<compile_context>
chip_gen: v6e
topology: v6e:2x2x1
jax: 0.10.0
libtpu: 0.0.40
codegen_flags: <defaults>
</compile_context>

<pallas_src>
import jax
import jax.numpy as jnp
from jax.experimental import pallas as pl
from jax.experimental.pallas import tpu as pltpu


# ------------------------------ fused kernel --------------------------------

def _wifi_fused_kernel(x_ref, tail_ref,
                       wih1_ref, whh1_ref, bias1_ref,
                       wih2_ref, whh2_ref, bias2_ref,
                       wih3_ref, whh3_ref, bias3_ref,
                       w1l_ref, w1t_ref, b1_ref,
                       w2_ref, b2_ref,
                       a1_ref, a2_ref,
                       out_ref):
    """Fused 3-layer LSTM + (BN-folded) Linear -> PReLU -> Linear -> PReLU.

    x_ref    : [B, T, D0]   batch-major LSTM inputs
    tail_ref : [B, S+1]     site embedding + floor
    wih*_ref : [Din, 4H]    (W_ih transposed),  whh*_ref: [H, 4H],  bias*: [1, 4H]
    w1l_ref  : [T*H2, hid]  BN-folded first Linear (LSTM-feature block)
    w1t_ref  : [S+1, hid]   BN-folded first Linear (site/floor block)
    w2_ref   : [hid, out]
    a1/a2    : (1,1) PReLU slopes in SMEM
    """
    B = x_ref.shape[0]
    T = x_ref.shape[1]
    H2 = whh3_ref.shape[0]

    def run_lstm(xs, wih_ref, whh_ref, bias_ref):
        H = whh_ref.shape[0]
        wih = wih_ref[...]                                     # hoisted weight loads
        whh = whh_ref[...]
        bias = jnp.broadcast_to(bias_ref[...], (B, 4 * H))     # hoisted broadcast
        # Input projections are recurrence-independent: precompute so only the
        # h @ W_hh matmul + nonlinearities sit on the serial chain.
        pres = [jnp.dot(x_t, wih, preferred_element_type=jnp.float32) + bias
                for x_t in xs]
        h = jnp.zeros((B, H), jnp.float32)
        c = jnp.zeros((B, H), jnp.float32)
        outs = []
        for pre in pres:                                       # T static -> unrolled
            gates = pre + jnp.dot(h, whh, preferred_element_type=jnp.float32)
            i = jax.nn.sigmoid(gates[:, 0 * H:1 * H])
            f = jax.nn.sigmoid(gates[:, 1 * H:2 * H])
            g = jnp.tanh(gates[:, 2 * H:3 * H])
            o = jax.nn.sigmoid(gates[:, 3 * H:4 * H])
            c = f * c + i * g
            h = o * jnp.tanh(c)
            outs.append(h)
        return outs

    xs = [x_ref[:, t, :] for t in range(T)]    # batch-major input, no transpose
    h1 = run_lstm(xs, wih1_ref, whh1_ref, bias1_ref)
    h2 = run_lstm(h1, wih2_ref, whh2_ref, bias2_ref)
    h3 = run_lstm(h2, wih3_ref, whh3_ref, bias3_ref)

    # Head with the [B, T*H2] flatten folded into the matmul:
    #   concat_t(h3[t]) @ W1_lstm  ==  sum_t h3[t] @ W1_lstm[t*H2:(t+1)*H2]
    # (matches PyTorch's reshape(-1, T*H2) layout exactly).
    hidden = (jnp.dot(tail_ref[...], w1t_ref[...], preferred_element_type=jnp.float32)
              + b1_ref[...])
    for t in range(T):
        hidden = hidden + jnp.dot(h3[t], w1l_ref[t * H2:(t + 1) * H2, :],
                                  preferred_element_type=jnp.float32)

    a1 = a1_ref[0, 0]
    hidden = jnp.where(hidden >= 0, hidden, a1 * hidden)
    y = jnp.dot(hidden, w2_ref[...], preferred_element_type=jnp.float32) + b2_ref[...]
    a2 = a2_ref[0, 0]
    out_ref[...] = jnp.where(y >= 0, y, a2 * y)


def _wifi_fused_call(x, tail, params):
    Bp = x.shape[0]
    out_dim = params["w2"].shape[1]
    vmem = pl.BlockSpec(memory_space=pltpu.MemorySpace.VMEM)
    smem = pl.BlockSpec(memory_space=pltpu.MemorySpace.SMEM)
    args = (x, tail,
            *params["l1"], *params["l2"], *params["l3"],
            params["w1_lstm"], params["w1_tail"], params["b1"],
            params["w2"], params["b2"],
            params["a1"], params["a2"])
    in_specs = [vmem] * (len(args) - 2) + [smem, smem]
    return pl.pallas_call(
        _wifi_fused_kernel,
        out_shape=jax.ShapeDtypeStruct((Bp, out_dim), jnp.float32),
        in_specs=in_specs,
        out_specs=vmem,
    )(*args)


# --------------------------- parameter construction -------------------------

def _uniform(key, shape, k):
    return jax.random.uniform(key, shape, jnp.float32, minval=-k, maxval=k)


def _lstm_params(key, din, h):
    k = 1.0 / float(h) ** 0.5
    k1, k2, k3, k4 = jax.random.split(key, 4)
    w_ih = _uniform(k1, (4 * h, din), k)       # PyTorch layout [4H, Din]
    w_hh = _uniform(k2, (4 * h, h), k)
    b_ih = _uniform(k3, (4 * h,), k)
    b_hh = _uniform(k4, (4 * h,), k)
    return (w_ih.T, w_hh.T, (b_ih + b_hh).reshape(1, 4 * h))


def _linear_params(key, din, dout):
    k = 1.0 / float(din) ** 0.5
    k1, k2 = jax.random.split(key)
    w = _uniform(k1, (dout, din), k)           # PyTorch layout [out, in]
    b = _uniform(k2, (dout,), k)
    return (w.T, b.reshape(1, dout))


def init_wifi_model(key, cfg):
    keys = jax.random.split(key, 8)
    T = cfg["seq_len"]
    S = cfg["site_embed_dim"]
    H1 = cfg["lstm1_hidden"]
    H2 = cfg["lstm_out_dim"]
    p = {}
    p["site_embed"] = jax.random.normal(keys[0], (cfg["site_vocab"], S), jnp.float32)
    p["bssid_embed"] = jax.random.normal(keys[1], (cfg["bssid_vocab"],
                                                   cfg["bssid_embed_dim"]), jnp.float32)
    p["l1"] = _lstm_params(keys[2], cfg["bssid_embed_dim"] + 2, H1)
    p["l2"] = _lstm_params(keys[3], H1, H1)
    p["l3"] = _lstm_params(keys[4], H1, H2)

    feat_dim = T * H2 + S + 1
    # BatchNorm1d (eval semantics, PyTorch default init / running stats).
    gamma = jnp.ones((feat_dim,), jnp.float32)
    beta = jnp.zeros((feat_dim,), jnp.float32)
    running_mean = jnp.zeros((feat_dim,), jnp.float32)
    running_var = jnp.ones((feat_dim,), jnp.float32)
    # TODO(synk): train-mode BatchNorm1d (batch statistics) is not replicated;
    # eval-mode BN is folded into the first Linear below.
    w1T, b1 = _linear_params(keys[5], feat_dim, cfg["hidden_dim"])   # [F,hid],[1,hid]
    scale = gamma / jnp.sqrt(running_var + 1e-5)
    shift = beta - running_mean * scale
    w1_folded = w1T * scale[:, None]
    b1_folded = b1 + shift.reshape(1, feat_dim) @ w1T
    p["w1_lstm"] = w1_folded[:T * H2]          # [T*H2, hidden]
    p["w1_tail"] = w1_folded[T * H2:]          # [S+1,  hidden]
    p["b1"] = b1_folded                        # [1, hidden]
    p["w2"], p["b2"] = _linear_params(keys[6], cfg["hidden_dim"], cfg["output_dim"])
    p["a1"] = jnp.full((1, 1), 0.25, jnp.float32)   # PReLU default slope
    p["a2"] = jnp.full((1, 1), 0.25, jnp.float32)
    return p


# --------------------------------- forward ----------------------------------

def wifi_model_forward(params, cfg, inputs):
    site, floor, wifi_bssid, wifi_rssi, wifi_freq, _wifi_last_seen_ts = inputs
    # wifi_last_seen_ts is accepted but unused, matching the reference forward.
    T = cfg["seq_len"]
    B = wifi_bssid.shape[0]

    # Embedding lookups + feature concat (JAX glue).
    bssid_vec = jnp.take(params["bssid_embed"], wifi_bssid, axis=0)   # [B, T, E]
    x = jnp.concatenate([bssid_vec,
                         wifi_rssi.reshape(-1, T, 1),
                         wifi_freq.reshape(-1, T, 1)], axis=2)        # [B, T, E+2]
    site_vec = jnp.take(params["site_embed"], site, axis=0)           # [B, S]
    tail = jnp.concatenate([site_vec,
                            floor.reshape(-1, 1).astype(jnp.float32)], axis=1)

    # Pad batch to a sublane multiple (8): padded rows are ignored on output.
    Bp = ((B + 7) // 8) * 8
    if Bp != B:
        x = jnp.pad(x, ((0, Bp - B), (0, 0), (0, 0)))
        tail = jnp.pad(tail, ((0, Bp - B), (0, 0)))

    out = _wifi_fused_call(x.astype(jnp.float32), tail.astype(jnp.float32), params)
    return out[:B]


# ----------------------------------- main ------------------------------------

if __name__ == "__main__":
    cfg = dict(
        seq_len=8,
        site_embed_dim=8,
        bssid_embed_dim=16,
        lstm1_hidden=32,
        lstm_out_dim=16,
        hidden_dim=64,
        output_dim=32,
        site_vocab=205,
        bssid_vocab=1000,
    )
    B = 2

    key = jax.random.PRNGKey(0)
    k_par, k_site, k_floor, k_bssid, k_rssi, k_freq, k_ts = jax.random.split(key, 7)

    params = init_wifi_model(k_par, cfg)

    site = jax.random.randint(k_site, (B,), 0, cfg["site_vocab"], jnp.int32)
    floor = jax.random.randint(k_floor, (B,), -2, 8).astype(jnp.float32)
    wifi_bssid = jax.random.randint(k_bssid, (B, cfg["seq_len"]), 0,
                                    cfg["bssid_vocab"], jnp.int32)
    wifi_rssi = jax.random.uniform(k_rssi, (B, cfg["seq_len"]), jnp.float32,
                                   minval=-90.0, maxval=-30.0)
    wifi_freq = jax.random.uniform(k_freq, (B, cfg["seq_len"]), jnp.float32,
                                   minval=2.4, maxval=5.8)
    wifi_last_seen_ts = jax.random.uniform(k_ts, (B, cfg["seq_len"]), jnp.float32)

    inputs = (site, floor, wifi_bssid, wifi_rssi, wifi_freq, wifi_last_seen_ts)

    out = wifi_model_forward(params, cfg, inputs)
    out = jax.block_until_ready(out)
    assert out.shape == (B, cfg["output_dim"]), out.shape
    assert jnp.all(jnp.isfinite(out))
    print("KERNEL_OK")
</pallas_src>

<mosaic_0001>
module attributes {stable_mosaic.version = 11 : i64} {
  func.func @_wifi_fused_kernel(%arg0: memref<8x8x18xf32, #tpu.memory_space<vmem>>, %arg1: memref<8x9xf32, #tpu.memory_space<vmem>>, %arg2: memref<18x128xf32, #tpu.memory_space<vmem>>, %arg3: memref<32x128xf32, #tpu.memory_space<vmem>>, %arg4: memref<1x128xf32, #tpu.memory_space<vmem>>, %arg5: memref<32x128xf32, #tpu.memory_space<vmem>>, %arg6: memref<32x128xf32, #tpu.memory_space<vmem>>, %arg7: memref<1x128xf32, #tpu.memory_space<vmem>>, %arg8: memref<32x64xf32, #tpu.memory_space<vmem>>, %arg9: memref<16x64xf32, #tpu.memory_space<vmem>>, %arg10: memref<1x64xf32, #tpu.memory_space<vmem>>, %arg11: memref<128x64xf32, #tpu.memory_space<vmem>>, %arg12: memref<9x64xf32, #tpu.memory_space<vmem>>, %arg13: memref<1x64xf32, #tpu.memory_space<vmem>>, %arg14: memref<64x32xf32, #tpu.memory_space<vmem>>, %arg15: memref<1x32xf32, #tpu.memory_space<vmem>>, %arg16: memref<1x1xf32, #tpu.memory_space<smem>>, %arg17: memref<1x1xf32, #tpu.memory_space<smem>>, %arg18: memref<8x32xf32, #tpu.memory_space<vmem>>) attributes {dimension_semantics = [], scalar_prefetch = 0 : i64, scratch_operands = 0 : i64, tpu.core_type = #tpu.core_type<tc>} {
    %c0 = arith.constant 0 : index
    %c0_0 = arith.constant 0 : index
    %c0_1 = arith.constant 0 : index
    %0 = vector.load %arg0[%c0, %c0_0, %c0_1] : memref<8x8x18xf32, #tpu.memory_space<vmem>>, vector<8x1x18xf32>
    %1 = vector.shape_cast %0 : vector<8x1x18xf32> to vector<8x18xf32>
    %c0_2 = arith.constant 0 : index
    %c1 = arith.constant 1 : index
    %c0_3 = arith.constant 0 : index
    %2 = vector.load %arg0[%c0_2, %c1, %c0_3] : memref<8x8x18xf32, #tpu.memory_space<vmem>>, vector<8x1x18xf32>
    %3 = vector.shape_cast %2 : vector<8x1x18xf32> to vector<8x18xf32>
    %c0_4 = arith.constant 0 : index
    %c2 = arith.constant 2 : index
    %c0_5 = arith.constant 0 : index
    %4 = vector.load %arg0[%c0_4, %c2, %c0_5] : memref<8x8x18xf32, #tpu.memory_space<vmem>>, vector<8x1x18xf32>
    %5 = vector.shape_cast %4 : vector<8x1x18xf32> to vector<8x18xf32>
    %c0_6 = arith.constant 0 : index
    %c3 = arith.constant 3 : index
    %c0_7 = arith.constant 0 : index
    %6 = vector.load %arg0[%c0_6, %c3, %c0_7] : memref<8x8x18xf32, #tpu.memory_space<vmem>>, vector<8x1x18xf32>
    %7 = vector.shape_cast %6 : vector<8x1x18xf32> to vector<8x18xf32>
    %c0_8 = arith.constant 0 : index
    %c4 = arith.constant 4 : index
    %c0_9 = arith.constant 0 : index
    %8 = vector.load %arg0[%c0_8, %c4, %c0_9] : memref<8x8x18xf32, #tpu.memory_space<vmem>>, vector<8x1x18xf32>
    %9 = vector.shape_cast %8 : vector<8x1x18xf32> to vector<8x18xf32>
    %c0_10 = arith.constant 0 : index
    %c5 = arith.constant 5 : index
    %c0_11 = arith.constant 0 : index
    %10 = vector.load %arg0[%c0_10, %c5, %c0_11] : memref<8x8x18xf32, #tpu.memory_space<vmem>>, vector<8x1x18xf32>
    %11 = vector.shape_cast %10 : vector<8x1x18xf32> to vector<8x18xf32>
    %c0_12 = arith.constant 0 : index
    %c6 = arith.constant 6 : index
    %c0_13 = arith.constant 0 : index
    %12 = vector.load %arg0[%c0_12, %c6, %c0_13] : memref<8x8x18xf32, #tpu.memory_space<vmem>>, vector<8x1x18xf32>
    %13 = vector.shape_cast %12 : vector<8x1x18xf32> to vector<8x18xf32>
    %c0_14 = arith.constant 0 : index
    %c7 = arith.constant 7 : index
    %c0_15 = arith.constant 0 : index
    %14 = vector.load %arg0[%c0_14, %c7, %c0_15] : memref<8x8x18xf32, #tpu.memory_space<vmem>>, vector<8x1x18xf32>
    %15 = vector.shape_cast %14 : vector<8x1x18xf32> to vector<8x18xf32>
    %c0_16 = arith.constant 0 : index
    %c0_17 = arith.constant 0 : index
    %16 = vector.load %arg2[%c0_16, %c0_17] : memref<18x128xf32, #tpu.memory_space<vmem>>, vector<18x128xf32>
    %c0_18 = arith.constant 0 : index
    %c0_19 = arith.constant 0 : index
    %17 = vector.load %arg3[%c0_18, %c0_19] : memref<32x128xf32, #tpu.memory_space<vmem>>, vector<32x128xf32>
    %c0_20 = arith.constant 0 : index
    %c0_21 = arith.constant 0 : index
    %18 = vector.load %arg4[%c0_20, %c0_21] : memref<1x128xf32, #tpu.memory_space<vmem>>, vector<1x128xf32>
    %19 = vector.shape_cast %18 : vector<1x128xf32> to vector<1x128xf32>
    %20 = vector.broadcast %19 : vector<1x128xf32> to vector<8x128xf32>
    %cst = arith.constant dense<0.000000e+00> : vector<8x128xf32>
    %21 = tpu.matmul %1, %16, %cst {dimension_numbers = #tpu.dot_dimension_numbers<[1], [0], [0], [1], [0, 0, 1, 1], [], []>} : vector<8x18xf32>, vector<18x128xf32>, vector<8x128xf32> -> vector<8x128xf32>
    %22 = arith.addf %21, %20 : vector<8x128xf32>
    %cst_22 = arith.constant dense<0.000000e+00> : vector<8x128xf32>
    %23 = tpu.matmul %3, %16, %cst_22 {dimension_numbers = #tpu.dot_dimension_numbers<[1], [0], [0], [1], [0, 0, 1, 1], [], []>} : vector<8x18xf32>, vector<18x128xf32>, vector<8x128xf32> -> vector<8x128xf32>
    %24 = arith.addf %23, %20 : vector<8x128xf32>
    %cst_23 = arith.constant dense<0.000000e+00> : vector<8x128xf32>
    %25 = tpu.matmul %5, %16, %cst_23 {dimension_numbers = #tpu.dot_dimension_numbers<[1], [0], [0], [1], [0, 0, 1, 1], [], []>} : vector<8x18xf32>, vector<18x128xf32>, vector<8x128xf32> -> vector<8x128xf32>
    %26 = arith.addf %25, %20 : vector<8x128xf32>
    %cst_24 = arith.constant dense<0.000000e+00> : vector<8x128xf32>
    %27 = tpu.matmul %7, %16, %cst_24 {dimension_numbers = #tpu.dot_dimension_numbers<[1], [0], [0], [1], [0, 0, 1, 1], [], []>} : vector<8x18xf32>, vector<18x128xf32>, vector<8x128xf32> -> vector<8x128xf32>
    %28 = arith.addf %27, %20 : vector<8x128xf32>
    %cst_25 = arith.constant dense<0.000000e+00> : vector<8x128xf32>
    %29 = tpu.matmul %9, %16, %cst_25 {dimension_numbers = #tpu.dot_dimension_numbers<[1], [0], [0], [1], [0, 0, 1, 1], [], []>} : vector<8x18xf32>, vector<18x128xf32>, vector<8x128xf32> -> vector<8x128xf32>
    %30 = arith.addf %29, %20 : vector<8x128xf32>
    %cst_26 = arith.constant dense<0.000000e+00> : vector<8x128xf32>
    %31 = tpu.matmul %11, %16, %cst_26 {dimension_numbers = #tpu.dot_dimension_numbers<[1], [0], [0], [1], [0, 0, 1, 1], [], []>} : vector<8x18xf32>, vector<18x128xf32>, vector<8x128xf32> -> vector<8x128xf32>
    %32 = arith.addf %31, %20 : vector<8x128xf32>
    %cst_27 = arith.constant dense<0.000000e+00> : vector<8x128xf32>
    %33 = tpu.matmul %13, %16, %cst_27 {dimension_numbers = #tpu.dot_dimension_numbers<[1], [0], [0], [1], [0, 0, 1, 1], [], []>} : vector<8x18xf32>, vector<18x128xf32>, vector<8x128xf32> -> vector<8x128xf32>
    %34 = arith.addf %33, %20 : vector<8x128xf32>
    %cst_28 = arith.constant dense<0.000000e+00> : vector<8x128xf32>
    %35 = tpu.matmul %15, %16, %cst_28 {dimension_numbers = #tpu.dot_dimension_numbers<[1], [0], [0], [1], [0, 0, 1, 1], [], []>} : vector<8x18xf32>, vector<18x128xf32>, vector<8x128xf32> -> vector<8x128xf32>
    %36 = arith.addf %35, %20 : vector<8x128xf32>
    %cst_29 = arith.constant 0.000000e+00 : f32
    %37 = vector.broadcast %cst_29 : f32 to vector<8x32xf32>
    %cst_30 = arith.constant 0.000000e+00 : f32
    %38 = vector.broadcast %cst_30 : f32 to vector<8x32xf32>
    %cst_31 = arith.constant dense<0.000000e+00> : vector<8x128xf32>
    %39 = tpu.matmul %37, %17, %cst_31 {dimension_numbers = #tpu.dot_dimension_numbers<[1], [0], [0], [1], [0, 0, 1, 1], [], []>} : vector<8x32xf32>, vector<32x128xf32>, vector<8x128xf32> -> vector<8x128xf32>
    %40 = arith.addf %22, %39 : vector<8x128xf32>
    %41 = vector.extract_strided_slice %40 {offsets = [0, 0], sizes = [8, 32], strides = [1, 1]} : vector<8x128xf32> to vector<8x32xf32>
    %42 = arith.negf %41 : vector<8x32xf32>
    %43 = math.exp %42 : vector<8x32xf32>
    %cst_32 = arith.constant 1.000000e+00 : f32
    %44 = vector.broadcast %cst_32 : f32 to vector<8x32xf32>
    %45 = arith.addf %44, %43 : vector<8x32xf32>
    %46 = arith.divf %44, %45 : vector<8x32xf32>
    %47 = vector.extract_strided_slice %40 {offsets = [0, 32], sizes = [8, 32], strides = [1, 1]} : vector<8x128xf32> to vector<8x32xf32>
    %48 = arith.negf %47 : vector<8x32xf32>
    %49 = math.exp %48 : vector<8x32xf32>
    %cst_33 = arith.constant 1.000000e+00 : f32
    %50 = vector.broadcast %cst_33 : f32 to vector<8x32xf32>
    %51 = arith.addf %50, %49 : vector<8x32xf32>
    %52 = arith.divf %50, %51 : vector<8x32xf32>
    %53 = vector.extract_strided_slice %40 {offsets = [0, 64], sizes = [8, 32], strides = [1, 1]} : vector<8x128xf32> to vector<8x32xf32>
    %54 = math.tanh %53 : vector<8x32xf32>
    %55 = vector.extract_strided_slice %40 {offsets = [0, 96], sizes = [8, 32], strides = [1, 1]} : vector<8x128xf32> to vector<8x32xf32>
    %56 = arith.negf %55 : vector<8x32xf32>
    %57 = math.exp %56 : vector<8x32xf32>
    %cst_34 = arith.constant 1.000000e+00 : f32
    %58 = vector.broadcast %cst_34 : f32 to vector<8x32xf32>
    %59 = arith.addf %58, %57 : vector<8x32xf32>
    %60 = arith.divf %58, %59 : vector<8x32xf32>
    %61 = arith.mulf %52, %38 : vector<8x32xf32>
    %62 = arith.mulf %46, %54 : vector<8x32xf32>
    %63 = arith.addf %61, %62 : vector<8x32xf32>
    %64 = math.tanh %63 : vector<8x32xf32>
    %65 = arith.mulf %60, %64 : vector<8x32xf32>
    %cst_35 = arith.constant dense<0.000000e+00> : vector<8x128xf32>
    %66 = tpu.matmul %65, %17, %cst_35 {dimension_numbers = #tpu.dot_dimension_numbers<[1], [0], [0], [1], [0, 0, 1, 1], [], []>} : vector<8x32xf32>, vector<32x128xf32>, vector<8x128xf32> -> vector<8x128xf32>
    %67 = arith.addf %24, %66 : vector<8x128xf32>
    %68 = vector.extract_strided_slice %67 {offsets = [0, 0], sizes = [8, 32], strides = [1, 1]} : vector<8x128xf32> to vector<8x32xf32>
    %69 = arith.negf %68 : vector<8x32xf32>
    %70 = math.exp %69 : vector<8x32xf32>
    %cst_36 = arith.constant 1.000000e+00 : f32
    %71 = vector.broadcast %cst_36 : f32 to vector<8x32xf32>
    %72 = arith.addf %71, %70 : vector<8x32xf32>
    %73 = arith.divf %71, %72 : vector<8x32xf32>
    %74 = vector.extract_strided_slice %67 {offsets = [0, 32], sizes = [8, 32], strides = [1, 1]} : vector<8x128xf32> to vector<8x32xf32>
    %75 = arith.negf %74 : vector<8x32xf32>
    %76 = math.exp %75 : vector<8x32xf32>
    %cst_37 = arith.constant 1.000000e+00 : f32
    %77 = vector.broadcast %cst_37 : f32 to vector<8x32xf32>
    %78 = arith.addf %77, %76 : vector<8x32xf32>
    %79 = arith.divf %77, %78 : vector<8x32xf32>
    %80 = vector.extract_strided_slice %67 {offsets = [0, 64], sizes = [8, 32], strides = [1, 1]} : vector<8x128xf32> to vector<8x32xf32>
    %81 = math.tanh %80 : vector<8x32xf32>
    %82 = vector.extract_strided_slice %67 {offsets = [0, 96], sizes = [8, 32], strides = [1, 1]} : vector<8x128xf32> to vector<8x32xf32>
    %83 = arith.negf %82 : vector<8x32xf32>
    %84 = math.exp %83 : vector<8x32xf32>
    %cst_38 = arith.constant 1.000000e+00 : f32
    %85 = vector.broadcast %cst_38 : f32 to vector<8x32xf32>
    %86 = arith.addf %85, %84 : vector<8x32xf32>
    %87 = arith.divf %85, %86 : vector<8x32xf32>
    %88 = arith.mulf %79, %63 : vector<8x32xf32>
    %89 = arith.mulf %73, %81 : vector<8x32xf32>
    %90 = arith.addf %88, %89 : vector<8x32xf32>
    %91 = math.tanh %90 : vector<8x32xf32>
    %92 = arith.mulf %87, %91 : vector<8x32xf32>
    %cst_39 = arith.constant dense<0.000000e+00> : vector<8x128xf32>
    %93 = tpu.matmul %92, %17, %cst_39 {dimension_numbers = #tpu.dot_dimension_numbers<[1], [0], [0], [1], [0, 0, 1, 1], [], []>} : vector<8x32xf32>, vector<32x128xf32>, vector<8x128xf32> -> vector<8x128xf32>
    %94 = arith.addf %26, %93 : vector<8x128xf32>
    %95 = vector.extract_strided_slice %94 {offsets = [0, 0], sizes = [8, 32], strides = [1, 1]} : vector<8x128xf32> to vector<8x32xf32>
    %96 = arith.negf %95 : vector<8x32xf32>
    %97 = math.exp %96 : vector<8x32xf32>
    %cst_40 = arith.constant 1.000000e+00 : f32
    %98 = vector.broadcast %cst_40 : f32 to vector<8x32xf32>
    %99 = arith.addf %98, %97 : vector<8x32xf32>
    %100 = arith.divf %98, %99 : vector<8x32xf32>
    %101 = vector.extract_strided_slice %94 {offsets = [0, 32], sizes = [8, 32], strides = [1, 1]} : vector<8x128xf32> to vector<8x32xf32>
    %102 = arith.negf %101 : vector<8x32xf32>
    %103 = math.exp %102 : vector<8x32xf32>
    %cst_41 = arith.constant 1.000000e+00 : f32
    %104 = vector.broadcast %cst_41 : f32 to vector<8x32xf32>
    %105 = arith.addf %104, %103 : vector<8x32xf32>
    %106 = arith.divf %104, %105 : vector<8x32xf32>
    %107 = vector.extract_strided_slice %94 {offsets = [0, 64], sizes = [8, 32], strides = [1, 1]} : vector<8x128xf32> to vector<8x32xf32>
    %108 = math.tanh %107 : vector<8x32xf32>
    %109 = vector.extract_strided_slice %94 {offsets = [0, 96], sizes = [8, 32], strides = [1, 1]} : vector<8x128xf32> to vector<8x32xf32>
    %110 = arith.negf %109 : vector<8x32xf32>
    %111 = math.exp %110 : vector<8x32xf32>
    %cst_42 = arith.constant 1.000000e+00 : f32
    %112 = vector.broadcast %cst_42 : f32 to vector<8x32xf32>
    %113 = arith.addf %112, %111 : vector<8x32xf32>
    %114 = arith.divf %112, %113 : vector<8x32xf32>
    %115 = arith.mulf %106, %90 : vector<8x32xf32>
    %116 = arith.mulf %100, %108 : vector<8x32xf32>
    %117 = arith.addf %115, %116 : vector<8x32xf32>
    %118 = math.tanh %117 : vector<8x32xf32>
    %119 = arith.mulf %114, %118 : vector<8x32xf32>
    %cst_43 = arith.constant dense<0.000000e+00> : vector<8x128xf32>
    %120 = tpu.matmul %119, %17, %cst_43 {dimension_numbers = #tpu.dot_dimension_numbers<[1], [0], [0], [1], [0, 0, 1, 1], [], []>} : vector<8x32xf32>, vector<32x128xf32>, vector<8x128xf32> -> vector<8x128xf32>
    %121 = arith.addf %28, %120 : vector<8x128xf32>
    %122 = vector.extract_strided_slice %121 {offsets = [0, 0], sizes = [8, 32], strides = [1, 1]} : vector<8x128xf32> to vector<8x32xf32>
    %123 = arith.negf %122 : vector<8x32xf32>
    %124 = math.exp %123 : vector<8x32xf32>
    %cst_44 = arith.constant 1.000000e+00 : f32
    %125 = vector.broadcast %cst_44 : f32 to vector<8x32xf32>
    %126 = arith.addf %125, %124 : vector<8x32xf32>
    %127 = arith.divf %125, %126 : vector<8x32xf32>
    %128 = vector.extract_strided_slice %121 {offsets = [0, 32], sizes = [8, 32], strides = [1, 1]} : vector<8x128xf32> to vector<8x32xf32>
    %129 = arith.negf %128 : vector<8x32xf32>
    %130 = math.exp %129 : vector<8x32xf32>
    %cst_45 = arith.constant 1.000000e+00 : f32
    %131 = vector.broadcast %cst_45 : f32 to vector<8x32xf32>
    %132 = arith.addf %131, %130 : vector<8x32xf32>
    %133 = arith.divf %131, %132 : vector<8x32xf32>
    %134 = vector.extract_strided_slice %121 {offsets = [0, 64], sizes = [8, 32], strides = [1, 1]} : vector<8x128xf32> to vector<8x32xf32>
    %135 = math.tanh %134 : vector<8x32xf32>
    %136 = vector.extract_strided_slice %121 {offsets = [0, 96], sizes = [8, 32], strides = [1, 1]} : vector<8x128xf32> to vector<8x32xf32>
    %137 = arith.negf %136 : vector<8x32xf32>
    %138 = math.exp %137 : vector<8x32xf32>
    %cst_46 = arith.constant 1.000000e+00 : f32
    %139 = vector.broadcast %cst_46 : f32 to vector<8x32xf32>
    %140 = arith.addf %139, %138 : vector<8x32xf32>
    %141 = arith.divf %139, %140 : vector<8x32xf32>
    %142 = arith.mulf %133, %117 : vector<8x32xf32>
    %143 = arith.mulf %127, %135 : vector<8x32xf32>
    %144 = arith.addf %142, %143 : vector<8x32xf32>
    %145 = math.tanh %144 : vector<8x32xf32>
    %146 = arith.mulf %141, %145 : vector<8x32xf32>
    %cst_47 = arith.constant dense<0.000000e+00> : vector<8x128xf32>
    %147 = tpu.matmul %146, %17, %cst_47 {dimension_numbers = #tpu.dot_dimension_numbers<[1], [0], [0], [1], [0, 0, 1, 1], [], []>} : vector<8x32xf32>, vector<32x128xf32>, vector<8x128xf32> -> vector<8x128xf32>
    %148 = arith.addf %30, %147 : vector<8x128xf32>
    %149 = vector.extract_strided_slice %148 {offsets = [0, 0], sizes = [8, 32], strides = [1, 1]} : vector<8x128xf32> to vector<8x32xf32>
    %150 = arith.negf %149 : vector<8x32xf32>
    %151 = math.exp %150 : vector<8x32xf32>
    %cst_48 = arith.constant 1.000000e+00 : f32
    %152 = vector.broadcast %cst_48 : f32 to vector<8x32xf32>
    %153 = arith.addf %152, %151 : vector<8x32xf32>
    %154 = arith.divf %152, %153 : vector<8x32xf32>
    %155 = vector.extract_strided_slice %148 {offsets = [0, 32], sizes = [8, 32], strides = [1, 1]} : vector<8x128xf32> to vector<8x32xf32>
    %156 = arith.negf %155 : vector<8x32xf32>
    %157 = math.exp %156 : vector<8x32xf32>
    %cst_49 = arith.constant 1.000000e+00 : f32
    %158 = vector.broadcast %cst_49 : f32 to vector<8x32xf32>
    %159 = arith.addf %158, %157 : vector<8x32xf32>
    %160 = arith.divf %158, %159 : vector<8x32xf32>
    %161 = vector.extract_strided_slice %148 {offsets = [0, 64], sizes = [8, 32], strides = [1, 1]} : vector<8x128xf32> to vector<8x32xf32>
    %162 = math.tanh %161 : vector<8x32xf32>
    %163 = vector.extract_strided_slice %148 {offsets = [0, 96], sizes = [8, 32], strides = [1, 1]} : vector<8x128xf32> to vector<8x32xf32>
    %164 = arith.negf %163 : vector<8x32xf32>
    %165 = math.exp %164 : vector<8x32xf32>
    %cst_50 = arith.constant 1.000000e+00 : f32
    %166 = vector.broadcast %cst_50 : f32 to vector<8x32xf32>
    %167 = arith.addf %166, %165 : vector<8x32xf32>
    %168 = arith.divf %166, %167 : vector<8x32xf32>
    %169 = arith.mulf %160, %144 : vector<8x32xf32>
    %170 = arith.mulf %154, %162 : vector<8x32xf32>
    %171 = arith.addf %169, %170 : vector<8x32xf32>
    %172 = math.tanh %171 : vector<8x32xf32>
    %173 = arith.mulf %168, %172 : vector<8x32xf32>
    %cst_51 = arith.constant dense<0.000000e+00> : vector<8x128xf32>
    %174 = tpu.matmul %173, %17, %cst_51 {dimension_numbers = #tpu.dot_dimension_numbers<[1], [0], [0], [1], [0, 0, 1, 1], [], []>} : vector<8x32xf32>, vector<32x128xf32>, vector<8x128xf32> -> vector<8x128xf32>
    %175 = arith.addf %32, %174 : vector<8x128xf32>
    %176 = vector.extract_strided_slice %175 {offsets = [0, 0], sizes = [8, 32], strides = [1, 1]} : vector<8x128xf32> to vector<8x32xf32>
    %177 = arith.negf %176 : vector<8x32xf32>
    %178 = math.exp %177 : vector<8x32xf32>
    %cst_52 = arith.constant 1.000000e+00 : f32
    %179 = vector.broadcast %cst_52 : f32 to vector<8x32xf32>
    %180 = arith.addf %179, %178 : vector<8x32xf32>
    %181 = arith.divf %179, %180 : vector<8x32xf32>
    %182 = vector.extract_strided_slice %175 {offsets = [0, 32], sizes = [8, 32], strides = [1, 1]} : vector<8x128xf32> to vector<8x32xf32>
    %183 = arith.negf %182 : vector<8x32xf32>
    %184 = math.exp %183 : vector<8x32xf32>
    %cst_53 = arith.constant 1.000000e+00 : f32
    %185 = vector.broadcast %cst_53 : f32 to vector<8x32xf32>
    %186 = arith.addf %185, %184 : vector<8x32xf32>
    %187 = arith.divf %185, %186 : vector<8x32xf32>
    %188 = vector.extract_strided_slice %175 {offsets = [0, 64], sizes = [8, 32], strides = [1, 1]} : vector<8x128xf32> to vector<8x32xf32>
    %189 = math.tanh %188 : vector<8x32xf32>
    %190 = vector.extract_strided_slice %175 {offsets = [0, 96], sizes = [8, 32], strides = [1, 1]} : vector<8x128xf32> to vector<8x32xf32>
    %191 = arith.negf %190 : vector<8x32xf32>
    %192 = math.exp %191 : vector<8x32xf32>
    %cst_54 = arith.constant 1.000000e+00 : f32
    %193 = vector.broadcast %cst_54 : f32 to vector<8x32xf32>
    %194 = arith.addf %193, %192 : vector<8x32xf32>
    %195 = arith.divf %193, %194 : vector<8x32xf32>
    %196 = arith.mulf %187, %171 : vector<8x32xf32>
    %197 = arith.mulf %181, %189 : vector<8x32xf32>
    %198 = arith.addf %196, %197 : vector<8x32xf32>
    %199 = math.tanh %198 : vector<8x32xf32>
    %200 = arith.mulf %195, %199 : vector<8x32xf32>
    %cst_55 = arith.constant dense<0.000000e+00> : vector<8x128xf32>
    %201 = tpu.matmul %200, %17, %cst_55 {dimension_numbers = #tpu.dot_dimension_numbers<[1], [0], [0], [1], [0, 0, 1, 1], [], []>} : vector<8x32xf32>, vector<32x128xf32>, vector<8x128xf32> -> vector<8x128xf32>
    %202 = arith.addf %34, %201 : vector<8x128xf32>
    %203 = vector.extract_strided_slice %202 {offsets = [0, 0], sizes = [8, 32], strides = [1, 1]} : vector<8x128xf32> to vector<8x32xf32>
    %204 = arith.negf %203 : vector<8x32xf32>
    %205 = math.exp %204 : vector<8x32xf32>
    %cst_56 = arith.constant 1.000000e+00 : f32
    %206 = vector.broadcast %cst_56 : f32 to vector<8x32xf32>
    %207 = arith.addf %206, %205 : vector<8x32xf32>
    %208 = arith.divf %206, %207 : vector<8x32xf32>
    %209 = vector.extract_strided_slice %202 {offsets = [0, 32], sizes = [8, 32], strides = [1, 1]} : vector<8x128xf32> to vector<8x32xf32>
    %210 = arith.negf %209 : vector<8x32xf32>
    %211 = math.exp %210 : vector<8x32xf32>
    %cst_57 = arith.constant 1.000000e+00 : f32
    %212 = vector.broadcast %cst_57 : f32 to vector<8x32xf32>
    %213 = arith.addf %212, %211 : vector<8x32xf32>
    %214 = arith.divf %212, %213 : vector<8x32xf32>
    %215 = vector.extract_strided_slice %202 {offsets = [0, 64], sizes = [8, 32], strides = [1, 1]} : vector<8x128xf32> to vector<8x32xf32>
    %216 = math.tanh %215 : vector<8x32xf32>
    %217 = vector.extract_strided_slice %202 {offsets = [0, 96], sizes = [8, 32], strides = [1, 1]} : vector<8x128xf32> to vector<8x32xf32>
    %218 = arith.negf %217 : vector<8x32xf32>
    %219 = math.exp %218 : vector<8x32xf32>
    %cst_58 = arith.constant 1.000000e+00 : f32
    %220 = vector.broadcast %cst_58 : f32 to vector<8x32xf32>
    %221 = arith.addf %220, %219 : vector<8x32xf32>
    %222 = arith.divf %220, %221 : vector<8x32xf32>
    %223 = arith.mulf %214, %198 : vector<8x32xf32>
    %224 = arith.mulf %208, %216 : vector<8x32xf32>
    %225 = arith.addf %223, %224 : vector<8x32xf32>
    %226 = math.tanh %225 : vector<8x32xf32>
    %227 = arith.mulf %222, %226 : vector<8x32xf32>
    %cst_59 = arith.constant dense<0.000000e+00> : vector<8x128xf32>
    %228 = tpu.matmul %227, %17, %cst_59 {dimension_numbers = #tpu.dot_dimension_numbers<[1], [0], [0], [1], [0, 0, 1, 1], [], []>} : vector<8x32xf32>, vector<32x128xf32>, vector<8x128xf32> -> vector<8x128xf32>
    %229 = arith.addf %36, %228 : vector<8x128xf32>
    %230 = vector.extract_strided_slice %229 {offsets = [0, 0], sizes = [8, 32], strides = [1, 1]} : vector<8x128xf32> to vector<8x32xf32>
    %231 = arith.negf %230 : vector<8x32xf32>
    %232 = math.exp %231 : vector<8x32xf32>
    %cst_60 = arith.constant 1.000000e+00 : f32
    %233 = vector.broadcast %cst_60 : f32 to vector<8x32xf32>
    %234 = arith.addf %233, %232 : vector<8x32xf32>
    %235 = arith.divf %233, %234 : vector<8x32xf32>
    %236 = vector.extract_strided_slice %229 {offsets = [0, 32], sizes = [8, 32], strides = [1, 1]} : vector<8x128xf32> to vector<8x32xf32>
    %237 = arith.negf %236 : vector<8x32xf32>
    %238 = math.exp %237 : vector<8x32xf32>
    %cst_61 = arith.constant 1.000000e+00 : f32
    %239 = vector.broadcast %cst_61 : f32 to vector<8x32xf32>
    %240 = arith.addf %239, %238 : vector<8x32xf32>
    %241 = arith.divf %239, %240 : vector<8x32xf32>
    %242 = vector.extract_strided_slice %229 {offsets = [0, 64], sizes = [8, 32], strides = [1, 1]} : vector<8x128xf32> to vector<8x32xf32>
    %243 = math.tanh %242 : vector<8x32xf32>
    %244 = vector.extract_strided_slice %229 {offsets = [0, 96], sizes = [8, 32], strides = [1, 1]} : vector<8x128xf32> to vector<8x32xf32>
    %245 = arith.negf %244 : vector<8x32xf32>
    %246 = math.exp %245 : vector<8x32xf32>
    %cst_62 = arith.constant 1.000000e+00 : f32
    %247 = vector.broadcast %cst_62 : f32 to vector<8x32xf32>
    %248 = arith.addf %247, %246 : vector<8x32xf32>
    %249 = arith.divf %247, %248 : vector<8x32xf32>
    %250 = arith.mulf %241, %225 : vector<8x32xf32>
    %251 = arith.mulf %235, %243 : vector<8x32xf32>
    %252 = arith.addf %250, %251 : vector<8x32xf32>
    %253 = math.tanh %252 : vector<8x32xf32>
    %254 = arith.mulf %249, %253 : vector<8x32xf32>
    %c0_63 = arith.constant 0 : index
    %c0_64 = arith.constant 0 : index
    %255 = vector.load %arg5[%c0_63, %c0_64] : memref<32x128xf32, #tpu.memory_space<vmem>>, vector<32x128xf32>
    %c0_65 = arith.constant 0 : index
    %c0_66 = arith.constant 0 : index
    %256 = vector.load %arg6[%c0_65, %c0_66] : memref<32x128xf32, #tpu.memory_space<vmem>>, vector<32x128xf32>
    %c0_67 = arith.constant 0 : index
    %c0_68 = arith.constant 0 : index
    %257 = vector.load %arg7[%c0_67, %c0_68] : memref<1x128xf32, #tpu.memory_space<vmem>>, vector<1x128xf32>
    %258 = vector.shape_cast %257 : vector<1x128xf32> to vector<1x128xf32>
    %259 = vector.broadcast %258 : vector<1x128xf32> to vector<8x128xf32>
    %cst_69 = arith.constant dense<0.000000e+00> : vector<8x128xf32>
    %260 = tpu.matmul %65, %255, %cst_69 {dimension_numbers = #tpu.dot_dimension_numbers<[1], [0], [0], [1], [0, 0, 1, 1], [], []>} : vector<8x32xf32>, vector<32x128xf32>, vector<8x128xf32> -> vector<8x128xf32>
    %261 = arith.addf %260, %259 : vector<8x128xf32>
    %cst_70 = arith.constant dense<0.000000e+00> : vector<8x128xf32>
    %262 = tpu.matmul %92, %255, %cst_70 {dimension_numbers = #tpu.dot_dimension_numbers<[1], [0], [0], [1], [0, 0, 1, 1], [], []>} : vector<8x32xf32>, vector<32x128xf32>, vector<8x128xf32> -> vector<8x128xf32>
    %263 = arith.addf %262, %259 : vector<8x128xf32>
    %cst_71 = arith.constant dense<0.000000e+00> : vector<8x128xf32>
    %264 = tpu.matmul %119, %255, %cst_71 {dimension_numbers = #tpu.dot_dimension_numbers<[1], [0], [0], [1], [0, 0, 1, 1], [], []>} : vector<8x32xf32>, vector<32x128xf32>, vector<8x128xf32> -> vector<8x128xf32>
    %265 = arith.addf %264, %259 : vector<8x128xf32>
    %cst_72 = arith.constant dense<0.000000e+00> : vector<8x128xf32>
    %266 = tpu.matmul %146, %255, %cst_72 {dimension_numbers = #tpu.dot_dimension_numbers<[1], [0], [0], [1], [0, 0, 1, 1], [], []>} : vector<8x32xf32>, vector<32x128xf32>, vector<8x128xf32> -> vector<8x128xf32>
    %267 = arith.addf %266, %259 : vector<8x128xf32>
    %cst_73 = arith.constant dense<0.000000e+00> : vector<8x128xf32>
    %268 = tpu.matmul %173, %255, %cst_73 {dimension_numbers = #tpu.dot_dimension_numbers<[1], [0], [0], [1], [0, 0, 1, 1], [], []>} : vector<8x32xf32>, vector<32x128xf32>, vector<8x128xf32> -> vector<8x128xf32>
    %269 = arith.addf %268, %259 : vector<8x128xf32>
    %cst_74 = arith.constant dense<0.000000e+00> : vector<8x128xf32>
    %270 = tpu.matmul %200, %255, %cst_74 {dimension_numbers = #tpu.dot_dimension_numbers<[1], [0], [0], [1], [0, 0, 1, 1], [], []>} : vector<8x32xf32>, vector<32x128xf32>, vector<8x128xf32> -> vector<8x128xf32>
    %271 = arith.addf %270, %259 : vector<8x128xf32>
    %cst_75 = arith.constant dense<0.000000e+00> : vector<8x128xf32>
    %272 = tpu.matmul %227, %255, %cst_75 {dimension_numbers = #tpu.dot_dimension_numbers<[1], [0], [0], [1], [0, 0, 1, 1], [], []>} : vector<8x32xf32>, vector<32x128xf32>, vector<8x128xf32> -> vector<8x128xf32>
    %273 = arith.addf %272, %259 : vector<8x128xf32>
    %cst_76 = arith.constant dense<0.000000e+00> : vector<8x128xf32>
    %274 = tpu.matmul %254, %255, %cst_76 {dimension_numbers = #tpu.dot_dimension_numbers<[1], [0], [0], [1], [0, 0, 1, 1], [], []>} : vector<8x32xf32>, vector<32x128xf32>, vector<8x128xf32> -> vector<8x128xf32>
    %275 = arith.addf %274, %259 : vector<8x128xf32>
    %cst_77 = arith.constant 0.000000e+00 : f32
    %276 = vector.broadcast %cst_77 : f32 to vector<8x32xf32>
    %cst_78 = arith.constant 0.000000e+00 : f32
    %277 = vector.broadcast %cst_78 : f32 to vector<8x32xf32>
    %cst_79 = arith.constant dense<0.000000e+00> : vector<8x128xf32>
    %278 = tpu.matmul %276, %256, %cst_79 {dimension_numbers = #tpu.dot_dimension_numbers<[1], [0], [0], [1], [0, 0, 1, 1], [], []>} : vector<8x32xf32>, vector<32x128xf32>, vector<8x128xf32> -> vector<8x128xf32>
    %279 = arith.addf %261, %278 : vector<8x128xf32>
    %280 = vector.extract_strided_slice %279 {offsets = [0, 0], sizes = [8, 32], strides = [1, 1]} : vector<8x128xf32> to vector<8x32xf32>
    %281 = arith.negf %280 : vector<8x32xf32>
    %282 = math.exp %281 : vector<8x32xf32>
    %cst_80 = arith.constant 1.000000e+00 : f32
    %283 = vector.broadcast %cst_80 : f32 to vector<8x32xf32>
    %284 = arith.addf %283, %282 : vector<8x32xf32>
    %285 = arith.divf %283, %284 : vector<8x32xf32>
    %286 = vector.extract_strided_slice %279 {offsets = [0, 32], sizes = [8, 32], strides = [1, 1]} : vector<8x128xf32> to vector<8x32xf32>
    %287 = arith.negf %286 : vector<8x32xf32>
    %288 = math.exp %287 : vector<8x32xf32>
    %cst_81 = arith.constant 1.000000e+00 : f32
    %289 = vector.broadcast %cst_81 : f32 to vector<8x32xf32>
    %290 = arith.addf %289, %288 : vector<8x32xf32>
    %291 = arith.divf %289, %290 : vector<8x32xf32>
    %292 = vector.extract_strided_slice %279 {offsets = [0, 64], sizes = [8, 32], strides = [1, 1]} : vector<8x128xf32> to vector<8x32xf32>
    %293 = math.tanh %292 : vector<8x32xf32>
    %294 = vector.extract_strided_slice %279 {offsets = [0, 96], sizes = [8, 32], strides = [1, 1]} : vector<8x128xf32> to vector<8x32xf32>
    %295 = arith.negf %294 : vector<8x32xf32>
    %296 = math.exp %295 : vector<8x32xf32>
    %cst_82 = arith.constant 1.000000e+00 : f32
    %297 = vector.broadcast %cst_82 : f32 to vector<8x32xf32>
    %298 = arith.addf %297, %296 : vector<8x32xf32>
    %299 = arith.divf %297, %298 : vector<8x32xf32>
    %300 = arith.mulf %291, %277 : vector<8x32xf32>
    %301 = arith.mulf %285, %293 : vector<8x32xf32>
    %302 = arith.addf %300, %301 : vector<8x32xf32>
    %303 = math.tanh %302 : vector<8x32xf32>
    %304 = arith.mulf %299, %303 : vector<8x32xf32>
    %cst_83 = arith.constant dense<0.000000e+00> : vector<8x128xf32>
    %305 = tpu.matmul %304, %256, %cst_83 {dimension_numbers = #tpu.dot_dimension_numbers<[1], [0], [0], [1], [0, 0, 1, 1], [], []>} : vector<8x32xf32>, vector<32x128xf32>, vector<8x128xf32> -> vector<8x128xf32>
    %306 = arith.addf %263, %305 : vector<8x128xf32>
    %307 = vector.extract_strided_slice %306 {offsets = [0, 0], sizes = [8, 32], strides = [1, 1]} : vector<8x128xf32> to vector<8x32xf32>
    %308 = arith.negf %307 : vector<8x32xf32>
    %309 = math.exp %308 : vector<8x32xf32>
    %cst_84 = arith.constant 1.000000e+00 : f32
    %310 = vector.broadcast %cst_84 : f32 to vector<8x32xf32>
    %311 = arith.addf %310, %309 : vector<8x32xf32>
    %312 = arith.divf %310, %311 : vector<8x32xf32>
    %313 = vector.extract_strided_slice %306 {offsets = [0, 32], sizes = [8, 32], strides = [1, 1]} : vector<8x128xf32> to vector<8x32xf32>
    %314 = arith.negf %313 : vector<8x32xf32>
    %315 = math.exp %314 : vector<8x32xf32>
    %cst_85 = arith.constant 1.000000e+00 : f32
    %316 = vector.broadcast %cst_85 : f32 to vector<8x32xf32>
    %317 = arith.addf %316, %315 : vector<8x32xf32>
    %318 = arith.divf %316, %317 : vector<8x32xf32>
    %319 = vector.extract_strided_slice %306 {offsets = [0, 64], sizes = [8, 32], strides = [1, 1]} : vector<8x128xf32> to vector<8x32xf32>
    %320 = math.tanh %319 : vector<8x32xf32>
    %321 = vector.extract_strided_slice %306 {offsets = [0, 96], sizes = [8, 32], strides = [1, 1]} : vector<8x128xf32> to vector<8x32xf32>
    %322 = arith.negf %321 : vector<8x32xf32>
    %323 = math.exp %322 : vector<8x32xf32>
    %cst_86 = arith.constant 1.000000e+00 : f32
    %324 = vector.broadcast %cst_86 : f32 to vector<8x32xf32>
    %325 = arith.addf %324, %323 : vector<8x32xf32>
    %326 = arith.divf %324, %325 : vector<8x32xf32>
    %327 = arith.mulf %318, %302 : vector<8x32xf32>
    %328 = arith.mulf %312, %320 : vector<8x32xf32>
    %329 = arith.addf %327, %328 : vector<8x32xf32>
    %330 = math.tanh %329 : vector<8x32xf32>
    %331 = arith.mulf %326, %330 : vector<8x32xf32>
    %cst_87 = arith.constant dense<0.000000e+00> : vector<8x128xf32>
    %332 = tpu.matmul %331, %256, %cst_87 {dimension_numbers = #tpu.dot_dimension_numbers<[1], [0], [0], [1], [0, 0, 1, 1], [], []>} : vector<8x32xf32>, vector<32x128xf32>, vector<8x128xf32> -> vector<8x128xf32>
    %333 = arith.addf %265, %332 : vector<8x128xf32>
    %334 = vector.extract_strided_slice %333 {offsets = [0, 0], sizes = [8, 32], strides = [1, 1]} : vector<8x128xf32> to vector<8x32xf32>
    %335 = arith.negf %334 : vector<8x32xf32>
    %336 = math.exp %335 : vector<8x32xf32>
    %cst_88 = arith.constant 1.000000e+00 : f32
    %337 = vector.broadcast %cst_88 : f32 to vector<8x32xf32>
    %338 = arith.addf %337, %336 : vector<8x32xf32>
    %339 = arith.divf %337, %338 : vector<8x32xf32>
    %340 = vector.extract_strided_slice %333 {offsets = [0, 32], sizes = [8, 32], strides = [1, 1]} : vector<8x128xf32> to vector<8x32xf32>
    %341 = arith.negf %340 : vector<8x32xf32>
    %342 = math.exp %341 : vector<8x32xf32>
    %cst_89 = arith.constant 1.000000e+00 : f32
    %343 = vector.broadcast %cst_89 : f32 to vector<8x32xf32>
    %344 = arith.addf %343, %342 : vector<8x32xf32>
    %345 = arith.divf %343, %344 : vector<8x32xf32>
    %346 = vector.extract_strided_slice %333 {offsets = [0, 64], sizes = [8, 32], strides = [1, 1]} : vector<8x128xf32> to vector<8x32xf32>
    %347 = math.tanh %346 : vector<8x32xf32>
    %348 = vector.extract_strided_slice %333 {offsets = [0, 96], sizes = [8, 32], strides = [1, 1]} : vector<8x128xf32> to vector<8x32xf32>
    %349 = arith.negf %348 : vector<8x32xf32>
    %350 = math.exp %349 : vector<8x32xf32>
    %cst_90 = arith.constant 1.000000e+00 : f32
    %351 = vector.broadcast %cst_90 : f32 to vector<8x32xf32>
    %352 = arith.addf %351, %350 : vector<8x32xf32>
    %353 = arith.divf %351, %352 : vector<8x32xf32>
    %354 = arith.mulf %345, %329 : vector<8x32xf32>
    %355 = arith.mulf %339, %347 : vector<8x32xf32>
    %356 = arith.addf %354, %355 : vector<8x32xf32>
    %357 = math.tanh %356 : vector<8x32xf32>
    %358 = arith.mulf %353, %357 : vector<8x32xf32>
    %cst_91 = arith.constant dense<0.000000e+00> : vector<8x128xf32>
    %359 = tpu.matmul %358, %256, %cst_91 {dimension_numbers = #tpu.dot_dimension_numbers<[1], [0], [0], [1], [0, 0, 1, 1], [], []>} : vector<8x32xf32>, vector<32x128xf32>, vector<8x128xf32> -> vector<8x128xf32>
    %360 = arith.addf %267, %359 : vector<8x128xf32>
    %361 = vector.extract_strided_slice %360 {offsets = [0, 0], sizes = [8, 32], strides = [1, 1]} : vector<8x128xf32> to vector<8x32xf32>
    %362 = arith.negf %361 : vector<8x32xf32>
    %363 = math.exp %362 : vector<8x32xf32>
    %cst_92 = arith.constant 1.000000e+00 : f32
    %364 = vector.broadcast %cst_92 : f32 to vector<8x32xf32>
    %365 = arith.addf %364, %363 : vector<8x32xf32>
    %366 = arith.divf %364, %365 : vector<8x32xf32>
    %367 = vector.extract_strided_slice %360 {offsets = [0, 32], sizes = [8, 32], strides = [1, 1]} : vector<8x128xf32> to vector<8x32xf32>
    %368 = arith.negf %367 : vector<8x32xf32>
    %369 = math.exp %368 : vector<8x32xf32>
    %cst_93 = arith.constant 1.000000e+00 : f32
    %370 = vector.broadcast %cst_93 : f32 to vector<8x32xf32>
    %371 = arith.addf %370, %369 : vector<8x32xf32>
    %372 = arith.divf %370, %371 : vector<8x32xf32>
    %373 = vector.extract_strided_slice %360 {offsets = [0, 64], sizes = [8, 32], strides = [1, 1]} : vector<8x128xf32> to vector<8x32xf32>
    %374 = math.tanh %373 : vector<8x32xf32>
    %375 = vector.extract_strided_slice %360 {offsets = [0, 96], sizes = [8, 32], strides = [1, 1]} : vector<8x128xf32> to vector<8x32xf32>
    %376 = arith.negf %375 : vector<8x32xf32>
    %377 = math.exp %376 : vector<8x32xf32>
    %cst_94 = arith.constant 1.000000e+00 : f32
    %378 = vector.broadcast %cst_94 : f32 to vector<8x32xf32>
    %379 = arith.addf %378, %377 : vector<8x32xf32>
    %380 = arith.divf %378, %379 : vector<8x32xf32>
    %381 = arith.mulf %372, %356 : vector<8x32xf32>
    %382 = arith.mulf %366, %374 : vector<8x32xf32>
    %383 = arith.addf %381, %382 : vector<8x32xf32>
    %384 = math.tanh %383 : vector<8x32xf32>
    %385 = arith.mulf %380, %384 : vector<8x32xf32>
    %cst_95 = arith.constant dense<0.000000e+00> : vector<8x128xf32>
    %386 = tpu.matmul %385, %256, %cst_95 {dimension_numbers = #tpu.dot_dimension_numbers<[1], [0], [0], [1], [0, 0, 1, 1], [], []>} : vector<8x32xf32>, vector<32x128xf32>, vector<8x128xf32> -> vector<8x128xf32>
    %387 = arith.addf %269, %386 : vector<8x128xf32>
    %388 = vector.extract_strided_slice %387 {offsets = [0, 0], sizes = [8, 32], strides = [1, 1]} : vector<8x128xf32> to vector<8x32xf32>
    %389 = arith.negf %388 : vector<8x32xf32>
    %390 = math.exp %389 : vector<8x32xf32>
    %cst_96 = arith.constant 1.000000e+00 : f32
    %391 = vector.broadcast %cst_96 : f32 to vector<8x32xf32>
    %392 = arith.addf %391, %390 : vector<8x32xf32>
    %393 = arith.divf %391, %392 : vector<8x32xf32>
    %394 = vector.extract_strided_slice %387 {offsets = [0, 32], sizes = [8, 32], strides = [1, 1]} : vector<8x128xf32> to vector<8x32xf32>
    %395 = arith.negf %394 : vector<8x32xf32>
    %396 = math.exp %395 : vector<8x32xf32>
    %cst_97 = arith.constant 1.000000e+00 : f32
    %397 = vector.broadcast %cst_97 : f32 to vector<8x32xf32>
    %398 = arith.addf %397, %396 : vector<8x32xf32>
    %399 = arith.divf %397, %398 : vector<8x32xf32>
    %400 = vector.extract_strided_slice %387 {offsets = [0, 64], sizes = [8, 32], strides = [1, 1]} : vector<8x128xf32> to vector<8x32xf32>
    %401 = math.tanh %400 : vector<8x32xf32>
    %402 = vector.extract_strided_slice %387 {offsets = [0, 96], sizes = [8, 32], strides = [1, 1]} : vector<8x128xf32> to vector<8x32xf32>
    %403 = arith.negf %402 : vector<8x32xf32>
    %404 = math.exp %403 : vector<8x32xf32>
    %cst_98 = arith.constant 1.000000e+00 : f32
    %405 = vector.broadcast %cst_98 : f32 to vector<8x32xf32>
    %406 = arith.addf %405, %404 : vector<8x32xf32>
    %407 = arith.divf %405, %406 : vector<8x32xf32>
    %408 = arith.mulf %399, %383 : vector<8x32xf32>
    %409 = arith.mulf %393, %401 : vector<8x32xf32>
    %410 = arith.addf %408, %409 : vector<8x32xf32>
    %411 = math.tanh %410 : vector<8x32xf32>
    %412 = arith.mulf %407, %411 : vector<8x32xf32>
    %cst_99 = arith.constant dense<0.000000e+00> : vector<8x128xf32>
    %413 = tpu.matmul %412, %256, %cst_99 {dimension_numbers = #tpu.dot_dimension_numbers<[1], [0], [0], [1], [0, 0, 1, 1], [], []>} : vector<8x32xf32>, vector<32x128xf32>, vector<8x128xf32> -> vector<8x128xf32>
    %414 = arith.addf %271, %413 : vector<8x128xf32>
    %415 = vector.extract_strided_slice %414 {offsets = [0, 0], sizes = [8, 32], strides = [1, 1]} : vector<8x128xf32> to vector<8x32xf32>
    %416 = arith.negf %415 : vector<8x32xf32>
    %417 = math.exp %416 : vector<8x32xf32>
    %cst_100 = arith.constant 1.000000e+00 : f32
    %418 = vector.broadcast %cst_100 : f32 to vector<8x32xf32>
    %419 = arith.addf %418, %417 : vector<8x32xf32>
    %420 = arith.divf %418, %419 : vector<8x32xf32>
    %421 = vector.extract_strided_slice %414 {offsets = [0, 32], sizes = [8, 32], strides = [1, 1]} : vector<8x128xf32> to vector<8x32xf32>
    %422 = arith.negf %421 : vector<8x32xf32>
    %423 = math.exp %422 : vector<8x32xf32>
    %cst_101 = arith.constant 1.000000e+00 : f32
    %424 = vector.broadcast %cst_101 : f32 to vector<8x32xf32>
    %425 = arith.addf %424, %423 : vector<8x32xf32>
    %426 = arith.divf %424, %425 : vector<8x32xf32>
    %427 = vector.extract_strided_slice %414 {offsets = [0, 64], sizes = [8, 32], strides = [1, 1]} : vector<8x128xf32> to vector<8x32xf32>
    %428 = math.tanh %427 : vector<8x32xf32>
    %429 = vector.extract_strided_slice %414 {offsets = [0, 96], sizes = [8, 32], strides = [1, 1]} : vector<8x128xf32> to vector<8x32xf32>
    %430 = arith.negf %429 : vector<8x32xf32>
    %431 = math.exp %430 : vector<8x32xf32>
    %cst_102 = arith.constant 1.000000e+00 : f32
    %432 = vector.broadcast %cst_102 : f32 to vector<8x32xf32>
    %433 = arith.addf %432, %431 : vector<8x32xf32>
    %434 = arith.divf %432, %433 : vector<8x32xf32>
    %435 = arith.mulf %426, %410 : vector<8x32xf32>
    %436 = arith.mulf %420, %428 : vector<8x32xf32>
    %437 = arith.addf %435, %436 : vector<8x32xf32>
    %438 = math.tanh %437 : vector<8x32xf32>
    %439 = arith.mulf %434, %438 : vector<8x32xf32>
    %cst_103 = arith.constant dense<0.000000e+00> : vector<8x128xf32>
    %440 = tpu.matmul %439, %256, %cst_103 {dimension_numbers = #tpu.dot_dimension_numbers<[1], [0], [0], [1], [0, 0, 1, 1], [], []>} : vector<8x32xf32>, vector<32x128xf32>, vector<8x128xf32> -> vector<8x128xf32>
    %441 = arith.addf %273, %440 : vector<8x128xf32>
    %442 = vector.extract_strided_slice %441 {offsets = [0, 0], sizes = [8, 32], strides = [1, 1]} : vector<8x128xf32> to vector<8x32xf32>
    %443 = arith.negf %442 : vector<8x32xf32>
    %444 = math.exp %443 : vector<8x32xf32>
    %cst_104 = arith.constant 1.000000e+00 : f32
    %445 = vector.broadcast %cst_104 : f32 to vector<8x32xf32>
    %446 = arith.addf %445, %444 : vector<8x32xf32>
    %447 = arith.divf %445, %446 : vector<8x32xf32>
    %448 = vector.extract_strided_slice %441 {offsets = [0, 32], sizes = [8, 32], strides = [1, 1]} : vector<8x128xf32> to vector<8x32xf32>
    %449 = arith.negf %448 : vector<8x32xf32>
    %450 = math.exp %449 : vector<8x32xf32>
    %cst_105 = arith.constant 1.000000e+00 : f32
    %451 = vector.broadcast %cst_105 : f32 to vector<8x32xf32>
    %452 = arith.addf %451, %450 : vector<8x32xf32>
    %453 = arith.divf %451, %452 : vector<8x32xf32>
    %454 = vector.extract_strided_slice %441 {offsets = [0, 64], sizes = [8, 32], strides = [1, 1]} : vector<8x128xf32> to vector<8x32xf32>
    %455 = math.tanh %454 : vector<8x32xf32>
    %456 = vector.extract_strided_slice %441 {offsets = [0, 96], sizes = [8, 32], strides = [1, 1]} : vector<8x128xf32> to vector<8x32xf32>
    %457 = arith.negf %456 : vector<8x32xf32>
    %458 = math.exp %457 : vector<8x32xf32>
    %cst_106 = arith.constant 1.000000e+00 : f32
    %459 = vector.broadcast %cst_106 : f32 to vector<8x32xf32>
    %460 = arith.addf %459, %458 : vector<8x32xf32>
    %461 = arith.divf %459, %460 : vector<8x32xf32>
    %462 = arith.mulf %453, %437 : vector<8x32xf32>
    %463 = arith.mulf %447, %455 : vector<8x32xf32>
    %464 = arith.addf %462, %463 : vector<8x32xf32>
    %465 = math.tanh %464 : vector<8x32xf32>
    %466 = arith.mulf %461, %465 : vector<8x32xf32>
    %cst_107 = arith.constant dense<0.000000e+00> : vector<8x128xf32>
    %467 = tpu.matmul %466, %256, %cst_107 {dimension_numbers = #tpu.dot_dimension_numbers<[1], [0], [0], [1], [0, 0, 1, 1], [], []>} : vector<8x32xf32>, vector<32x128xf32>, vector<8x128xf32> -> vector<8x128xf32>
    %468 = arith.addf %275, %467 : vector<8x128xf32>
    %469 = vector.extract_strided_slice %468 {offsets = [0, 0], sizes = [8, 32], strides = [1, 1]} : vector<8x128xf32> to vector<8x32xf32>
    %470 = arith.negf %469 : vector<8x32xf32>
    %471 = math.exp %470 : vector<8x32xf32>
    %cst_108 = arith.constant 1.000000e+00 : f32
    %472 = vector.broadcast %cst_108 : f32 to vector<8x32xf32>
    %473 = arith.addf %472, %471 : vector<8x32xf32>
    %474 = arith.divf %472, %473 : vector<8x32xf32>
    %475 = vector.extract_strided_slice %468 {offsets = [0, 32], sizes = [8, 32], strides = [1, 1]} : vector<8x128xf32> to vector<8x32xf32>
    %476 = arith.negf %475 : vector<8x32xf32>
    %477 = math.exp %476 : vector<8x32xf32>
    %cst_109 = arith.constant 1.000000e+00 : f32
    %478 = vector.broadcast %cst_109 : f32 to vector<8x32xf32>
    %479 = arith.addf %478, %477 : vector<8x32xf32>
    %480 = arith.divf %478, %479 : vector<8x32xf32>
    %481 = vector.extract_strided_slice %468 {offsets = [0, 64], sizes = [8, 32], strides = [1, 1]} : vector<8x128xf32> to vector<8x32xf32>
    %482 = math.tanh %481 : vector<8x32xf32>
    %483 = vector.extract_strided_slice %468 {offsets = [0, 96], sizes = [8, 32], strides = [1, 1]} : vector<8x128xf32> to vector<8x32xf32>
    %484 = arith.negf %483 : vector<8x32xf32>
    %485 = math.exp %484 : vector<8x32xf32>
    %cst_110 = arith.constant 1.000000e+00 : f32
    %486 = vector.broadcast %cst_110 : f32 to vector<8x32xf32>
    %487 = arith.addf %486, %485 : vector<8x32xf32>
    %488 = arith.divf %486, %487 : vector<8x32xf32>
    %489 = arith.mulf %480, %464 : vector<8x32xf32>
    %490 = arith.mulf %474, %482 : vector<8x32xf32>
    %491 = arith.addf %489, %490 : vector<8x32xf32>
    %492 = math.tanh %491 : vector<8x32xf32>
    %493 = arith.mulf %488, %492 : vector<8x32xf32>
    %c0_111 = arith.constant 0 : index
    %c0_112 = arith.constant 0 : index
    %494 = vector.load %arg8[%c0_111, %c0_112] : memref<32x64xf32, #tpu.memory_space<vmem>>, vector<32x64xf32>
    %c0_113 = arith.constant 0 : index
    %c0_114 = arith.constant 0 : index
    %495 = vector.load %arg9[%c0_113, %c0_114] : memref<16x64xf32, #tpu.memory_space<vmem>>, vector<16x64xf32>
    %c0_115 = arith.constant 0 : index
    %c0_116 = arith.constant 0 : index
    %496 = vector.load %arg10[%c0_115, %c0_116] : memref<1x64xf32, #tpu.memory_space<vmem>>, vector<1x64xf32>
    %497 = vector.shape_cast %496 : vector<1x64xf32> to vector<1x64xf32>
    %498 = vector.broadcast %497 : vector<1x64xf32> to vector<8x64xf32>
    %cst_117 = arith.constant dense<0.000000e+00> : vector<8x64xf32>
    %499 = tpu.matmul %304, %494, %cst_117 {dimension_numbers = #tpu.dot_dimension_numbers<[1], [0], [0], [1], [0, 0, 1, 1], [], []>} : vector<8x32xf32>, vector<32x64xf32>, vector<8x64xf32> -> vector<8x64xf32>
    %500 = arith.addf %499, %498 : vector<8x64xf32>
    %cst_118 = arith.constant dense<0.000000e+00> : vector<8x64xf32>
    %501 = tpu.matmul %331, %494, %cst_118 {dimension_numbers = #tpu.dot_dimension_numbers<[1], [0], [0], [1], [0, 0, 1, 1], [], []>} : vector<8x32xf32>, vector<32x64xf32>, vector<8x64xf32> -> vector<8x64xf32>
    %502 = arith.addf %501, %498 : vector<8x64xf32>
    %cst_119 = arith.constant dense<0.000000e+00> : vector<8x64xf32>
    %503 = tpu.matmul %358, %494, %cst_119 {dimension_numbers = #tpu.dot_dimension_numbers<[1], [0], [0], [1], [0, 0, 1, 1], [], []>} : vector<8x32xf32>, vector<32x64xf32>, vector<8x64xf32> -> vector<8x64xf32>
    %504 = arith.addf %503, %498 : vector<8x64xf32>
    %cst_120 = arith.constant dense<0.000000e+00> : vector<8x64xf32>
    %505 = tpu.matmul %385, %494, %cst_120 {dimension_numbers = #tpu.dot_dimension_numbers<[1], [0], [0], [1], [0, 0, 1, 1], [], []>} : vector<8x32xf32>, vector<32x64xf32>, vector<8x64xf32> -> vector<8x64xf32>
    %506 = arith.addf %505, %498 : vector<8x64xf32>
    %cst_121 = arith.constant dense<0.000000e+00> : vector<8x64xf32>
    %507 = tpu.matmul %412, %494, %cst_121 {dimension_numbers = #tpu.dot_dimension_numbers<[1], [0], [0], [1], [0, 0, 1, 1], [], []>} : vector<8x32xf32>, vector<32x64xf32>, vector<8x64xf32> -> vector<8x64xf32>
    %508 = arith.addf %507, %498 : vector<8x64xf32>
    %cst_122 = arith.constant dense<0.000000e+00> : vector<8x64xf32>
    %509 = tpu.matmul %439, %494, %cst_122 {dimension_numbers = #tpu.dot_dimension_numbers<[1], [0], [0], [1], [0, 0, 1, 1], [], []>} : vector<8x32xf32>, vector<32x64xf32>, vector<8x64xf32> -> vector<8x64xf32>
    %510 = arith.addf %509, %498 : vector<8x64xf32>
    %cst_123 = arith.constant dense<0.000000e+00> : vector<8x64xf32>
    %511 = tpu.matmul %466, %494, %cst_123 {dimension_numbers = #tpu.dot_dimension_numbers<[1], [0], [0], [1], [0, 0, 1, 1], [], []>} : vector<8x32xf32>, vector<32x64xf32>, vector<8x64xf32> -> vector<8x64xf32>
    %512 = arith.addf %511, %498 : vector<8x64xf32>
    %cst_124 = arith.constant dense<0.000000e+00> : vector<8x64xf32>
    %513 = tpu.matmul %493, %494, %cst_124 {dimension_numbers = #tpu.dot_dimension_numbers<[1], [0], [0], [1], [0, 0, 1, 1], [], []>} : vector<8x32xf32>, vector<32x64xf32>, vector<8x64xf32> -> vector<8x64xf32>
    %514 = arith.addf %513, %498 : vector<8x64xf32>
    %cst_125 = arith.constant 0.000000e+00 : f32
    %515 = vector.broadcast %cst_125 : f32 to vector<8x16xf32>
    %cst_126 = arith.constant 0.000000e+00 : f32
    %516 = vector.broadcast %cst_126 : f32 to vector<8x16xf32>
    %cst_127 = arith.constant dense<0.000000e+00> : vector<8x64xf32>
    %517 = tpu.matmul %515, %495, %cst_127 {dimension_numbers = #tpu.dot_dimension_numbers<[1], [0], [0], [1], [0, 0, 1, 1], [], []>} : vector<8x16xf32>, vector<16x64xf32>, vector<8x64xf32> -> vector<8x64xf32>
    %518 = arith.addf %500, %517 : vector<8x64xf32>
    %519 = vector.extract_strided_slice %518 {offsets = [0, 0], sizes = [8, 16], strides = [1, 1]} : vector<8x64xf32> to vector<8x16xf32>
    %520 = arith.negf %519 : vector<8x16xf32>
    %521 = math.exp %520 : vector<8x16xf32>
    %cst_128 = arith.constant 1.000000e+00 : f32
    %522 = vector.broadcast %cst_128 : f32 to vector<8x16xf32>
    %523 = arith.addf %522, %521 : vector<8x16xf32>
    %524 = arith.divf %522, %523 : vector<8x16xf32>
    %525 = vector.extract_strided_slice %518 {offsets = [0, 16], sizes = [8, 16], strides = [1, 1]} : vector<8x64xf32> to vector<8x16xf32>
    %526 = arith.negf %525 : vector<8x16xf32>
    %527 = math.exp %526 : vector<8x16xf32>
    %cst_129 = arith.constant 1.000000e+00 : f32
    %528 = vector.broadcast %cst_129 : f32 to vector<8x16xf32>
    %529 = arith.addf %528, %527 : vector<8x16xf32>
    %530 = arith.divf %528, %529 : vector<8x16xf32>
    %531 = vector.extract_strided_slice %518 {offsets = [0, 32], sizes = [8, 16], strides = [1, 1]} : vector<8x64xf32> to vector<8x16xf32>
    %532 = math.tanh %531 : vector<8x16xf32>
    %533 = vector.extract_strided_slice %518 {offsets = [0, 48], sizes = [8, 16], strides = [1, 1]} : vector<8x64xf32> to vector<8x16xf32>
    %534 = arith.negf %533 : vector<8x16xf32>
    %535 = math.exp %534 : vector<8x16xf32>
    %cst_130 = arith.constant 1.000000e+00 : f32
    %536 = vector.broadcast %cst_130 : f32 to vector<8x16xf32>
    %537 = arith.addf %536, %535 : vector<8x16xf32>
    %538 = arith.divf %536, %537 : vector<8x16xf32>
    %539 = arith.mulf %530, %516 : vector<8x16xf32>
    %540 = arith.mulf %524, %532 : vector<8x16xf32>
    %541 = arith.addf %539, %540 : vector<8x16xf32>
    %542 = math.tanh %541 : vector<8x16xf32>
    %543 = arith.mulf %538, %542 : vector<8x16xf32>
    %cst_131 = arith.constant dense<0.000000e+00> : vector<8x64xf32>
    %544 = tpu.matmul %543, %495, %cst_131 {dimension_numbers = #tpu.dot_dimension_numbers<[1], [0], [0], [1], [0, 0, 1, 1], [], []>} : vector<8x16xf32>, vector<16x64xf32>, vector<8x64xf32> -> vector<8x64xf32>
    %545 = arith.addf %502, %544 : vector<8x64xf32>
    %546 = vector.extract_strided_slice %545 {offsets = [0, 0], sizes = [8, 16], strides = [1, 1]} : vector<8x64xf32> to vector<8x16xf32>
    %547 = arith.negf %546 : vector<8x16xf32>
    %548 = math.exp %547 : vector<8x16xf32>
    %cst_132 = arith.constant 1.000000e+00 : f32
    %549 = vector.broadcast %cst_132 : f32 to vector<8x16xf32>
    %550 = arith.addf %549, %548 : vector<8x16xf32>
    %551 = arith.divf %549, %550 : vector<8x16xf32>
    %552 = vector.extract_strided_slice %545 {offsets = [0, 16], sizes = [8, 16], strides = [1, 1]} : vector<8x64xf32> to vector<8x16xf32>
    %553 = arith.negf %552 : vector<8x16xf32>
    %554 = math.exp %553 : vector<8x16xf32>
    %cst_133 = arith.constant 1.000000e+00 : f32
    %555 = vector.broadcast %cst_133 : f32 to vector<8x16xf32>
    %556 = arith.addf %555, %554 : vector<8x16xf32>
    %557 = arith.divf %555, %556 : vector<8x16xf32>
    %558 = vector.extract_strided_slice %545 {offsets = [0, 32], sizes = [8, 16], strides = [1, 1]} : vector<8x64xf32> to vector<8x16xf32>
    %559 = math.tanh %558 : vector<8x16xf32>
    %560 = vector.extract_strided_slice %545 {offsets = [0, 48], sizes = [8, 16], strides = [1, 1]} : vector<8x64xf32> to vector<8x16xf32>
    %561 = arith.negf %560 : vector<8x16xf32>
    %562 = math.exp %561 : vector<8x16xf32>
    %cst_134 = arith.constant 1.000000e+00 : f32
    %563 = vector.broadcast %cst_134 : f32 to vector<8x16xf32>
    %564 = arith.addf %563, %562 : vector<8x16xf32>
    %565 = arith.divf %563, %564 : vector<8x16xf32>
    %566 = arith.mulf %557, %541 : vector<8x16xf32>
    %567 = arith.mulf %551, %559 : vector<8x16xf32>
    %568 = arith.addf %566, %567 : vector<8x16xf32>
    %569 = math.tanh %568 : vector<8x16xf32>
    %570 = arith.mulf %565, %569 : vector<8x16xf32>
    %cst_135 = arith.constant dense<0.000000e+00> : vector<8x64xf32>
    %571 = tpu.matmul %570, %495, %cst_135 {dimension_numbers = #tpu.dot_dimension_numbers<[1], [0], [0], [1], [0, 0, 1, 1], [], []>} : vector<8x16xf32>, vector<16x64xf32>, vector<8x64xf32> -> vector<8x64xf32>
    %572 = arith.addf %504, %571 : vector<8x64xf32>
    %573 = vector.extract_strided_slice %572 {offsets = [0, 0], sizes = [8, 16], strides = [1, 1]} : vector<8x64xf32> to vector<8x16xf32>
    %574 = arith.negf %573 : vector<8x16xf32>
    %575 = math.exp %574 : vector<8x16xf32>
    %cst_136 = arith.constant 1.000000e+00 : f32
    %576 = vector.broadcast %cst_136 : f32 to vector<8x16xf32>
    %577 = arith.addf %576, %575 : vector<8x16xf32>
    %578 = arith.divf %576, %577 : vector<8x16xf32>
    %579 = vector.extract_strided_slice %572 {offsets = [0, 16], sizes = [8, 16], strides = [1, 1]} : vector<8x64xf32> to vector<8x16xf32>
    %580 = arith.negf %579 : vector<8x16xf32>
    %581 = math.exp %580 : vector<8x16xf32>
    %cst_137 = arith.constant 1.000000e+00 : f32
    %582 = vector.broadcast %cst_137 : f32 to vector<8x16xf32>
    %583 = arith.addf %582, %581 : vector<8x16xf32>
    %584 = arith.divf %582, %583 : vector<8x16xf32>
    %585 = vector.extract_strided_slice %572 {offsets = [0, 32], sizes = [8, 16], strides = [1, 1]} : vector<8x64xf32> to vector<8x16xf32>
    %586 = math.tanh %585 : vector<8x16xf32>
    %587 = vector.extract_strided_slice %572 {offsets = [0, 48], sizes = [8, 16], strides = [1, 1]} : vector<8x64xf32> to vector<8x16xf32>
    %588 = arith.negf %587 : vector<8x16xf32>
    %589 = math.exp %588 : vector<8x16xf32>
    %cst_138 = arith.constant 1.000000e+00 : f32
    %590 = vector.broadcast %cst_138 : f32 to vector<8x16xf32>
    %591 = arith.addf %590, %589 : vector<8x16xf32>
    %592 = arith.divf %590, %591 : vector<8x16xf32>
    %593 = arith.mulf %584, %568 : vector<8x16xf32>
    %594 = arith.mulf %578, %586 : vector<8x16xf32>
    %595 = arith.addf %593, %594 : vector<8x16xf32>
    %596 = math.tanh %595 : vector<8x16xf32>
    %597 = arith.mulf %592, %596 : vector<8x16xf32>
    %cst_139 = arith.constant dense<0.000000e+00> : vector<8x64xf32>
    %598 = tpu.matmul %597, %495, %cst_139 {dimension_numbers = #tpu.dot_dimension_numbers<[1], [0], [0], [1], [0, 0, 1, 1], [], []>} : vector<8x16xf32>, vector<16x64xf32>, vector<8x64xf32> -> vector<8x64xf32>
    %599 = arith.addf %506, %598 : vector<8x64xf32>
    %600 = vector.extract_strided_slice %599 {offsets = [0, 0], sizes = [8, 16], strides = [1, 1]} : vector<8x64xf32> to vector<8x16xf32>
    %601 = arith.negf %600 : vector<8x16xf32>
    %602 = math.exp %601 : vector<8x16xf32>
    %cst_140 = arith.constant 1.000000e+00 : f32
    %603 = vector.broadcast %cst_140 : f32 to vector<8x16xf32>
    %604 = arith.addf %603, %602 : vector<8x16xf32>
    %605 = arith.divf %603, %604 : vector<8x16xf32>
    %606 = vector.extract_strided_slice %599 {offsets = [0, 16], sizes = [8, 16], strides = [1, 1]} : vector<8x64xf32> to vector<8x16xf32>
    %607 = arith.negf %606 : vector<8x16xf32>
    %608 = math.exp %607 : vector<8x16xf32>
    %cst_141 = arith.constant 1.000000e+00 : f32
    %609 = vector.broadcast %cst_141 : f32 to vector<8x16xf32>
    %610 = arith.addf %609, %608 : vector<8x16xf32>
    %611 = arith.divf %609, %610 : vector<8x16xf32>
    %612 = vector.extract_strided_slice %599 {offsets = [0, 32], sizes = [8, 16], strides = [1, 1]} : vector<8x64xf32> to vector<8x16xf32>
    %613 = math.tanh %612 : vector<8x16xf32>
    %614 = vector.extract_strided_slice %599 {offsets = [0, 48], sizes = [8, 16], strides = [1, 1]} : vector<8x64xf32> to vector<8x16xf32>
    %615 = arith.negf %614 : vector<8x16xf32>
    %616 = math.exp %615 : vector<8x16xf32>
    %cst_142 = arith.constant 1.000000e+00 : f32
    %617 = vector.broadcast %cst_142 : f32 to vector<8x16xf32>
    %618 = arith.addf %617, %616 : vector<8x16xf32>
    %619 = arith.divf %617, %618 : vector<8x16xf32>
    %620 = arith.mulf %611, %595 : vector<8x16xf32>
    %621 = arith.mulf %605, %613 : vector<8x16xf32>
    %622 = arith.addf %620, %621 : vector<8x16xf32>
    %623 = math.tanh %622 : vector<8x16xf32>
    %624 = arith.mulf %619, %623 : vector<8x16xf32>
    %cst_143 = arith.constant dense<0.000000e+00> : vector<8x64xf32>
    %625 = tpu.matmul %624, %495, %cst_143 {dimension_numbers = #tpu.dot_dimension_numbers<[1], [0], [0], [1], [0, 0, 1, 1], [], []>} : vector<8x16xf32>, vector<16x64xf32>, vector<8x64xf32> -> vector<8x64xf32>
    %626 = arith.addf %508, %625 : vector<8x64xf32>
    %627 = vector.extract_strided_slice %626 {offsets = [0, 0], sizes = [8, 16], strides = [1, 1]} : vector<8x64xf32> to vector<8x16xf32>
    %628 = arith.negf %627 : vector<8x16xf32>
    %629 = math.exp %628 : vector<8x16xf32>
    %cst_144 = arith.constant 1.000000e+00 : f32
    %630 = vector.broadcast %cst_144 : f32 to vector<8x16xf32>
    %631 = arith.addf %630, %629 : vector<8x16xf32>
    %632 = arith.divf %630, %631 : vector<8x16xf32>
    %633 = vector.extract_strided_slice %626 {offsets = [0, 16], sizes = [8, 16], strides = [1, 1]} : vector<8x64xf32> to vector<8x16xf32>
    %634 = arith.negf %633 : vector<8x16xf32>
    %635 = math.exp %634 : vector<8x16xf32>
    %cst_145 = arith.constant 1.000000e+00 : f32
    %636 = vector.broadcast %cst_145 : f32 to vector<8x16xf32>
    %637 = arith.addf %636, %635 : vector<8x16xf32>
    %638 = arith.divf %636, %637 : vector<8x16xf32>
    %639 = vector.extract_strided_slice %626 {offsets = [0, 32], sizes = [8, 16], strides = [1, 1]} : vector<8x64xf32> to vector<8x16xf32>
    %640 = math.tanh %639 : vector<8x16xf32>
    %641 = vector.extract_strided_slice %626 {offsets = [0, 48], sizes = [8, 16], strides = [1, 1]} : vector<8x64xf32> to vector<8x16xf32>
    %642 = arith.negf %641 : vector<8x16xf32>
    %643 = math.exp %642 : vector<8x16xf32>
    %cst_146 = arith.constant 1.000000e+00 : f32
    %644 = vector.broadcast %cst_146 : f32 to vector<8x16xf32>
    %645 = arith.addf %644, %643 : vector<8x16xf32>
    %646 = arith.divf %644, %645 : vector<8x16xf32>
    %647 = arith.mulf %638, %622 : vector<8x16xf32>
    %648 = arith.mulf %632, %640 : vector<8x16xf32>
    %649 = arith.addf %647, %648 : vector<8x16xf32>
    %650 = math.tanh %649 : vector<8x16xf32>
    %651 = arith.mulf %646, %650 : vector<8x16xf32>
    %cst_147 = arith.constant dense<0.000000e+00> : vector<8x64xf32>
    %652 = tpu.matmul %651, %495, %cst_147 {dimension_numbers = #tpu.dot_dimension_numbers<[1], [0], [0], [1], [0, 0, 1, 1], [], []>} : vector<8x16xf32>, vector<16x64xf32>, vector<8x64xf32> -> vector<8x64xf32>
    %653 = arith.addf %510, %652 : vector<8x64xf32>
    %654 = vector.extract_strided_slice %653 {offsets = [0, 0], sizes = [8, 16], strides = [1, 1]} : vector<8x64xf32> to vector<8x16xf32>
    %655 = arith.negf %654 : vector<8x16xf32>
    %656 = math.exp %655 : vector<8x16xf32>
    %cst_148 = arith.constant 1.000000e+00 : f32
    %657 = vector.broadcast %cst_148 : f32 to vector<8x16xf32>
    %658 = arith.addf %657, %656 : vector<8x16xf32>
    %659 = arith.divf %657, %658 : vector<8x16xf32>
    %660 = vector.extract_strided_slice %653 {offsets = [0, 16], sizes = [8, 16], strides = [1, 1]} : vector<8x64xf32> to vector<8x16xf32>
    %661 = arith.negf %660 : vector<8x16xf32>
    %662 = math.exp %661 : vector<8x16xf32>
    %cst_149 = arith.constant 1.000000e+00 : f32
    %663 = vector.broadcast %cst_149 : f32 to vector<8x16xf32>
    %664 = arith.addf %663, %662 : vector<8x16xf32>
    %665 = arith.divf %663, %664 : vector<8x16xf32>
    %666 = vector.extract_strided_slice %653 {offsets = [0, 32], sizes = [8, 16], strides = [1, 1]} : vector<8x64xf32> to vector<8x16xf32>
    %667 = math.tanh %666 : vector<8x16xf32>
    %668 = vector.extract_strided_slice %653 {offsets = [0, 48], sizes = [8, 16], strides = [1, 1]} : vector<8x64xf32> to vector<8x16xf32>
    %669 = arith.negf %668 : vector<8x16xf32>
    %670 = math.exp %669 : vector<8x16xf32>
    %cst_150 = arith.constant 1.000000e+00 : f32
    %671 = vector.broadcast %cst_150 : f32 to vector<8x16xf32>
    %672 = arith.addf %671, %670 : vector<8x16xf32>
    %673 = arith.divf %671, %672 : vector<8x16xf32>
    %674 = arith.mulf %665, %649 : vector<8x16xf32>
    %675 = arith.mulf %659, %667 : vector<8x16xf32>
    %676 = arith.addf %674, %675 : vector<8x16xf32>
    %677 = math.tanh %676 : vector<8x16xf32>
    %678 = arith.mulf %673, %677 : vector<8x16xf32>
    %cst_151 = arith.constant dense<0.000000e+00> : vector<8x64xf32>
    %679 = tpu.matmul %678, %495, %cst_151 {dimension_numbers = #tpu.dot_dimension_numbers<[1], [0], [0], [1], [0, 0, 1, 1], [], []>} : vector<8x16xf32>, vector<16x64xf32>, vector<8x64xf32> -> vector<8x64xf32>
    %680 = arith.addf %512, %679 : vector<8x64xf32>
    %681 = vector.extract_strided_slice %680 {offsets = [0, 0], sizes = [8, 16], strides = [1, 1]} : vector<8x64xf32> to vector<8x16xf32>
    %682 = arith.negf %681 : vector<8x16xf32>
    %683 = math.exp %682 : vector<8x16xf32>
    %cst_152 = arith.constant 1.000000e+00 : f32
    %684 = vector.broadcast %cst_152 : f32 to vector<8x16xf32>
    %685 = arith.addf %684, %683 : vector<8x16xf32>
    %686 = arith.divf %684, %685 : vector<8x16xf32>
    %687 = vector.extract_strided_slice %680 {offsets = [0, 16], sizes = [8, 16], strides = [1, 1]} : vector<8x64xf32> to vector<8x16xf32>
    %688 = arith.negf %687 : vector<8x16xf32>
    %689 = math.exp %688 : vector<8x16xf32>
    %cst_153 = arith.constant 1.000000e+00 : f32
    %690 = vector.broadcast %cst_153 : f32 to vector<8x16xf32>
    %691 = arith.addf %690, %689 : vector<8x16xf32>
    %692 = arith.divf %690, %691 : vector<8x16xf32>
    %693 = vector.extract_strided_slice %680 {offsets = [0, 32], sizes = [8, 16], strides = [1, 1]} : vector<8x64xf32> to vector<8x16xf32>
    %694 = math.tanh %693 : vector<8x16xf32>
    %695 = vector.extract_strided_slice %680 {offsets = [0, 48], sizes = [8, 16], strides = [1, 1]} : vector<8x64xf32> to vector<8x16xf32>
    %696 = arith.negf %695 : vector<8x16xf32>
    %697 = math.exp %696 : vector<8x16xf32>
    %cst_154 = arith.constant 1.000000e+00 : f32
    %698 = vector.broadcast %cst_154 : f32 to vector<8x16xf32>
    %699 = arith.addf %698, %697 : vector<8x16xf32>
    %700 = arith.divf %698, %699 : vector<8x16xf32>
    %701 = arith.mulf %692, %676 : vector<8x16xf32>
    %702 = arith.mulf %686, %694 : vector<8x16xf32>
    %703 = arith.addf %701, %702 : vector<8x16xf32>
    %704 = math.tanh %703 : vector<8x16xf32>
    %705 = arith.mulf %700, %704 : vector<8x16xf32>
    %cst_155 = arith.constant dense<0.000000e+00> : vector<8x64xf32>
    %706 = tpu.matmul %705, %495, %cst_155 {dimension_numbers = #tpu.dot_dimension_numbers<[1], [0], [0], [1], [0, 0, 1, 1], [], []>} : vector<8x16xf32>, vector<16x64xf32>, vector<8x64xf32> -> vector<8x64xf32>
    %707 = arith.addf %514, %706 : vector<8x64xf32>
    %708 = vector.extract_strided_slice %707 {offsets = [0, 0], sizes = [8, 16], strides = [1, 1]} : vector<8x64xf32> to vector<8x16xf32>
    %709 = arith.negf %708 : vector<8x16xf32>
    %710 = math.exp %709 : vector<8x16xf32>
    %cst_156 = arith.constant 1.000000e+00 : f32
    %711 = vector.broadcast %cst_156 : f32 to vector<8x16xf32>
    %712 = arith.addf %711, %710 : vector<8x16xf32>
    %713 = arith.divf %711, %712 : vector<8x16xf32>
    %714 = vector.extract_strided_slice %707 {offsets = [0, 16], sizes = [8, 16], strides = [1, 1]} : vector<8x64xf32> to vector<8x16xf32>
    %715 = arith.negf %714 : vector<8x16xf32>
    %716 = math.exp %715 : vector<8x16xf32>
    %cst_157 = arith.constant 1.000000e+00 : f32
    %717 = vector.broadcast %cst_157 : f32 to vector<8x16xf32>
    %718 = arith.addf %717, %716 : vector<8x16xf32>
    %719 = arith.divf %717, %718 : vector<8x16xf32>
    %720 = vector.extract_strided_slice %707 {offsets = [0, 32], sizes = [8, 16], strides = [1, 1]} : vector<8x64xf32> to vector<8x16xf32>
    %721 = math.tanh %720 : vector<8x16xf32>
    %722 = vector.extract_strided_slice %707 {offsets = [0, 48], sizes = [8, 16], strides = [1, 1]} : vector<8x64xf32> to vector<8x16xf32>
    %723 = arith.negf %722 : vector<8x16xf32>
    %724 = math.exp %723 : vector<8x16xf32>
    %cst_158 = arith.constant 1.000000e+00 : f32
    %725 = vector.broadcast %cst_158 : f32 to vector<8x16xf32>
    %726 = arith.addf %725, %724 : vector<8x16xf32>
    %727 = arith.divf %725, %726 : vector<8x16xf32>
    %728 = arith.mulf %719, %703 : vector<8x16xf32>
    %729 = arith.mulf %713, %721 : vector<8x16xf32>
    %730 = arith.addf %728, %729 : vector<8x16xf32>
    %731 = math.tanh %730 : vector<8x16xf32>
    %732 = arith.mulf %727, %731 : vector<8x16xf32>
    %c0_159 = arith.constant 0 : index
    %c0_160 = arith.constant 0 : index
    %733 = vector.load %arg1[%c0_159, %c0_160] : memref<8x9xf32, #tpu.memory_space<vmem>>, vector<8x9xf32>
    %c0_161 = arith.constant 0 : index
    %c0_162 = arith.constant 0 : index
    %734 = vector.load %arg12[%c0_161, %c0_162] : memref<9x64xf32, #tpu.memory_space<vmem>>, vector<9x64xf32>
    %cst_163 = arith.constant dense<0.000000e+00> : vector<8x64xf32>
    %735 = tpu.matmul %733, %734, %cst_163 {dimension_numbers = #tpu.dot_dimension_numbers<[1], [0], [0], [1], [0, 0, 1, 1], [], []>} : vector<8x9xf32>, vector<9x64xf32>, vector<8x64xf32> -> vector<8x64xf32>
    %c0_164 = arith.constant 0 : index
    %c0_165 = arith.constant 0 : index
    %736 = vector.load %arg13[%c0_164, %c0_165] : memref<1x64xf32, #tpu.memory_space<vmem>>, vector<1x64xf32>
    %737 = vector.broadcast %736 : vector<1x64xf32> to vector<8x64xf32>
    %738 = arith.addf %735, %737 : vector<8x64xf32>
    %c0_166 = arith.constant 0 : index
    %c0_167 = arith.constant 0 : index
    %739 = vector.load %arg11[%c0_166, %c0_167] : memref<128x64xf32, #tpu.memory_space<vmem>>, vector<16x64xf32>
    %cst_168 = arith.constant dense<0.000000e+00> : vector<8x64xf32>
    %740 = tpu.matmul %543, %739, %cst_168 {dimension_numbers = #tpu.dot_dimension_numbers<[1], [0], [0], [1], [0, 0, 1, 1], [], []>} : vector<8x16xf32>, vector<16x64xf32>, vector<8x64xf32> -> vector<8x64xf32>
    %741 = arith.addf %738, %740 : vector<8x64xf32>
    %c16 = arith.constant 16 : index
    %c0_169 = arith.constant 0 : index
    %742 = vector.load %arg11[%c16, %c0_169] : memref<128x64xf32, #tpu.memory_space<vmem>>, vector<16x64xf32>
    %cst_170 = arith.constant dense<0.000000e+00> : vector<8x64xf32>
    %743 = tpu.matmul %570, %742, %cst_170 {dimension_numbers = #tpu.dot_dimension_numbers<[1], [0], [0], [1], [0, 0, 1, 1], [], []>} : vector<8x16xf32>, vector<16x64xf32>, vector<8x64xf32> -> vector<8x64xf32>
    %744 = arith.addf %741, %743 : vector<8x64xf32>
    %c32 = arith.constant 32 : index
    %c0_171 = arith.constant 0 : index
    %745 = vector.load %arg11[%c32, %c0_171] : memref<128x64xf32, #tpu.memory_space<vmem>>, vector<16x64xf32>
    %cst_172 = arith.constant dense<0.000000e+00> : vector<8x64xf32>
    %746 = tpu.matmul %597, %745, %cst_172 {dimension_numbers = #tpu.dot_dimension_numbers<[1], [0], [0], [1], [0, 0, 1, 1], [], []>} : vector<8x16xf32>, vector<16x64xf32>, vector<8x64xf32> -> vector<8x64xf32>
    %747 = arith.addf %744, %746 : vector<8x64xf32>
    %c48 = arith.constant 48 : index
    %c0_173 = arith.constant 0 : index
    %748 = vector.load %arg11[%c48, %c0_173] : memref<128x64xf32, #tpu.memory_space<vmem>>, vector<16x64xf32>
    %cst_174 = arith.constant dense<0.000000e+00> : vector<8x64xf32>
    %749 = tpu.matmul %624, %748, %cst_174 {dimension_numbers = #tpu.dot_dimension_numbers<[1], [0], [0], [1], [0, 0, 1, 1], [], []>} : vector<8x16xf32>, vector<16x64xf32>, vector<8x64xf32> -> vector<8x64xf32>
    %750 = arith.addf %747, %749 : vector<8x64xf32>
    %c64 = arith.constant 64 : index
    %c0_175 = arith.constant 0 : index
    %751 = vector.load %arg11[%c64, %c0_175] : memref<128x64xf32, #tpu.memory_space<vmem>>, vector<16x64xf32>
    %cst_176 = arith.constant dense<0.000000e+00> : vector<8x64xf32>
    %752 = tpu.matmul %651, %751, %cst_176 {dimension_numbers = #tpu.dot_dimension_numbers<[1], [0], [0], [1], [0, 0, 1, 1], [], []>} : vector<8x16xf32>, vector<16x64xf32>, vector<8x64xf32> -> vector<8x64xf32>
    %753 = arith.addf %750, %752 : vector<8x64xf32>
    %c80 = arith.constant 80 : index
    %c0_177 = arith.constant 0 : index
    %754 = vector.load %arg11[%c80, %c0_177] : memref<128x64xf32, #tpu.memory_space<vmem>>, vector<16x64xf32>
    %cst_178 = arith.constant dense<0.000000e+00> : vector<8x64xf32>
    %755 = tpu.matmul %678, %754, %cst_178 {dimension_numbers = #tpu.dot_dimension_numbers<[1], [0], [0], [1], [0, 0, 1, 1], [], []>} : vector<8x16xf32>, vector<16x64xf32>, vector<8x64xf32> -> vector<8x64xf32>
    %756 = arith.addf %753, %755 : vector<8x64xf32>
    %c96 = arith.constant 96 : index
    %c0_179 = arith.constant 0 : index
    %757 = vector.load %arg11[%c96, %c0_179] : memref<128x64xf32, #tpu.memory_space<vmem>>, vector<16x64xf32>
    %cst_180 = arith.constant dense<0.000000e+00> : vector<8x64xf32>
    %758 = tpu.matmul %705, %757, %cst_180 {dimension_numbers = #tpu.dot_dimension_numbers<[1], [0], [0], [1], [0, 0, 1, 1], [], []>} : vector<8x16xf32>, vector<16x64xf32>, vector<8x64xf32> -> vector<8x64xf32>
    %759 = arith.addf %756, %758 : vector<8x64xf32>
    %c112 = arith.constant 112 : index
    %c0_181 = arith.constant 0 : index
    %760 = vector.load %arg11[%c112, %c0_181] : memref<128x64xf32, #tpu.memory_space<vmem>>, vector<16x64xf32>
    %cst_182 = arith.constant dense<0.000000e+00> : vector<8x64xf32>
    %761 = tpu.matmul %732, %760, %cst_182 {dimension_numbers = #tpu.dot_dimension_numbers<[1], [0], [0], [1], [0, 0, 1, 1], [], []>} : vector<8x16xf32>, vector<16x64xf32>, vector<8x64xf32> -> vector<8x64xf32>
    %762 = arith.addf %759, %761 : vector<8x64xf32>
    %c0_183 = arith.constant 0 : index
    %c0_184 = arith.constant 0 : index
    %763 = memref.load %arg16[%c0_183, %c0_184] : memref<1x1xf32, #tpu.memory_space<smem>>
    %cst_185 = arith.constant 0.000000e+00 : f32
    %764 = vector.broadcast %cst_185 : f32 to vector<8x64xf32>
    %765 = arith.cmpf oge, %762, %764 : vector<8x64xf32>
    %766 = vector.broadcast %763 : f32 to vector<8x64xf32>
    %767 = arith.mulf %766, %762 : vector<8x64xf32>
    %768 = arith.select %765, %762, %767 : vector<8x64xi1>, vector<8x64xf32>
    %c0_186 = arith.constant 0 : index
    %c0_187 = arith.constant 0 : index
    %769 = vector.load %arg14[%c0_186, %c0_187] : memref<64x32xf32, #tpu.memory_space<vmem>>, vector<64x32xf32>
    %cst_188 = arith.constant dense<0.000000e+00> : vector<8x32xf32>
    %770 = tpu.matmul %768, %769, %cst_188 {dimension_numbers = #tpu.dot_dimension_numbers<[1], [0], [0], [1], [0, 0, 1, 1], [], []>} : vector<8x64xf32>, vector<64x32xf32>, vector<8x32xf32> -> vector<8x32xf32>
    %c0_189 = arith.constant 0 : index
    %c0_190 = arith.constant 0 : index
    %771 = vector.load %arg15[%c0_189, %c0_190] : memref<1x32xf32, #tpu.memory_space<vmem>>, vector<1x32xf32>
    %772 = vector.broadcast %771 : vector<1x32xf32> to vector<8x32xf32>
    %773 = arith.addf %770, %772 : vector<8x32xf32>
    %c0_191 = arith.constant 0 : index
    %c0_192 = arith.constant 0 : index
    %774 = memref.load %arg17[%c0_191, %c0_192] : memref<1x1xf32, #tpu.memory_space<smem>>
    %cst_193 = arith.constant 0.000000e+00 : f32
    %775 = vector.broadcast %cst_193 : f32 to vector<8x32xf32>
    %776 = arith.cmpf oge, %773, %775 : vector<8x32xf32>
    %777 = vector.broadcast %774 : f32 to vector<8x32xf32>
    %778 = arith.mulf %777, %773 : vector<8x32xf32>
    %779 = arith.select %776, %773, %778 : vector<8x32xi1>, vector<8x32xf32>
    %c0_194 = arith.constant 0 : index
    %c0_195 = arith.constant 0 : index
    %780 = vector.load %arg18[%c0_194, %c0_195] : memref<8x32xf32, #tpu.memory_space<vmem>>, vector<8x32xf32>
    tpu.vector_store %arg18[%c0_194, %c0_195], %779 {strides = array<i32>} : memref<8x32xf32, #tpu.memory_space<vmem>>, vector<8x32xf32>,
    return
  }
}

</mosaic_0001>

<llo_original>
// kernel: tpu_custom_call.1
$region0: #{tpu_custom_call.1}
  #allocation0 [shape = 'u32[]', space=smem, size = 0x4, offset = 0x4, fixed_abs, tag = 'smem constant byte address 0x4 - core index']
  #allocation1 [shape = 'u32[144,128]{1,0:T(1,128)}', space=vmem, size = 0x12000, scoped, tag = 'internal scratch']
  #allocation2 [shape = 'f32[1,1]{1,0:T(1,128)S(6)}', space=smem, size = 0x200, scoped, tag = 'scoped memory for tpu_custom_call.1']
  #allocation3 [shape = 'f32[1,1]{1,0:T(1,128)S(6)}', space=smem, size = 0x200, scoped, tag = 'scoped memory for tpu_custom_call.1']
  %s0 = inlined_call_operand.vmem [shape: f32[8,8,18], index: 0, kind: input, shape index: {}]
  %s1 = inlined_call_operand.hbm [shape: f32[8,9], index: 1, kind: input, shape index: {}]
  %s2 = inlined_call_operand.vmem [shape: f32[18,128], index: 2, kind: input, shape index: {}]
  %s3 = inlined_call_operand.vmem [shape: f32[32,128], index: 3, kind: input, shape index: {}]
  %s4 = inlined_call_operand.hbm [shape: f32[1,128], index: 4, kind: input, shape index: {}]
  %s5 = inlined_call_operand.vmem [shape: f32[32,128], index: 5, kind: input, shape index: {}]
  %s6 = inlined_call_operand.vmem [shape: f32[32,128], index: 6, kind: input, shape index: {}]
  %s7 = inlined_call_operand.hbm [shape: f32[1,128], index: 7, kind: input, shape index: {}]
  %s8 = inlined_call_operand.vmem [shape: f32[32,64], index: 8, kind: input, shape index: {}]
  %s9 = inlined_call_operand.vmem [shape: f32[16,64], index: 9, kind: input, shape index: {}]
  %s10 = inlined_call_operand.hbm [shape: f32[1,64], index: 10, kind: input, shape index: {}]
  %s11 = inlined_call_operand.vmem [shape: f32[128,64], index: 11, kind: input, shape index: {}]
  %s12 = inlined_call_operand.vmem [shape: f32[9,64], index: 12, kind: input, shape index: {}]
  %s13 = inlined_call_operand.vmem [shape: f32[1,64], index: 13, kind: input, shape index: {}]
  %s14 = inlined_call_operand.vmem [shape: f32[64,32], index: 14, kind: input, shape index: {}]
  %s15 = inlined_call_operand.vmem [shape: f32[1,32], index: 15, kind: input, shape index: {}]
  %s16 = inlined_call_operand.<no memory space> [shape: f32[1,1], index: 16, kind: input, shape index: {}]
  %s17 = inlined_call_operand.<no memory space> [shape: f32[1,1], index: 17, kind: input, shape index: {}]
  %s18 = inlined_call_operand.hbm [shape: f32[8,32], index: 18, kind: output, shape index: {}]
  %s19 = sld [smem:[#allocation0]]
  $region98: #{tpu_custom_call.1} parent=0
    _
  %s21 = ssub.s32 1, %s19
  %s22 = scalar_select 0, %s21, %s19
  %23 = sst [smem:[#allocation2]] %s16
  %24 = sst [smem:[#allocation3]] %s17
  $region1: #{tpu_custom_call.1} parent=0
    #allocation4 [shape = 'u8[4096]{0}', space=vmem, size = 0x1000, scoped, tag = 'input window, operand 1, single buffered']
    #allocation5 [shape = 's32[1]{0}', space=sflag, size = 0x4, scoped, tag = 'scoped memory for tpu_custom_call.1']
    #allocation6 [shape = 's32[1]{0}', space=sflag, size = 0x4, scoped, tag = 'scoped memory for tpu_custom_call.1']
    #allocation7 [shape = 'u8[512]{0}', space=vmem, size = 0x400, scoped, tag = 'input window, operand 4, single buffered']
    #allocation8 [shape = 's32[1]{0}', space=sflag, size = 0x4, scoped, tag = 'scoped memory for tpu_custom_call.1']
    #allocation9 [shape = 'u8[512]{0}', space=vmem, size = 0x400, scoped, tag = 'input window, operand 7, single buffered']
    #allocation10 [shape = 'u8[512]{0}', space=vmem, size = 0x400, scoped, tag = 'input window, operand 10, single buffered']
    #allocation11 [shape = 's32[1]{0}', space=sflag, size = 0x4, scoped, tag = 'scoped memory for tpu_custom_call.1']
    #allocation12 [shape = 'u8[4096]{0}', space=vmem, size = 0x1000, scoped, tag = 'output window, operand 0, single buffered']
    %25 = vsyncpa [#allocation5], 0
    %26 = vsyncpa [#allocation8], 0
    %27 = vsyncpa [#allocation11], 0
    %28 = vsyncpa [#allocation6], 0
    // Predicated region
    $region2: #{tpu_custom_call.1} parent=1 // pred_check
      _
    $region3: #{tpu_custom_call.1} parent=1 // pred_check_branch
      %30 = sbr.rel (0) target = $region5
    $region4: #{tpu_custom_call.1} parent=1 // pred_region
      _
    $region5: #{tpu_custom_call.1} parent=1 // pred_fallthru
      _
    // Predicated region
    $region6: #{tpu_custom_call.1} parent=1 // pred_check
      _
    $region7: #{tpu_custom_call.1} parent=1 // pred_check_branch
      %32 = sbr.rel (0) target = $region9
    $region8: #{tpu_custom_call.1} parent=1 // pred_region
      %s34 = ssub.s32 128, 128
      %35 = vsyncadd [#allocation5], %s34
      %s37 = sshll.u32 [#allocation4], 4
      %s38 = int_to_ptr.vmem [resolvable:$true] %s37
      %40 = dma.hbm_to_vmem [thread:$0]  %s1, 128, %s38, [#allocation5]
    $region9: #{tpu_custom_call.1} parent=1 // pred_fallthru
      _
    // Predicated region
    $region10: #{tpu_custom_call.1} parent=1 // pred_check
      _
    $region11: #{tpu_custom_call.1} parent=1 // pred_check_branch
      %42 = sbr.rel (0) target = $region13
    $region12: #{tpu_custom_call.1} parent=1 // pred_region
      _
    $region13: #{tpu_custom_call.1} parent=1 // pred_fallthru
      _
    // Predicated region
    $region14: #{tpu_custom_call.1} parent=1 // pred_check
      _
    $region15: #{tpu_custom_call.1} parent=1 // pred_check_branch
      %44 = sbr.rel (0) target = $region17
    $region16: #{tpu_custom_call.1} parent=1 // pred_region
      _
    $region17: #{tpu_custom_call.1} parent=1 // pred_fallthru
      _
    // Predicated region
    $region18: #{tpu_custom_call.1} parent=1 // pred_check
      _
    $region19: #{tpu_custom_call.1} parent=1 // pred_check_branch
      %46 = sbr.rel (0) target = $region21
    $region20: #{tpu_custom_call.1} parent=1 // pred_region
      %s48 = ssub.s32 16, 16
      %49 = vsyncadd [#allocation8], %s48
      %s51 = sshll.u32 [#allocation7], 4
      %s52 = int_to_ptr.vmem [resolvable:$true] %s51
      %54 = dma.hbm_to_vmem [thread:$0]  %s4, 16, %s52, [#allocation8]
    $region21: #{tpu_custom_call.1} parent=1 // pred_fallthru
      _
    // Predicated region
    $region22: #{tpu_custom_call.1} parent=1 // pred_check
      _
    $region23: #{tpu_custom_call.1} parent=1 // pred_check_branch
      %56 = sbr.rel (0) target = $region25
    $region24: #{tpu_custom_call.1} parent=1 // pred_region
      _
    $region25: #{tpu_custom_call.1} parent=1 // pred_fallthru
      _
    // Predicated region
    $region26: #{tpu_custom_call.1} parent=1 // pred_check
      _
    $region27: #{tpu_custom_call.1} parent=1 // pred_check_branch
      %58 = sbr.rel (0) target = $region29
    $region28: #{tpu_custom_call.1} parent=1 // pred_region
      _
    $region29: #{tpu_custom_call.1} parent=1 // pred_fallthru
      _
    // Predicated region
    $region30: #{tpu_custom_call.1} parent=1 // pred_check
      _
    $region31: #{tpu_custom_call.1} parent=1 // pred_check_branch
      %60 = sbr.rel (0) target = $region33
    $region32: #{tpu_custom_call.1} parent=1 // pred_region
      %s62 = ssub.s32 16, 16
      %63 = vsyncadd [#allocation8], %s62
      %s65 = sshll.u32 [#allocation9], 4
      %s66 = int_to_ptr.vmem [resolvable:$true] %s65
      %68 = dma.hbm_to_vmem [thread:$0]  %s7, 16, %s66, [#allocation8]
    $region33: #{tpu_custom_call.1} parent=1 // pred_fallthru
      _
    // Predicated region
    $region34: #{tpu_custom_call.1} parent=1 // pred_check
      _
    $region35: #{tpu_custom_call.1} parent=1 // pred_check_branch
      %70 = sbr.rel (0) target = $region37
    $region36: #{tpu_custom_call.1} parent=1 // pred_region
      _
    $region37: #{tpu_custom_call.1} parent=1 // pred_fallthru
      _
    // Predicated region
    $region38: #{tpu_custom_call.1} parent=1 // pred_check
      _
    $region39: #{tpu_custom_call.1} parent=1 // pred_check_branch
      %72 = sbr.rel (0) target = $region41
    $region40: #{tpu_custom_call.1} parent=1 // pred_region
      _
    $region41: #{tpu_custom_call.1} parent=1 // pred_fallthru
      _
    // Predicated region
    $region42: #{tpu_custom_call.1} parent=1 // pred_check
      _
    $region43: #{tpu_custom_call.1} parent=1 // pred_check_branch
      %74 = sbr.rel (0) target = $region45
    $region44: #{tpu_custom_call.1} parent=1 // pred_region
      %s76 = ssub.s32 16, 16
      %77 = vsyncadd [#allocation11], %s76
      %s79 = sshll.u32 [#allocation10], 4
      %s80 = int_to_ptr.vmem [resolvable:$true] %s79
      %82 = dma.hbm_to_vmem [thread:$0]  %s10, 16, %s80, [#allocation11]
    $region45: #{tpu_custom_call.1} parent=1 // pred_fallthru
      _
    // Predicated region
    $region46: #{tpu_custom_call.1} parent=1 // pred_check
      _
    $region47: #{tpu_custom_call.1} parent=1 // pred_check_branch
      %84 = sbr.rel (0) target = $region49
    $region48: #{tpu_custom_call.1} parent=1 // pred_region
      _
    $region49: #{tpu_custom_call.1} parent=1 // pred_fallthru
      _
    // Predicated region
    $region50: #{tpu_custom_call.1} parent=1 // pred_check
      _
    $region51: #{tpu_custom_call.1} parent=1 // pred_check_branch
      %86 = sbr.rel (0) target = $region53
    $region52: #{tpu_custom_call.1} parent=1 // pred_region
      _
    $region53: #{tpu_custom_call.1} parent=1 // pred_fallthru
      _
    // Predicated region
    $region54: #{tpu_custom_call.1} parent=1 // pred_check
      _
    $region55: #{tpu_custom_call.1} parent=1 // pred_check_branch
      %88 = sbr.rel (0) target = $region57
    $region56: #{tpu_custom_call.1} parent=1 // pred_region
      _
    $region57: #{tpu_custom_call.1} parent=1 // pred_fallthru
      _
    // Predicated region
    $region58: #{tpu_custom_call.1} parent=1 // pred_check
      _
    $region59: #{tpu_custom_call.1} parent=1 // pred_check_branch
      %90 = sbr.rel (0) target = $region61
    $region60: #{tpu_custom_call.1} parent=1 // pred_region
      _
    $region61: #{tpu_custom_call.1} parent=1 // pred_fallthru
      _
    // Predicated region
    $region62: #{tpu_custom_call.1} parent=1 // pred_check
      _
    $region63: #{tpu_custom_call.1} parent=1 // pred_check_branch
      %92 = sbr.rel (0) target = $region65
    $region64: #{tpu_custom_call.1} parent=1 // pred_region
      _
    $region65: #{tpu_custom_call.1} parent=1 // pred_fallthru
      _
    // Predicated region
    $region66: #{tpu_custom_call.1} parent=1 // pred_check
      _
    $region67: #{tpu_custom_call.1} parent=1 // pred_check_branch
      %94 = sbr.rel (0) target = $region69
    $region68: #{tpu_custom_call.1} parent=1 // pred_region
      _
    $region69: #{tpu_custom_call.1} parent=1 // pred_fallthru
      _
    // Predicated region
    $region70: #{tpu_custom_call.1} parent=1 // pred_check
      _
    $region71: #{tpu_custom_call.1} parent=1 // pred_check_branch
      %96 = sbr.rel (0) target = $region73
    $region72: #{tpu_custom_call.1} parent=1 // pred_region
      _
    $region73: #{tpu_custom_call.1} parent=1 // pred_fallthru
      _
    // Predicated region
    $region74: #{tpu_custom_call.1} parent=1 // pred_check
      _
    $region75: #{tpu_custom_call.1} parent=1 // pred_check_branch
      %98 = sbr.rel (0) target = $region77
    $region76: #{tpu_custom_call.1} parent=1 // pred_region
      %99 = dma.done [#allocation5], 128
    $region77: #{tpu_custom_call.1} parent=1 // pred_fallthru
      _
    // Predicated region
    $region78: #{tpu_custom_call.1} parent=1 // pred_check
      _
    $region79: #{tpu_custom_call.1} parent=1 // pred_check_branch
      %101 = sbr.rel (0) target = $region81
    $region80: #{tpu_custom_call.1} parent=1 // pred_region
      %102 = dma.done [#allocation8], 16
    $region81: #{tpu_custom_call.1} parent=1 // pred_fallthru
      _
    // Predicated region
    $region82: #{tpu_custom_call.1} parent=1 // pred_check
      _
    $region83: #{tpu_custom_call.1} parent=1 // pred_check_branch
      %104 = sbr.rel (0) target = $region85
    $region84: #{tpu_custom_call.1} parent=1 // pred_region
      %105 = dma.done [#allocation8], 16
    $region85: #{tpu_custom_call.1} parent=1 // pred_fallthru
      _
    // Predicated region
    $region86: #{tpu_custom_call.1} parent=1 // pred_check
      _
    $region87: #{tpu_custom_call.1} parent=1 // pred_check_branch
      %107 = sbr.rel (0) target = $region89
    $region88: #{tpu_custom_call.1} parent=1 // pred_region
      %108 = dma.done [#allocation11], 16
    $region89: #{tpu_custom_call.1} parent=1 // pred_fallthru
      _
    %v109 = vld [vmem:[%s0] sm:$0x1]
    %v110 = vld [vmem:[%s0 + $0x8] sm:$0x1]
    %v111 = vld [vmem:[%s0 + $0x10] sm:$0x1]
    %v112 = vld [vmem:[%s0 + $0x18] sm:$0x1]
    %v113 = vld [vmem:[%s0 + $0x20] sm:$0x1]
    %v114 = vld [vmem:[%s0 + $0x28] sm:$0x1]
    %v115 = vld [vmem:[%s0 + $0x30] sm:$0x1]
    %v116 = vld [vmem:[%s0 + $0x38] sm:$0x1]
    %v117 = vld [vmem:[%s0 + $0x1] sm:$0x1]
    %v118 = vld [vmem:[%s0 + $0x9] sm:$0x1]
    %v119 = vld [vmem:[%s0 + $0x11] sm:$0x1]
    %v120 = vld [vmem:[%s0 + $0x19] sm:$0x1]
    %v121 = vld [vmem:[%s0 + $0x21] sm:$0x1]
    %v122 = vld [vmem:[%s0 + $0x29] sm:$0x1]
    %v123 = vld [vmem:[%s0 + $0x31] sm:$0x1]
    %v124 = vld [vmem:[%s0 + $0x39] sm:$0x1]
    %v125 = vld [vmem:[%s0 + $0x2] sm:$0x1]
    %v126 = vld [vmem:[%s0 + $0xa] sm:$0x1]
    %v127 = vld [vmem:[%s0 + $0x12] sm:$0x1]
    %v128 = vld [vmem:[%s0 + $0x1a] sm:$0x1]
    %v129 = vld [vmem:[%s0 + $0x22] sm:$0x1]
    %v130 = vld [vmem:[%s0 + $0x2a] sm:$0x1]
    %v131 = vld [vmem:[%s0 + $0x32] sm:$0x1]
    %v132 = vld [vmem:[%s0 + $0x3a] sm:$0x1]
    %v133 = vld [vmem:[%s0 + $0x3] sm:$0x1]
    %v134 = vld [vmem:[%s0 + $0xb] sm:$0x1]
    %v135 = vld [vmem:[%s0 + $0x13] sm:$0x1]
    %v136 = vld [vmem:[%s0 + $0x1b] sm:$0x1]
    %v137 = vld [vmem:[%s0 + $0x23] sm:$0x1]
    %v138 = vld [vmem:[%s0 + $0x2b] sm:$0x1]
    %v139 = vld [vmem:[%s0 + $0x33] sm:$0x1]
    %v140 = vld [vmem:[%s0 + $0x3b] sm:$0x1]
    %v141 = vld [vmem:[%s0 + $0x4] sm:$0x1]
    %v142 = vld [vmem:[%s0 + $0xc] sm:$0x1]
    %v143 = vld [vmem:[%s0 + $0x14] sm:$0x1]
    %v144 = vld [vmem:[%s0 + $0x1c] sm:$0x1]
    %v145 = vld [vmem:[%s0 + $0x24] sm:$0x1]
    %v146 = vld [vmem:[%s0 + $0x2c] sm:$0x1]
    %v147 = vld [vmem:[%s0 + $0x34] sm:$0x1]
    %v148 = vld [vmem:[%s0 + $0x3c] sm:$0x1]
    %v149 = vld [vmem:[%s0 + $0x5] sm:$0x1]
    %v150 = vld [vmem:[%s0 + $0xd] sm:$0x1]
    %v151 = vld [vmem:[%s0 + $0x15] sm:$0x1]
    %v152 = vld [vmem:[%s0 + $0x1d] sm:$0x1]
    %v153 = vld [vmem:[%s0 + $0x25] sm:$0x1]
    %v154 = vld [vmem:[%s0 + $0x2d] sm:$0x1]
    %v155 = vld [vmem:[%s0 + $0x35] sm:$0x1]
    %v156 = vld [vmem:[%s0 + $0x3d] sm:$0x1]
    %v157 = vld [vmem:[%s0 + $0x6] sm:$0x1]
    %v158 = vld [vmem:[%s0 + $0xe] sm:$0x1]
    %v159 = vld [vmem:[%s0 + $0x16] sm:$0x1]
    %v160 = vld [vmem:[%s0 + $0x1e] sm:$0x1]
    %v161 = vld [vmem:[%s0 + $0x26] sm:$0x1]
    %v162 = vld [vmem:[%s0 + $0x2e] sm:$0x1]
    %v163 = vld [vmem:[%s0 + $0x36] sm:$0x1]
    %v164 = vld [vmem:[%s0 + $0x3e] sm:$0x1]
    %v165 = vld [vmem:[%s0 + $0x7] sm:$0x1]
    %v166 = vld [vmem:[%s0 + $0xf] sm:$0x1]
    %v167 = vld [vmem:[%s0 + $0x17] sm:$0x1]
    %v168 = vld [vmem:[%s0 + $0x1f] sm:$0x1]
    %v169 = vld [vmem:[%s0 + $0x27] sm:$0x1]
    %v170 = vld [vmem:[%s0 + $0x2f] sm:$0x1]
    %v171 = vld [vmem:[%s0 + $0x37] sm:$0x1]
    %v172 = vld [vmem:[%s0 + $0x3f] sm:$0x1]
    %v173 = vld [vmem:[%s2] sm:$0xff]
    %v174 = vld [vmem:[%s2 + $0x8] sm:$0xff]
    %v175 = vld [vmem:[%s2 + $0x10] sm:$0x3]
    %v176 = vld [vmem:[%s3] sm:$0xff]
    %v177 = vld [vmem:[%s3 + $0x8] sm:$0xff]
    %v178 = vld [vmem:[%s3 + $0x10] sm:$0xff]
    %v179 = vld [vmem:[%s3 + $0x18] sm:$0xff]
    %v180 = vld [vmem:[#allocation7] sm:$0x1]
    %v182 = vlaneseq
    %v183 = vshrl.u32 %v182, 7
    %v184 = vsub.s32 0, %v183
    %v185 = vrot.slane %v180, %v184
    %v195 = vrot.slane %v110, 7
    %vm196 = vcmask 1041409
    %v197 = vsel %vm196, %v195, %v109
    %v198 = vrot.slane %v111, 6
    %vm199 = vcmask 1042434
    %v200 = vsel %vm199, %v198, %v197
    %v201 = vrot.slane %v112, 5
    %vm202 = vcmask 1043459
    %v203 = vsel %vm202, %v201, %v200
    %v204 = vrot.slane %v113, 4
    %vm205 = vcmask 1044484
    %v206 = vsel %vm205, %v204, %v203
    %v207 = vrot.slane %v114, 3
    %vm208 = vcmask 1045509
    %v209 = vsel %vm208, %v207, %v206
    %v210 = vrot.slane %v115, 2
    %vm211 = vcmask 1046534
    %v212 = vsel %vm211, %v210, %v209
    %v213 = vrot.slane %v116, 1
    %vm214 = vcmask 1047559
    %v215 = vsel %vm214, %v213, %v212
    %vm216 = vcmask 146432
    %v217 = vsel %vm216, %v215, 0
    %vm219 = vcmask 1041408
    %v221 = vsel %vm219, %v175, 0
    %223 = vmatprep.subr.mxu0 0.0
    %224 = vmatpush1.msra.mxu0 0.0
    %225 = vmatprep.subr.mxu0 0.0
    %226 = vmatpush1.msra.mxu0 0.0
    %227 = vmatprep.subr.mxu0 0.0
    %228 = vmatpush1.msra.mxu0 0.0
    %229 = vmatprep.subr.mxu0 0.0
    %230 = vmatpush1.msra.mxu0 0.0
    %231 = vmatprep.subr.mxu0 0.0
    %232 = vmatpush1.msra.mxu0 0.0
    %233 = vmatprep.subr.mxu0 0.0
    %234 = vmatpush1.msra.mxu0 0.0
    %235 = vmatprep.subr.mxu0 0.0
    %236 = vmatpush1.msra.mxu0 0.0
    %237 = vmatprep.subr.mxu0 0.0
    %238 = vmatpush1.msra.mxu0 0.0
    %239 = vmatprep.subr.mxu0 0.0
    %240 = vmatpush1.msra.mxu0 0.0
    %241 = vmatprep.subr.mxu0 0.0
    %242 = vmatpush1.msra.mxu0 0.0
    %243 = vmatprep.subr.mxu0 0.0
    %244 = vmatpush1.msra.mxu0 0.0
    %245 = vmatprep.subr.mxu0 0.0
    %246 = vmatpush1.msra.mxu0 0.0
    %247 = vmatprep.subr.mxu0 0.0
    %248 = vmatpush1.msra.mxu0 0.0
    %249 = vmatprep.subr.mxu0 0.0
    %250 = vmatpush1.msra.mxu0 %v221
    %251 = vmatprep.subr.mxu0 0.0
    %252 = vmatpush1.msra.mxu0 %v174
    %253 = vmatprep.subr.mxu0 0.0
    %254 = vmatpush1.msra.mxu0 %v173
    %255 = vmatprep.subr.mxu0 0.0
    %256 = vmatpush2.msra.mxu0 0.0
    %257 = vmatprep.subr.mxu0 0.0
    %258 = vmatpush2.msra.mxu0 0.0
    %259 = vmatprep.subr.mxu0 0.0
    %260 = vmatpush2.msra.mxu0 0.0
    %261 = vmatprep.subr.mxu0 0.0
    %262 = vmatpush2.msra.mxu0 0.0
    %263 = vmatprep.subr.mxu0 0.0
    %264 = vmatpush2.msra.mxu0 0.0
    %265 = vmatprep.subr.mxu0 0.0
    %266 = vmatpush2.msra.mxu0 0.0
    %267 = vmatprep.subr.mxu0 0.0
    %268 = vmatpush2.msra.mxu0 0.0
    %269 = vmatprep.subr.mxu0 0.0
    %270 = vmatpush2.msra.mxu0 0.0
    %271 = vmatprep.subr.mxu0 0.0
    %272 = vmatpush2.msra.mxu0 0.0
    %273 = vmatprep.subr.mxu0 0.0
    %274 = vmatpush2.msra.mxu0 0.0
    %275 = vmatprep.subr.mxu0 0.0
    %276 = vmatpush2.msra.mxu0 0.0
    %277 = vmatprep.subr.mxu0 0.0
    %278 = vmatpush2.msra.mxu0 0.0
    %279 = vmatprep.subr.mxu0 0.0
    %280 = vmatpush2.msra.mxu0 0.0
    %281 = vmatprep.subr.mxu0 0.0
    %282 = vmatpush2.msra.mxu0 0.0
    %283 = vmatprep.subr.mxu0 0.0
    %284 = vmatpush2.msra.mxu0 0.0
    %285 = vmatprep.subr.mxu0 0.0
    %286 = vmatpush2.msra.mxu0 0.0
    %287 = vmatprep.mubr.f32.mxu0 0.0
    %288 = vmatmul.mubr.f32.gmra.mxu0 %v217
    %v289 = vpop.f32.mrf.mxu0
    %v290 = vadd.f32 %v185, %v289
    %v291 = vpop.f32.mrf.mxu0
    %292 = vdwg.mxu0
    %v301 = vrot.slane %v118, 7
    %v302 = vsel %vm196, %v301, %v117
    %v303 = vrot.slane %v119, 6
    %v304 = vsel %vm199, %v303, %v302
    %v305 = vrot.slane %v120, 5
    %v306 = vsel %vm202, %v305, %v304
    %v307 = vrot.slane %v121, 4
    %v308 = vsel %vm205, %v307, %v306
    %v309 = vrot.slane %v122, 3
    %v310 = vsel %vm208, %v309, %v308
    %v311 = vrot.slane %v123, 2
    %v312 = vsel %vm211, %v311, %v310
    %v313 = vrot.slane %v124, 1
    %v314 = vsel %vm214, %v313, %v312
    %v315 = vsel %vm216, %v314, 0
    %317 = vmatprep.subr.mxu0 0.0
    %318 = vmatpush1.msra.mxu0 0.0
    %319 = vmatprep.subr.mxu0 0.0
    %320 = vmatpush1.msra.mxu0 0.0
    %321 = vmatprep.subr.mxu0 0.0
    %322 = vmatpush1.msra.mxu0 0.0
    %323 = vmatprep.subr.mxu0 0.0
    %324 = vmatpush1.msra.mxu0 0.0
    %325 = vmatprep.subr.mxu0 0.0
    %326 = vmatpush1.msra.mxu0 0.0
    %327 = vmatprep.subr.mxu0 0.0
    %328 = vmatpush1.msra.mxu0 0.0
    %329 = vmatprep.subr.mxu0 0.0
    %330 = vmatpush1.msra.mxu0 0.0
    %331 = vmatprep.subr.mxu0 0.0
    %332 = vmatpush1.msra.mxu0 0.0
    %333 = vmatprep.subr.mxu0 0.0
    %334 = vmatpush1.msra.mxu0 0.0
    %335 = vmatprep.subr.mxu0 0.0
    %336 = vmatpush1.msra.mxu0 0.0
    %337 = vmatprep.subr.mxu0 0.0
    %338 = vmatpush1.msra.mxu0 0.0
    %339 = vmatprep.subr.mxu0 0.0
    %340 = vmatpush1.msra.mxu0 0.0
    %341 = vmatprep.subr.mxu0 0.0
    %342 = vmatpush1.msra.mxu0 0.0
    %343 = vmatprep.subr.mxu0 0.0
    %344 = vmatpush1.msra.mxu0 %v221
    %345 = vmatprep.subr.mxu0 0.0
    %346 = vmatpush1.msra.mxu0 %v174
    %347 = vmatprep.subr.mxu0 0.0
    %348 = vmatpush1.msra.mxu0 %v173
    %349 = vmatprep.subr.mxu0 0.0
    %350 = vmatpush2.msra.mxu0 0.0
    %351 = vmatprep.subr.mxu0 0.0
    %352 = vmatpush2.msra.mxu0 0.0
    %353 = vmatprep.subr.mxu0 0.0
    %354 = vmatpush2.msra.mxu0 0.0
    %355 = vmatprep.subr.mxu0 0.0
    %356 = vmatpush2.msra.mxu0 0.0
    %357 = vmatprep.subr.mxu0 0.0
    %358 = vmatpush2.msra.mxu0 0.0
    %359 = vmatprep.subr.mxu0 0.0
    %360 = vmatpush2.msra.mxu0 0.0
    %361 = vmatprep.subr.mxu0 0.0
    %362 = vmatpush2.msra.mxu0 0.0
    %363 = vmatprep.subr.mxu0 0.0
    %364 = vmatpush2.msra.mxu0 0.0
    %365 = vmatprep.subr.mxu0 0.0
    %366 = vmatpush2.msra.mxu0 0.0
    %367 = vmatprep.subr.mxu0 0.0
    %368 = vmatpush2.msra.mxu0 0.0
    %369 = vmatprep.subr.mxu0 0.0
    %370 = vmatpush2.msra.mxu0 0.0
    %371 = vmatprep.subr.mxu0 0.0
    %372 = vmatpush2.msra.mxu0 0.0
    %373 = vmatprep.subr.mxu0 0.0
    %374 = vmatpush2.msra.mxu0 0.0
    %375 = vmatprep.subr.mxu0 0.0
    %376 = vmatpush2.msra.mxu0 0.0
    %377 = vmatprep.subr.mxu0 0.0
    %378 = vmatpush2.msra.mxu0 0.0
    %379 = vmatprep.subr.mxu0 0.0
    %380 = vmatpush2.msra.mxu0 0.0
    %381 = vmatprep.mubr.f32.mxu0 0.0
    %382 = vmatmul.mubr.f32.gmra.mxu0 %v315
    %v383 = vpop.f32.mrf.mxu0
    %v384 = vadd.f32 %v185, %v383
    %v385 = vpop.f32.mrf.mxu0
    %386 = vdwg.mxu0
    %v395 = vrot.slane %v126, 7
    %v396 = vsel %vm196, %v395, %v125
    %v397 = vrot.slane %v127, 6
    %v398 = vsel %vm199, %v397, %v396
    %v399 = vrot.slane %v128, 5
    %v400 = vsel %vm202, %v399, %v398
    %v401 = vrot.slane %v129, 4
    %v402 = vsel %vm205, %v401, %v400
    %v403 = vrot.slane %v130, 3
    %v404 = vsel %vm208, %v403, %v402
    %v405 = vrot.slane %v131, 2
    %v406 = vsel %vm211, %v405, %v404
    %v407 = vrot.slane %v132, 1
    %v408 = vsel %vm214, %v407, %v406
    %v409 = vsel %vm216, %v408, 0
    %411 = vmatprep.subr.mxu0 0.0
    %412 = vmatpush1.msra.mxu0 0.0
    %413 = vmatprep.subr.mxu0 0.0
    %414 = vmatpush1.msra.mxu0 0.0
    %415 = vmatprep.subr.mxu0 0.0
    %416 = vmatpush1.msra.mxu0 0.0
    %417 = vmatprep.subr.mxu0 0.0
    %418 = vmatpush1.msra.mxu0 0.0
    %419 = vmatprep.subr.mxu0 0.0
    %420 = vmatpush1.msra.mxu0 0.0
    %421 = vmatprep.subr.mxu0 0.0
    %422 = vmatpush1.msra.mxu0 0.0
    %423 = vmatprep.subr.mxu0 0.0
    %424 = vmatpush1.msra.mxu0 0.0
    %425 = vmatprep.subr.mxu0 0.0
    %426 = vmatpush1.msra.mxu0 0.0
    %427 = vmatprep.subr.mxu0 0.0
    %428 = vmatpush1.msra.mxu0 0.0
    %429 = vmatprep.subr.mxu0 0.0
    %430 = vmatpush1.msra.mxu0 0.0
    %431 = vmatprep.subr.mxu0 0.0
    %432 = vmatpush1.msra.mxu0 0.0
    %433 = vmatprep.subr.mxu0 0.0
    %434 = vmatpush1.msra.mxu0 0.0
    %435 = vmatprep.subr.mxu0 0.0
    %436 = vmatpush1.msra.mxu0 0.0
    %437 = vmatprep.subr.mxu0 0.0
    %438 = vmatpush1.msra.mxu0 %v221
    %439 = vmatprep.subr.mxu0 0.0
    %440 = vmatpush1.msra.mxu0 %v174
    %441 = vmatprep.subr.mxu0 0.0
    %442 = vmatpush1.msra.mxu0 %v173
    %443 = vmatprep.subr.mxu0 0.0
    %444 = vmatpush2.msra.mxu0 0.0
    %445 = vmatprep.subr.mxu0 0.0
    %446 = vmatpush2.msra.mxu0 0.0
    %447 = vmatprep.subr.mxu0 0.0
    %448 = vmatpush2.msra.mxu0 0.0
    %449 = vmatprep.subr.mxu0 0.0
    %450 = vmatpush2.msra.mxu0 0.0
    %451 = vmatprep.subr.mxu0 0.0
    %452 = vmatpush2.msra.mxu0 0.0
    %453 = vmatprep.subr.mxu0 0.0
    %454 = vmatpush2.msra.mxu0 0.0
    %455 = vmatprep.subr.mxu0 0.0
    %456 = vmatpush2.msra.mxu0 0.0
    %457 = vmatprep.subr.mxu0 0.0
    %458 = vmatpush2.msra.mxu0 0.0
    %459 = vmatprep.subr.mxu0 0.0
    %460 = vmatpush2.msra.mxu0 0.0
    %461 = vmatprep.subr.mxu0 0.0
    %462 = vmatpush2.msra.mxu0 0.0
    %463 = vmatprep.subr.mxu0 0.0
    %464 = vmatpush2.msra.mxu0 0.0
    %465 = vmatprep.subr.mxu0 0.0
    %466 = vmatpush2.msra.mxu0 0.0
    %467 = vmatprep.subr.mxu0 0.0
    %468 = vmatpush2.msra.mxu0 0.0
    %469 = vmatprep.subr.mxu0 0.0
    %470 = vmatpush2.msra.mxu0 0.0
    %471 = vmatprep.subr.mxu0 0.0
    %472 = vmatpush2.msra.mxu0 0.0
    %473 = vmatprep.subr.mxu0 0.0
    %474 = vmatpush2.msra.mxu0 0.0
    %475 = vmatprep.mubr.f32.mxu0 0.0
    %476 = vmatmul.mubr.f32.gmra.mxu0 %v409
    %v477 = vpop.f32.mrf.mxu0
    %v478 = vadd.f32 %v185, %v477
    %v479 = vpop.f32.mrf.mxu0
    %480 = vdwg.mxu0
    %v489 = vrot.slane %v134, 7
    %v490 = vsel %vm196, %v489, %v133
    %v491 = vrot.slane %v135, 6
    %v492 = vsel %vm199, %v491, %v490
    %v493 = vrot.slane %v136, 5
    %v494 = vsel %vm202, %v493, %v492
    %v495 = vrot.slane %v137, 4
    %v496 = vsel %vm205, %v495, %v494
    %v497 = vrot.slane %v138, 3
    %v498 = vsel %vm208, %v497, %v496
    %v499 = vrot.slane %v139, 2
    %v500 = vsel %vm211, %v499, %v498
    %v501 = vrot.slane %v140, 1
    %v502 = vsel %vm214, %v501, %v500
    %v503 = vsel %vm216, %v502, 0
    %505 = vmatprep.subr.mxu0 0.0
    %506 = vmatpush1.msra.mxu0 0.0
    %507 = vmatprep.subr.mxu0 0.0
    %508 = vmatpush1.msra.mxu0 0.0
    %509 = vmatprep.subr.mxu0 0.0
    %510 = vmatpush1.msra.mxu0 0.0
    %511 = vmatprep.subr.mxu0 0.0
    %512 = vmatpush1.msra.mxu0 0.0
    %513 = vmatprep.subr.mxu0 0.0
    %514 = vmatpush1.msra.mxu0 0.0
    %515 = vmatprep.subr.mxu0 0.0
    %516 = vmatpush1.msra.mxu0 0.0
    %517 = vmatprep.subr.mxu0 0.0
    %518 = vmatpush1.msra.mxu0 0.0
    %519 = vmatprep.subr.mxu0 0.0
    %520 = vmatpush1.msra.mxu0 0.0
    %521 = vmatprep.subr.mxu0 0.0
    %522 = vmatpush1.msra.mxu0 0.0
    %523 = vmatprep.subr.mxu0 0.0
    %524 = vmatpush1.msra.mxu0 0.0
    %525 = vmatprep.subr.mxu0 0.0
    %526 = vmatpush1.msra.mxu0 0.0
    %527 = vmatprep.subr.mxu0 0.0
    %528 = vmatpush1.msra.mxu0 0.0
    %529 = vmatprep.subr.mxu0 0.0
    %530 = vmatpush1.msra.mxu0 0.0
    %531 = vmatprep.subr.mxu0 0.0
    %532 = vmatpush1.msra.mxu0 %v221
    %533 = vmatprep.subr.mxu0 0.0
    %534 = vmatpush1.msra.mxu0 %v174
    %535 = vmatprep.subr.mxu0 0.0
    %536 = vmatpush1.msra.mxu0 %v173
    %537 = vmatprep.subr.mxu0 0.0
    %538 = vmatpush2.msra.mxu0 0.0
    %539 = vmatprep.subr.mxu0 0.0
    %540 = vmatpush2.msra.mxu0 0.0
    %541 = vmatprep.subr.mxu0 0.0
    %542 = vmatpush2.msra.mxu0 0.0
    %543 = vmatprep.subr.mxu0 0.0
    %544 = vmatpush2.msra.mxu0 0.0
    %545 = vmatprep.subr.mxu0 0.0
    %546 = vmatpush2.msra.mxu0 0.0
    %547 = vmatprep.subr.mxu0 0.0
    %548 = vmatpush2.msra.mxu0 0.0
    %549 = vmatprep.subr.mxu0 0.0
    %550 = vmatpush2.msra.mxu0 0.0
    %551 = vmatprep.subr.mxu0 0.0
    %552 = vmatpush2.msra.mxu0 0.0
    %553 = vmatprep.subr.mxu0 0.0
    %554 = vmatpush2.msra.mxu0 0.0
    %555 = vmatprep.subr.mxu0 0.0
    %556 = vmatpush2.msra.mxu0 0.0
    %557 = vmatprep.subr.mxu0 0.0
    %558 = vmatpush2.msra.mxu0 0.0
    %559 = vmatprep.subr.mxu0 0.0
    %560 = vmatpush2.msra.mxu0 0.0
    %561 = vmatprep.subr.mxu0 0.0
    %562 = vmatpush2.msra.mxu0 0.0
    %563 = vmatprep.subr.mxu0 0.0
    %564 = vmatpush2.msra.mxu0 0.0
    %565 = vmatprep.subr.mxu0 0.0
    %566 = vmatpush2.msra.mxu0 0.0
    %567 = vmatprep.subr.mxu0 0.0
    %568 = vmatpush2.msra.mxu0 0.0
    %569 = vmatprep.mubr.f32.mxu0 0.0
    %570 = vmatmul.mubr.f32.gmra.mxu0 %v503
    %v571 = vpop.f32.mrf.mxu0
    %v572 = vadd.f32 %v185, %v571
    %v573 = vpop.f32.mrf.mxu0
    %574 = vdwg.mxu0
    %v583 = vrot.slane %v142, 7
    %v584 = vsel %vm196, %v583, %v141
    %v585 = vrot.slane %v143, 6
    %v586 = vsel %vm199, %v585, %v584
    %v587 = vrot.slane %v144, 5
    %v588 = vsel %vm202, %v587, %v586
    %v589 = vrot.slane %v145, 4
    %v590 = vsel %vm205, %v589, %v588
    %v591 = vrot.slane %v146, 3
    %v592 = vsel %vm208, %v591, %v590
    %v593 = vrot.slane %v147, 2
    %v594 = vsel %vm211, %v593, %v592
    %v595 = vrot.slane %v148, 1
    %v596 = vsel %vm214, %v595, %v594
    %v597 = vsel %vm216, %v596, 0
    %599 = vmatprep.subr.mxu0 0.0
    %600 = vmatpush1.msra.mxu0 0.0
    %601 = vmatprep.subr.mxu0 0.0
    %602 = vmatpush1.msra.mxu0 0.0
    %603 = vmatprep.subr.mxu0 0.0
    %604 = vmatpush1.msra.mxu0 0.0
    %605 = vmatprep.subr.mxu0 0.0
    %606 = vmatpush1.msra.mxu0 0.0
    %607 = vmatprep.subr.mxu0 0.0
    %608 = vmatpush1.msra.mxu0 0.0
    %609 = vmatprep.subr.mxu0 0.0
    %610 = vmatpush1.msra.mxu0 0.0
    %611 = vmatprep.subr.mxu0 0.0
    %612 = vmatpush1.msra.mxu0 0.0
    %613 = vmatprep.subr.mxu0 0.0
    %614 = vmatpush1.msra.mxu0 0.0
    %615 = vmatprep.subr.mxu0 0.0
    %616 = vmatpush1.msra.mxu0 0.0
    %617 = vmatprep.subr.mxu0 0.0
    %618 = vmatpush1.msra.mxu0 0.0
    %619 = vmatprep.subr.mxu0 0.0
    %620 = vmatpush1.msra.mxu0 0.0
    %621 = vmatprep.subr.mxu0 0.0
    %622 = vmatpush1.msra.mxu0 0.0
    %623 = vmatprep.subr.mxu0 0.0
    %624 = vmatpush1.msra.mxu0 0.0
    %625 = vmatprep.subr.mxu0 0.0
    %626 = vmatpush1.msra.mxu0 %v221
    %627 = vmatprep.subr.mxu0 0.0
    %628 = vmatpush1.msra.mxu0 %v174
    %629 = vmatprep.subr.mxu0 0.0
    %630 = vmatpush1.msra.mxu0 %v173
    %631 = vmatprep.subr.mxu0 0.0
    %632 = vmatpush2.msra.mxu0 0.0
    %633 = vmatprep.subr.mxu0 0.0
    %634 = vmatpush2.msra.mxu0 0.0
    %635 = vmatprep.subr.mxu0 0.0
    %636 = vmatpush2.msra.mxu0 0.0
    %637 = vmatprep.subr.mxu0 0.0
    %638 = vmatpush2.msra.mxu0 0.0
    %639 = vmatprep.subr.mxu0 0.0
    %640 = vmatpush2.msra.mxu0 0.0
    %641 = vmatprep.subr.mxu0 0.0
    %642 = vmatpush2.msra.mxu0 0.0
    %643 = vmatprep.subr.mxu0 0.0
    %644 = vmatpush2.msra.mxu0 0.0
    %645 = vmatprep.subr.mxu0 0.0
    %646 = vmatpush2.msra.mxu0 0.0
    %647 = vmatprep.subr.mxu0 0.0
    %648 = vmatpush2.msra.mxu0 0.0
    %649 = vmatprep.subr.mxu0 0.0
    %650 = vmatpush2.msra.mxu0 0.0
    %651 = vmatprep.subr.mxu0 0.0
    %652 = vmatpush2.msra.mxu0 0.0
    %653 = vmatprep.subr.mxu0 0.0
    %654 = vmatpush2.msra.mxu0 0.0
    %655 = vmatprep.subr.mxu0 0.0
    %656 = vmatpush2.msra.mxu0 0.0
    %657 = vmatprep.subr.mxu0 0.0
    %658 = vmatpush2.msra.mxu0 0.0
    %659 = vmatprep.subr.mxu0 0.0
    %660 = vmatpush2.msra.mxu0 0.0
    %661 = vmatprep.subr.mxu0 0.0
    %662 = vmatpush2.msra.mxu0 0.0
    %663 = vmatprep.mubr.f32.mxu0 0.0
    %664 = vmatmul.mubr.f32.gmra.mxu0 %v597
    %v665 = vpop.f32.mrf.mxu0
    %v666 = vadd.f32 %v185, %v665
    %v667 = vpop.f32.mrf.mxu0
    %668 = vdwg.mxu0
    %v677 = vrot.slane %v150, 7
    %v678 = vsel %vm196, %v677, %v149
    %v679 = vrot.slane %v151, 6
    %v680 = vsel %vm199, %v679, %v678
    %v681 = vrot.slane %v152, 5
    %v682 = vsel %vm202, %v681, %v680
    %v683 = vrot.slane %v153, 4
    %v684 = vsel %vm205, %v683, %v682
    %v685 = vrot.slane %v154, 3
    %v686 = vsel %vm208, %v685, %v684
    %v687 = vrot.slane %v155, 2
    %v688 = vsel %vm211, %v687, %v686
    %v689 = vrot.slane %v156, 1
    %v690 = vsel %vm214, %v689, %v688
    %v691 = vsel %vm216, %v690, 0
    %693 = vmatprep.subr.mxu0 0.0
    %694 = vmatpush1.msra.mxu0 0.0
    %695 = vmatprep.subr.mxu0 0.0
    %696 = vmatpush1.msra.mxu0 0.0
    %697 = vmatprep.subr.mxu0 0.0
    %698 = vmatpush1.msra.mxu0 0.0
    %699 = vmatprep.subr.mxu0 0.0
    %700 = vmatpush1.msra.mxu0 0.0
    %701 = vmatprep.subr.mxu0 0.0
    %702 = vmatpush1.msra.mxu0 0.0
    %703 = vmatprep.subr.mxu0 0.0
    %704 = vmatpush1.msra.mxu0 0.0
    %705 = vmatprep.subr.mxu0 0.0
    %706 = vmatpush1.msra.mxu0 0.0
    %707 = vmatprep.subr.mxu0 0.0
    %708 = vmatpush1.msra.mxu0 0.0
    %709 = vmatprep.subr.mxu0 0.0
    %710 = vmatpush1.msra.mxu0 0.0
    %711 = vmatprep.subr.mxu0 0.0
    %712 = vmatpush1.msra.mxu0 0.0
    %713 = vmatprep.subr.mxu0 0.0
    %714 = vmatpush1.msra.mxu0 0.0
    %715 = vmatprep.subr.mxu0 0.0
    %716 = vmatpush1.msra.mxu0 0.0
    %717 = vmatprep.subr.mxu0 0.0
    %718 = vmatpush1.msra.mxu0 0.0
    %719 = vmatprep.subr.mxu0 0.0
    %720 = vmatpush1.msra.mxu0 %v221
    %721 = vmatprep.subr.mxu0 0.0
    %722 = vmatpush1.msra.mxu0 %v174
    %723 = vmatprep.subr.mxu0 0.0
    %724 = vmatpush1.msra.mxu0 %v173
    %725 = vmatprep.subr.mxu0 0.0
    %726 = vmatpush2.msra.mxu0 0.0
    %727 = vmatprep.subr.mxu0 0.0
    %728 = vmatpush2.msra.mxu0 0.0
    %729 = vmatprep.subr.mxu0 0.0
    %730 = vmatpush2.msra.mxu0 0.0
    %731 = vmatprep.subr.mxu0 0.0
    %732 = vmatpush2.msra.mxu0 0.0
    %733 = vmatprep.subr.mxu0 0.0
    %734 = vmatpush2.msra.mxu0 0.0
    %735 = vmatprep.subr.mxu0 0.0
    %736 = vmatpush2.msra.mxu0 0.0
    %737 = vmatprep.subr.mxu0 0.0
    %738 = vmatpush2.msra.mxu0 0.0
    %739 = vmatprep.subr.mxu0 0.0
    %740 = vmatpush2.msra.mxu0 0.0
    %741 = vmatprep.subr.mxu0 0.0
    %742 = vmatpush2.msra.mxu0 0.0
    %743 = vmatprep.subr.mxu0 0.0
    %744 = vmatpush2.msra.mxu0 0.0
    %745 = vmatprep.subr.mxu0 0.0
    %746 = vmatpush2.msra.mxu0 0.0
    %747 = vmatprep.subr.mxu0 0.0
    %748 = vmatpush2.msra.mxu0 0.0
    %749 = vmatprep.subr.mxu0 0.0
    %750 = vmatpush2.msra.mxu0 0.0
    %751 = vmatprep.subr.mxu0 0.0
    %752 = vmatpush2.msra.mxu0 0.0
    %753 = vmatprep.subr.mxu0 0.0
    %754 = vmatpush2.msra.mxu0 0.0
    %755 = vmatprep.subr.mxu0 0.0
    %756 = vmatpush2.msra.mxu0 0.0
    %757 = vmatprep.mubr.f32.mxu0 0.0
    %758 = vmatmul.mubr.f32.gmra.mxu0 %v691
    %v759 = vpop.f32.mrf.mxu0
    %v760 = vadd.f32 %v185, %v759
    %v761 = vpop.f32.mrf.mxu0
    %762 = vdwg.mxu0
    %v771 = vrot.slane %v158, 7
    %v772 = vsel %vm196, %v771, %v157
    %v773 = vrot.slane %v159, 6
    %v774 = vsel %vm199, %v773, %v772
    %v775 = vrot.slane %v160, 5
    %v776 = vsel %vm202, %v775, %v774
    %v777 = vrot.slane %v161, 4
    %v778 = vsel %vm205, %v777, %v776
    %v779 = vrot.slane %v162, 3
    %v780 = vsel %vm208, %v779, %v778
    %v781 = vrot.slane %v163, 2
    %v782 = vsel %vm211, %v781, %v780
    %v783 = vrot.slane %v164, 1
    %v784 = vsel %vm214, %v783, %v782
    %v785 = vsel %vm216, %v784, 0
    %787 = vmatprep.subr.mxu0 0.0
    %788 = vmatpush1.msra.mxu0 0.0
    %789 = vmatprep.subr.mxu0 0.0
    %790 = vmatpush1.msra.mxu0 0.0
    %791 = vmatprep.subr.mxu0 0.0
    %792 = vmatpush1.msra.mxu0 0.0
    %793 = vmatprep.subr.mxu0 0.0
    %794 = vmatpush1.msra.mxu0 0.0
    %795 = vmatprep.subr.mxu0 0.0
    %796 = vmatpush1.msra.mxu0 0.0
    %797 = vmatprep.subr.mxu0 0.0
    %798 = vmatpush1.msra.mxu0 0.0
    %799 = vmatprep.subr.mxu0 0.0
    %800 = vmatpush1.msra.mxu0 0.0
    %801 = vmatprep.subr.mxu0 0.0
    %802 = vmatpush1.msra.mxu0 0.0
    %803 = vmatprep.subr.mxu0 0.0
    %804 = vmatpush1.msra.mxu0 0.0
    %805 = vmatprep.subr.mxu0 0.0
    %806 = vmatpush1.msra.mxu0 0.0
    %807 = vmatprep.subr.mxu0 0.0
    %808 = vmatpush1.msra.mxu0 0.0
    %809 = vmatprep.subr.mxu0 0.0
    %810 = vmatpush1.msra.mxu0 0.0
    %811 = vmatprep.subr.mxu0 0.0
    %812 = vmatpush1.msra.mxu0 0.0
    %813 = vmatprep.subr.mxu0 0.0
    %814 = vmatpush1.msra.mxu0 %v221
    %815 = vmatprep.subr.mxu0 0.0
    %816 = vmatpush1.msra.mxu0 %v174
    %817 = vmatprep.subr.mxu0 0.0
    %818 = vmatpush1.msra.mxu0 %v173
    %819 = vmatprep.subr.mxu0 0.0
    %820 = vmatpush2.msra.mxu0 0.0
    %821 = vmatprep.subr.mxu0 0.0
    %822 = vmatpush2.msra.mxu0 0.0
    %823 = vmatprep.subr.mxu0 0.0
    %824 = vmatpush2.msra.mxu0 0.0
    %825 = vmatprep.subr.mxu0 0.0
    %826 = vmatpush2.msra.mxu0 0.0
    %827 = vmatprep.subr.mxu0 0.0
    %828 = vmatpush2.msra.mxu0 0.0
    %829 = vmatprep.subr.mxu0 0.0
    %830 = vmatpush2.msra.mxu0 0.0
    %831 = vmatprep.subr.mxu0 0.0
    %832 = vmatpush2.msra.mxu0 0.0
    %833 = vmatprep.subr.mxu0 0.0
    %834 = vmatpush2.msra.mxu0 0.0
    %835 = vmatprep.subr.mxu0 0.0
    %836 = vmatpush2.msra.mxu0 0.0
    %837 = vmatprep.subr.mxu0 0.0
    %838 = vmatpush2.msra.mxu0 0.0
    %839 = vmatprep.subr.mxu0 0.0
    %840 = vmatpush2.msra.mxu0 0.0
    %841 = vmatprep.subr.mxu0 0.0
    %842 = vmatpush2.msra.mxu0 0.0
    %843 = vmatprep.subr.mxu0 0.0
    %844 = vmatpush2.msra.mxu0 0.0
    %845 = vmatprep.subr.mxu0 0.0
    %846 = vmatpush2.msra.mxu0 0.0
    %847 = vmatprep.subr.mxu0 0.0
    %848 = vmatpush2.msra.mxu0 0.0
    %849 = vmatprep.subr.mxu0 0.0
    %850 = vmatpush2.msra.mxu0 0.0
    %851 = vmatprep.mubr.f32.mxu0 0.0
    %852 = vmatmul.mubr.f32.gmra.mxu0 %v785
    %v853 = vpop.f32.mrf.mxu0
    %v854 = vadd.f32 %v185, %v853
    %v855 = vpop.f32.mrf.mxu0
    %856 = vdwg.mxu0
    %v865 = vrot.slane %v166, 7
    %v866 = vsel %vm196, %v865, %v165
    %v867 = vrot.slane %v167, 6
    %v868 = vsel %vm199, %v867, %v866
    %v869 = vrot.slane %v168, 5
    %v870 = vsel %vm202, %v869, %v868
    %v871 = vrot.slane %v169, 4
    %v872 = vsel %vm205, %v871, %v870
    %v873 = vrot.slane %v170, 3
    %v874 = vsel %vm208, %v873, %v872
    %v875 = vrot.slane %v171, 2
    %v876 = vsel %vm211, %v875, %v874
    %v877 = vrot.slane %v172, 1
    %v878 = vsel %vm214, %v877, %v876
    %v879 = vsel %vm216, %v878, 0
    %881 = vmatprep.subr.mxu0 0.0
    %882 = vmatpush1.msra.mxu0 0.0
    %883 = vmatprep.subr.mxu0 0.0
    %884 = vmatpush1.msra.mxu0 0.0
    %885 = vmatprep.subr.mxu0 0.0
    %886 = vmatpush1.msra.mxu0 0.0
    %887 = vmatprep.subr.mxu0 0.0
    %888 = vmatpush1.msra.mxu0 0.0
    %889 = vmatprep.subr.mxu0 0.0
    %890 = vmatpush1.msra.mxu0 0.0
    %891 = vmatprep.subr.mxu0 0.0
    %892 = vmatpush1.msra.mxu0 0.0
    %893 = vmatprep.subr.mxu0 0.0
    %894 = vmatpush1.msra.mxu0 0.0
    %895 = vmatprep.subr.mxu0 0.0
    %896 = vmatpush1.msra.mxu0 0.0
    %897 = vmatprep.subr.mxu0 0.0
    %898 = vmatpush1.msra.mxu0 0.0
    %899 = vmatprep.subr.mxu0 0.0
    %900 = vmatpush1.msra.mxu0 0.0
    %901 = vmatprep.subr.mxu0 0.0
    %902 = vmatpush1.msra.mxu0 0.0
    %903 = vmatprep.subr.mxu0 0.0
    %904 = vmatpush1.msra.mxu0 0.0
    %905 = vmatprep.subr.mxu0 0.0
    %906 = vmatpush1.msra.mxu0 0.0
    %907 = vmatprep.subr.mxu0 0.0
    %908 = vmatpush1.msra.mxu0 %v221
    %909 = vmatprep.subr.mxu0 0.0
    %910 = vmatpush1.msra.mxu0 %v174
    %911 = vmatprep.subr.mxu0 0.0
    %912 = vmatpush1.msra.mxu0 %v173
    %913 = vmatprep.subr.mxu0 0.0
    %914 = vmatpush2.msra.mxu0 0.0
    %915 = vmatprep.subr.mxu0 0.0
    %916 = vmatpush2.msra.mxu0 0.0
    %917 = vmatprep.subr.mxu0 0.0
    %918 = vmatpush2.msra.mxu0 0.0
    %919 = vmatprep.subr.mxu0 0.0
    %920 = vmatpush2.msra.mxu0 0.0
    %921 = vmatprep.subr.mxu0 0.0
    %922 = vmatpush2.msra.mxu0 0.0
    %923 = vmatprep.subr.mxu0 0.0
    %924 = vmatpush2.msra.mxu0 0.0
    %925 = vmatprep.subr.mxu0 0.0
    %926 = vmatpush2.msra.mxu0 0.0
    %927 = vmatprep.subr.mxu0 0.0
    %928 = vmatpush2.msra.mxu0 0.0
    %929 = vmatprep.subr.mxu0 0.0
    %930 = vmatpush2.msra.mxu0 0.0
    %931 = vmatprep.subr.mxu0 0.0
    %932 = vmatpush2.msra.mxu0 0.0
    %933 = vmatprep.subr.mxu0 0.0
    %934 = vmatpush2.msra.mxu0 0.0
    %935 = vmatprep.subr.mxu0 0.0
    %936 = vmatpush2.msra.mxu0 0.0
    %937 = vmatprep.subr.mxu0 0.0
    %938 = vmatpush2.msra.mxu0 0.0
    %939 = vmatprep.subr.mxu0 0.0
    %940 = vmatpush2.msra.mxu0 0.0
    %941 = vmatprep.subr.mxu0 0.0
    %942 = vmatpush2.msra.mxu0 0.0
    %943 = vmatprep.subr.mxu0 0.0
    %944 = vmatpush2.msra.mxu0 0.0
    %945 = vmatprep.mubr.f32.mxu0 0.0
    %946 = vmatmul.mubr.f32.gmra.mxu0 %v879
    %v947 = vpop.f32.mrf.mxu0
    %v948 = vadd.f32 %v185, %v947
    %v949 = vpop.f32.mrf.mxu0
    %950 = vdwg.mxu0
    %vm951 = vcmask 261120
    %v953 = vsel %vm951, 0.0, 0
    %955 = vmatprep.subr.mxu0 0.0
    %956 = vmatpush1.msra.mxu0 0.0
    %957 = vmatprep.subr.mxu0 0.0
    %958 = vmatpush1.msra.mxu0 0.0
    %959 = vmatprep.subr.mxu0 0.0
    %960 = vmatpush1.msra.mxu0 0.0
    %961 = vmatprep.subr.mxu0 0.0
    %962 = vmatpush1.msra.mxu0 0.0
    %963 = vmatprep.subr.mxu0 0.0
    %964 = vmatpush1.msra.mxu0 0.0
    %965 = vmatprep.subr.mxu0 0.0
    %966 = vmatpush1.msra.mxu0 0.0
    %967 = vmatprep.subr.mxu0 0.0
    %968 = vmatpush1.msra.mxu0 0.0
    %969 = vmatprep.subr.mxu0 0.0
    %970 = vmatpush1.msra.mxu0 0.0
    %971 = vmatprep.subr.mxu0 0.0
    %972 = vmatpush1.msra.mxu0 0.0
    %973 = vmatprep.subr.mxu0 0.0
    %974 = vmatpush1.msra.mxu0 0.0
    %975 = vmatprep.subr.mxu0 0.0
    %976 = vmatpush1.msra.mxu0 0.0
    %977 = vmatprep.subr.mxu0 0.0
    %978 = vmatpush1.msra.mxu0 0.0
    %979 = vmatprep.subr.mxu0 0.0
    %980 = vmatpush1.msra.mxu0 %v179
    %981 = vmatprep.subr.mxu0 0.0
    %982 = vmatpush1.msra.mxu0 %v178
    %983 = vmatprep.subr.mxu0 0.0
    %984 = vmatpush1.msra.mxu0 %v177
    %985 = vmatprep.subr.mxu0 0.0
    %986 = vmatpush1.msra.mxu0 %v176
    %987 = vmatprep.subr.mxu0 0.0
    %988 = vmatpush2.msra.mxu0 0.0
    %989 = vmatprep.subr.mxu0 0.0
    %990 = vmatpush2.msra.mxu0 0.0
    %991 = vmatprep.subr.mxu0 0.0
    %992 = vmatpush2.msra.mxu0 0.0
    %993 = vmatprep.subr.mxu0 0.0
    %994 = vmatpush2.msra.mxu0 0.0
    %995 = vmatprep.subr.mxu0 0.0
    %996 = vmatpush2.msra.mxu0 0.0
    %997 = vmatprep.subr.mxu0 0.0
    %998 = vmatpush2.msra.mxu0 0.0
    %999 = vmatprep.subr.mxu0 0.0
    %1000 = vmatpush2.msra.mxu0 0.0
    %1001 = vmatprep.subr.mxu0 0.0
    %1002 = vmatpush2.msra.mxu0 0.0
    %1003 = vmatprep.subr.mxu0 0.0
    %1004 = vmatpush2.msra.mxu0 0.0
    %1005 = vmatprep.subr.mxu0 0.0
    %1006 = vmatpush2.msra.mxu0 0.0
    %1007 = vmatprep.subr.mxu0 0.0
    %1008 = vmatpush2.msra.mxu0 0.0
    %1009 = vmatprep.subr.mxu0 0.0
    %1010 = vmatpush2.msra.mxu0 0.0
    %1011 = vmatprep.subr.mxu0 0.0
    %1012 = vmatpush2.msra.mxu0 0.0
    %1013 = vmatprep.subr.mxu0 0.0
    %1014 = vmatpush2.msra.mxu0 0.0
    %1015 = vmatprep.subr.mxu0 0.0
    %1016 = vmatpush2.msra.mxu0 0.0
    %1017 = vmatprep.subr.mxu0 0.0
    %1018 = vmatpush2.msra.mxu0 0.0
    %1019 = vmatprep.mubr.f32.mxu0 0.0
    %1020 = vmatmul.mubr.f32.gmra.mxu0 %v953
    %v1021 = vpop.f32.mrf.mxu0
    %v1022 = vadd.f32 0.0, %v1021
    %v1023 = vpop.f32.mrf.mxu0
    %1024 = vdwg.mxu0
    %v1025 = vadd.f32 %v290, %v1022
    %v1026 = vxor.u32 %v1025, 2147483648
    %v1027 = vmul.f32 %v1026, 1.442695
    %v1028 = vpow.pop %v1027
    %v1029 = vadd.f32 %v1028, 1.0
    %v1030 = vrcp.pop %v1029
    %v1031 = vmul.f32 1.0, %v1030
    %v1032 = vtanh.pop %v1025
    %v1033 = vmul.f32 %v1031, 0.0
    %1035 = vrot.lane.b32.xlu0 %v1032, 64
    %v1036 = vpop.permute.xlu0 %1035
    %v1038 = vmul.f32 %v1031, %v1036
    %1040 = vrot.lane.b32.xlu0 %v1038, 32
    %v1041 = vpop.permute.xlu0 %1040
    %v1043 = vadd.f32 %v1033, %v1041
    %v1044 = vtanh.pop %v1043
    %1046 = vrot.lane.b32.xlu0 %v1044, 64
    %v1047 = vpop.permute.xlu0 %1046
    %v1049 = vmul.f32 %v1031, %v1047
    %1051 = vrot.lane.b32.xlu0 %v1049, 32
    %v1052 = vpop.permute.xlu0 %1051
    %v1053 = vsel %vm951, %v1052, 0
    %1055 = vmatprep.subr.mxu0 0.0
    %1056 = vmatpush1.msra.mxu0 0.0
    %1057 = vmatprep.subr.mxu0 0.0
    %1058 = vmatpush1.msra.mxu0 0.0
    %1059 = vmatprep.subr.mxu0 0.0
    %1060 = vmatpush1.msra.mxu0 0.0
    %1061 = vmatprep.subr.mxu0 0.0
    %1062 = vmatpush1.msra.mxu0 0.0
    %1063 = vmatprep.subr.mxu0 0.0
    %1064 = vmatpush1.msra.mxu0 0.0
    %1065 = vmatprep.subr.mxu0 0.0
    %1066 = vmatpush1.msra.mxu0 0.0
    %1067 = vmatprep.subr.mxu0 0.0
    %1068 = vmatpush1.msra.mxu0 0.0
    %1069 = vmatprep.subr.mxu0 0.0
    %1070 = vmatpush1.msra.mxu0 0.0
    %1071 = vmatprep.subr.mxu0 0.0
    %1072 = vmatpush1.msra.mxu0 0.0
    %1073 = vmatprep.subr.mxu0 0.0
    %1074 = vmatpush1.msra.mxu0 0.0
    %1075 = vmatprep.subr.mxu0 0.0
    %1076 = vmatpush1.msra.mxu0 0.0
    %1077 = vmatprep.subr.mxu0 0.0
    %1078 = vmatpush1.msra.mxu0 0.0
    %1079 = vmatprep.subr.mxu0 0.0
    %1080 = vmatpush1.msra.mxu0 %v179
    %1081 = vmatprep.subr.mxu0 0.0
    %1082 = vmatpush1.msra.mxu0 %v178
    %1083 = vmatprep.subr.mxu0 0.0
    %1084 = vmatpush1.msra.mxu0 %v177
    %1085 = vmatprep.subr.mxu0 0.0
    %1086 = vmatpush1.msra.mxu0 %v176
    %1087 = vmatprep.subr.mxu0 0.0
    %1088 = vmatpush2.msra.mxu0 0.0
    %1089 = vmatprep.subr.mxu0 0.0
    %1090 = vmatpush2.msra.mxu0 0.0
    %1091 = vmatprep.subr.mxu0 0.0
    %1092 = vmatpush2.msra.mxu0 0.0
    %1093 = vmatprep.subr.mxu0 0.0
    %1094 = vmatpush2.msra.mxu0 0.0
    %1095 = vmatprep.subr.mxu0 0.0
    %1096 = vmatpush2.msra.mxu0 0.0
    %1097 = vmatprep.subr.mxu0 0.0
    %1098 = vmatpush2.msra.mxu0 0.0
    %1099 = vmatprep.subr.mxu0 0.0
    %1100 = vmatpush2.msra.mxu0 0.0
    %1101 = vmatprep.subr.mxu0 0.0
    %1102 = vmatpush2.msra.mxu0 0.0
    %1103 = vmatprep.subr.mxu0 0.0
    %1104 = vmatpush2.msra.mxu0 0.0
    %1105 = vmatprep.subr.mxu0 0.0
    %1106 = vmatpush2.msra.mxu0 0.0
    %1107 = vmatprep.subr.mxu0 0.0
    %1108 = vmatpush2.msra.mxu0 0.0
    %1109 = vmatprep.subr.mxu0 0.0
    %1110 = vmatpush2.msra.mxu0 0.0
    %1111 = vmatprep.subr.mxu0 0.0
    %1112 = vmatpush2.msra.mxu0 0.0
    %1113 = vmatprep.subr.mxu0 0.0
    %1114 = vmatpush2.msra.mxu0 0.0
    %1115 = vmatprep.subr.mxu0 0.0
    %1116 = vmatpush2.msra.mxu0 0.0
    %1117 = vmatprep.subr.mxu0 0.0
    %1118 = vmatpush2.msra.mxu0 0.0
    %1119 = vmatprep.mubr.f32.mxu0 0.0
    %1120 = vmatmul.mubr.f32.gmra.mxu0 %v1053
    %v1121 = vpop.f32.mrf.mxu0
    %v1122 = vadd.f32 0.0, %v1121
    %v1123 = vpop.f32.mrf.mxu0
    %1124 = vdwg.mxu0
    %v1125 = vadd.f32 %v384, %v1122
    %v1126 = vxor.u32 %v1125, 2147483648
    %v1127 = vmul.f32 %v1126, 1.442695
    %v1128 = vpow.pop %v1127
    %v1129 = vadd.f32 %v1128, 1.0
    %v1130 = vrcp.pop %v1129
    %v1131 = vmul.f32 1.0, %v1130
    %v1132 = vtanh.pop %v1125
    %v1133 = vmul.f32 %v1131, %v1043
    %1135 = vrot.lane.b32.xlu0 %v1132, 64
    %v1136 = vpop.permute.xlu0 %1135
    %v1138 = vmul.f32 %v1131, %v1136
    %1140 = vrot.lane.b32.xlu0 %v1138, 32
    %v1141 = vpop.permute.xlu0 %1140
    %v1143 = vadd.f32 %v1133, %v1141
    %v1144 = vtanh.pop %v1143
    %1146 = vrot.lane.b32.xlu0 %v1144, 64
    %v1147 = vpop.permute.xlu0 %1146
    %v1149 = vmul.f32 %v1131, %v1147
    %1151 = vrot.lane.b32.xlu0 %v1149, 32
    %v1152 = vpop.permute.xlu0 %1151
    %v1153 = vsel %vm951, %v1152, 0
    %1155 = vmatprep.subr.mxu0 0.0
    %1156 = vmatpush1.msra.mxu0 0.0
    %1157 = vmatprep.subr.mxu0 0.0
    %1158 = vmatpush1.msra.mxu0 0.0
    %1159 = vmatprep.subr.mxu0 0.0
    %1160 = vmatpush1.msra.mxu0 0.0
    %1161 = vmatprep.subr.mxu0 0.0
    %1162 = vmatpush1.msra.mxu0 0.0
    %1163 = vmatprep.subr.mxu0 0.0
    %1164 = vmatpush1.msra.mxu0 0.0
    %1165 = vmatprep.subr.mxu0 0.0
    %1166 = vmatpush1.msra.mxu0 0.0
    %1167 = vmatprep.subr.mxu0 0.0
    %1168 = vmatpush1.msra.mxu0 0.0
    %1169 = vmatprep.subr.mxu0 0.0
    %1170 = vmatpush1.msra.mxu0 0.0
    %1171 = vmatprep.subr.mxu0 0.0
    %1172 = vmatpush1.msra.mxu0 0.0
    %1173 = vmatprep.subr.mxu0 0.0
    %1174 = vmatpush1.msra.mxu0 0.0
    %1175 = vmatprep.subr.mxu0 0.0
    %1176 = vmatpush1.msra.mxu0 0.0
    %1177 = vmatprep.subr.mxu0 0.0
    %1178 = vmatpush1.msra.mxu0 0.0
    %1179 = vmatprep.subr.mxu0 0.0
    %1180 = vmatpush1.msra.mxu0 %v179
    %1181 = vmatprep.subr.mxu0 0.0
    %1182 = vmatpush1.msra.mxu0 %v178
    %1183 = vmatprep.subr.mxu0 0.0
    %1184 = vmatpush1.msra.mxu0 %v177
    %1185 = vmatprep.subr.mxu0 0.0
    %1186 = vmatpush1.msra.mxu0 %v176
    %1187 = vmatprep.subr.mxu0 0.0
    %1188 = vmatpush2.msra.mxu0 0.0
    %1189 = vmatprep.subr.mxu0 0.0
    %1190 = vmatpush2.msra.mxu0 0.0
    %1191 = vmatprep.subr.mxu0 0.0
    %1192 = vmatpush2.msra.mxu0 0.0
    %1193 = vmatprep.subr.mxu0 0.0
    %1194 = vmatpush2.msra.mxu0 0.0
    %1195 = vmatprep.subr.mxu0 0.0
    %1196 = vmatpush2.msra.mxu0 0.0
    %1197 = vmatprep.subr.mxu0 0.0
    %1198 = vmatpush2.msra.mxu0 0.0
    %1199 = vmatprep.subr.mxu0 0.0
    %1200 = vmatpush2.msra.mxu0 0.0
    %1201 = vmatprep.subr.mxu0 0.0
    %1202 = vmatpush2.msra.mxu0 0.0
    %1203 = vmatprep.subr.mxu0 0.0
    %1204 = vmatpush2.msra.mxu0 0.0
    %1205 = vmatprep.subr.mxu0 0.0
    %1206 = vmatpush2.msra.mxu0 0.0
    %1207 = vmatprep.subr.mxu0 0.0
    %1208 = vmatpush2.msra.mxu0 0.0
    %1209 = vmatprep.subr.mxu0 0.0
    %1210 = vmatpush2.msra.mxu0 0.0
    %1211 = vmatprep.subr.mxu0 0.0
    %1212 = vmatpush2.msra.mxu0 0.0
    %1213 = vmatprep.subr.mxu0 0.0
    %1214 = vmatpush2.msra.mxu0 0.0
    %1215 = vmatprep.subr.mxu0 0.0
    %1216 = vmatpush2.msra.mxu0 0.0
    %1217 = vmatprep.subr.mxu0 0.0
    %1218 = vmatpush2.msra.mxu0 0.0
    %1219 = vmatprep.mubr.f32.mxu0 0.0
    %1220 = vmatmul.mubr.f32.gmra.mxu0 %v1153
    %v1221 = vpop.f32.mrf.mxu0
    %v1222 = vadd.f32 0.0, %v1221
    %v1223 = vpop.f32.mrf.mxu0
    %1224 = vdwg.mxu0
    %v1225 = vadd.f32 %v478, %v1222
    %v1226 = vxor.u32 %v1225, 2147483648
    %v1227 = vmul.f32 %v1226, 1.442695
    %v1228 = vpow.pop %v1227
    %v1229 = vadd.f32 %v1228, 1.0
    %v1230 = vrcp.pop %v1229
    %v1231 = vmul.f32 1.0, %v1230
    %v1232 = vtanh.pop %v1225
    %v1233 = vmul.f32 %v1231, %v1143
    %1235 = vrot.lane.b32.xlu0 %v1232, 64
    %v1236 = vpop.permute.xlu0 %1235
    %v1238 = vmul.f32 %v1231, %v1236
    %1240 = vrot.lane.b32.xlu0 %v1238, 32
    %v1241 = vpop.permute.xlu0 %1240
    %v1243 = vadd.f32 %v1233, %v1241
    %v1244 = vtanh.pop %v1243
    %1246 = vrot.lane.b32.xlu0 %v1244, 64
    %v1247 = vpop.permute.xlu0 %1246
    %v1249 = vmul.f32 %v1231, %v1247
    %1251 = vrot.lane.b32.xlu0 %v1249, 32
    %v1252 = vpop.permute.xlu0 %1251
    %v1253 = vsel %vm951, %v1252, 0
    %1255 = vmatprep.subr.mxu0 0.0
    %1256 = vmatpush1.msra.mxu0 0.0
    %1257 = vmatprep.subr.mxu0 0.0
    %1258 = vmatpush1.msra.mxu0 0.0
    %1259 = vmatprep.subr.mxu0 0.0
    %1260 = vmatpush1.msra.mxu0 0.0
    %1261 = vmatprep.subr.mxu0 0.0
    %1262 = vmatpush1.msra.mxu0 0.0
    %1263 = vmatprep.subr.mxu0 0.0
    %1264 = vmatpush1.msra.mxu0 0.0
    %1265 = vmatprep.subr.mxu0 0.0
    %1266 = vmatpush1.msra.mxu0 0.0
    %1267 = vmatprep.subr.mxu0 0.0
    %1268 = vmatpush1.msra.mxu0 0.0
    %1269 = vmatprep.subr.mxu0 0.0
    %1270 = vmatpush1.msra.mxu0 0.0
    %1271 = vmatprep.subr.mxu0 0.0
    %1272 = vmatpush1.msra.mxu0 0.0
    %1273 = vmatprep.subr.mxu0 0.0
    %1274 = vmatpush1.msra.mxu0 0.0
    %1275 = vmatprep.subr.mxu0 0.0
    %1276 = vmatpush1.msra.mxu0 0.0
    %1277 = vmatprep.subr.mxu0 0.0
    %1278 = vmatpush1.msra.mxu0 0.0
    %1279 = vmatprep.subr.mxu0 0.0
    %1280 = vmatpush1.msra.mxu0 %v179
    %1281 = vmatprep.subr.mxu0 0.0
    %1282 = vmatpush1.msra.mxu0 %v178
    %1283 = vmatprep.subr.mxu0 0.0
    %1284 = vmatpush1.msra.mxu0 %v177
    %1285 = vmatprep.subr.mxu0 0.0
    %1286 = vmatpush1.msra.mxu0 %v176
    %1287 = vmatprep.subr.mxu0 0.0
    %1288 = vmatpush2.msra.mxu0 0.0
    %1289 = vmatprep.subr.mxu0 0.0
    %1290 = vmatpush2.msra.mxu0 0.0
    %1291 = vmatprep.subr.mxu0 0.0
    %1292 = vmatpush2.msra.mxu0 0.0
    %1293 = vmatprep.subr.mxu0 0.0
    %1294 = vmatpush2.msra.mxu0 0.0
    %1295 = vmatprep.subr.mxu0 0.0
    %1296 = vmatpush2.msra.mxu0 0.0
    %1297 = vmatprep.subr.mxu0 0.0
    %1298 = vmatpush2.msra.mxu0 0.0
    %1299 = vmatprep.subr.mxu0 0.0
    %1300 = vmatpush2.msra.mxu0 0.0
    %1301 = vmatprep.subr.mxu0 0.0
    %1302 = vmatpush2.msra.mxu0 0.0
    %1303 = vmatprep.subr.mxu0 0.0
    %1304 = vmatpush2.msra.mxu0 0.0
    %1305 = vmatprep.subr.mxu0 0.0
    %1306 = vmatpush2.msra.mxu0 0.0
    %1307 = vmatprep.subr.mxu0 0.0
    %1308 = vmatpush2.msra.mxu0 0.0
    %1309 = vmatprep.subr.mxu0 0.0
    %1310 = vmatpush2.msra.mxu0 0.0
    %1311 = vmatprep.subr.mxu0 0.0
    %1312 = vmatpush2.msra.mxu0 0.0
    %1313 = vmatprep.subr.mxu0 0.0
    %1314 = vmatpush2.msra.mxu0 0.0
    %1315 = vmatprep.subr.mxu0 0.0
    %1316 = vmatpush2.msra.mxu0 0.0
    %1317 = vmatprep.subr.mxu0 0.0
    %1318 = vmatpush2.msra.mxu0 0.0
    %1319 = vmatprep.mubr.f32.mxu0 0.0
    %1320 = vmatmul.mubr.f32.gmra.mxu0 %v1253
    %v1321 = vpop.f32.mrf.mxu0
    %v1322 = vadd.f32 0.0, %v1321
    %v1323 = vpop.f32.mrf.mxu0
    %1324 = vdwg.mxu0
    %v1325 = vadd.f32 %v572, %v1322
    %v1326 = vxor.u32 %v1325, 2147483648
    %v1327 = vmul.f32 %v1326, 1.442695
    %v1328 = vpow.pop %v1327
    %v1329 = vadd.f32 %v1328, 1.0
    %v1330 = vrcp.pop %v1329
    %v1331 = vmul.f32 1.0, %v1330
    %v1332 = vtanh.pop %v1325
    %v1333 = vmul.f32 %v1331, %v1243
    %1335 = vrot.lane.b32.xlu0 %v1332, 64
    %v1336 = vpop.permute.xlu0 %1335
    %v1338 = vmul.f32 %v1331, %v1336
    %1340 = vrot.lane.b32.xlu0 %v1338, 32
    %v1341 = vpop.permute.xlu0 %1340
    %v1343 = vadd.f32 %v1333, %v1341
    %v1344 = vtanh.pop %v1343
    %1346 = vrot.lane.b32.xlu0 %v1344, 64
    %v1347 = vpop.permute.xlu0 %1346
    %v1349 = vmul.f32 %v1331, %v1347
    %1351 = vrot.lane.b32.xlu0 %v1349, 32
    %v1352 = vpop.permute.xlu0 %1351
    %v1353 = vsel %vm951, %v1352, 0
    %1355 = vmatprep.subr.mxu0 0.0
    %1356 = vmatpush1.msra.mxu0 0.0
    %1357 = vmatprep.subr.mxu0 0.0
    %1358 = vmatpush1.msra.mxu0 0.0
    %1359 = vmatprep.subr.mxu0 0.0
    %1360 = vmatpush1.msra.mxu0 0.0
    %1361 = vmatprep.subr.mxu0 0.0
    %1362 = vmatpush1.msra.mxu0 0.0
    %1363 = vmatprep.subr.mxu0 0.0
    %1364 = vmatpush1.msra.mxu0 0.0
    %1365 = vmatprep.subr.mxu0 0.0
    %1366 = vmatpush1.msra.mxu0 0.0
    %1367 = vmatprep.subr.mxu0 0.0
    %1368 = vmatpush1.msra.mxu0 0.0
    %1369 = vmatprep.subr.mxu0 0.0
    %1370 = vmatpush1.msra.mxu0 0.0
    %1371 = vmatprep.subr.mxu0 0.0
    %1372 = vmatpush1.msra.mxu0 0.0
    %1373 = vmatprep.subr.mxu0 0.0
    %1374 = vmatpush1.msra.mxu0 0.0
    %1375 = vmatprep.subr.mxu0 0.0
    %1376 = vmatpush1.msra.mxu0 0.0
    %1377 = vmatprep.subr.mxu0 0.0
    %1378 = vmatpush1.msra.mxu0 0.0
    %1379 = vmatprep.subr.mxu0 0.0
    %1380 = vmatpush1.msra.mxu0 %v179
    %1381 = vmatprep.subr.mxu0 0.0
    %1382 = vmatpush1.msra.mxu0 %v178
    %1383 = vmatprep.subr.mxu0 0.0
    %1384 = vmatpush1.msra.mxu0 %v177
    %1385 = vmatprep.subr.mxu0 0.0
    %1386 = vmatpush1.msra.mxu0 %v176
    %1387 = vmatprep.subr.mxu0 0.0
    %1388 = vmatpush2.msra.mxu0 0.0
    %1389 = vmatprep.subr.mxu0 0.0
    %1390 = vmatpush2.msra.mxu0 0.0
    %1391 = vmatprep.subr.mxu0 0.0
    %1392 = vmatpush2.msra.mxu0 0.0
    %1393 = vmatprep.subr.mxu0 0.0
    %1394 = vmatpush2.msra.mxu0 0.0
    %1395 = vmatprep.subr.mxu0 0.0
    %1396 = vmatpush2.msra.mxu0 0.0
    %1397 = vmatprep.subr.mxu0 0.0
    %1398 = vmatpush2.msra.mxu0 0.0
    %1399 = vmatprep.subr.mxu0 0.0
    %1400 = vmatpush2.msra.mxu0 0.0
    %1401 = vmatprep.subr.mxu0 0.0
    %1402 = vmatpush2.msra.mxu0 0.0
    %1403 = vmatprep.subr.mxu0 0.0
    %1404 = vmatpush2.msra.mxu0 0.0
    %1405 = vmatprep.subr.mxu0 0.0
    %1406 = vmatpush2.msra.mxu0 0.0
    %1407 = vmatprep.subr.mxu0 0.0
    %1408 = vmatpush2.msra.mxu0 0.0
    %1409 = vmatprep.subr.mxu0 0.0
    %1410 = vmatpush2.msra.mxu0 0.0
    %1411 = vmatprep.subr.mxu0 0.0
    %1412 = vmatpush2.msra.mxu0 0.0
    %1413 = vmatprep.subr.mxu0 0.0
    %1414 = vmatpush2.msra.mxu0 0.0
    %1415 = vmatprep.subr.mxu0 0.0
    %1416 = vmatpush2.msra.mxu0 0.0
    %1417 = vmatprep.subr.mxu0 0.0
    %1418 = vmatpush2.msra.mxu0 0.0
    %1419 = vmatprep.mubr.f32.mxu0 0.0
    %1420 = vmatmul.mubr.f32.gmra.mxu0 %v1353
    %v1421 = vpop.f32.mrf.mxu0
    %v1422 = vadd.f32 0.0, %v1421
    %v1423 = vpop.f32.mrf.mxu0
    %1424 = vdwg.mxu0
    %v1425 = vadd.f32 %v666, %v1422
    %v1426 = vxor.u32 %v1425, 2147483648
    %v1427 = vmul.f32 %v1426, 1.442695
    %v1428 = vpow.pop %v1427
    %v1429 = vadd.f32 %v1428, 1.0
    %v1430 = vrcp.pop %v1429
    %v1431 = vmul.f32 1.0, %v1430
    %v1432 = vtanh.pop %v1425
    %v1433 = vmul.f32 %v1431, %v1343
    %1435 = vrot.lane.b32.xlu0 %v1432, 64
    %v1436 = vpop.permute.xlu0 %1435
    %v1438 = vmul.f32 %v1431, %v1436
    %1440 = vrot.lane.b32.xlu0 %v1438, 32
    %v1441 = vpop.permute.xlu0 %1440
    %v1443 = vadd.f32 %v1433, %v1441
    %v1444 = vtanh.pop %v1443
    %1446 = vrot.lane.b32.xlu0 %v1444, 64
    %v1447 = vpop.permute.xlu0 %1446
    %v1449 = vmul.f32 %v1431, %v1447
    %1451 = vrot.lane.b32.xlu0 %v1449, 32
    %v1452 = vpop.permute.xlu0 %1451
    %v1453 = vsel %vm951, %v1452, 0
    %1455 = vmatprep.subr.mxu0 0.0
    %1456 = vmatpush1.msra.mxu0 0.0
    %1457 = vmatprep.subr.mxu0 0.0
    %1458 = vmatpush1.msra.mxu0 0.0
    %1459 = vmatprep.subr.mxu0 0.0
    %1460 = vmatpush1.msra.mxu0 0.0
    %1461 = vmatprep.subr.mxu0 0.0
    %1462 = vmatpush1.msra.mxu0 0.0
    %1463 = vmatprep.subr.mxu0 0.0
    %1464 = vmatpush1.msra.mxu0 0.0
    %1465 = vmatprep.subr.mxu0 0.0
    %1466 = vmatpush1.msra.mxu0 0.0
    %1467 = vmatprep.subr.mxu0 0.0
    %1468 = vmatpush1.msra.mxu0 0.0
    %1469 = vmatprep.subr.mxu0 0.0
    %1470 = vmatpush1.msra.mxu0 0.0
    %1471 = vmatprep.subr.mxu0 0.0
    %1472 = vmatpush1.msra.mxu0 0.0
    %1473 = vmatprep.subr.mxu0 0.0
    %1474 = vmatpush1.msra.mxu0 0.0
    %1475 = vmatprep.subr.mxu0 0.0
    %1476 = vmatpush1.msra.mxu0 0.0
    %1477 = vmatprep.subr.mxu0 0.0
    %1478 = vmatpush1.msra.mxu0 0.0
    %1479 = vmatprep.subr.mxu0 0.0
    %1480 = vmatpush1.msra.mxu0 %v179
    %1481 = vmatprep.subr.mxu0 0.0
    %1482 = vmatpush1.msra.mxu0 %v178
    %1483 = vmatprep.subr.mxu0 0.0
    %1484 = vmatpush1.msra.mxu0 %v177
    %1485 = vmatprep.subr.mxu0 0.0
    %1486 = vmatpush1.msra.mxu0 %v176
    %1487 = vmatprep.subr.mxu0 0.0
    %1488 = vmatpush2.msra.mxu0 0.0
    %1489 = vmatprep.subr.mxu0 0.0
    %1490 = vmatpush2.msra.mxu0 0.0
    %1491 = vmatprep.subr.mxu0 0.0
    %1492 = vmatpush2.msra.mxu0 0.0
    %1493 = vmatprep.subr.mxu0 0.0
    %1494 = vmatpush2.msra.mxu0 0.0
    %1495 = vmatprep.subr.mxu0 0.0
    %1496 = vmatpush2.msra.mxu0 0.0
    %1497 = vmatprep.subr.mxu0 0.0
    %1498 = vmatpush2.msra.mxu0 0.0
    %1499 = vmatprep.subr.mxu0 0.0
    %1500 = vmatpush2.msra.mxu0 0.0
    %1501 = vmatprep.subr.mxu0 0.0
    %1502 = vmatpush2.msra.mxu0 0.0
    %1503 = vmatprep.subr.mxu0 0.0
    %1504 = vmatpush2.msra.mxu0 0.0
    %1505 = vmatprep.subr.mxu0 0.0
    %1506 = vmatpush2.msra.mxu0 0.0
    %1507 = vmatprep.subr.mxu0 0.0
    %1508 = vmatpush2.msra.mxu0 0.0
    %1509 = vmatprep.subr.mxu0 0.0
    %1510 = vmatpush2.msra.mxu0 0.0
    %1511 = vmatprep.subr.mxu0 0.0
    %1512 = vmatpush2.msra.mxu0 0.0
    %1513 = vmatprep.subr.mxu0 0.0
    %1514 = vmatpush2.msra.mxu0 0.0
    %1515 = vmatprep.subr.mxu0 0.0
    %1516 = vmatpush2.msra.mxu0 0.0
    %1517 = vmatprep.subr.mxu0 0.0
    %1518 = vmatpush2.msra.mxu0 0.0
    %1519 = vmatprep.mubr.f32.mxu0 0.0
    %1520 = vmatmul.mubr.f32.gmra.mxu0 %v1453
    %v1521 = vpop.f32.mrf.mxu0
    %v1522 = vadd.f32 0.0, %v1521
    %v1523 = vpop.f32.mrf.mxu0
    %1524 = vdwg.mxu0
    %v1525 = vadd.f32 %v760, %v1522
    %v1526 = vxor.u32 %v1525, 2147483648
    %v1527 = vmul.f32 %v1526, 1.442695
    %v1528 = vpow.pop %v1527
    %v1529 = vadd.f32 %v1528, 1.0
    %v1530 = vrcp.pop %v1529
    %v1531 = vmul.f32 1.0, %v1530
    %v1532 = vtanh.pop %v1525
    %v1533 = vmul.f32 %v1531, %v1443
    %1535 = vrot.lane.b32.xlu0 %v1532, 64
    %v1536 = vpop.permute.xlu0 %1535
    %v1538 = vmul.f32 %v1531, %v1536
    %1540 = vrot.lane.b32.xlu0 %v1538, 32
    %v1541 = vpop.permute.xlu0 %1540
    %v1543 = vadd.f32 %v1533, %v1541
    %v1544 = vtanh.pop %v1543
    %1546 = vrot.lane.b32.xlu0 %v1544, 64
    %v1547 = vpop.permute.xlu0 %1546
    %v1549 = vmul.f32 %v1531, %v1547
    %1551 = vrot.lane.b32.xlu0 %v1549, 32
    %v1552 = vpop.permute.xlu0 %1551
    %v1553 = vsel %vm951, %v1552, 0
    %1555 = vmatprep.subr.mxu0 0.0
    %1556 = vmatpush1.msra.mxu0 0.0
    %1557 = vmatprep.subr.mxu0 0.0
    %1558 = vmatpush1.msra.mxu0 0.0
    %1559 = vmatprep.subr.mxu0 0.0
    %1560 = vmatpush1.msra.mxu0 0.0
    %1561 = vmatprep.subr.mxu0 0.0
    %1562 = vmatpush1.msra.mxu0 0.0
    %1563 = vmatprep.subr.mxu0 0.0
    %1564 = vmatpush1.msra.mxu0 0.0
    %1565 = vmatprep.subr.mxu0 0.0
    %1566 = vmatpush1.msra.mxu0 0.0
    %1567 = vmatprep.subr.mxu0 0.0
    %1568 = vmatpush1.msra.mxu0 0.0
    %1569 = vmatprep.subr.mxu0 0.0
    %1570 = vmatpush1.msra.mxu0 0.0
    %1571 = vmatprep.subr.mxu0 0.0
    %1572 = vmatpush1.msra.mxu0 0.0
    %1573 = vmatprep.subr.mxu0 0.0
    %1574 = vmatpush1.msra.mxu0 0.0
    %1575 = vmatprep.subr.mxu0 0.0
    %1576 = vmatpush1.msra.mxu0 0.0
    %1577 = vmatprep.subr.mxu0 0.0
    %1578 = vmatpush1.msra.mxu0 0.0
    %1579 = vmatprep.subr.mxu0 0.0
    %1580 = vmatpush1.msra.mxu0 %v179
    %1581 = vmatprep.subr.mxu0 0.0
    %1582 = vmatpush1.msra.mxu0 %v178
    %1583 = vmatprep.subr.mxu0 0.0
    %1584 = vmatpush1.msra.mxu0 %v177
    %1585 = vmatprep.subr.mxu0 0.0
    %1586 = vmatpush1.msra.mxu0 %v176
    %1587 = vmatprep.subr.mxu0 0.0
    %1588 = vmatpush2.msra.mxu0 0.0
    %1589 = vmatprep.subr.mxu0 0.0
    %1590 = vmatpush2.msra.mxu0 0.0
    %1591 = vmatprep.subr.mxu0 0.0
    %1592 = vmatpush2.msra.mxu0 0.0
    %1593 = vmatprep.subr.mxu0 0.0
    %1594 = vmatpush2.msra.mxu0 0.0
    %1595 = vmatprep.subr.mxu0 0.0
    %1596 = vmatpush2.msra.mxu0 0.0
    %1597 = vmatprep.subr.mxu0 0.0
    %1598 = vmatpush2.msra.mxu0 0.0
    %1599 = vmatprep.subr.mxu0 0.0
    %1600 = vmatpush2.msra.mxu0 0.0
    %1601 = vmatprep.subr.mxu0 0.0
    %1602 = vmatpush2.msra.mxu0 0.0
    %1603 = vmatprep.subr.mxu0 0.0
    %1604 = vmatpush2.msra.mxu0 0.0
    %1605 = vmatprep.subr.mxu0 0.0
    %1606 = vmatpush2.msra.mxu0 0.0
    %1607 = vmatprep.subr.mxu0 0.0
    %1608 = vmatpush2.msra.mxu0 0.0
    %1609 = vmatprep.subr.mxu0 0.0
    %1610 = vmatpush2.msra.mxu0 0.0
    %1611 = vmatprep.subr.mxu0 0.0
    %1612 = vmatpush2.msra.mxu0 0.0
    %1613 = vmatprep.subr.mxu0 0.0
    %1614 = vmatpush2.msra.mxu0 0.0
    %1615 = vmatprep.subr.mxu0 0.0
    %1616 = vmatpush2.msra.mxu0 0.0
    %1617 = vmatprep.subr.mxu0 0.0
    %1618 = vmatpush2.msra.mxu0 0.0
    %1619 = vmatprep.mubr.f32.mxu0 0.0
    %1620 = vmatmul.mubr.f32.gmra.mxu0 %v1553
    %v1621 = vpop.f32.mrf.mxu0
    %v1622 = vadd.f32 0.0, %v1621
    %v1623 = vpop.f32.mrf.mxu0
    %1624 = vdwg.mxu0
    %v1625 = vadd.f32 %v854, %v1622
    %v1626 = vxor.u32 %v1625, 2147483648
    %v1627 = vmul.f32 %v1626, 1.442695
    %v1628 = vpow.pop %v1627
    %v1629 = vadd.f32 %v1628, 1.0
    %v1630 = vrcp.pop %v1629
    %v1631 = vmul.f32 1.0, %v1630
    %v1632 = vtanh.pop %v1625
    %v1633 = vmul.f32 %v1631, %v1543
    %1635 = vrot.lane.b32.xlu0 %v1632, 64
    %v1636 = vpop.permute.xlu0 %1635
    %v1638 = vmul.f32 %v1631, %v1636
    %1640 = vrot.lane.b32.xlu0 %v1638, 32
    %v1641 = vpop.permute.xlu0 %1640
    %v1643 = vadd.f32 %v1633, %v1641
    %v1644 = vtanh.pop %v1643
    %1646 = vrot.lane.b32.xlu0 %v1644, 64
    %v1647 = vpop.permute.xlu0 %1646
    %v1649 = vmul.f32 %v1631, %v1647
    %1651 = vrot.lane.b32.xlu0 %v1649, 32
    %v1652 = vpop.permute.xlu0 %1651
    %v1653 = vsel %vm951, %v1652, 0
    %1655 = vmatprep.subr.mxu0 0.0
    %1656 = vmatpush1.msra.mxu0 0.0
    %1657 = vmatprep.subr.mxu0 0.0
    %1658 = vmatpush1.msra.mxu0 0.0
    %1659 = vmatprep.subr.mxu0 0.0
    %1660 = vmatpush1.msra.mxu0 0.0
    %1661 = vmatprep.subr.mxu0 0.0
    %1662 = vmatpush1.msra.mxu0 0.0
    %1663 = vmatprep.subr.mxu0 0.0
    %1664 = vmatpush1.msra.mxu0 0.0
    %1665 = vmatprep.subr.mxu0 0.0
    %1666 = vmatpush1.msra.mxu0 0.0
    %1667 = vmatprep.subr.mxu0 0.0
    %1668 = vmatpush1.msra.mxu0 0.0
    %1669 = vmatprep.subr.mxu0 0.0
    %1670 = vmatpush1.msra.mxu0 0.0
    %1671 = vmatprep.subr.mxu0 0.0
    %1672 = vmatpush1.msra.mxu0 0.0
    %1673 = vmatprep.subr.mxu0 0.0
    %1674 = vmatpush1.msra.mxu0 0.0
    %1675 = vmatprep.subr.mxu0 0.0
    %1676 = vmatpush1.msra.mxu0 0.0
    %1677 = vmatprep.subr.mxu0 0.0
    %1678 = vmatpush1.msra.mxu0 0.0
    %1679 = vmatprep.subr.mxu0 0.0
    %1680 = vmatpush1.msra.mxu0 %v179
    %1681 = vmatprep.subr.mxu0 0.0
    %1682 = vmatpush1.msra.mxu0 %v178
    %1683 = vmatprep.subr.mxu0 0.0
    %1684 = vmatpush1.msra.mxu0 %v177
    %1685 = vmatprep.subr.mxu0 0.0
    %1686 = vmatpush1.msra.mxu0 %v176
    %1687 = vmatprep.subr.mxu0 0.0
    %1688 = vmatpush2.msra.mxu0 0.0
    %1689 = vmatprep.subr.mxu0 0.0
    %1690 = vmatpush2.msra.mxu0 0.0
    %1691 = vmatprep.subr.mxu0 0.0
    %1692 = vmatpush2.msra.mxu0 0.0
    %1693 = vmatprep.subr.mxu0 0.0
    %1694 = vmatpush2.msra.mxu0 0.0
    %1695 = vmatprep.subr.mxu0 0.0
    %1696 = vmatpush2.msra.mxu0 0.0
    %1697 = vmatprep.subr.mxu0 0.0
    %1698 = vmatpush2.msra.mxu0 0.0
    %1699 = vmatprep.subr.mxu0 0.0
    %1700 = vmatpush2.msra.mxu0 0.0
    %1701 = vmatprep.subr.mxu0 0.0
    %1702 = vmatpush2.msra.mxu0 0.0
    %1703 = vmatprep.subr.mxu0 0.0
    %1704 = vmatpush2.msra.mxu0 0.0
    %1705 = vmatprep.subr.mxu0 0.0
    %1706 = vmatpush2.msra.mxu0 0.0
    %1707 = vmatprep.subr.mxu0 0.0
    %1708 = vmatpush2.msra.mxu0 0.0
    %1709 = vmatprep.subr.mxu0 0.0
    %1710 = vmatpush2.msra.mxu0 0.0
    %1711 = vmatprep.subr.mxu0 0.0
    %1712 = vmatpush2.msra.mxu0 0.0
    %1713 = vmatprep.subr.mxu0 0.0
    %1714 = vmatpush2.msra.mxu0 0.0
    %1715 = vmatprep.subr.mxu0 0.0
    %1716 = vmatpush2.msra.mxu0 0.0
    %1717 = vmatprep.subr.mxu0 0.0
    %1718 = vmatpush2.msra.mxu0 0.0
    %1719 = vmatprep.mubr.f32.mxu0 0.0
    %1720 = vmatmul.mubr.f32.gmra.mxu0 %v1653
    %v1721 = vpop.f32.mrf.mxu0
    %v1722 = vadd.f32 0.0, %v1721
    %v1723 = vpop.f32.mrf.mxu0
    %1724 = vdwg.mxu0
    %v1725 = vadd.f32 %v948, %v1722
    %v1726 = vxor.u32 %v1725, 2147483648
    %v1727 = vmul.f32 %v1726, 1.442695
    %v1728 = vpow.pop %v1727
    %v1729 = vadd.f32 %v1728, 1.0
    %v1730 = vrcp.pop %v1729
    %v1731 = vmul.f32 1.0, %v1730
    %v1732 = vtanh.pop %v1725
    %v1733 = vmul.f32 %v1731, %v1643
    %1735 = vrot.lane.b32.xlu0 %v1732, 64
    %v1736 = vpop.permute.xlu0 %1735
    %v1738 = vmul.f32 %v1731, %v1736
    %1740 = vrot.lane.b32.xlu0 %v1738, 32
    %v1741 = vpop.permute.xlu0 %1740
    %v1743 = vadd.f32 %v1733, %v1741
    %v1744 = vtanh.pop %v1743
    %1746 = vrot.lane.b32.xlu0 %v1744, 64
    %v1747 = vpop.permute.xlu0 %1746
    %v1749 = vmul.f32 %v1731, %v1747
    %v1750 = vld [vmem:[%s5] sm:$0xff]
    %v1751 = vld [vmem:[%s5 + $0x8] sm:$0xff]
    %v1752 = vld [vmem:[%s5 + $0x10] sm:$0xff]
    %v1753 = vld [vmem:[%s5 + $0x18] sm:$0xff]
    %v1754 = vld [vmem:[%s6] sm:$0xff]
    %v1755 = vld [vmem:[%s6 + $0x8] sm:$0xff]
    %v1756 = vld [vmem:[%s6 + $0x10] sm:$0xff]
    %v1757 = vld [vmem:[%s6 + $0x18] sm:$0xff]
    %v1758 = vld [vmem:[#allocation9] sm:$0x1]
    %v1760 = vlaneseq
    %v1761 = vshrl.u32 %v1760, 7
    %v1762 = vsub.s32 0, %v1761
    %v1763 = vrot.slane %v1758, %v1762
    %1765 = vmatprep.subr.mxu0 0.0
    %1766 = vmatpush1.msra.mxu0 0.0
    %1767 = vmatprep.subr.mxu0 0.0
    %1768 = vmatpush1.msra.mxu0 0.0
    %1769 = vmatprep.subr.mxu0 0.0
    %1770 = vmatpush1.msra.mxu0 0.0
    %1771 = vmatprep.subr.mxu0 0.0
    %1772 = vmatpush1.msra.mxu0 0.0
    %1773 = vmatprep.subr.mxu0 0.0
    %1774 = vmatpush1.msra.mxu0 0.0
    %1775 = vmatprep.subr.mxu0 0.0
    %1776 = vmatpush1.msra.mxu0 0.0
    %1777 = vmatprep.subr.mxu0 0.0
    %1778 = vmatpush1.msra.mxu0 0.0
    %1779 = vmatprep.subr.mxu0 0.0
    %1780 = vmatpush1.msra.mxu0 0.0
    %1781 = vmatprep.subr.mxu0 0.0
    %1782 = vmatpush1.msra.mxu0 0.0
    %1783 = vmatprep.subr.mxu0 0.0
    %1784 = vmatpush1.msra.mxu0 0.0
    %1785 = vmatprep.subr.mxu0 0.0
    %1786 = vmatpush1.msra.mxu0 0.0
    %1787 = vmatprep.subr.mxu0 0.0
    %1788 = vmatpush1.msra.mxu0 0.0
    %1789 = vmatprep.subr.mxu0 0.0
    %1790 = vmatpush1.msra.mxu0 %v1753
    %1791 = vmatprep.subr.mxu0 0.0
    %1792 = vmatpush1.msra.mxu0 %v1752
    %1793 = vmatprep.subr.mxu0 0.0
    %1794 = vmatpush1.msra.mxu0 %v1751
    %1795 = vmatprep.subr.mxu0 0.0
    %1796 = vmatpush1.msra.mxu0 %v1750
    %1797 = vmatprep.subr.mxu0 0.0
    %1798 = vmatpush2.msra.mxu0 0.0
    %1799 = vmatprep.subr.mxu0 0.0
    %1800 = vmatpush2.msra.mxu0 0.0
    %1801 = vmatprep.subr.mxu0 0.0
    %1802 = vmatpush2.msra.mxu0 0.0
    %1803 = vmatprep.subr.mxu0 0.0
    %1804 = vmatpush2.msra.mxu0 0.0
    %1805 = vmatprep.subr.mxu0 0.0
    %1806 = vmatpush2.msra.mxu0 0.0
    %1807 = vmatprep.subr.mxu0 0.0
    %1808 = vmatpush2.msra.mxu0 0.0
    %1809 = vmatprep.subr.mxu0 0.0
    %1810 = vmatpush2.msra.mxu0 0.0
    %1811 = vmatprep.subr.mxu0 0.0
    %1812 = vmatpush2.msra.mxu0 0.0
    %1813 = vmatprep.subr.mxu0 0.0
    %1814 = vmatpush2.msra.mxu0 0.0
    %1815 = vmatprep.subr.mxu0 0.0
    %1816 = vmatpush2.msra.mxu0 0.0
    %1817 = vmatprep.subr.mxu0 0.0
    %1818 = vmatpush2.msra.mxu0 0.0
    %1819 = vmatprep.subr.mxu0 0.0
    %1820 = vmatpush2.msra.mxu0 0.0
    %1821 = vmatprep.subr.mxu0 0.0
    %1822 = vmatpush2.msra.mxu0 0.0
    %1823 = vmatprep.subr.mxu0 0.0
    %1824 = vmatpush2.msra.mxu0 0.0
    %1825 = vmatprep.subr.mxu0 0.0
    %1826 = vmatpush2.msra.mxu0 0.0
    %1827 = vmatprep.subr.mxu0 0.0
    %1828 = vmatpush2.msra.mxu0 0.0
    %1829 = vmatprep.mubr.f32.mxu0 0.0
    %1830 = vmatmul.mubr.f32.gmra.mxu0 %v1053
    %v1831 = vpop.f32.mrf.mxu0
    %v1832 = vadd.f32 %v1763, %v1831
    %v1833 = vpop.f32.mrf.mxu0
    %1834 = vdwg.mxu0
    %1835 = vmatprep.subr.mxu0 0.0
    %1836 = vmatpush1.msra.mxu0 0.0
    %1837 = vmatprep.subr.mxu0 0.0
    %1838 = vmatpush1.msra.mxu0 0.0
    %1839 = vmatprep.subr.mxu0 0.0
    %1840 = vmatpush1.msra.mxu0 0.0
    %1841 = vmatprep.subr.mxu0 0.0
    %1842 = vmatpush1.msra.mxu0 0.0
    %1843 = vmatprep.subr.mxu0 0.0
    %1844 = vmatpush1.msra.mxu0 0.0
    %1845 = vmatprep.subr.mxu0 0.0
    %1846 = vmatpush1.msra.mxu0 0.0
    %1847 = vmatprep.subr.mxu0 0.0
    %1848 = vmatpush1.msra.mxu0 0.0
    %1849 = vmatprep.subr.mxu0 0.0
    %1850 = vmatpush1.msra.mxu0 0.0
    %1851 = vmatprep.subr.mxu0 0.0
    %1852 = vmatpush1.msra.mxu0 0.0
    %1853 = vmatprep.subr.mxu0 0.0
    %1854 = vmatpush1.msra.mxu0 0.0
    %1855 = vmatprep.subr.mxu0 0.0
    %1856 = vmatpush1.msra.mxu0 0.0
    %1857 = vmatprep.subr.mxu0 0.0
    %1858 = vmatpush1.msra.mxu0 0.0
    %1859 = vmatprep.subr.mxu0 0.0
    %1860 = vmatpush1.msra.mxu0 %v1753
    %1861 = vmatprep.subr.mxu0 0.0
    %1862 = vmatpush1.msra.mxu0 %v1752
    %1863 = vmatprep.subr.mxu0 0.0
    %1864 = vmatpush1.msra.mxu0 %v1751
    %1865 = vmatprep.subr.mxu0 0.0
    %1866 = vmatpush1.msra.mxu0 %v1750
    %1867 = vmatprep.subr.mxu0 0.0
    %1868 = vmatpush2.msra.mxu0 0.0
    %1869 = vmatprep.subr.mxu0 0.0
    %1870 = vmatpush2.msra.mxu0 0.0
    %1871 = vmatprep.subr.mxu0 0.0
    %1872 = vmatpush2.msra.mxu0 0.0
    %1873 = vmatprep.subr.mxu0 0.0
    %1874 = vmatpush2.msra.mxu0 0.0
    %1875 = vmatprep.subr.mxu0 0.0
    %1876 = vmatpush2.msra.mxu0 0.0
    %1877 = vmatprep.subr.mxu0 0.0
    %1878 = vmatpush2.msra.mxu0 0.0
    %1879 = vmatprep.subr.mxu0 0.0
    %1880 = vmatpush2.msra.mxu0 0.0
    %1881 = vmatprep.subr.mxu0 0.0
    %1882 = vmatpush2.msra.mxu0 0.0
    %1883 = vmatprep.subr.mxu0 0.0
    %1884 = vmatpush2.msra.mxu0 0.0
    %1885 = vmatprep.subr.mxu0 0.0
    %1886 = vmatpush2.msra.mxu0 0.0
    %1887 = vmatprep.subr.mxu0 0.0
    %1888 = vmatpush2.msra.mxu0 0.0
    %1889 = vmatprep.subr.mxu0 0.0
    %1890 = vmatpush2.msra.mxu0 0.0
    %1891 = vmatprep.subr.mxu0 0.0
    %1892 = vmatpush2.msra.mxu0 0.0
    %1893 = vmatprep.subr.mxu0 0.0
    %1894 = vmatpush2.msra.mxu0 0.0
    %1895 = vmatprep.subr.mxu0 0.0
    %1896 = vmatpush2.msra.mxu0 0.0
    %1897 = vmatprep.subr.mxu0 0.0
    %1898 = vmatpush2.msra.mxu0 0.0
    %1899 = vmatprep.mubr.f32.mxu0 0.0
    %1900 = vmatmul.mubr.f32.gmra.mxu0 %v1153
    %v1901 = vpop.f32.mrf.mxu0
    %v1902 = vadd.f32 %v1763, %v1901
    %v1903 = vpop.f32.mrf.mxu0
    %1904 = vdwg.mxu0
    %1905 = vmatprep.subr.mxu0 0.0
    %1906 = vmatpush1.msra.mxu0 0.0
    %1907 = vmatprep.subr.mxu0 0.0
    %1908 = vmatpush1.msra.mxu0 0.0
    %1909 = vmatprep.subr.mxu0 0.0
    %1910 = vmatpush1.msra.mxu0 0.0
    %1911 = vmatprep.subr.mxu0 0.0
    %1912 = vmatpush1.msra.mxu0 0.0
    %1913 = vmatprep.subr.mxu0 0.0
    %1914 = vmatpush1.msra.mxu0 0.0
    %1915 = vmatprep.subr.mxu0 0.0
    %1916 = vmatpush1.msra.mxu0 0.0
    %1917 = vmatprep.subr.mxu0 0.0
    %1918 = vmatpush1.msra.mxu0 0.0
    %1919 = vmatprep.subr.mxu0 0.0
    %1920 = vmatpush1.msra.mxu0 0.0
    %1921 = vmatprep.subr.mxu0 0.0
    %1922 = vmatpush1.msra.mxu0 0.0
    %1923 = vmatprep.subr.mxu0 0.0
    %1924 = vmatpush1.msra.mxu0 0.0
    %1925 = vmatprep.subr.mxu0 0.0
    %1926 = vmatpush1.msra.mxu0 0.0
    %1927 = vmatprep.subr.mxu0 0.0
    %1928 = vmatpush1.msra.mxu0 0.0
    %1929 = vmatprep.subr.mxu0 0.0
    %1930 = vmatpush1.msra.mxu0 %v1753
    %1931 = vmatprep.subr.mxu0 0.0
    %1932 = vmatpush1.msra.mxu0 %v1752
    %1933 = vmatprep.subr.mxu0 0.0
    %1934 = vmatpush1.msra.mxu0 %v1751
    %1935 = vmatprep.subr.mxu0 0.0
    %1936 = vmatpush1.msra.mxu0 %v1750
    %1937 = vmatprep.subr.mxu0 0.0
    %1938 = vmatpush2.msra.mxu0 0.0
    %1939 = vmatprep.subr.mxu0 0.0
    %1940 = vmatpush2.msra.mxu0 0.0
    %1941 = vmatprep.subr.mxu0 0.0
    %1942 = vmatpush2.msra.mxu0 0.0
    %1943 = vmatprep.subr.mxu0 0.0
    %1944 = vmatpush2.msra.mxu0 0.0
    %1945 = vmatprep.subr.mxu0 0.0
    %1946 = vmatpush2.msra.mxu0 0.0
    %1947 = vmatprep.subr.mxu0 0.0
    %1948 = vmatpush2.msra.mxu0 0.0
    %1949 = vmatprep.subr.mxu0 0.0
    %1950 = vmatpush2.msra.mxu0 0.0
    %1951 = vmatprep.subr.mxu0 0.0
    %1952 = vmatpush2.msra.mxu0 0.0
    %1953 = vmatprep.subr.mxu0 0.0
    %1954 = vmatpush2.msra.mxu0 0.0
    %1955 = vmatprep.subr.mxu0 0.0
    %1956 = vmatpush2.msra.mxu0 0.0
    %1957 = vmatprep.subr.mxu0 0.0
    %1958 = vmatpush2.msra.mxu0 0.0
    %1959 = vmatprep.subr.mxu0 0.0
    %1960 = vmatpush2.msra.mxu0 0.0
    %1961 = vmatprep.subr.mxu0 0.0
    %1962 = vmatpush2.msra.mxu0 0.0
    %1963 = vmatprep.subr.mxu0 0.0
    %1964 = vmatpush2.msra.mxu0 0.0
    %1965 = vmatprep.subr.mxu0 0.0
    %1966 = vmatpush2.msra.mxu0 0.0
    %1967 = vmatprep.subr.mxu0 0.0
    %1968 = vmatpush2.msra.mxu0 0.0
    %1969 = vmatprep.mubr.f32.mxu0 0.0
    %1970 = vmatmul.mubr.f32.gmra.mxu0 %v1253
    %v1971 = vpop.f32.mrf.mxu0
    %v1972 = vadd.f32 %v1763, %v1971
    %v1973 = vpop.f32.mrf.mxu0
    %1974 = vdwg.mxu0
    %1975 = vmatprep.subr.mxu0 0.0
    %1976 = vmatpush1.msra.mxu0 0.0
    %1977 = vmatprep.subr.mxu0 0.0
    %1978 = vmatpush1.msra.mxu0 0.0
    %1979 = vmatprep.subr.mxu0 0.0
    %1980 = vmatpush1.msra.mxu0 0.0
    %1981 = vmatprep.subr.mxu0 0.0
    %1982 = vmatpush1.msra.mxu0 0.0
    %1983 = vmatprep.subr.mxu0 0.0
    %1984 = vmatpush1.msra.mxu0 0.0
    %1985 = vmatprep.subr.mxu0 0.0
    %1986 = vmatpush1.msra.mxu0 0.0
    %1987 = vmatprep.subr.mxu0 0.0
    %1988 = vmatpush1.msra.mxu0 0.0
    %1989 = vmatprep.subr.mxu0 0.0
    %1990 = vmatpush1.msra.mxu0 0.0
    %1991 = vmatprep.subr.mxu0 0.0
    %1992 = vmatpush1.msra.mxu0 0.0
    %1993 = vmatprep.subr.mxu0 0.0
    %1994 = vmatpush1.msra.mxu0 0.0
    %1995 = vmatprep.subr.mxu0 0.0
    %1996 = vmatpush1.msra.mxu0 0.0
    %1997 = vmatprep.subr.mxu0 0.0
    %1998 = vmatpush1.msra.mxu0 0.0
    %1999 = vmatprep.subr.mxu0 0.0
    %2000 = vmatpush1.msra.mxu0 %v1753
    %2001 = vmatprep.subr.mxu0 0.0
    %2002 = vmatpush1.msra.mxu0 %v1752
    %2003 = vmatprep.subr.mxu0 0.0
    %2004 = vmatpush1.msra.mxu0 %v1751
    %2005 = vmatprep.subr.mxu0 0.0
    %2006 = vmatpush1.msra.mxu0 %v1750
    %2007 = vmatprep.subr.mxu0 0.0
    %2008 = vmatpush2.msra.mxu0 0.0
    %2009 = vmatprep.subr.mxu0 0.0
    %2010 = vmatpush2.msra.mxu0 0.0
    %2011 = vmatprep.subr.mxu0 0.0
    %2012 = vmatpush2.msra.mxu0 0.0
    %2013 = vmatprep.subr.mxu0 0.0
    %2014 = vmatpush2.msra.mxu0 0.0
    %2015 = vmatprep.subr.mxu0 0.0
    %2016 = vmatpush2.msra.mxu0 0.0
    %2017 = vmatprep.subr.mxu0 0.0
    %2018 = vmatpush2.msra.mxu0 0.0
    %2019 = vmatprep.subr.mxu0 0.0
    %2020 = vmatpush2.msra.mxu0 0.0
    %2021 = vmatprep.subr.mxu0 0.0
    %2022 = vmatpush2.msra.mxu0 0.0
    %2023 = vmatprep.subr.mxu0 0.0
    %2024 = vmatpush2.msra.mxu0 0.0
    %2025 = vmatprep.subr.mxu0 0.0
    %2026 = vmatpush2.msra.mxu0 0.0
    %2027 = vmatprep.subr.mxu0 0.0
    %2028 = vmatpush2.msra.mxu0 0.0
    %2029 = vmatprep.subr.mxu0 0.0
    %2030 = vmatpush2.msra.mxu0 0.0
    %2031 = vmatprep.subr.mxu0 0.0
    %2032 = vmatpush2.msra.mxu0 0.0
    %2033 = vmatprep.subr.mxu0 0.0
    %2034 = vmatpush2.msra.mxu0 0.0
    %2035 = vmatprep.subr.mxu0 0.0
    %2036 = vmatpush2.msra.mxu0 0.0
    %2037 = vmatprep.subr.mxu0 0.0
    %2038 = vmatpush2.msra.mxu0 0.0
    %2039 = vmatprep.mubr.f32.mxu0 0.0
    %2040 = vmatmul.mubr.f32.gmra.mxu0 %v1353
    %v2041 = vpop.f32.mrf.mxu0
    %v2042 = vadd.f32 %v1763, %v2041
    %v2043 = vpop.f32.mrf.mxu0
    %2044 = vdwg.mxu0
    %2045 = vmatprep.subr.mxu0 0.0
    %2046 = vmatpush1.msra.mxu0 0.0
    %2047 = vmatprep.subr.mxu0 0.0
    %2048 = vmatpush1.msra.mxu0 0.0
    %2049 = vmatprep.subr.mxu0 0.0
    %2050 = vmatpush1.msra.mxu0 0.0
    %2051 = vmatprep.subr.mxu0 0.0
    %2052 = vmatpush1.msra.mxu0 0.0
    %2053 = vmatprep.subr.mxu0 0.0
    %2054 = vmatpush1.msra.mxu0 0.0
    %2055 = vmatprep.subr.mxu0 0.0
    %2056 = vmatpush1.msra.mxu0 0.0
    %2057 = vmatprep.subr.mxu0 0.0
    %2058 = vmatpush1.msra.mxu0 0.0
    %2059 = vmatprep.subr.mxu0 0.0
    %2060 = vmatpush1.msra.mxu0 0.0
    %2061 = vmatprep.subr.mxu0 0.0
    %2062 = vmatpush1.msra.mxu0 0.0
    %2063 = vmatprep.subr.mxu0 0.0
    %2064 = vmatpush1.msra.mxu0 0.0
    %2065 = vmatprep.subr.mxu0 0.0
    %2066 = vmatpush1.msra.mxu0 0.0
    %2067 = vmatprep.subr.mxu0 0.0
    %2068 = vmatpush1.msra.mxu0 0.0
    %2069 = vmatprep.subr.mxu0 0.0
    %2070 = vmatpush1.msra.mxu0 %v1753
    %2071 = vmatprep.subr.mxu0 0.0
    %2072 = vmatpush1.msra.mxu0 %v1752
    %2073 = vmatprep.subr.mxu0 0.0
    %2074 = vmatpush1.msra.mxu0 %v1751
    %2075 = vmatprep.subr.mxu0 0.0
    %2076 = vmatpush1.msra.mxu0 %v1750
    %2077 = vmatprep.subr.mxu0 0.0
    %2078 = vmatpush2.msra.mxu0 0.0
    %2079 = vmatprep.subr.mxu0 0.0
    %2080 = vmatpush2.msra.mxu0 0.0
    %2081 = vmatprep.subr.mxu0 0.0
    %2082 = vmatpush2.msra.mxu0 0.0
    %2083 = vmatprep.subr.mxu0 0.0
    %2084 = vmatpush2.msra.mxu0 0.0
    %2085 = vmatprep.subr.mxu0 0.0
    %2086 = vmatpush2.msra.mxu0 0.0
    %2087 = vmatprep.subr.mxu0 0.0
    %2088 = vmatpush2.msra.mxu0 0.0
    %2089 = vmatprep.subr.mxu0 0.0
    %2090 = vmatpush2.msra.mxu0 0.0
    %2091 = vmatprep.subr.mxu0 0.0
    %2092 = vmatpush2.msra.mxu0 0.0
    %2093 = vmatprep.subr.mxu0 0.0
    %2094 = vmatpush2.msra.mxu0 0.0
    %2095 = vmatprep.subr.mxu0 0.0
    %2096 = vmatpush2.msra.mxu0 0.0
    %2097 = vmatprep.subr.mxu0 0.0
    %2098 = vmatpush2.msra.mxu0 0.0
    %2099 = vmatprep.subr.mxu0 0.0
    %2100 = vmatpush2.msra.mxu0 0.0
    %2101 = vmatprep.subr.mxu0 0.0
    %2102 = vmatpush2.msra.mxu0 0.0
    %2103 = vmatprep.subr.mxu0 0.0
    %2104 = vmatpush2.msra.mxu0 0.0
    %2105 = vmatprep.subr.mxu0 0.0
    %2106 = vmatpush2.msra.mxu0 0.0
    %2107 = vmatprep.subr.mxu0 0.0
    %2108 = vmatpush2.msra.mxu0 0.0
    %2109 = vmatprep.mubr.f32.mxu0 0.0
    %2110 = vmatmul.mubr.f32.gmra.mxu0 %v1453
    %v2111 = vpop.f32.mrf.mxu0
    %v2112 = vadd.f32 %v1763, %v2111
    %v2113 = vpop.f32.mrf.mxu0
    %2114 = vdwg.mxu0
    %2115 = vmatprep.subr.mxu0 0.0
    %2116 = vmatpush1.msra.mxu0 0.0
    %2117 = vmatprep.subr.mxu0 0.0
    %2118 = vmatpush1.msra.mxu0 0.0
    %2119 = vmatprep.subr.mxu0 0.0
    %2120 = vmatpush1.msra.mxu0 0.0
    %2121 = vmatprep.subr.mxu0 0.0
    %2122 = vmatpush1.msra.mxu0 0.0
    %2123 = vmatprep.subr.mxu0 0.0
    %2124 = vmatpush1.msra.mxu0 0.0
    %2125 = vmatprep.subr.mxu0 0.0
    %2126 = vmatpush1.msra.mxu0 0.0
    %2127 = vmatprep.subr.mxu0 0.0
    %2128 = vmatpush1.msra.mxu0 0.0
    %2129 = vmatprep.subr.mxu0 0.0
    %2130 = vmatpush1.msra.mxu0 0.0
    %2131 = vmatprep.subr.mxu0 0.0
    %2132 = vmatpush1.msra.mxu0 0.0
    %2133 = vmatprep.subr.mxu0 0.0
    %2134 = vmatpush1.msra.mxu0 0.0
    %2135 = vmatprep.subr.mxu0 0.0
    %2136 = vmatpush1.msra.mxu0 0.0
    %2137 = vmatprep.subr.mxu0 0.0
    %2138 = vmatpush1.msra.mxu0 0.0
    %2139 = vmatprep.subr.mxu0 0.0
    %2140 = vmatpush1.msra.mxu0 %v1753
    %2141 = vmatprep.subr.mxu0 0.0
    %2142 = vmatpush1.msra.mxu0 %v1752
    %2143 = vmatprep.subr.mxu0 0.0
    %2144 = vmatpush1.msra.mxu0 %v1751
    %2145 = vmatprep.subr.mxu0 0.0
    %2146 = vmatpush1.msra.mxu0 %v1750
    %2147 = vmatprep.subr.mxu0 0.0
    %2148 = vmatpush2.msra.mxu0 0.0
    %2149 = vmatprep.subr.mxu0 0.0
    %2150 = vmatpush2.msra.mxu0 0.0
    %2151 = vmatprep.subr.mxu0 0.0
    %2152 = vmatpush2.msra.mxu0 0.0
    %2153 = vmatprep.subr.mxu0 0.0
    %2154 = vmatpush2.msra.mxu0 0.0
    %2155 = vmatprep.subr.mxu0 0.0
    %2156 = vmatpush2.msra.mxu0 0.0
    %2157 = vmatprep.subr.mxu0 0.0
    %2158 = vmatpush2.msra.mxu0 0.0
    %2159 = vmatprep.subr.mxu0 0.0
    %2160 = vmatpush2.msra.mxu0 0.0
    %2161 = vmatprep.subr.mxu0 0.0
    %2162 = vmatpush2.msra.mxu0 0.0
    %2163 = vmatprep.subr.mxu0 0.0
    %2164 = vmatpush2.msra.mxu0 0.0
    %2165 = vmatprep.subr.mxu0 0.0
    %2166 = vmatpush2.msra.mxu0 0.0
    %2167 = vmatprep.subr.mxu0 0.0
    %2168 = vmatpush2.msra.mxu0 0.0
    %2169 = vmatprep.subr.mxu0 0.0
    %2170 = vmatpush2.msra.mxu0 0.0
    %2171 = vmatprep.subr.mxu0 0.0
    %2172 = vmatpush2.msra.mxu0 0.0
    %2173 = vmatprep.subr.mxu0 0.0
    %2174 = vmatpush2.msra.mxu0 0.0
    %2175 = vmatprep.subr.mxu0 0.0
    %2176 = vmatpush2.msra.mxu0 0.0
    %2177 = vmatprep.subr.mxu0 0.0
    %2178 = vmatpush2.msra.mxu0 0.0
    %2179 = vmatprep.mubr.f32.mxu0 0.0
    %2180 = vmatmul.mubr.f32.gmra.mxu0 %v1553
    %v2181 = vpop.f32.mrf.mxu0
    %v2182 = vadd.f32 %v1763, %v2181
    %v2183 = vpop.f32.mrf.mxu0
    %2184 = vdwg.mxu0
    %2185 = vmatprep.subr.mxu0 0.0
    %2186 = vmatpush1.msra.mxu0 0.0
    %2187 = vmatprep.subr.mxu0 0.0
    %2188 = vmatpush1.msra.mxu0 0.0
    %2189 = vmatprep.subr.mxu0 0.0
    %2190 = vmatpush1.msra.mxu0 0.0
    %2191 = vmatprep.subr.mxu0 0.0
    %2192 = vmatpush1.msra.mxu0 0.0
    %2193 = vmatprep.subr.mxu0 0.0
    %2194 = vmatpush1.msra.mxu0 0.0
    %2195 = vmatprep.subr.mxu0 0.0
    %2196 = vmatpush1.msra.mxu0 0.0
    %2197 = vmatprep.subr.mxu0 0.0
    %2198 = vmatpush1.msra.mxu0 0.0
    %2199 = vmatprep.subr.mxu0 0.0
    %2200 = vmatpush1.msra.mxu0 0.0
    %2201 = vmatprep.subr.mxu0 0.0
    %2202 = vmatpush1.msra.mxu0 0.0
    %2203 = vmatprep.subr.mxu0 0.0
    %2204 = vmatpush1.msra.mxu0 0.0
    %2205 = vmatprep.subr.mxu0 0.0
    %2206 = vmatpush1.msra.mxu0 0.0
    %2207 = vmatprep.subr.mxu0 0.0
    %2208 = vmatpush1.msra.mxu0 0.0
    %2209 = vmatprep.subr.mxu0 0.0
    %2210 = vmatpush1.msra.mxu0 %v1753
    %2211 = vmatprep.subr.mxu0 0.0
    %2212 = vmatpush1.msra.mxu0 %v1752
    %2213 = vmatprep.subr.mxu0 0.0
    %2214 = vmatpush1.msra.mxu0 %v1751
    %2215 = vmatprep.subr.mxu0 0.0
    %2216 = vmatpush1.msra.mxu0 %v1750
    %2217 = vmatprep.subr.mxu0 0.0
    %2218 = vmatpush2.msra.mxu0 0.0
    %2219 = vmatprep.subr.mxu0 0.0
    %2220 = vmatpush2.msra.mxu0 0.0
    %2221 = vmatprep.subr.mxu0 0.0
    %2222 = vmatpush2.msra.mxu0 0.0
    %2223 = vmatprep.subr.mxu0 0.0
    %2224 = vmatpush2.msra.mxu0 0.0
    %2225 = vmatprep.subr.mxu0 0.0
    %2226 = vmatpush2.msra.mxu0 0.0
    %2227 = vmatprep.subr.mxu0 0.0
    %2228 = vmatpush2.msra.mxu0 0.0
    %2229 = vmatprep.subr.mxu0 0.0
    %2230 = vmatpush2.msra.mxu0 0.0
    %2231 = vmatprep.subr.mxu0 0.0
    %2232 = vmatpush2.msra.mxu0 0.0
    %2233 = vmatprep.subr.mxu0 0.0
    %2234 = vmatpush2.msra.mxu0 0.0
    %2235 = vmatprep.subr.mxu0 0.0
    %2236 = vmatpush2.msra.mxu0 0.0
    %2237 = vmatprep.subr.mxu0 0.0
    %2238 = vmatpush2.msra.mxu0 0.0
    %2239 = vmatprep.subr.mxu0 0.0
    %2240 = vmatpush2.msra.mxu0 0.0
    %2241 = vmatprep.subr.mxu0 0.0
    %2242 = vmatpush2.msra.mxu0 0.0
    %2243 = vmatprep.subr.mxu0 0.0
    %2244 = vmatpush2.msra.mxu0 0.0
    %2245 = vmatprep.subr.mxu0 0.0
    %2246 = vmatpush2.msra.mxu0 0.0
    %2247 = vmatprep.subr.mxu0 0.0
    %2248 = vmatpush2.msra.mxu0 0.0
    %2249 = vmatprep.mubr.f32.mxu0 0.0
    %2250 = vmatmul.mubr.f32.gmra.mxu0 %v1653
    %v2251 = vpop.f32.mrf.mxu0
    %v2252 = vadd.f32 %v1763, %v2251
    %v2253 = vpop.f32.mrf.mxu0
    %2254 = vdwg.mxu0
    %2256 = vrot.lane.b32.xlu0 %v1749, 32
    %v2257 = vpop.permute.xlu0 %2256
    %v2258 = vsel %vm951, %v2257, 0
    %2260 = vmatprep.subr.mxu0 0.0
    %2261 = vmatpush1.msra.mxu0 0.0
    %2262 = vmatprep.subr.mxu0 0.0
    %2263 = vmatpush1.msra.mxu0 0.0
    %2264 = vmatprep.subr.mxu0 0.0
    %2265 = vmatpush1.msra.mxu0 0.0
    %2266 = vmatprep.subr.mxu0 0.0
    %2267 = vmatpush1.msra.mxu0 0.0
    %2268 = vmatprep.subr.mxu0 0.0
    %2269 = vmatpush1.msra.mxu0 0.0
    %2270 = vmatprep.subr.mxu0 0.0
    %2271 = vmatpush1.msra.mxu0 0.0
    %2272 = vmatprep.subr.mxu0 0.0
    %2273 = vmatpush1.msra.mxu0 0.0
    %2274 = vmatprep.subr.mxu0 0.0
    %2275 = vmatpush1.msra.mxu0 0.0
    %2276 = vmatprep.subr.mxu0 0.0
    %2277 = vmatpush1.msra.mxu0 0.0
    %2278 = vmatprep.subr.mxu0 0.0
    %2279 = vmatpush1.msra.mxu0 0.0
    %2280 = vmatprep.subr.mxu0 0.0
    %2281 = vmatpush1.msra.mxu0 0.0
    %2282 = vmatprep.subr.mxu0 0.0
    %2283 = vmatpush1.msra.mxu0 0.0
    %2284 = vmatprep.subr.mxu0 0.0
    %2285 = vmatpush1.msra.mxu0 %v1753
    %2286 = vmatprep.subr.mxu0 0.0
    %2287 = vmatpush1.msra.mxu0 %v1752
    %2288 = vmatprep.subr.mxu0 0.0
    %2289 = vmatpush1.msra.mxu0 %v1751
    %2290 = vmatprep.subr.mxu0 0.0
    %2291 = vmatpush1.msra.mxu0 %v1750
    %2292 = vmatprep.subr.mxu0 0.0
    %2293 = vmatpush2.msra.mxu0 0.0
    %2294 = vmatprep.subr.mxu0 0.0
    %2295 = vmatpush2.msra.mxu0 0.0
    %2296 = vmatprep.subr.mxu0 0.0
    %2297 = vmatpush2.msra.mxu0 0.0
    %2298 = vmatprep.subr.mxu0 0.0
    %2299 = vmatpush2.msra.mxu0 0.0
    %2300 = vmatprep.subr.mxu0 0.0
    %2301 = vmatpush2.msra.mxu0 0.0
    %2302 = vmatprep.subr.mxu0 0.0
    %2303 = vmatpush2.msra.mxu0 0.0
    %2304 = vmatprep.subr.mxu0 0.0
    %2305 = vmatpush2.msra.mxu0 0.0
    %2306 = vmatprep.subr.mxu0 0.0
    %2307 = vmatpush2.msra.mxu0 0.0
    %2308 = vmatprep.subr.mxu0 0.0
    %2309 = vmatpush2.msra.mxu0 0.0
    %2310 = vmatprep.subr.mxu0 0.0
    %2311 = vmatpush2.msra.mxu0 0.0
    %2312 = vmatprep.subr.mxu0 0.0
    %2313 = vmatpush2.msra.mxu0 0.0
    %2314 = vmatprep.subr.mxu0 0.0
    %2315 = vmatpush2.msra.mxu0 0.0
    %2316 = vmatprep.subr.mxu0 0.0
    %2317 = vmatpush2.msra.mxu0 0.0
    %2318 = vmatprep.subr.mxu0 0.0
    %2319 = vmatpush2.msra.mxu0 0.0
    %2320 = vmatprep.subr.mxu0 0.0
    %2321 = vmatpush2.msra.mxu0 0.0
    %2322 = vmatprep.subr.mxu0 0.0
    %2323 = vmatpush2.msra.mxu0 0.0
    %2324 = vmatprep.mubr.f32.mxu0 0.0
    %2325 = vmatmul.mubr.f32.gmra.mxu0 %v2258
    %v2326 = vpop.f32.mrf.mxu0
    %v2327 = vadd.f32 %v1763, %v2326
    %v2328 = vpop.f32.mrf.mxu0
    %2329 = vdwg.mxu0
    %2330 = vmatprep.subr.mxu0 0.0
    %2331 = vmatpush1.msra.mxu0 0.0
    %2332 = vmatprep.subr.mxu0 0.0
    %2333 = vmatpush1.msra.mxu0 0.0
    %2334 = vmatprep.subr.mxu0 0.0
    %2335 = vmatpush1.msra.mxu0 0.0
    %2336 = vmatprep.subr.mxu0 0.0
    %2337 = vmatpush1.msra.mxu0 0.0
    %2338 = vmatprep.subr.mxu0 0.0
    %2339 = vmatpush1.msra.mxu0 0.0
    %2340 = vmatprep.subr.mxu0 0.0
    %2341 = vmatpush1.msra.mxu0 0.0
    %2342 = vmatprep.subr.mxu0 0.0
    %2343 = vmatpush1.msra.mxu0 0.0
    %2344 = vmatprep.subr.mxu0 0.0
    %2345 = vmatpush1.msra.mxu0 0.0
    %2346 = vmatprep.subr.mxu0 0.0
    %2347 = vmatpush1.msra.mxu0 0.0
    %2348 = vmatprep.subr.mxu0 0.0
    %2349 = vmatpush1.msra.mxu0 0.0
    %2350 = vmatprep.subr.mxu0 0.0
    %2351 = vmatpush1.msra.mxu0 0.0
    %2352 = vmatprep.subr.mxu0 0.0
    %2353 = vmatpush1.msra.mxu0 0.0
    %2354 = vmatprep.subr.mxu0 0.0
    %2355 = vmatpush1.msra.mxu0 %v1757
    %2356 = vmatprep.subr.mxu0 0.0
    %2357 = vmatpush1.msra.mxu0 %v1756
    %2358 = vmatprep.subr.mxu0 0.0
    %2359 = vmatpush1.msra.mxu0 %v1755
    %2360 = vmatprep.subr.mxu0 0.0
    %2361 = vmatpush1.msra.mxu0 %v1754
    %2362 = vmatprep.subr.mxu0 0.0
    %2363 = vmatpush2.msra.mxu0 0.0
    %2364 = vmatprep.subr.mxu0 0.0
    %2365 = vmatpush2.msra.mxu0 0.0
    %2366 = vmatprep.subr.mxu0 0.0
    %2367 = vmatpush2.msra.mxu0 0.0
    %2368 = vmatprep.subr.mxu0 0.0
    %2369 = vmatpush2.msra.mxu0 0.0
    %2370 = vmatprep.subr.mxu0 0.0
    %2371 = vmatpush2.msra.mxu0 0.0
    %2372 = vmatprep.subr.mxu0 0.0
    %2373 = vmatpush2.msra.mxu0 0.0
    %2374 = vmatprep.subr.mxu0 0.0
    %2375 = vmatpush2.msra.mxu0 0.0
    %2376 = vmatprep.subr.mxu0 0.0
    %2377 = vmatpush2.msra.mxu0 0.0
    %2378 = vmatprep.subr.mxu0 0.0
    %2379 = vmatpush2.msra.mxu0 0.0
    %2380 = vmatprep.subr.mxu0 0.0
    %2381 = vmatpush2.msra.mxu0 0.0
    %2382 = vmatprep.subr.mxu0 0.0
    %2383 = vmatpush2.msra.mxu0 0.0
    %2384 = vmatprep.subr.mxu0 0.0
    %2385 = vmatpush2.msra.mxu0 0.0
    %2386 = vmatprep.subr.mxu0 0.0
    %2387 = vmatpush2.msra.mxu0 0.0
    %2388 = vmatprep.subr.mxu0 0.0
    %2389 = vmatpush2.msra.mxu0 0.0
    %2390 = vmatprep.subr.mxu0 0.0
    %2391 = vmatpush2.msra.mxu0 0.0
    %2392 = vmatprep.subr.mxu0 0.0
    %2393 = vmatpush2.msra.mxu0 0.0
    %2394 = vmatprep.mubr.f32.mxu0 0.0
    %2395 = vmatmul.mubr.f32.gmra.mxu0 %v953
    %v2396 = vpop.f32.mrf.mxu0
    %v2397 = vadd.f32 0.0, %v2396
    %v2398 = vpop.f32.mrf.mxu0
    %2399 = vdwg.mxu0
    %v2400 = vadd.f32 %v1832, %v2397
    %v2401 = vxor.u32 %v2400, 2147483648
    %v2402 = vmul.f32 %v2401, 1.442695
    %v2403 = vpow.pop %v2402
    %v2404 = vadd.f32 %v2403, 1.0
    %v2405 = vrcp.pop %v2404
    %v2406 = vmul.f32 1.0, %v2405
    %v2407 = vtanh.pop %v2400
    %v2408 = vmul.f32 %v2406, 0.0
    %2410 = vrot.lane.b32.xlu0 %v2407, 64
    %v2411 = vpop.permute.xlu0 %2410
    %v2413 = vmul.f32 %v2406, %v2411
    %2415 = vrot.lane.b32.xlu0 %v2413, 32
    %v2416 = vpop.permute.xlu0 %2415
    %v2418 = vadd.f32 %v2408, %v2416
    %v2419 = vtanh.pop %v2418
    %2421 = vrot.lane.b32.xlu0 %v2419, 64
    %v2422 = vpop.permute.xlu0 %2421
    %v2424 = vmul.f32 %v2406, %v2422
    %2426 = vrot.lane.b32.xlu0 %v2424, 32
    %v2427 = vpop.permute.xlu0 %2426
    %v2428 = vsel %vm951, %v2427, 0
    %2430 = vmatprep.subr.mxu0 0.0
    %2431 = vmatpush1.msra.mxu0 0.0
    %2432 = vmatprep.subr.mxu0 0.0
    %2433 = vmatpush1.msra.mxu0 0.0
    %2434 = vmatprep.subr.mxu0 0.0
    %2435 = vmatpush1.msra.mxu0 0.0
    %2436 = vmatprep.subr.mxu0 0.0
    %2437 = vmatpush1.msra.mxu0 0.0
    %2438 = vmatprep.subr.mxu0 0.0
    %2439 = vmatpush1.msra.mxu0 0.0
    %2440 = vmatprep.subr.mxu0 0.0
    %2441 = vmatpush1.msra.mxu0 0.0
    %2442 = vmatprep.subr.mxu0 0.0
    %2443 = vmatpush1.msra.mxu0 0.0
    %2444 = vmatprep.subr.mxu0 0.0
    %2445 = vmatpush1.msra.mxu0 0.0
    %2446 = vmatprep.subr.mxu0 0.0
    %2447 = vmatpush1.msra.mxu0 0.0
    %2448 = vmatprep.subr.mxu0 0.0
    %2449 = vmatpush1.msra.mxu0 0.0
    %2450 = vmatprep.subr.mxu0 0.0
    %2451 = vmatpush1.msra.mxu0 0.0
    %2452 = vmatprep.subr.mxu0 0.0
    %2453 = vmatpush1.msra.mxu0 0.0
    %2454 = vmatprep.subr.mxu0 0.0
    %2455 = vmatpush1.msra.mxu0 %v1757
    %2456 = vmatprep.subr.mxu0 0.0
    %2457 = vmatpush1.msra.mxu0 %v1756
    %2458 = vmatprep.subr.mxu0 0.0
    %2459 = vmatpush1.msra.mxu0 %v1755
    %2460 = vmatprep.subr.mxu0 0.0
    %2461 = vmatpush1.msra.mxu0 %v1754
    %2462 = vmatprep.subr.mxu0 0.0
    %2463 = vmatpush2.msra.mxu0 0.0
    %2464 = vmatprep.subr.mxu0 0.0
    %2465 = vmatpush2.msra.mxu0 0.0
    %2466 = vmatprep.subr.mxu0 0.0
    %2467 = vmatpush2.msra.mxu0 0.0
    %2468 = vmatprep.subr.mxu0 0.0
    %2469 = vmatpush2.msra.mxu0 0.0
    %2470 = vmatprep.subr.mxu0 0.0
    %2471 = vmatpush2.msra.mxu0 0.0
    %2472 = vmatprep.subr.mxu0 0.0
    %2473 = vmatpush2.msra.mxu0 0.0
    %2474 = vmatprep.subr.mxu0 0.0
    %2475 = vmatpush2.msra.mxu0 0.0
    %2476 = vmatprep.subr.mxu0 0.0
    %2477 = vmatpush2.msra.mxu0 0.0
    %2478 = vmatprep.subr.mxu0 0.0
    %2479 = vmatpush2.msra.mxu0 0.0
    %2480 = vmatprep.subr.mxu0 0.0
    %2481 = vmatpush2.msra.mxu0 0.0
    %2482 = vmatprep.subr.mxu0 0.0
    %2483 = vmatpush2.msra.mxu0 0.0
    %2484 = vmatprep.subr.mxu0 0.0
    %2485 = vmatpush2.msra.mxu0 0.0
    %2486 = vmatprep.subr.mxu0 0.0
    %2487 = vmatpush2.msra.mxu0 0.0
    %2488 = vmatprep.subr.mxu0 0.0
    %2489 = vmatpush2.msra.mxu0 0.0
    %2490 = vmatprep.subr.mxu0 0.0
    %2491 = vmatpush2.msra.mxu0 0.0
    %2492 = vmatprep.subr.mxu0 0.0
    %2493 = vmatpush2.msra.mxu0 0.0
    %2494 = vmatprep.mubr.f32.mxu0 0.0
    %2495 = vmatmul.mubr.f32.gmra.mxu0 %v2428
    %v2496 = vpop.f32.mrf.mxu0
    %v2497 = vadd.f32 0.0, %v2496
    %v2498 = vpop.f32.mrf.mxu0
    %2499 = vdwg.mxu0
    %v2500 = vadd.f32 %v1902, %v2497
    %v2501 = vxor.u32 %v2500, 2147483648
    %v2502 = vmul.f32 %v2501, 1.442695
    %v2503 = vpow.pop %v2502
    %v2504 = vadd.f32 %v2503, 1.0
    %v2505 = vrcp.pop %v2504
    %v2506 = vmul.f32 1.0, %v2505
    %v2507 = vtanh.pop %v2500
    %v2508 = vmul.f32 %v2506, %v2418
    %2510 = vrot.lane.b32.xlu0 %v2507, 64
    %v2511 = vpop.permute.xlu0 %2510
    %v2513 = vmul.f32 %v2506, %v2511
    %2515 = vrot.lane.b32.xlu0 %v2513, 32
    %v2516 = vpop.permute.xlu0 %2515
    %v2518 = vadd.f32 %v2508, %v2516
    %v2519 = vtanh.pop %v2518
    %2521 = vrot.lane.b32.xlu0 %v2519, 64
    %v2522 = vpop.permute.xlu0 %2521
    %v2524 = vmul.f32 %v2506, %v2522
    %2526 = vrot.lane.b32.xlu0 %v2524, 32
    %v2527 = vpop.permute.xlu0 %2526
    %v2528 = vsel %vm951, %v2527, 0
    %2530 = vmatprep.subr.mxu0 0.0
    %2531 = vmatpush1.msra.mxu0 0.0
    %2532 = vmatprep.subr.mxu0 0.0
    %2533 = vmatpush1.msra.mxu0 0.0
    %2534 = vmatprep.subr.mxu0 0.0
    %2535 = vmatpush1.msra.mxu0 0.0
    %2536 = vmatprep.subr.mxu0 0.0
    %2537 = vmatpush1.msra.mxu0 0.0
    %2538 = vmatprep.subr.mxu0 0.0
    %2539 = vmatpush1.msra.mxu0 0.0
    %2540 = vmatprep.subr.mxu0 0.0
    %2541 = vmatpush1.msra.mxu0 0.0
    %2542 = vmatprep.subr.mxu0 0.0
    %2543 = vmatpush1.msra.mxu0 0.0
    %2544 = vmatprep.subr.mxu0 0.0
    %2545 = vmatpush1.msra.mxu0 0.0
    %2546 = vmatprep.subr.mxu0 0.0
    %2547 = vmatpush1.msra.mxu0 0.0
    %2548 = vmatprep.subr.mxu0 0.0
    %2549 = vmatpush1.msra.mxu0 0.0
    %2550 = vmatprep.subr.mxu0 0.0
    %2551 = vmatpush1.msra.mxu0 0.0
    %2552 = vmatprep.subr.mxu0 0.0
    %2553 = vmatpush1.msra.mxu0 0.0
    %2554 = vmatprep.subr.mxu0 0.0
    %2555 = vmatpush1.msra.mxu0 %v1757
    %2556 = vmatprep.subr.mxu0 0.0
    %2557 = vmatpush1.msra.mxu0 %v1756
    %2558 = vmatprep.subr.mxu0 0.0
    %2559 = vmatpush1.msra.mxu0 %v1755
    %2560 = vmatprep.subr.mxu0 0.0
    %2561 = vmatpush1.msra.mxu0 %v1754
    %2562 = vmatprep.subr.mxu0 0.0
    %2563 = vmatpush2.msra.mxu0 0.0
    %2564 = vmatprep.subr.mxu0 0.0
    %2565 = vmatpush2.msra.mxu0 0.0
    %2566 = vmatprep.subr.mxu0 0.0
    %2567 = vmatpush2.msra.mxu0 0.0
    %2568 = vmatprep.subr.mxu0 0.0
    %2569 = vmatpush2.msra.mxu0 0.0
    %2570 = vmatprep.subr.mxu0 0.0
    %2571 = vmatpush2.msra.mxu0 0.0
    %2572 = vmatprep.subr.mxu0 0.0
    %2573 = vmatpush2.msra.mxu0 0.0
    %2574 = vmatprep.subr.mxu0 0.0
    %2575 = vmatpush2.msra.mxu0 0.0
    %2576 = vmatprep.subr.mxu0 0.0
    %2577 = vmatpush2.msra.mxu0 0.0
    %2578 = vmatprep.subr.mxu0 0.0
    %2579 = vmatpush2.msra.mxu0 0.0
    %2580 = vmatprep.subr.mxu0 0.0
    %2581 = vmatpush2.msra.mxu0 0.0
    %2582 = vmatprep.subr.mxu0 0.0
    %2583 = vmatpush2.msra.mxu0 0.0
    %2584 = vmatprep.subr.mxu0 0.0
    %2585 = vmatpush2.msra.mxu0 0.0
    %2586 = vmatprep.subr.mxu0 0.0
    %2587 = vmatpush2.msra.mxu0 0.0
    %2588 = vmatprep.subr.mxu0 0.0
    %2589 = vmatpush2.msra.mxu0 0.0
    %2590 = vmatprep.subr.mxu0 0.0
    %2591 = vmatpush2.msra.mxu0 0.0
    %2592 = vmatprep.subr.mxu0 0.0
    %2593 = vmatpush2.msra.mxu0 0.0
    %2594 = vmatprep.mubr.f32.mxu0 0.0
    %2595 = vmatmul.mubr.f32.gmra.mxu0 %v2528
    %v2596 = vpop.f32.mrf.mxu0
    %v2597 = vadd.f32 0.0, %v2596
    %v2598 = vpop.f32.mrf.mxu0
    %2599 = vdwg.mxu0
    %v2600 = vadd.f32 %v1972, %v2597
    %v2601 = vxor.u32 %v2600, 2147483648
    %v2602 = vmul.f32 %v2601, 1.442695
    %v2603 = vpow.pop %v2602
    %v2604 = vadd.f32 %v2603, 1.0
    %v2605 = vrcp.pop %v2604
    %v2606 = vmul.f32 1.0, %v2605
    %v2607 = vtanh.pop %v2600
    %v2608 = vmul.f32 %v2606, %v2518
    %2610 = vrot.lane.b32.xlu0 %v2607, 64
    %v2611 = vpop.permute.xlu0 %2610
    %v2613 = vmul.f32 %v2606, %v2611
    %2615 = vrot.lane.b32.xlu0 %v2613, 32
    %v2616 = vpop.permute.xlu0 %2615
    %v2618 = vadd.f32 %v2608, %v2616
    %v2619 = vtanh.pop %v2618
    %2621 = vrot.lane.b32.xlu0 %v2619, 64
    %v2622 = vpop.permute.xlu0 %2621
    %v2624 = vmul.f32 %v2606, %v2622
    %2626 = vrot.lane.b32.xlu0 %v2624, 32
    %v2627 = vpop.permute.xlu0 %2626
    %v2628 = vsel %vm951, %v2627, 0
    %2630 = vmatprep.subr.mxu0 0.0
    %2631 = vmatpush1.msra.mxu0 0.0
    %2632 = vmatprep.subr.mxu0 0.0
    %2633 = vmatpush1.msra.mxu0 0.0
    %2634 = vmatprep.subr.mxu0 0.0
    %2635 = vmatpush1.msra.mxu0 0.0
    %2636 = vmatprep.subr.mxu0 0.0
    %2637 = vmatpush1.msra.mxu0 0.0
    %2638 = vmatprep.subr.mxu0 0.0
    %2639 = vmatpush1.msra.mxu0 0.0
    %2640 = vmatprep.subr.mxu0 0.0
    %2641 = vmatpush1.msra.mxu0 0.0
    %2642 = vmatprep.subr.mxu0 0.0
    %2643 = vmatpush1.msra.mxu0 0.0
    %2644 = vmatprep.subr.mxu0 0.0
    %2645 = vmatpush1.msra.mxu0 0.0
    %2646 = vmatprep.subr.mxu0 0.0
    %2647 = vmatpush1.msra.mxu0 0.0
    %2648 = vmatprep.subr.mxu0 0.0
    %2649 = vmatpush1.msra.mxu0 0.0
    %2650 = vmatprep.subr.mxu0 0.0
    %2651 = vmatpush1.msra.mxu0 0.0
    %2652 = vmatprep.subr.mxu0 0.0
    %2653 = vmatpush1.msra.mxu0 0.0
    %2654 = vmatprep.subr.mxu0 0.0
    %2655 = vmatpush1.msra.mxu0 %v1757
    %2656 = vmatprep.subr.mxu0 0.0
    %2657 = vmatpush1.msra.mxu0 %v1756
    %2658 = vmatprep.subr.mxu0 0.0
    %2659 = vmatpush1.msra.mxu0 %v1755
    %2660 = vmatprep.subr.mxu0 0.0
    %2661 = vmatpush1.msra.mxu0 %v1754
    %2662 = vmatprep.subr.mxu0 0.0
    %2663 = vmatpush2.msra.mxu0 0.0
    %2664 = vmatprep.subr.mxu0 0.0
    %2665 = vmatpush2.msra.mxu0 0.0
    %2666 = vmatprep.subr.mxu0 0.0
    %2667 = vmatpush2.msra.mxu0 0.0
    %2668 = vmatprep.subr.mxu0 0.0
    %2669 = vmatpush2.msra.mxu0 0.0
    %2670 = vmatprep.subr.mxu0 0.0
    %2671 = vmatpush2.msra.mxu0 0.0
    %2672 = vmatprep.subr.mxu0 0.0
    %2673 = vmatpush2.msra.mxu0 0.0
    %2674 = vmatprep.subr.mxu0 0.0
    %2675 = vmatpush2.msra.mxu0 0.0
    %2676 = vmatprep.subr.mxu0 0.0
    %2677 = vmatpush2.msra.mxu0 0.0
    %2678 = vmatprep.subr.mxu0 0.0
    %2679 = vmatpush2.msra.mxu0 0.0
    %2680 = vmatprep.subr.mxu0 0.0
    %2681 = vmatpush2.msra.mxu0 0.0
    %2682 = vmatprep.subr.mxu0 0.0
    %2683 = vmatpush2.msra.mxu0 0.0
    %2684 = vmatprep.subr.mxu0 0.0
    %2685 = vmatpush2.msra.mxu0 0.0
    %2686 = vmatprep.subr.mxu0 0.0
    %2687 = vmatpush2.msra.mxu0 0.0
    %2688 = vmatprep.subr.mxu0 0.0
    %2689 = vmatpush2.msra.mxu0 0.0
    %2690 = vmatprep.subr.mxu0 0.0
    %2691 = vmatpush2.msra.mxu0 0.0
    %2692 = vmatprep.subr.mxu0 0.0
    %2693 = vmatpush2.msra.mxu0 0.0
    %2694 = vmatprep.mubr.f32.mxu0 0.0
    %2695 = vmatmul.mubr.f32.gmra.mxu0 %v2628
    %v2696 = vpop.f32.mrf.mxu0
    %v2697 = vadd.f32 0.0, %v2696
    %v2698 = vpop.f32.mrf.mxu0
    %2699 = vdwg.mxu0
    %v2700 = vadd.f32 %v2042, %v2697
    %v2701 = vxor.u32 %v2700, 2147483648
    %v2702 = vmul.f32 %v2701, 1.442695
    %v2703 = vpow.pop %v2702
    %v2704 = vadd.f32 %v2703, 1.0
    %v2705 = vrcp.pop %v2704
    %v2706 = vmul.f32 1.0, %v2705
    %v2707 = vtanh.pop %v2700
    %v2708 = vmul.f32 %v2706, %v2618
    %2710 = vrot.lane.b32.xlu0 %v2707, 64
    %v2711 = vpop.permute.xlu0 %2710
    %v2713 = vmul.f32 %v2706, %v2711
    %2715 = vrot.lane.b32.xlu0 %v2713, 32
    %v2716 = vpop.permute.xlu0 %2715
    %v2718 = vadd.f32 %v2708, %v2716
    %v2719 = vtanh.pop %v2718
    %2721 = vrot.lane.b32.xlu0 %v2719, 64
    %v2722 = vpop.permute.xlu0 %2721
    %v2724 = vmul.f32 %v2706, %v2722
    %2726 = vrot.lane.b32.xlu0 %v2724, 32
    %v2727 = vpop.permute.xlu0 %2726
    %v2728 = vsel %vm951, %v2727, 0
    %2730 = vmatprep.subr.mxu0 0.0
    %2731 = vmatpush1.msra.mxu0 0.0
    %2732 = vmatprep.subr.mxu0 0.0
    %2733 = vmatpush1.msra.mxu0 0.0
    %2734 = vmatprep.subr.mxu0 0.0
    %2735 = vmatpush1.msra.mxu0 0.0
    %2736 = vmatprep.subr.mxu0 0.0
    %2737 = vmatpush1.msra.mxu0 0.0
    %2738 = vmatprep.subr.mxu0 0.0
    %2739 = vmatpush1.msra.mxu0 0.0
    %2740 = vmatprep.subr.mxu0 0.0
    %2741 = vmatpush1.msra.mxu0 0.0
    %2742 = vmatprep.subr.mxu0 0.0
    %2743 = vmatpush1.msra.mxu0 0.0
    %2744 = vmatprep.subr.mxu0 0.0
    %2745 = vmatpush1.msra.mxu0 0.0
    %2746 = vmatprep.subr.mxu0 0.0
    %2747 = vmatpush1.msra.mxu0 0.0
    %2748 = vmatprep.subr.mxu0 0.0
    %2749 = vmatpush1.msra.mxu0 0.0
    %2750 = vmatprep.subr.mxu0 0.0
    %2751 = vmatpush1.msra.mxu0 0.0
    %2752 = vmatprep.subr.mxu0 0.0
    %2753 = vmatpush1.msra.mxu0 0.0
    %2754 = vmatprep.subr.mxu0 0.0
    %2755 = vmatpush1.msra.mxu0 %v1757
    %2756 = vmatprep.subr.mxu0 0.0
    %2757 = vmatpush1.msra.mxu0 %v1756
    %2758 = vmatprep.subr.mxu0 0.0
    %2759 = vmatpush1.msra.mxu0 %v1755
    %2760 = vmatprep.subr.mxu0 0.0
    %2761 = vmatpush1.msra.mxu0 %v1754
    %2762 = vmatprep.subr.mxu0 0.0
    %2763 = vmatpush2.msra.mxu0 0.0
    %2764 = vmatprep.subr.mxu0 0.0
    %2765 = vmatpush2.msra.mxu0 0.0
    %2766 = vmatprep.subr.mxu0 0.0
    %2767 = vmatpush2.msra.mxu0 0.0
    %2768 = vmatprep.subr.mxu0 0.0
    %2769 = vmatpush2.msra.mxu0 0.0
    %2770 = vmatprep.subr.mxu0 0.0
    %2771 = vmatpush2.msra.mxu0 0.0
    %2772 = vmatprep.subr.mxu0 0.0
    %2773 = vmatpush2.msra.mxu0 0.0
    %2774 = vmatprep.subr.mxu0 0.0
    %2775 = vmatpush2.msra.mxu0 0.0
    %2776 = vmatprep.subr.mxu0 0.0
    %2777 = vmatpush2.msra.mxu0 0.0
    %2778 = vmatprep.subr.mxu0 0.0
    %2779 = vmatpush2.msra.mxu0 0.0
    %2780 = vmatprep.subr.mxu0 0.0
    %2781 = vmatpush2.msra.mxu0 0.0
    %2782 = vmatprep.subr.mxu0 0.0
    %2783 = vmatpush2.msra.mxu0 0.0
    %2784 = vmatprep.subr.mxu0 0.0
    %2785 = vmatpush2.msra.mxu0 0.0
    %2786 = vmatprep.subr.mxu0 0.0
    %2787 = vmatpush2.msra.mxu0 0.0
    %2788 = vmatprep.subr.mxu0 0.0
    %2789 = vmatpush2.msra.mxu0 0.0
    %2790 = vmatprep.subr.mxu0 0.0
    %2791 = vmatpush2.msra.mxu0 0.0
    %2792 = vmatprep.subr.mxu0 0.0
    %2793 = vmatpush2.msra.mxu0 0.0
    %2794 = vmatprep.mubr.f32.mxu0 0.0
    %2795 = vmatmul.mubr.f32.gmra.mxu0 %v2728
    %v2796 = vpop.f32.mrf.mxu0
    %v2797 = vadd.f32 0.0, %v2796
    %v2798 = vpop.f32.mrf.mxu0
    %2799 = vdwg.mxu0
    %v2800 = vadd.f32 %v2112, %v2797
    %v2801 = vxor.u32 %v2800, 2147483648
    %v2802 = vmul.f32 %v2801, 1.442695
    %v2803 = vpow.pop %v2802
    %v2804 = vadd.f32 %v2803, 1.0
    %v2805 = vrcp.pop %v2804
    %v2806 = vmul.f32 1.0, %v2805
    %v2807 = vtanh.pop %v2800
    %v2808 = vmul.f32 %v2806, %v2718
    %2810 = vrot.lane.b32.xlu0 %v2807, 64
    %v2811 = vpop.permute.xlu0 %2810
    %v2813 = vmul.f32 %v2806, %v2811
    %2815 = vrot.lane.b32.xlu0 %v2813, 32
    %v2816 = vpop.permute.xlu0 %2815
    %v2818 = vadd.f32 %v2808, %v2816
    %v2819 = vtanh.pop %v2818
    %2821 = vrot.lane.b32.xlu0 %v2819, 64
    %v2822 = vpop.permute.xlu0 %2821
    %v2824 = vmul.f32 %v2806, %v2822
    %2826 = vrot.lane.b32.xlu0 %v2824, 32
    %v2827 = vpop.permute.xlu0 %2826
    %v2828 = vsel %vm951, %v2827, 0
    %2830 = vmatprep.subr.mxu0 0.0
    %2831 = vmatpush1.msra.mxu0 0.0
    %2832 = vmatprep.subr.mxu0 0.0
    %2833 = vmatpush1.msra.mxu0 0.0
    %2834 = vmatprep.subr.mxu0 0.0
    %2835 = vmatpush1.msra.mxu0 0.0
    %2836 = vmatprep.subr.mxu0 0.0
    %2837 = vmatpush1.msra.mxu0 0.0
    %2838 = vmatprep.subr.mxu0 0.0
    %2839 = vmatpush1.msra.mxu0 0.0
    %2840 = vmatprep.subr.mxu0 0.0
    %2841 = vmatpush1.msra.mxu0 0.0
    %2842 = vmatprep.subr.mxu0 0.0
    %2843 = vmatpush1.msra.mxu0 0.0
    %2844 = vmatprep.subr.mxu0 0.0
    %2845 = vmatpush1.msra.mxu0 0.0
    %2846 = vmatprep.subr.mxu0 0.0
    %2847 = vmatpush1.msra.mxu0 0.0
    %2848 = vmatprep.subr.mxu0 0.0
    %2849 = vmatpush1.msra.mxu0 0.0
    %2850 = vmatprep.subr.mxu0 0.0
    %2851 = vmatpush1.msra.mxu0 0.0
    %2852 = vmatprep.subr.mxu0 0.0
    %2853 = vmatpush1.msra.mxu0 0.0
    %2854 = vmatprep.subr.mxu0 0.0
    %2855 = vmatpush1.msra.mxu0 %v1757
    %2856 = vmatprep.subr.mxu0 0.0
    %2857 = vmatpush1.msra.mxu0 %v1756
    %2858 = vmatprep.subr.mxu0 0.0
    %2859 = vmatpush1.msra.mxu0 %v1755
    %2860 = vmatprep.subr.mxu0 0.0
    %2861 = vmatpush1.msra.mxu0 %v1754
    %2862 = vmatprep.subr.mxu0 0.0
    %2863 = vmatpush2.msra.mxu0 0.0
    %2864 = vmatprep.subr.mxu0 0.0
    %2865 = vmatpush2.msra.mxu0 0.0
    %2866 = vmatprep.subr.mxu0 0.0
    %2867 = vmatpush2.msra.mxu0 0.0
    %2868 = vmatprep.subr.mxu0 0.0
    %2869 = vmatpush2.msra.mxu0 0.0
    %2870 = vmatprep.subr.mxu0 0.0
    %2871 = vmatpush2.msra.mxu0 0.0
    %2872 = vmatprep.subr.mxu0 0.0
    %2873 = vmatpush2.msra.mxu0 0.0
    %2874 = vmatprep.subr.mxu0 0.0
    %2875 = vmatpush2.msra.mxu0 0.0
    %2876 = vmatprep.subr.mxu0 0.0
    %2877 = vmatpush2.msra.mxu0 0.0
    %2878 = vmatprep.subr.mxu0 0.0
    %2879 = vmatpush2.msra.mxu0 0.0
    %2880 = vmatprep.subr.mxu0 0.0
    %2881 = vmatpush2.msra.mxu0 0.0
    %2882 = vmatprep.subr.mxu0 0.0
    %2883 = vmatpush2.msra.mxu0 0.0
    %2884 = vmatprep.subr.mxu0 0.0
    %2885 = vmatpush2.msra.mxu0 0.0
    %2886 = vmatprep.subr.mxu0 0.0
    %2887 = vmatpush2.msra.mxu0 0.0
    %2888 = vmatprep.subr.mxu0 0.0
    %2889 = vmatpush2.msra.mxu0 0.0
    %2890 = vmatprep.subr.mxu0 0.0
    %2891 = vmatpush2.msra.mxu0 0.0
    %2892 = vmatprep.subr.mxu0 0.0
    %2893 = vmatpush2.msra.mxu0 0.0
    %2894 = vmatprep.mubr.f32.mxu0 0.0
    %2895 = vmatmul.mubr.f32.gmra.mxu0 %v2828
    %v2896 = vpop.f32.mrf.mxu0
    %v2897 = vadd.f32 0.0, %v2896
    %v2898 = vpop.f32.mrf.mxu0
    %2899 = vdwg.mxu0
    %v2900 = vadd.f32 %v2182, %v2897
    %v2901 = vxor.u32 %v2900, 2147483648
    %v2902 = vmul.f32 %v2901, 1.442695
    %v2903 = vpow.pop %v2902
    %v2904 = vadd.f32 %v2903, 1.0
    %v2905 = vrcp.pop %v2904
    %v2906 = vmul.f32 1.0, %v2905
    %v2907 = vtanh.pop %v2900
    %v2908 = vmul.f32 %v2906, %v2818
    %2910 = vrot.lane.b32.xlu0 %v2907, 64
    %v2911 = vpop.permute.xlu0 %2910
    %v2913 = vmul.f32 %v2906, %v2911
    %2915 = vrot.lane.b32.xlu0 %v2913, 32
    %v2916 = vpop.permute.xlu0 %2915
    %v2918 = vadd.f32 %v2908, %v2916
    %v2919 = vtanh.pop %v2918
    %2921 = vrot.lane.b32.xlu0 %v2919, 64
    %v2922 = vpop.permute.xlu0 %2921
    %v2924 = vmul.f32 %v2906, %v2922
    %2926 = vrot.lane.b32.xlu0 %v2924, 32
    %v2927 = vpop.permute.xlu0 %2926
    %v2928 = vsel %vm951, %v2927, 0
    %2930 = vmatprep.subr.mxu0 0.0
    %2931 = vmatpush1.msra.mxu0 0.0
    %2932 = vmatprep.subr.mxu0 0.0
    %2933 = vmatpush1.msra.mxu0 0.0
    %2934 = vmatprep.subr.mxu0 0.0
    %2935 = vmatpush1.msra.mxu0 0.0
    %2936 = vmatprep.subr.mxu0 0.0
    %2937 = vmatpush1.msra.mxu0 0.0
    %2938 = vmatprep.subr.mxu0 0.0
    %2939 = vmatpush1.msra.mxu0 0.0
    %2940 = vmatprep.subr.mxu0 0.0
    %2941 = vmatpush1.msra.mxu0 0.0
    %2942 = vmatprep.subr.mxu0 0.0
    %2943 = vmatpush1.msra.mxu0 0.0
    %2944 = vmatprep.subr.mxu0 0.0
    %2945 = vmatpush1.msra.mxu0 0.0
    %2946 = vmatprep.subr.mxu0 0.0
    %2947 = vmatpush1.msra.mxu0 0.0
    %2948 = vmatprep.subr.mxu0 0.0
    %2949 = vmatpush1.msra.mxu0 0.0
    %2950 = vmatprep.subr.mxu0 0.0
    %2951 = vmatpush1.msra.mxu0 0.0
    %2952 = vmatprep.subr.mxu0 0.0
    %2953 = vmatpush1.msra.mxu0 0.0
    %2954 = vmatprep.subr.mxu0 0.0
    %2955 = vmatpush1.msra.mxu0 %v1757
    %2956 = vmatprep.subr.mxu0 0.0
    %2957 = vmatpush1.msra.mxu0 %v1756
    %2958 = vmatprep.subr.mxu0 0.0
    %2959 = vmatpush1.msra.mxu0 %v1755
    %2960 = vmatprep.subr.mxu0 0.0
    %2961 = vmatpush1.msra.mxu0 %v1754
    %2962 = vmatprep.subr.mxu0 0.0
    %2963 = vmatpush2.msra.mxu0 0.0
    %2964 = vmatprep.subr.mxu0 0.0
    %2965 = vmatpush2.msra.mxu0 0.0
    %2966 = vmatprep.subr.mxu0 0.0
    %2967 = vmatpush2.msra.mxu0 0.0
    %2968 = vmatprep.subr.mxu0 0.0
    %2969 = vmatpush2.msra.mxu0 0.0
    %2970 = vmatprep.subr.mxu0 0.0
    %2971 = vmatpush2.msra.mxu0 0.0
    %2972 = vmatprep.subr.mxu0 0.0
    %2973 = vmatpush2.msra.mxu0 0.0
    %2974 = vmatprep.subr.mxu0 0.0
    %2975 = vmatpush2.msra.mxu0 0.0
    %2976 = vmatprep.subr.mxu0 0.0
    %2977 = vmatpush2.msra.mxu0 0.0
    %2978 = vmatprep.subr.mxu0 0.0
    %2979 = vmatpush2.msra.mxu0 0.0
    %2980 = vmatprep.subr.mxu0 0.0
    %2981 = vmatpush2.msra.mxu0 0.0
    %2982 = vmatprep.subr.mxu0 0.0
    %2983 = vmatpush2.msra.mxu0 0.0
    %2984 = vmatprep.subr.mxu0 0.0
    %2985 = vmatpush2.msra.mxu0 0.0
    %2986 = vmatprep.subr.mxu0 0.0
    %2987 = vmatpush2.msra.mxu0 0.0
    %2988 = vmatprep.subr.mxu0 0.0
    %2989 = vmatpush2.msra.mxu0 0.0
    %2990 = vmatprep.subr.mxu0 0.0
    %2991 = vmatpush2.msra.mxu0 0.0
    %2992 = vmatprep.subr.mxu0 0.0
    %2993 = vmatpush2.msra.mxu0 0.0
    %2994 = vmatprep.mubr.f32.mxu0 0.0
    %2995 = vmatmul.mubr.f32.gmra.mxu0 %v2928
    %v2996 = vpop.f32.mrf.mxu0
    %v2997 = vadd.f32 0.0, %v2996
    %v2998 = vpop.f32.mrf.mxu0
    %2999 = vdwg.mxu0
    %v3000 = vadd.f32 %v2252, %v2997
    %v3001 = vxor.u32 %v3000, 2147483648
    %v3002 = vmul.f32 %v3001, 1.442695
    %v3003 = vpow.pop %v3002
    %v3004 = vadd.f32 %v3003, 1.0
    %v3005 = vrcp.pop %v3004
    %v3006 = vmul.f32 1.0, %v3005
    %v3007 = vtanh.pop %v3000
    %v3008 = vmul.f32 %v3006, %v2918
    %3010 = vrot.lane.b32.xlu0 %v3007, 64
    %v3011 = vpop.permute.xlu0 %3010
    %v3013 = vmul.f32 %v3006, %v3011
    %3015 = vrot.lane.b32.xlu0 %v3013, 32
    %v3016 = vpop.permute.xlu0 %3015
    %v3018 = vadd.f32 %v3008, %v3016
    %v3019 = vtanh.pop %v3018
    %3021 = vrot.lane.b32.xlu0 %v3019, 64
    %v3022 = vpop.permute.xlu0 %3021
    %v3024 = vmul.f32 %v3006, %v3022
    %3026 = vrot.lane.b32.xlu0 %v3024, 32
    %v3027 = vpop.permute.xlu0 %3026
    %v3028 = vsel %vm951, %v3027, 0
    %3030 = vmatprep.subr.mxu0 0.0
    %3031 = vmatpush1.msra.mxu0 0.0
    %3032 = vmatprep.subr.mxu0 0.0
    %3033 = vmatpush1.msra.mxu0 0.0
    %3034 = vmatprep.subr.mxu0 0.0
    %3035 = vmatpush1.msra.mxu0 0.0
    %3036 = vmatprep.subr.mxu0 0.0
    %3037 = vmatpush1.msra.mxu0 0.0
    %3038 = vmatprep.subr.mxu0 0.0
    %3039 = vmatpush1.msra.mxu0 0.0
    %3040 = vmatprep.subr.mxu0 0.0
    %3041 = vmatpush1.msra.mxu0 0.0
    %3042 = vmatprep.subr.mxu0 0.0
    %3043 = vmatpush1.msra.mxu0 0.0
    %3044 = vmatprep.subr.mxu0 0.0
    %3045 = vmatpush1.msra.mxu0 0.0
    %3046 = vmatprep.subr.mxu0 0.0
    %3047 = vmatpush1.msra.mxu0 0.0
    %3048 = vmatprep.subr.mxu0 0.0
    %3049 = vmatpush1.msra.mxu0 0.0
    %3050 = vmatprep.subr.mxu0 0.0
    %3051 = vmatpush1.msra.mxu0 0.0
    %3052 = vmatprep.subr.mxu0 0.0
    %3053 = vmatpush1.msra.mxu0 0.0
    %3054 = vmatprep.subr.mxu0 0.0
    %3055 = vmatpush1.msra.mxu0 %v1757
    %3056 = vmatprep.subr.mxu0 0.0
    %3057 = vmatpush1.msra.mxu0 %v1756
    %3058 = vmatprep.subr.mxu0 0.0
    %3059 = vmatpush1.msra.mxu0 %v1755
    %3060 = vmatprep.subr.mxu0 0.0
    %3061 = vmatpush1.msra.mxu0 %v1754
    %3062 = vmatprep.subr.mxu0 0.0
    %3063 = vmatpush2.msra.mxu0 0.0
    %3064 = vmatprep.subr.mxu0 0.0
    %3065 = vmatpush2.msra.mxu0 0.0
    %3066 = vmatprep.subr.mxu0 0.0
    %3067 = vmatpush2.msra.mxu0 0.0
    %3068 = vmatprep.subr.mxu0 0.0
    %3069 = vmatpush2.msra.mxu0 0.0
    %3070 = vmatprep.subr.mxu0 0.0
    %3071 = vmatpush2.msra.mxu0 0.0
    %3072 = vmatprep.subr.mxu0 0.0
    %3073 = vmatpush2.msra.mxu0 0.0
    %3074 = vmatprep.subr.mxu0 0.0
    %3075 = vmatpush2.msra.mxu0 0.0
    %3076 = vmatprep.subr.mxu0 0.0
    %3077 = vmatpush2.msra.mxu0 0.0
    %3078 = vmatprep.subr.mxu0 0.0
    %3079 = vmatpush2.msra.mxu0 0.0
    %3080 = vmatprep.subr.mxu0 0.0
    %3081 = vmatpush2.msra.mxu0 0.0
    %3082 = vmatprep.subr.mxu0 0.0
    %3083 = vmatpush2.msra.mxu0 0.0
    %3084 = vmatprep.subr.mxu0 0.0
    %3085 = vmatpush2.msra.mxu0 0.0
    %3086 = vmatprep.subr.mxu0 0.0
    %3087 = vmatpush2.msra.mxu0 0.0
    %3088 = vmatprep.subr.mxu0 0.0
    %3089 = vmatpush2.msra.mxu0 0.0
    %3090 = vmatprep.subr.mxu0 0.0
    %3091 = vmatpush2.msra.mxu0 0.0
    %3092 = vmatprep.subr.mxu0 0.0
    %3093 = vmatpush2.msra.mxu0 0.0
    %3094 = vmatprep.mubr.f32.mxu0 0.0
    %3095 = vmatmul.mubr.f32.gmra.mxu0 %v3028
    %v3096 = vpop.f32.mrf.mxu0
    %v3097 = vadd.f32 0.0, %v3096
    %v3098 = vpop.f32.mrf.mxu0
    %3099 = vdwg.mxu0
    %v3100 = vadd.f32 %v2327, %v3097
    %v3101 = vxor.u32 %v3100, 2147483648
    %v3102 = vmul.f32 %v3101, 1.442695
    %v3103 = vpow.pop %v3102
    %v3104 = vadd.f32 %v3103, 1.0
    %v3105 = vrcp.pop %v3104
    %v3106 = vmul.f32 1.0, %v3105
    %v3107 = vtanh.pop %v3100
    %v3108 = vmul.f32 %v3106, %v3018
    %3110 = vrot.lane.b32.xlu0 %v3107, 64
    %v3111 = vpop.permute.xlu0 %3110
    %v3113 = vmul.f32 %v3106, %v3111
    %3115 = vrot.lane.b32.xlu0 %v3113, 32
    %v3116 = vpop.permute.xlu0 %3115
    %v3118 = vadd.f32 %v3108, %v3116
    %v3119 = vtanh.pop %v3118
    %3121 = vrot.lane.b32.xlu0 %v3119, 64
    %v3122 = vpop.permute.xlu0 %3121
    %v3124 = vmul.f32 %v3106, %v3122
    %v3125 = vld [vmem:[%s8] sm:$0xff]
    %v3126 = vld [vmem:[%s8 + $0x8] sm:$0xff]
    %v3127 = vld [vmem:[%s8 + $0x10] sm:$0xff]
    %v3128 = vld [vmem:[%s8 + $0x18] sm:$0xff]
    %v3129 = vld [vmem:[%s9] sm:$0xff]
    %v3130 = vld [vmem:[%s9 + $0x8] sm:$0xff]
    %v3131 = vld [vmem:[#allocation10] sm:$0x1]
    %v3133 = vlaneseq
    %v3134 = vshrl.u32 %v3133, 7
    %v3135 = vsub.s32 0, %v3134
    %v3136 = vrot.slane %v3131, %v3135
    %3138 = vmatprep.subr.mxu0 0.0
    %3139 = vmatpush1.msra.mxu0 0.0
    %3140 = vmatprep.subr.mxu0 0.0
    %3141 = vmatpush1.msra.mxu0 0.0
    %3142 = vmatprep.subr.mxu0 0.0
    %3143 = vmatpush1.msra.mxu0 0.0
    %3144 = vmatprep.subr.mxu0 0.0
    %3145 = vmatpush1.msra.mxu0 0.0
    %3146 = vmatprep.subr.mxu0 0.0
    %3147 = vmatpush1.msra.mxu0 0.0
    %3148 = vmatprep.subr.mxu0 0.0
    %3149 = vmatpush1.msra.mxu0 0.0
    %3150 = vmatprep.subr.mxu0 0.0
    %3151 = vmatpush1.msra.mxu0 0.0
    %3152 = vmatprep.subr.mxu0 0.0
    %3153 = vmatpush1.msra.mxu0 0.0
    %3154 = vmatprep.subr.mxu0 0.0
    %3155 = vmatpush1.msra.mxu0 0.0
    %3156 = vmatprep.subr.mxu0 0.0
    %3157 = vmatpush1.msra.mxu0 0.0
    %3158 = vmatprep.subr.mxu0 0.0
    %3159 = vmatpush1.msra.mxu0 0.0
    %3160 = vmatprep.subr.mxu0 0.0
    %3161 = vmatpush1.msra.mxu0 0.0
    %3162 = vmatprep.subr.mxu0 0.0
    %3163 = vmatpush1.msra.mxu0 %v3128
    %3164 = vmatprep.subr.mxu0 0.0
    %3165 = vmatpush1.msra.mxu0 %v3127
    %3166 = vmatprep.subr.mxu0 0.0
    %3167 = vmatpush1.msra.mxu0 %v3126
    %3168 = vmatprep.subr.mxu0 0.0
    %3169 = vmatpush1.msra.mxu0 %v3125
    %3170 = vmatprep.subr.mxu0 0.0
    %3171 = vmatpush2.msra.mxu0 0.0
    %3172 = vmatprep.subr.mxu0 0.0
    %3173 = vmatpush2.msra.mxu0 0.0
    %3174 = vmatprep.subr.mxu0 0.0
    %3175 = vmatpush2.msra.mxu0 0.0
    %3176 = vmatprep.subr.mxu0 0.0
    %3177 = vmatpush2.msra.mxu0 0.0
    %3178 = vmatprep.subr.mxu0 0.0
    %3179 = vmatpush2.msra.mxu0 0.0
    %3180 = vmatprep.subr.mxu0 0.0
    %3181 = vmatpush2.msra.mxu0 0.0
    %3182 = vmatprep.subr.mxu0 0.0
    %3183 = vmatpush2.msra.mxu0 0.0
    %3184 = vmatprep.subr.mxu0 0.0
    %3185 = vmatpush2.msra.mxu0 0.0
    %3186 = vmatprep.subr.mxu0 0.0
    %3187 = vmatpush2.msra.mxu0 0.0
    %3188 = vmatprep.subr.mxu0 0.0
    %3189 = vmatpush2.msra.mxu0 0.0
    %3190 = vmatprep.subr.mxu0 0.0
    %3191 = vmatpush2.msra.mxu0 0.0
    %3192 = vmatprep.subr.mxu0 0.0
    %3193 = vmatpush2.msra.mxu0 0.0
    %3194 = vmatprep.subr.mxu0 0.0
    %3195 = vmatpush2.msra.mxu0 0.0
    %3196 = vmatprep.subr.mxu0 0.0
    %3197 = vmatpush2.msra.mxu0 0.0
    %3198 = vmatprep.subr.mxu0 0.0
    %3199 = vmatpush2.msra.mxu0 0.0
    %3200 = vmatprep.subr.mxu0 0.0
    %3201 = vmatpush2.msra.mxu0 0.0
    %3202 = vmatprep.mubr.f32.mxu0 0.0
    %3203 = vmatmul.mubr.f32.gmra.mxu0 %v2428
    %v3204 = vpop.f32.mrf.mxu0
    %v3205 = vadd.f32 %v3136, %v3204
    %v3206 = vpop.f32.mrf.mxu0
    %3207 = vdwg.mxu0
    %3208 = vmatprep.subr.mxu0 0.0
    %3209 = vmatpush1.msra.mxu0 0.0
    %3210 = vmatprep.subr.mxu0 0.0
    %3211 = vmatpush1.msra.mxu0 0.0
    %3212 = vmatprep.subr.mxu0 0.0
    %3213 = vmatpush1.msra.mxu0 0.0
    %3214 = vmatprep.subr.mxu0 0.0
    %3215 = vmatpush1.msra.mxu0 0.0
    %3216 = vmatprep.subr.mxu0 0.0
    %3217 = vmatpush1.msra.mxu0 0.0
    %3218 = vmatprep.subr.mxu0 0.0
    %3219 = vmatpush1.msra.mxu0 0.0
    %3220 = vmatprep.subr.mxu0 0.0
    %3221 = vmatpush1.msra.mxu0 0.0
    %3222 = vmatprep.subr.mxu0 0.0
    %3223 = vmatpush1.msra.mxu0 0.0
    %3224 = vmatprep.subr.mxu0 0.0
    %3225 = vmatpush1.msra.mxu0 0.0
    %3226 = vmatprep.subr.mxu0 0.0
    %3227 = vmatpush1.msra.mxu0 0.0
    %3228 = vmatprep.subr.mxu0 0.0
    %3229 = vmatpush1.msra.mxu0 0.0
    %3230 = vmatprep.subr.mxu0 0.0
    %3231 = vmatpush1.msra.mxu0 0.0
    %3232 = vmatprep.subr.mxu0 0.0
    %3233 = vmatpush1.msra.mxu0 %v3128
    %3234 = vmatprep.subr.mxu0 0.0
    %3235 = vmatpush1.msra.mxu0 %v3127
    %3236 = vmatprep.subr.mxu0 0.0
    %3237 = vmatpush1.msra.mxu0 %v3126
    %3238 = vmatprep.subr.mxu0 0.0
    %3239 = vmatpush1.msra.mxu0 %v3125
    %3240 = vmatprep.subr.mxu0 0.0
    %3241 = vmatpush2.msra.mxu0 0.0
    %3242 = vmatprep.subr.mxu0 0.0
    %3243 = vmatpush2.msra.mxu0 0.0
    %3244 = vmatprep.subr.mxu0 0.0
    %3245 = vmatpush2.msra.mxu0 0.0
    %3246 = vmatprep.subr.mxu0 0.0
    %3247 = vmatpush2.msra.mxu0 0.0
    %3248 = vmatprep.subr.mxu0 0.0
    %3249 = vmatpush2.msra.mxu0 0.0
    %3250 = vmatprep.subr.mxu0 0.0
    %3251 = vmatpush2.msra.mxu0 0.0
    %3252 = vmatprep.subr.mxu0 0.0
    %3253 = vmatpush2.msra.mxu0 0.0
    %3254 = vmatprep.subr.mxu0 0.0
    %3255 = vmatpush2.msra.mxu0 0.0
    %3256 = vmatprep.subr.mxu0 0.0
    %3257 = vmatpush2.msra.mxu0 0.0
    %3258 = vmatprep.subr.mxu0 0.0
    %3259 = vmatpush2.msra.mxu0 0.0
    %3260 = vmatprep.subr.mxu0 0.0
    %3261 = vmatpush2.msra.mxu0 0.0
    %3262 = vmatprep.subr.mxu0 0.0
    %3263 = vmatpush2.msra.mxu0 0.0
    %3264 = vmatprep.subr.mxu0 0.0
    %3265 = vmatpush2.msra.mxu0 0.0
    %3266 = vmatprep.subr.mxu0 0.0
    %3267 = vmatpush2.msra.mxu0 0.0
    %3268 = vmatprep.subr.mxu0 0.0
    %3269 = vmatpush2.msra.mxu0 0.0
    %3270 = vmatprep.subr.mxu0 0.0
    %3271 = vmatpush2.msra.mxu0 0.0
    %3272 = vmatprep.mubr.f32.mxu0 0.0
    %3273 = vmatmul.mubr.f32.gmra.mxu0 %v2528
    %v3274 = vpop.f32.mrf.mxu0
    %v3275 = vadd.f32 %v3136, %v3274
    %v3276 = vpop.f32.mrf.mxu0
    %3277 = vdwg.mxu0
    %3278 = vmatprep.subr.mxu0 0.0
    %3279 = vmatpush1.msra.mxu0 0.0
    %3280 = vmatprep.subr.mxu0 0.0
    %3281 = vmatpush1.msra.mxu0 0.0
    %3282 = vmatprep.subr.mxu0 0.0
    %3283 = vmatpush1.msra.mxu0 0.0
    %3284 = vmatprep.subr.mxu0 0.0
    %3285 = vmatpush1.msra.mxu0 0.0
    %3286 = vmatprep.subr.mxu0 0.0
    %3287 = vmatpush1.msra.mxu0 0.0
    %3288 = vmatprep.subr.mxu0 0.0
    %3289 = vmatpush1.msra.mxu0 0.0
    %3290 = vmatprep.subr.mxu0 0.0
    %3291 = vmatpush1.msra.mxu0 0.0
    %3292 = vmatprep.subr.mxu0 0.0
    %3293 = vmatpush1.msra.mxu0 0.0
    %3294 = vmatprep.subr.mxu0 0.0
    %3295 = vmatpush1.msra.mxu0 0.0
    %3296 = vmatprep.subr.mxu0 0.0
    %3297 = vmatpush1.msra.mxu0 0.0
    %3298 = vmatprep.subr.mxu0 0.0
    %3299 = vmatpush1.msra.mxu0 0.0
    %3300 = vmatprep.subr.mxu0 0.0
    %3301 = vmatpush1.msra.mxu0 0.0
    %3302 = vmatprep.subr.mxu0 0.0
    %3303 = vmatpush1.msra.mxu0 %v3128
    %3304 = vmatprep.subr.mxu0 0.0
    %3305 = vmatpush1.msra.mxu0 %v3127
    %3306 = vmatprep.subr.mxu0 0.0
    %3307 = vmatpush1.msra.mxu0 %v3126
    %3308 = vmatprep.subr.mxu0 0.0
    %3309 = vmatpush1.msra.mxu0 %v3125
    %3310 = vmatprep.subr.mxu0 0.0
    %3311 = vmatpush2.msra.mxu0 0.0
    %3312 = vmatprep.subr.mxu0 0.0
    %3313 = vmatpush2.msra.mxu0 0.0
    %3314 = vmatprep.subr.mxu0 0.0
    %3315 = vmatpush2.msra.mxu0 0.0
    %3316 = vmatprep.subr.mxu0 0.0
    %3317 = vmatpush2.msra.mxu0 0.0
    %3318 = vmatprep.subr.mxu0 0.0
    %3319 = vmatpush2.msra.mxu0 0.0
    %3320 = vmatprep.subr.mxu0 0.0
    %3321 = vmatpush2.msra.mxu0 0.0
    %3322 = vmatprep.subr.mxu0 0.0
    %3323 = vmatpush2.msra.mxu0 0.0
    %3324 = vmatprep.subr.mxu0 0.0
    %3325 = vmatpush2.msra.mxu0 0.0
    %3326 = vmatprep.subr.mxu0 0.0
    %3327 = vmatpush2.msra.mxu0 0.0
    %3328 = vmatprep.subr.mxu0 0.0
    %3329 = vmatpush2.msra.mxu0 0.0
    %3330 = vmatprep.subr.mxu0 0.0
    %3331 = vmatpush2.msra.mxu0 0.0
    %3332 = vmatprep.subr.mxu0 0.0
    %3333 = vmatpush2.msra.mxu0 0.0
    %3334 = vmatprep.subr.mxu0 0.0
    %3335 = vmatpush2.msra.mxu0 0.0
    %3336 = vmatprep.subr.mxu0 0.0
    %3337 = vmatpush2.msra.mxu0 0.0
    %3338 = vmatprep.subr.mxu0 0.0
    %3339 = vmatpush2.msra.mxu0 0.0
    %3340 = vmatprep.subr.mxu0 0.0
    %3341 = vmatpush2.msra.mxu0 0.0
    %3342 = vmatprep.mubr.f32.mxu0 0.0
    %3343 = vmatmul.mubr.f32.gmra.mxu0 %v2628
    %v3344 = vpop.f32.mrf.mxu0
    %v3345 = vadd.f32 %v3136, %v3344
    %v3346 = vpop.f32.mrf.mxu0
    %3347 = vdwg.mxu0
    %3348 = vmatprep.subr.mxu0 0.0
    %3349 = vmatpush1.msra.mxu0 0.0
    %3350 = vmatprep.subr.mxu0 0.0
    %3351 = vmatpush1.msra.mxu0 0.0
    %3352 = vmatprep.subr.mxu0 0.0
    %3353 = vmatpush1.msra.mxu0 0.0
    %3354 = vmatprep.subr.mxu0 0.0
    %3355 = vmatpush1.msra.mxu0 0.0
    %3356 = vmatprep.subr.mxu0 0.0
    %3357 = vmatpush1.msra.mxu0 0.0
    %3358 = vmatprep.subr.mxu0 0.0
    %3359 = vmatpush1.msra.mxu0 0.0
    %3360 = vmatprep.subr.mxu0 0.0
    %3361 = vmatpush1.msra.mxu0 0.0
    %3362 = vmatprep.subr.mxu0 0.0
    %3363 = vmatpush1.msra.mxu0 0.0
    %3364 = vmatprep.subr.mxu0 0.0
    %3365 = vmatpush1.msra.mxu0 0.0
    %3366 = vmatprep.subr.mxu0 0.0
    %3367 = vmatpush1.msra.mxu0 0.0
    %3368 = vmatprep.subr.mxu0 0.0
    %3369 = vmatpush1.msra.mxu0 0.0
    %3370 = vmatprep.subr.mxu0 0.0
    %3371 = vmatpush1.msra.mxu0 0.0
    %3372 = vmatprep.subr.mxu0 0.0
    %3373 = vmatpush1.msra.mxu0 %v3128
    %3374 = vmatprep.subr.mxu0 0.0
    %3375 = vmatpush1.msra.mxu0 %v3127
    %3376 = vmatprep.subr.mxu0 0.0
    %3377 = vmatpush1.msra.mxu0 %v3126
    %3378 = vmatprep.subr.mxu0 0.0
    %3379 = vmatpush1.msra.mxu0 %v3125
    %3380 = vmatprep.subr.mxu0 0.0
    %3381 = vmatpush2.msra.mxu0 0.0
    %3382 = vmatprep.subr.mxu0 0.0
    %3383 = vmatpush2.msra.mxu0 0.0
    %3384 = vmatprep.subr.mxu0 0.0
    %3385 = vmatpush2.msra.mxu0 0.0
    %3386 = vmatprep.subr.mxu0 0.0
    %3387 = vmatpush2.msra.mxu0 0.0
    %3388 = vmatprep.subr.mxu0 0.0
    %3389 = vmatpush2.msra.mxu0 0.0
    %3390 = vmatprep.subr.mxu0 0.0
    %3391 = vmatpush2.msra.mxu0 0.0
    %3392 = vmatprep.subr.mxu0 0.0
    %3393 = vmatpush2.msra.mxu0 0.0
    %3394 = vmatprep.subr.mxu0 0.0
    %3395 = vmatpush2.msra.mxu0 0.0
    %3396 = vmatprep.subr.mxu0 0.0
    %3397 = vmatpush2.msra.mxu0 0.0
    %3398 = vmatprep.subr.mxu0 0.0
    %3399 = vmatpush2.msra.mxu0 0.0
    %3400 = vmatprep.subr.mxu0 0.0
    %3401 = vmatpush2.msra.mxu0 0.0
    %3402 = vmatprep.subr.mxu0 0.0
    %3403 = vmatpush2.msra.mxu0 0.0
    %3404 = vmatprep.subr.mxu0 0.0
    %3405 = vmatpush2.msra.mxu0 0.0
    %3406 = vmatprep.subr.mxu0 0.0
    %3407 = vmatpush2.msra.mxu0 0.0
    %3408 = vmatprep.subr.mxu0 0.0
    %3409 = vmatpush2.msra.mxu0 0.0
    %3410 = vmatprep.subr.mxu0 0.0
    %3411 = vmatpush2.msra.mxu0 0.0
    %3412 = vmatprep.mubr.f32.mxu0 0.0
    %3413 = vmatmul.mubr.f32.gmra.mxu0 %v2728
    %v3414 = vpop.f32.mrf.mxu0
    %v3415 = vadd.f32 %v3136, %v3414
    %v3416 = vpop.f32.mrf.mxu0
    %3417 = vdwg.mxu0
    %3418 = vmatprep.subr.mxu0 0.0
    %3419 = vmatpush1.msra.mxu0 0.0
    %3420 = vmatprep.subr.mxu0 0.0
    %3421 = vmatpush1.msra.mxu0 0.0
    %3422 = vmatprep.subr.mxu0 0.0
    %3423 = vmatpush1.msra.mxu0 0.0
    %3424 = vmatprep.subr.mxu0 0.0
    %3425 = vmatpush1.msra.mxu0 0.0
    %3426 = vmatprep.subr.mxu0 0.0
    %3427 = vmatpush1.msra.mxu0 0.0
    %3428 = vmatprep.subr.mxu0 0.0
    %3429 = vmatpush1.msra.mxu0 0.0
    %3430 = vmatprep.subr.mxu0 0.0
    %3431 = vmatpush1.msra.mxu0 0.0
    %3432 = vmatprep.subr.mxu0 0.0
    %3433 = vmatpush1.msra.mxu0 0.0
    %3434 = vmatprep.subr.mxu0 0.0
    %3435 = vmatpush1.msra.mxu0 0.0
    %3436 = vmatprep.subr.mxu0 0.0
    %3437 = vmatpush1.msra.mxu0 0.0
    %3438 = vmatprep.subr.mxu0 0.0
    %3439 = vmatpush1.msra.mxu0 0.0
    %3440 = vmatprep.subr.mxu0 0.0
    %3441 = vmatpush1.msra.mxu0 0.0
    %3442 = vmatprep.subr.mxu0 0.0
    %3443 = vmatpush1.msra.mxu0 %v3128
    %3444 = vmatprep.subr.mxu0 0.0
    %3445 = vmatpush1.msra.mxu0 %v3127
    %3446 = vmatprep.subr.mxu0 0.0
    %3447 = vmatpush1.msra.mxu0 %v3126
    %3448 = vmatprep.subr.mxu0 0.0
    %3449 = vmatpush1.msra.mxu0 %v3125
    %3450 = vmatprep.subr.mxu0 0.0
    %3451 = vmatpush2.msra.mxu0 0.0
    %3452 = vmatprep.subr.mxu0 0.0
    %3453 = vmatpush2.msra.mxu0 0.0
    %3454 = vmatprep.subr.mxu0 0.0
    %3455 = vmatpush2.msra.mxu0 0.0
    %3456 = vmatprep.subr.mxu0 0.0
    %3457 = vmatpush2.msra.mxu0 0.0
    %3458 = vmatprep.subr.mxu0 0.0
    %3459 = vmatpush2.msra.mxu0 0.0
    %3460 = vmatprep.subr.mxu0 0.0
    %3461 = vmatpush2.msra.mxu0 0.0
    %3462 = vmatprep.subr.mxu0 0.0
    %3463 = vmatpush2.msra.mxu0 0.0
    %3464 = vmatprep.subr.mxu0 0.0
    %3465 = vmatpush2.msra.mxu0 0.0
    %3466 = vmatprep.subr.mxu0 0.0
    %3467 = vmatpush2.msra.mxu0 0.0
    %3468 = vmatprep.subr.mxu0 0.0
    %3469 = vmatpush2.msra.mxu0 0.0
    %3470 = vmatprep.subr.mxu0 0.0
    %3471 = vmatpush2.msra.mxu0 0.0
    %3472 = vmatprep.subr.mxu0 0.0
    %3473 = vmatpush2.msra.mxu0 0.0
    %3474 = vmatprep.subr.mxu0 0.0
    %3475 = vmatpush2.msra.mxu0 0.0
    %3476 = vmatprep.subr.mxu0 0.0
    %3477 = vmatpush2.msra.mxu0 0.0
    %3478 = vmatprep.subr.mxu0 0.0
    %3479 = vmatpush2.msra.mxu0 0.0
    %3480 = vmatprep.subr.mxu0 0.0
    %3481 = vmatpush2.msra.mxu0 0.0
    %3482 = vmatprep.mubr.f32.mxu0 0.0
    %3483 = vmatmul.mubr.f32.gmra.mxu0 %v2828
    %v3484 = vpop.f32.mrf.mxu0
    %v3485 = vadd.f32 %v3136, %v3484
    %v3486 = vpop.f32.mrf.mxu0
    %3487 = vdwg.mxu0
    %3488 = vmatprep.subr.mxu0 0.0
    %3489 = vmatpush1.msra.mxu0 0.0
    %3490 = vmatprep.subr.mxu0 0.0
    %3491 = vmatpush1.msra.mxu0 0.0
    %3492 = vmatprep.subr.mxu0 0.0
    %3493 = vmatpush1.msra.mxu0 0.0
    %3494 = vmatprep.subr.mxu0 0.0
    %3495 = vmatpush1.msra.mxu0 0.0
    %3496 = vmatprep.subr.mxu0 0.0
    %3497 = vmatpush1.msra.mxu0 0.0
    %3498 = vmatprep.subr.mxu0 0.0
    %3499 = vmatpush1.msra.mxu0 0.0
    %3500 = vmatprep.subr.mxu0 0.0
    %3501 = vmatpush1.msra.mxu0 0.0
    %3502 = vmatprep.subr.mxu0 0.0
    %3503 = vmatpush1.msra.mxu0 0.0
    %3504 = vmatprep.subr.mxu0 0.0
    %3505 = vmatpush1.msra.mxu0 0.0
    %3506 = vmatprep.subr.mxu0 0.0
    %3507 = vmatpush1.msra.mxu0 0.0
    %3508 = vmatprep.subr.mxu0 0.0
    %3509 = vmatpush1.msra.mxu0 0.0
    %3510 = vmatprep.subr.mxu0 0.0
    %3511 = vmatpush1.msra.mxu0 0.0
    %3512 = vmatprep.subr.mxu0 0.0
    %3513 = vmatpush1.msra.mxu0 %v3128
    %3514 = vmatprep.subr.mxu0 0.0
    %3515 = vmatpush1.msra.mxu0 %v3127
    %3516 = vmatprep.subr.mxu0 0.0
    %3517 = vmatpush1.msra.mxu0 %v3126
    %3518 = vmatprep.subr.mxu0 0.0
    %3519 = vmatpush1.msra.mxu0 %v3125
    %3520 = vmatprep.subr.mxu0 0.0
    %3521 = vmatpush2.msra.mxu0 0.0
    %3522 = vmatprep.subr.mxu0 0.0
    %3523 = vmatpush2.msra.mxu0 0.0
    %3524 = vmatprep.subr.mxu0 0.0
    %3525 = vmatpush2.msra.mxu0 0.0
    %3526 = vmatprep.subr.mxu0 0.0
    %3527 = vmatpush2.msra.mxu0 0.0
    %3528 = vmatprep.subr.mxu0 0.0
    %3529 = vmatpush2.msra.mxu0 0.0
    %3530 = vmatprep.subr.mxu0 0.0
    %3531 = vmatpush2.msra.mxu0 0.0
    %3532 = vmatprep.subr.mxu0 0.0
    %3533 = vmatpush2.msra.mxu0 0.0
    %3534 = vmatprep.subr.mxu0 0.0
    %3535 = vmatpush2.msra.mxu0 0.0
    %3536 = vmatprep.subr.mxu0 0.0
    %3537 = vmatpush2.msra.mxu0 0.0
    %3538 = vmatprep.subr.mxu0 0.0
    %3539 = vmatpush2.msra.mxu0 0.0
    %3540 = vmatprep.subr.mxu0 0.0
    %3541 = vmatpush2.msra.mxu0 0.0
    %3542 = vmatprep.subr.mxu0 0.0
    %3543 = vmatpush2.msra.mxu0 0.0
    %3544 = vmatprep.subr.mxu0 0.0
    %3545 = vmatpush2.msra.mxu0 0.0
    %3546 = vmatprep.subr.mxu0 0.0
    %3547 = vmatpush2.msra.mxu0 0.0
    %3548 = vmatprep.subr.mxu0 0.0
    %3549 = vmatpush2.msra.mxu0 0.0
    %3550 = vmatprep.subr.mxu0 0.0
    %3551 = vmatpush2.msra.mxu0 0.0
    %3552 = vmatprep.mubr.f32.mxu0 0.0
    %3553 = vmatmul.mubr.f32.gmra.mxu0 %v2928
    %v3554 = vpop.f32.mrf.mxu0
    %v3555 = vadd.f32 %v3136, %v3554
    %v3556 = vpop.f32.mrf.mxu0
    %3557 = vdwg.mxu0
    %3558 = vmatprep.subr.mxu0 0.0
    %3559 = vmatpush1.msra.mxu0 0.0
    %3560 = vmatprep.subr.mxu0 0.0
    %3561 = vmatpush1.msra.mxu0 0.0
    %3562 = vmatprep.subr.mxu0 0.0
    %3563 = vmatpush1.msra.mxu0 0.0
    %3564 = vmatprep.subr.mxu0 0.0
    %3565 = vmatpush1.msra.mxu0 0.0
    %3566 = vmatprep.subr.mxu0 0.0
    %3567 = vmatpush1.msra.mxu0 0.0
    %3568 = vmatprep.subr.mxu0 0.0
    %3569 = vmatpush1.msra.mxu0 0.0
    %3570 = vmatprep.subr.mxu0 0.0
    %3571 = vmatpush1.msra.mxu0 0.0
    %3572 = vmatprep.subr.mxu0 0.0
    %3573 = vmatpush1.msra.mxu0 0.0
    %3574 = vmatprep.subr.mxu0 0.0
    %3575 = vmatpush1.msra.mxu0 0.0
    %3576 = vmatprep.subr.mxu0 0.0
    %3577 = vmatpush1.msra.mxu0 0.0
    %3578 = vmatprep.subr.mxu0 0.0
    %3579 = vmatpush1.msra.mxu0 0.0
    %3580 = vmatprep.subr.mxu0 0.0
    %3581 = vmatpush1.msra.mxu0 0.0
    %3582 = vmatprep.subr.mxu0 0.0
    %3583 = vmatpush1.msra.mxu0 %v3128
    %3584 = vmatprep.subr.mxu0 0.0
    %3585 = vmatpush1.msra.mxu0 %v3127
    %3586 = vmatprep.subr.mxu0 0.0
    %3587 = vmatpush1.msra.mxu0 %v3126
    %3588 = vmatprep.subr.mxu0 0.0
    %3589 = vmatpush1.msra.mxu0 %v3125
    %3590 = vmatprep.subr.mxu0 0.0
    %3591 = vmatpush2.msra.mxu0 0.0
    %3592 = vmatprep.subr.mxu0 0.0
    %3593 = vmatpush2.msra.mxu0 0.0
    %3594 = vmatprep.subr.mxu0 0.0
    %3595 = vmatpush2.msra.mxu0 0.0
    %3596 = vmatprep.subr.mxu0 0.0
    %3597 = vmatpush2.msra.mxu0 0.0
    %3598 = vmatprep.subr.mxu0 0.0
    %3599 = vmatpush2.msra.mxu0 0.0
    %3600 = vmatprep.subr.mxu0 0.0
    %3601 = vmatpush2.msra.mxu0 0.0
    %3602 = vmatprep.subr.mxu0 0.0
    %3603 = vmatpush2.msra.mxu0 0.0
    %3604 = vmatprep.subr.mxu0 0.0
    %3605 = vmatpush2.msra.mxu0 0.0
    %3606 = vmatprep.subr.mxu0 0.0
    %3607 = vmatpush2.msra.mxu0 0.0
    %3608 = vmatprep.subr.mxu0 0.0
    %3609 = vmatpush2.msra.mxu0 0.0
    %3610 = vmatprep.subr.mxu0 0.0
    %3611 = vmatpush2.msra.mxu0 0.0
    %3612 = vmatprep.subr.mxu0 0.0
    %3613 = vmatpush2.msra.mxu0 0.0
    %3614 = vmatprep.subr.mxu0 0.0
    %3615 = vmatpush2.msra.mxu0 0.0
    %3616 = vmatprep.subr.mxu0 0.0
    %3617 = vmatpush2.msra.mxu0 0.0
    %3618 = vmatprep.subr.mxu0 0.0
    %3619 = vmatpush2.msra.mxu0 0.0
    %3620 = vmatprep.subr.mxu0 0.0
    %3621 = vmatpush2.msra.mxu0 0.0
    %3622 = vmatprep.mubr.f32.mxu0 0.0
    %3623 = vmatmul.mubr.f32.gmra.mxu0 %v3028
    %v3624 = vpop.f32.mrf.mxu0
    %v3625 = vadd.f32 %v3136, %v3624
    %v3626 = vpop.f32.mrf.mxu0
    %3627 = vdwg.mxu0
    %3629 = vrot.lane.b32.xlu0 %v3124, 32
    %v3630 = vpop.permute.xlu0 %3629
    %v3631 = vsel %vm951, %v3630, 0
    %3633 = vmatprep.subr.mxu0 0.0
    %3634 = vmatpush1.msra.mxu0 0.0
    %3635 = vmatprep.subr.mxu0 0.0
    %3636 = vmatpush1.msra.mxu0 0.0
    %3637 = vmatprep.subr.mxu0 0.0
    %3638 = vmatpush1.msra.mxu0 0.0
    %3639 = vmatprep.subr.mxu0 0.0
    %3640 = vmatpush1.msra.mxu0 0.0
    %3641 = vmatprep.subr.mxu0 0.0
    %3642 = vmatpush1.msra.mxu0 0.0
    %3643 = vmatprep.subr.mxu0 0.0
    %3644 = vmatpush1.msra.mxu0 0.0
    %3645 = vmatprep.subr.mxu0 0.0
    %3646 = vmatpush1.msra.mxu0 0.0
    %3647 = vmatprep.subr.mxu0 0.0
    %3648 = vmatpush1.msra.mxu0 0.0
    %3649 = vmatprep.subr.mxu0 0.0
    %3650 = vmatpush1.msra.mxu0 0.0
    %3651 = vmatprep.subr.mxu0 0.0
    %3652 = vmatpush1.msra.mxu0 0.0
    %3653 = vmatprep.subr.mxu0 0.0
    %3654 = vmatpush1.msra.mxu0 0.0
    %3655 = vmatprep.subr.mxu0 0.0
    %3656 = vmatpush1.msra.mxu0 0.0
    %3657 = vmatprep.subr.mxu0 0.0
    %3658 = vmatpush1.msra.mxu0 %v3128
    %3659 = vmatprep.subr.mxu0 0.0
    %3660 = vmatpush1.msra.mxu0 %v3127
    %3661 = vmatprep.subr.mxu0 0.0
    %3662 = vmatpush1.msra.mxu0 %v3126
    %3663 = vmatprep.subr.mxu0 0.0
    %3664 = vmatpush1.msra.mxu0 %v3125
    %3665 = vmatprep.subr.mxu0 0.0
    %3666 = vmatpush2.msra.mxu0 0.0
    %3667 = vmatprep.subr.mxu0 0.0
    %3668 = vmatpush2.msra.mxu0 0.0
    %3669 = vmatprep.subr.mxu0 0.0
    %3670 = vmatpush2.msra.mxu0 0.0
    %3671 = vmatprep.subr.mxu0 0.0
    %3672 = vmatpush2.msra.mxu0 0.0
    %3673 = vmatprep.subr.mxu0 0.0
    %3674 = vmatpush2.msra.mxu0 0.0
    %3675 = vmatprep.subr.mxu0 0.0
    %3676 = vmatpush2.msra.mxu0 0.0
    %3677 = vmatprep.subr.mxu0 0.0
    %3678 = vmatpush2.msra.mxu0 0.0
    %3679 = vmatprep.subr.mxu0 0.0
    %3680 = vmatpush2.msra.mxu0 0.0
    %3681 = vmatprep.subr.mxu0 0.0
    %3682 = vmatpush2.msra.mxu0 0.0
    %3683 = vmatprep.subr.mxu0 0.0
    %3684 = vmatpush2.msra.mxu0 0.0
    %3685 = vmatprep.subr.mxu0 0.0
    %3686 = vmatpush2.msra.mxu0 0.0
    %3687 = vmatprep.subr.mxu0 0.0
    %3688 = vmatpush2.msra.mxu0 0.0
    %3689 = vmatprep.subr.mxu0 0.0
    %3690 = vmatpush2.msra.mxu0 0.0
    %3691 = vmatprep.subr.mxu0 0.0
    %3692 = vmatpush2.msra.mxu0 0.0
    %3693 = vmatprep.subr.mxu0 0.0
    %3694 = vmatpush2.msra.mxu0 0.0
    %3695 = vmatprep.subr.mxu0 0.0
    %3696 = vmatpush2.msra.mxu0 0.0
    %3697 = vmatprep.mubr.f32.mxu0 0.0
    %3698 = vmatmul.mubr.f32.gmra.mxu0 %v3631
    %v3699 = vpop.f32.mrf.mxu0
    %v3700 = vadd.f32 %v3136, %v3699
    %v3701 = vpop.f32.mrf.mxu0
    %3702 = vdwg.mxu0
    %vm3703 = vcmask 130048
    %v3704 = vsel %vm3703, 0.0, 0
    %3706 = vmatprep.subr.mxu0 0.0
    %3707 = vmatpush1.msra.mxu0 0.0
    %3708 = vmatprep.subr.mxu0 0.0
    %3709 = vmatpush1.msra.mxu0 0.0
    %3710 = vmatprep.subr.mxu0 0.0
    %3711 = vmatpush1.msra.mxu0 0.0
    %3712 = vmatprep.subr.mxu0 0.0
    %3713 = vmatpush1.msra.mxu0 0.0
    %3714 = vmatprep.subr.mxu0 0.0
    %3715 = vmatpush1.msra.mxu0 0.0
    %3716 = vmatprep.subr.mxu0 0.0
    %3717 = vmatpush1.msra.mxu0 0.0
    %3718 = vmatprep.subr.mxu0 0.0
    %3719 = vmatpush1.msra.mxu0 0.0
    %3720 = vmatprep.subr.mxu0 0.0
    %3721 = vmatpush1.msra.mxu0 0.0
    %3722 = vmatprep.subr.mxu0 0.0
    %3723 = vmatpush1.msra.mxu0 0.0
    %3724 = vmatprep.subr.mxu0 0.0
    %3725 = vmatpush1.msra.mxu0 0.0
    %3726 = vmatprep.subr.mxu0 0.0
    %3727 = vmatpush1.msra.mxu0 0.0
    %3728 = vmatprep.subr.mxu0 0.0
    %3729 = vmatpush1.msra.mxu0 0.0
    %3730 = vmatprep.subr.mxu0 0.0
    %3731 = vmatpush1.msra.mxu0 0.0
    %3732 = vmatprep.subr.mxu0 0.0
    %3733 = vmatpush1.msra.mxu0 0.0
    %3734 = vmatprep.subr.mxu0 0.0
    %3735 = vmatpush1.msra.mxu0 %v3130
    %3736 = vmatprep.subr.mxu0 0.0
    %3737 = vmatpush1.msra.mxu0 %v3129
    %3738 = vmatprep.subr.mxu0 0.0
    %3739 = vmatpush2.msra.mxu0 0.0
    %3740 = vmatprep.subr.mxu0 0.0
    %3741 = vmatpush2.msra.mxu0 0.0
    %3742 = vmatprep.subr.mxu0 0.0
    %3743 = vmatpush2.msra.mxu0 0.0
    %3744 = vmatprep.subr.mxu0 0.0
    %3745 = vmatpush2.msra.mxu0 0.0
    %3746 = vmatprep.subr.mxu0 0.0
    %3747 = vmatpush2.msra.mxu0 0.0
    %3748 = vmatprep.subr.mxu0 0.0
    %3749 = vmatpush2.msra.mxu0 0.0
    %3750 = vmatprep.subr.mxu0 0.0
    %3751 = vmatpush2.msra.mxu0 0.0
    %3752 = vmatprep.subr.mxu0 0.0
    %3753 = vmatpush2.msra.mxu0 0.0
    %3754 = vmatprep.subr.mxu0 0.0
    %3755 = vmatpush2.msra.mxu0 0.0
    %3756 = vmatprep.subr.mxu0 0.0
    %3757 = vmatpush2.msra.mxu0 0.0
    %3758 = vmatprep.subr.mxu0 0.0
    %3759 = vmatpush2.msra.mxu0 0.0
    %3760 = vmatprep.subr.mxu0 0.0
    %3761 = vmatpush2.msra.mxu0 0.0
    %3762 = vmatprep.subr.mxu0 0.0
    %3763 = vmatpush2.msra.mxu0 0.0
    %3764 = vmatprep.subr.mxu0 0.0
    %3765 = vmatpush2.msra.mxu0 0.0
    %3766 = vmatprep.subr.mxu0 0.0
    %3767 = vmatpush2.msra.mxu0 0.0
    %3768 = vmatprep.subr.mxu0 0.0
    %3769 = vmatpush2.msra.mxu0 0.0
    %3770 = vmatprep.mubr.f32.mxu0 0.0
    %3771 = vmatmul.mubr.f32.gmra.mxu0 %v3704
    %v3772 = vpop.f32.mrf.mxu0
    %v3773 = vadd.f32 0.0, %v3772
    %v3774 = vpop.f32.mrf.mxu0
    %3775 = vdwg.mxu0
    %v3776 = vadd.f32 %v3205, %v3773
    %v3777 = vxor.u32 %v3776, 2147483648
    %v3778 = vmul.f32 %v3777, 1.442695
    %v3779 = vpow.pop %v3778
    %v3780 = vadd.f32 %v3779, 1.0
    %v3781 = vrcp.pop %v3780
    %v3782 = vmul.f32 1.0, %v3781
    %v3783 = vtanh.pop %v3776
    %v3784 = vmul.f32 %v3782, 0.0
    %3786 = vrot.lane.b32.xlu0 %v3783, 96
    %v3787 = vpop.permute.xlu0 %3786
    %v3789 = vmul.f32 %v3782, %v3787
    %3791 = vrot.lane.b32.xlu0 %v3789, 16
    %v3792 = vpop.permute.xlu0 %3791
    %v3794 = vadd.f32 %v3784, %v3792
    %v3795 = vtanh.pop %v3794
    %3797 = vrot.lane.b32.xlu0 %v3795, 32
    %v3798 = vpop.permute.xlu0 %3797
    %v3800 = vmul.f32 %v3782, %v3798
    %3802 = vrot.lane.b32.xlu0 %v3800, 80
    %v3803 = vpop.permute.xlu0 %3802
    %v3804 = vsel %vm3703, %v3803, 0
    %3806 = vmatprep.subr.mxu0 0.0
    %3807 = vmatpush1.msra.mxu0 0.0
    %3808 = vmatprep.subr.mxu0 0.0
    %3809 = vmatpush1.msra.mxu0 0.0
    %3810 = vmatprep.subr.mxu0 0.0
    %3811 = vmatpush1.msra.mxu0 0.0
    %3812 = vmatprep.subr.mxu0 0.0
    %3813 = vmatpush1.msra.mxu0 0.0
    %3814 = vmatprep.subr.mxu0 0.0
    %3815 = vmatpush1.msra.mxu0 0.0
    %3816 = vmatprep.subr.mxu0 0.0
    %3817 = vmatpush1.msra.mxu0 0.0
    %3818 = vmatprep.subr.mxu0 0.0
    %3819 = vmatpush1.msra.mxu0 0.0
    %3820 = vmatprep.subr.mxu0 0.0
    %3821 = vmatpush1.msra.mxu0 0.0
    %3822 = vmatprep.subr.mxu0 0.0
    %3823 = vmatpush1.msra.mxu0 0.0
    %3824 = vmatprep.subr.mxu0 0.0
    %3825 = vmatpush1.msra.mxu0 0.0
    %3826 = vmatprep.subr.mxu0 0.0
    %3827 = vmatpush1.msra.mxu0 0.0
    %3828 = vmatprep.subr.mxu0 0.0
    %3829 = vmatpush1.msra.mxu0 0.0
    %3830 = vmatprep.subr.mxu0 0.0
    %3831 = vmatpush1.msra.mxu0 0.0
    %3832 = vmatprep.subr.mxu0 0.0
    %3833 = vmatpush1.msra.mxu0 0.0
    %3834 = vmatprep.subr.mxu0 0.0
    %3835 = vmatpush1.msra.mxu0 %v3130
    %3836 = vmatprep.subr.mxu0 0.0
    %3837 = vmatpush1.msra.mxu0 %v3129
    %3838 = vmatprep.subr.mxu0 0.0
    %3839 = vmatpush2.msra.mxu0 0.0
    %3840 = vmatprep.subr.mxu0 0.0
    %3841 = vmatpush2.msra.mxu0 0.0
    %3842 = vmatprep.subr.mxu0 0.0
    %3843 = vmatpush2.msra.mxu0 0.0
    %3844 = vmatprep.subr.mxu0 0.0
    %3845 = vmatpush2.msra.mxu0 0.0
    %3846 = vmatprep.subr.mxu0 0.0
    %3847 = vmatpush2.msra.mxu0 0.0
    %3848 = vmatprep.subr.mxu0 0.0
    %3849 = vmatpush2.msra.mxu0 0.0
    %3850 = vmatprep.subr.mxu0 0.0
    %3851 = vmatpush2.msra.mxu0 0.0
    %3852 = vmatprep.subr.mxu0 0.0
    %3853 = vmatpush2.msra.mxu0 0.0
    %3854 = vmatprep.subr.mxu0 0.0
    %3855 = vmatpush2.msra.mxu0 0.0
    %3856 = vmatprep.subr.mxu0 0.0
    %3857 = vmatpush2.msra.mxu0 0.0
    %3858 = vmatprep.subr.mxu0 0.0
    %3859 = vmatpush2.msra.mxu0 0.0
    %3860 = vmatprep.subr.mxu0 0.0
    %3861 = vmatpush2.msra.mxu0 0.0
    %3862 = vmatprep.subr.mxu0 0.0
    %3863 = vmatpush2.msra.mxu0 0.0
    %3864 = vmatprep.subr.mxu0 0.0
    %3865 = vmatpush2.msra.mxu0 0.0
    %3866 = vmatprep.subr.mxu0 0.0
    %3867 = vmatpush2.msra.mxu0 0.0
    %3868 = vmatprep.subr.mxu0 0.0
    %3869 = vmatpush2.msra.mxu0 0.0
    %3870 = vmatprep.mubr.f32.mxu0 0.0
    %3871 = vmatmul.mubr.f32.gmra.mxu0 %v3804
    %v3872 = vpop.f32.mrf.mxu0
    %v3873 = vadd.f32 0.0, %v3872
    %v3874 = vpop.f32.mrf.mxu0
    %3875 = vdwg.mxu0
    %v3876 = vadd.f32 %v3275, %v3873
    %v3877 = vxor.u32 %v3876, 2147483648
    %v3878 = vmul.f32 %v3877, 1.442695
    %v3879 = vpow.pop %v3878
    %v3880 = vadd.f32 %v3879, 1.0
    %v3881 = vrcp.pop %v3880
    %v3882 = vmul.f32 1.0, %v3881
    %v3883 = vtanh.pop %v3876
    %v3884 = vmul.f32 %v3882, %v3794
    %3886 = vrot.lane.b32.xlu0 %v3883, 96
    %v3887 = vpop.permute.xlu0 %3886
    %v3889 = vmul.f32 %v3882, %v3887
    %3891 = vrot.lane.b32.xlu0 %v3889, 16
    %v3892 = vpop.permute.xlu0 %3891
    %v3894 = vadd.f32 %v3884, %v3892
    %v3895 = vtanh.pop %v3894
    %3897 = vrot.lane.b32.xlu0 %v3895, 32
    %v3898 = vpop.permute.xlu0 %3897
    %v3900 = vmul.f32 %v3882, %v3898
    %3902 = vrot.lane.b32.xlu0 %v3900, 80
    %v3903 = vpop.permute.xlu0 %3902
    %v3904 = vsel %vm3703, %v3903, 0
    %3906 = vmatprep.subr.mxu0 0.0
    %3907 = vmatpush1.msra.mxu0 0.0
    %3908 = vmatprep.subr.mxu0 0.0
    %3909 = vmatpush1.msra.mxu0 0.0
    %3910 = vmatprep.subr.mxu0 0.0
    %3911 = vmatpush1.msra.mxu0 0.0
    %3912 = vmatprep.subr.mxu0 0.0
    %3913 = vmatpush1.msra.mxu0 0.0
    %3914 = vmatprep.subr.mxu0 0.0
    %3915 = vmatpush1.msra.mxu0 0.0
    %3916 = vmatprep.subr.mxu0 0.0
    %3917 = vmatpush1.msra.mxu0 0.0
    %3918 = vmatprep.subr.mxu0 0.0
    %3919 = vmatpush1.msra.mxu0 0.0
    %3920 = vmatprep.subr.mxu0 0.0
    %3921 = vmatpush1.msra.mxu0 0.0
    %3922 = vmatprep.subr.mxu0 0.0
    %3923 = vmatpush1.msra.mxu0 0.0
    %3924 = vmatprep.subr.mxu0 0.0
    %3925 = vmatpush1.msra.mxu0 0.0
    %3926 = vmatprep.subr.mxu0 0.0
    %3927 = vmatpush1.msra.mxu0 0.0
    %3928 = vmatprep.subr.mxu0 0.0
    %3929 = vmatpush1.msra.mxu0 0.0
    %3930 = vmatprep.subr.mxu0 0.0
    %3931 = vmatpush1.msra.mxu0 0.0
    %3932 = vmatprep.subr.mxu0 0.0
    %3933 = vmatpush1.msra.mxu0 0.0
    %3934 = vmatprep.subr.mxu0 0.0
    %3935 = vmatpush1.msra.mxu0 %v3130
    %3936 = vmatprep.subr.mxu0 0.0
    %3937 = vmatpush1.msra.mxu0 %v3129
    %3938 = vmatprep.subr.mxu0 0.0
    %3939 = vmatpush2.msra.mxu0 0.0
    %3940 = vmatprep.subr.mxu0 0.0
    %3941 = vmatpush2.msra.mxu0 0.0
    %3942 = vmatprep.subr.mxu0 0.0
    %3943 = vmatpush2.msra.mxu0 0.0
    %3944 = vmatprep.subr.mxu0 0.0
    %3945 = vmatpush2.msra.mxu0 0.0
    %3946 = vmatprep.subr.mxu0 0.0
    %3947 = vmatpush2.msra.mxu0 0.0
    %3948 = vmatprep.subr.mxu0 0.0
    %3949 = vmatpush2.msra.mxu0 0.0
    %3950 = vmatprep.subr.mxu0 0.0
    %3951 = vmatpush2.msra.mxu0 0.0
    %3952 = vmatprep.subr.mxu0 0.0
    %3953 = vmatpush2.msra.mxu0 0.0
    %3954 = vmatprep.subr.mxu0 0.0
    %3955 = vmatpush2.msra.mxu0 0.0
    %3956 = vmatprep.subr.mxu0 0.0
    %3957 = vmatpush2.msra.mxu0 0.0
    %3958 = vmatprep.subr.mxu0 0.0
    %3959 = vmatpush2.msra.mxu0 0.0
    %3960 = vmatprep.subr.mxu0 0.0
    %3961 = vmatpush2.msra.mxu0 0.0
    %3962 = vmatprep.subr.mxu0 0.0
    %3963 = vmatpush2.msra.mxu0 0.0
    %3964 = vmatprep.subr.mxu0 0.0
    %3965 = vmatpush2.msra.mxu0 0.0
    %3966 = vmatprep.subr.mxu0 0.0
    %3967 = vmatpush2.msra.mxu0 0.0
    %3968 = vmatprep.subr.mxu0 0.0
    %3969 = vmatpush2.msra.mxu0 0.0
    %3970 = vmatprep.mubr.f32.mxu0 0.0
    %3971 = vmatmul.mubr.f32.gmra.mxu0 %v3904
    %v3972 = vpop.f32.mrf.mxu0
    %v3973 = vadd.f32 0.0, %v3972
    %v3974 = vpop.f32.mrf.mxu0
    %3975 = vdwg.mxu0
    %v3976 = vadd.f32 %v3345, %v3973
    %v3977 = vxor.u32 %v3976, 2147483648
    %v3978 = vmul.f32 %v3977, 1.442695
    %v3979 = vpow.pop %v3978
    %v3980 = vadd.f32 %v3979, 1.0
    %v3981 = vrcp.pop %v3980
    %v3982 = vmul.f32 1.0, %v3981
    %v3983 = vtanh.pop %v3976
    %v3984 = vmul.f32 %v3982, %v3894
    %3986 = vrot.lane.b32.xlu0 %v3983, 96
    %v3987 = vpop.permute.xlu0 %3986
    %v3989 = vmul.f32 %v3982, %v3987
    %3991 = vrot.lane.b32.xlu0 %v3989, 16
    %v3992 = vpop.permute.xlu0 %3991
    %v3994 = vadd.f32 %v3984, %v3992
    %v3995 = vtanh.pop %v3994
    %3997 = vrot.lane.b32.xlu0 %v3995, 32
    %v3998 = vpop.permute.xlu0 %3997
    %v4000 = vmul.f32 %v3982, %v3998
    %4002 = vrot.lane.b32.xlu0 %v4000, 80
    %v4003 = vpop.permute.xlu0 %4002
    %v4004 = vsel %vm3703, %v4003, 0
    %4006 = vmatprep.subr.mxu0 0.0
    %4007 = vmatpush1.msra.mxu0 0.0
    %4008 = vmatprep.subr.mxu0 0.0
    %4009 = vmatpush1.msra.mxu0 0.0
    %4010 = vmatprep.subr.mxu0 0.0
    %4011 = vmatpush1.msra.mxu0 0.0
    %4012 = vmatprep.subr.mxu0 0.0
    %4013 = vmatpush1.msra.mxu0 0.0
    %4014 = vmatprep.subr.mxu0 0.0
    %4015 = vmatpush1.msra.mxu0 0.0
    %4016 = vmatprep.subr.mxu0 0.0
    %4017 = vmatpush1.msra.mxu0 0.0
    %4018 = vmatprep.subr.mxu0 0.0
    %4019 = vmatpush1.msra.mxu0 0.0
    %4020 = vmatprep.subr.mxu0 0.0
    %4021 = vmatpush1.msra.mxu0 0.0
    %4022 = vmatprep.subr.mxu0 0.0
    %4023 = vmatpush1.msra.mxu0 0.0
    %4024 = vmatprep.subr.mxu0 0.0
    %4025 = vmatpush1.msra.mxu0 0.0
    %4026 = vmatprep.subr.mxu0 0.0
    %4027 = vmatpush1.msra.mxu0 0.0
    %4028 = vmatprep.subr.mxu0 0.0
    %4029 = vmatpush1.msra.mxu0 0.0
    %4030 = vmatprep.subr.mxu0 0.0
    %4031 = vmatpush1.msra.mxu0 0.0
    %4032 = vmatprep.subr.mxu0 0.0
    %4033 = vmatpush1.msra.mxu0 0.0
    %4034 = vmatprep.subr.mxu0 0.0
    %4035 = vmatpush1.msra.mxu0 %v3130
    %4036 = vmatprep.subr.mxu0 0.0
    %4037 = vmatpush1.msra.mxu0 %v3129
    %4038 = vmatprep.subr.mxu0 0.0
    %4039 = vmatpush2.msra.mxu0 0.0
    %4040 = vmatprep.subr.mxu0 0.0
    %4041 = vmatpush2.msra.mxu0 0.0
    %4042 = vmatprep.subr.mxu0 0.0
    %4043 = vmatpush2.msra.mxu0 0.0
    %4044 = vmatprep.subr.mxu0 0.0
    %4045 = vmatpush2.msra.mxu0 0.0
    %4046 = vmatprep.subr.mxu0 0.0
    %4047 = vmatpush2.msra.mxu0 0.0
    %4048 = vmatprep.subr.mxu0 0.0
    %4049 = vmatpush2.msra.mxu0 0.0
    %4050 = vmatprep.subr.mxu0 0.0
    %4051 = vmatpush2.msra.mxu0 0.0
    %4052 = vmatprep.subr.mxu0 0.0
    %4053 = vmatpush2.msra.mxu0 0.0
    %4054 = vmatprep.subr.mxu0 0.0
    %4055 = vmatpush2.msra.mxu0 0.0
    %4056 = vmatprep.subr.mxu0 0.0
    %4057 = vmatpush2.msra.mxu0 0.0
    %4058 = vmatprep.subr.mxu0 0.0
    %4059 = vmatpush2.msra.mxu0 0.0
    %4060 = vmatprep.subr.mxu0 0.0
    %4061 = vmatpush2.msra.mxu0 0.0
    %4062 = vmatprep.subr.mxu0 0.0
    %4063 = vmatpush2.msra.mxu0 0.0
    %4064 = vmatprep.subr.mxu0 0.0
    %4065 = vmatpush2.msra.mxu0 0.0
    %4066 = vmatprep.subr.mxu0 0.0
    %4067 = vmatpush2.msra.mxu0 0.0
    %4068 = vmatprep.subr.mxu0 0.0
    %4069 = vmatpush2.msra.mxu0 0.0
    %4070 = vmatprep.mubr.f32.mxu0 0.0
    %4071 = vmatmul.mubr.f32.gmra.mxu0 %v4004
    %v4072 = vpop.f32.mrf.mxu0
    %v4073 = vadd.f32 0.0, %v4072
    %v4074 = vpop.f32.mrf.mxu0
    %4075 = vdwg.mxu0
    %v4076 = vadd.f32 %v3415, %v4073
    %v4077 = vxor.u32 %v4076, 2147483648
    %v4078 = vmul.f32 %v4077, 1.442695
    %v4079 = vpow.pop %v4078
    %v4080 = vadd.f32 %v4079, 1.0
    %v4081 = vrcp.pop %v4080
    %v4082 = vmul.f32 1.0, %v4081
    %v4083 = vtanh.pop %v4076
    %v4084 = vmul.f32 %v4082, %v3994
    %4086 = vrot.lane.b32.xlu0 %v4083, 96
    %v4087 = vpop.permute.xlu0 %4086
    %v4089 = vmul.f32 %v4082, %v4087
    %4091 = vrot.lane.b32.xlu0 %v4089, 16
    %v4092 = vpop.permute.xlu0 %4091
    %v4094 = vadd.f32 %v4084, %v4092
    %v4095 = vtanh.pop %v4094
    %4097 = vrot.lane.b32.xlu0 %v4095, 32
    %v4098 = vpop.permute.xlu0 %4097
    %v4100 = vmul.f32 %v4082, %v4098
    %4102 = vrot.lane.b32.xlu0 %v4100, 80
    %v4103 = vpop.permute.xlu0 %4102
    %v4104 = vsel %vm3703, %v4103, 0
    %4106 = vmatprep.subr.mxu0 0.0
    %4107 = vmatpush1.msra.mxu0 0.0
    %4108 = vmatprep.subr.mxu0 0.0
    %4109 = vmatpush1.msra.mxu0 0.0
    %4110 = vmatprep.subr.mxu0 0.0
    %4111 = vmatpush1.msra.mxu0 0.0
    %4112 = vmatprep.subr.mxu0 0.0
    %4113 = vmatpush1.msra.mxu0 0.0
    %4114 = vmatprep.subr.mxu0 0.0
    %4115 = vmatpush1.msra.mxu0 0.0
    %4116 = vmatprep.subr.mxu0 0.0
    %4117 = vmatpush1.msra.mxu0 0.0
    %4118 = vmatprep.subr.mxu0 0.0
    %4119 = vmatpush1.msra.mxu0 0.0
    %4120 = vmatprep.subr.mxu0 0.0
    %4121 = vmatpush1.msra.mxu0 0.0
    %4122 = vmatprep.subr.mxu0 0.0
    %4123 = vmatpush1.msra.mxu0 0.0
    %4124 = vmatprep.subr.mxu0 0.0
    %4125 = vmatpush1.msra.mxu0 0.0
    %4126 = vmatprep.subr.mxu0 0.0
    %4127 = vmatpush1.msra.mxu0 0.0
    %4128 = vmatprep.subr.mxu0 0.0
    %4129 = vmatpush1.msra.mxu0 0.0
    %4130 = vmatprep.subr.mxu0 0.0
    %4131 = vmatpush1.msra.mxu0 0.0
    %4132 = vmatprep.subr.mxu0 0.0
    %4133 = vmatpush1.msra.mxu0 0.0
    %4134 = vmatprep.subr.mxu0 0.0
    %4135 = vmatpush1.msra.mxu0 %v3130
    %4136 = vmatprep.subr.mxu0 0.0
    %4137 = vmatpush1.msra.mxu0 %v3129
    %4138 = vmatprep.subr.mxu0 0.0
    %4139 = vmatpush2.msra.mxu0 0.0
    %4140 = vmatprep.subr.mxu0 0.0
    %4141 = vmatpush2.msra.mxu0 0.0
    %4142 = vmatprep.subr.mxu0 0.0
    %4143 = vmatpush2.msra.mxu0 0.0
    %4144 = vmatprep.subr.mxu0 0.0
    %4145 = vmatpush2.msra.mxu0 0.0
    %4146 = vmatprep.subr.mxu0 0.0
    %4147 = vmatpush2.msra.mxu0 0.0
    %4148 = vmatprep.subr.mxu0 0.0
    %4149 = vmatpush2.msra.mxu0 0.0
    %4150 = vmatprep.subr.mxu0 0.0
    %4151 = vmatpush2.msra.mxu0 0.0
    %4152 = vmatprep.subr.mxu0 0.0
    %4153 = vmatpush2.msra.mxu0 0.0
    %4154 = vmatprep.subr.mxu0 0.0
    %4155 = vmatpush2.msra.mxu0 0.0
    %4156 = vmatprep.subr.mxu0 0.0
    %4157 = vmatpush2.msra.mxu0 0.0
    %4158 = vmatprep.subr.mxu0 0.0
    %4159 = vmatpush2.msra.mxu0 0.0
    %4160 = vmatprep.subr.mxu0 0.0
    %4161 = vmatpush2.msra.mxu0 0.0
    %4162 = vmatprep.subr.mxu0 0.0
    %4163 = vmatpush2.msra.mxu0 0.0
    %4164 = vmatprep.subr.mxu0 0.0
    %4165 = vmatpush2.msra.mxu0 0.0
    %4166 = vmatprep.subr.mxu0 0.0
    %4167 = vmatpush2.msra.mxu0 0.0
    %4168 = vmatprep.subr.mxu0 0.0
    %4169 = vmatpush2.msra.mxu0 0.0
    %4170 = vmatprep.mubr.f32.mxu0 0.0
    %4171 = vmatmul.mubr.f32.gmra.mxu0 %v4104
    %v4172 = vpop.f32.mrf.mxu0
    %v4173 = vadd.f32 0.0, %v4172
    %v4174 = vpop.f32.mrf.mxu0
    %4175 = vdwg.mxu0
    %v4176 = vadd.f32 %v3485, %v4173
    %v4177 = vxor.u32 %v4176, 2147483648
    %v4178 = vmul.f32 %v4177, 1.442695
    %v4179 = vpow.pop %v4178
    %v4180 = vadd.f32 %v4179, 1.0
    %v4181 = vrcp.pop %v4180
    %v4182 = vmul.f32 1.0, %v4181
    %v4183 = vtanh.pop %v4176
    %v4184 = vmul.f32 %v4182, %v4094
    %4186 = vrot.lane.b32.xlu0 %v4183, 96
    %v4187 = vpop.permute.xlu0 %4186
    %v4189 = vmul.f32 %v4182, %v4187
    %4191 = vrot.lane.b32.xlu0 %v4189, 16
    %v4192 = vpop.permute.xlu0 %4191
    %v4194 = vadd.f32 %v4184, %v4192
    %v4195 = vtanh.pop %v4194
    %4197 = vrot.lane.b32.xlu0 %v4195, 32
    %v4198 = vpop.permute.xlu0 %4197
    %v4200 = vmul.f32 %v4182, %v4198
    %4202 = vrot.lane.b32.xlu0 %v4200, 80
    %v4203 = vpop.permute.xlu0 %4202
    %v4204 = vsel %vm3703, %v4203, 0
    %4206 = vmatprep.subr.mxu0 0.0
    %4207 = vmatpush1.msra.mxu0 0.0
    %4208 = vmatprep.subr.mxu0 0.0
    %4209 = vmatpush1.msra.mxu0 0.0
    %4210 = vmatprep.subr.mxu0 0.0
    %4211 = vmatpush1.msra.mxu0 0.0
    %4212 = vmatprep.subr.mxu0 0.0
    %4213 = vmatpush1.msra.mxu0 0.0
    %4214 = vmatprep.subr.mxu0 0.0
    %4215 = vmatpush1.msra.mxu0 0.0
    %4216 = vmatprep.subr.mxu0 0.0
    %4217 = vmatpush1.msra.mxu0 0.0
    %4218 = vmatprep.subr.mxu0 0.0
    %4219 = vmatpush1.msra.mxu0 0.0
    %4220 = vmatprep.subr.mxu0 0.0
    %4221 = vmatpush1.msra.mxu0 0.0
    %4222 = vmatprep.subr.mxu0 0.0
    %4223 = vmatpush1.msra.mxu0 0.0
    %4224 = vmatprep.subr.mxu0 0.0
    %4225 = vmatpush1.msra.mxu0 0.0
    %4226 = vmatprep.subr.mxu0 0.0
    %4227 = vmatpush1.msra.mxu0 0.0
    %4228 = vmatprep.subr.mxu0 0.0
    %4229 = vmatpush1.msra.mxu0 0.0
    %4230 = vmatprep.subr.mxu0 0.0
    %4231 = vmatpush1.msra.mxu0 0.0
    %4232 = vmatprep.subr.mxu0 0.0
    %4233 = vmatpush1.msra.mxu0 0.0
    %4234 = vmatprep.subr.mxu0 0.0
    %4235 = vmatpush1.msra.mxu0 %v3130
    %4236 = vmatprep.subr.mxu0 0.0
    %4237 = vmatpush1.msra.mxu0 %v3129
    %4238 = vmatprep.subr.mxu0 0.0
    %4239 = vmatpush2.msra.mxu0 0.0
    %4240 = vmatprep.subr.mxu0 0.0
    %4241 = vmatpush2.msra.mxu0 0.0
    %4242 = vmatprep.subr.mxu0 0.0
    %4243 = vmatpush2.msra.mxu0 0.0
    %4244 = vmatprep.subr.mxu0 0.0
    %4245 = vmatpush2.msra.mxu0 0.0
    %4246 = vmatprep.subr.mxu0 0.0
    %4247 = vmatpush2.msra.mxu0 0.0
    %4248 = vmatprep.subr.mxu0 0.0
    %4249 = vmatpush2.msra.mxu0 0.0
    %4250 = vmatprep.subr.mxu0 0.0
    %4251 = vmatpush2.msra.mxu0 0.0
    %4252 = vmatprep.subr.mxu0 0.0
    %4253 = vmatpush2.msra.mxu0 0.0
    %4254 = vmatprep.subr.mxu0 0.0
    %4255 = vmatpush2.msra.mxu0 0.0
    %4256 = vmatprep.subr.mxu0 0.0
    %4257 = vmatpush2.msra.mxu0 0.0
    %4258 = vmatprep.subr.mxu0 0.0
    %4259 = vmatpush2.msra.mxu0 0.0
    %4260 = vmatprep.subr.mxu0 0.0
    %4261 = vmatpush2.msra.mxu0 0.0
    %4262 = vmatprep.subr.mxu0 0.0
    %4263 = vmatpush2.msra.mxu0 0.0
    %4264 = vmatprep.subr.mxu0 0.0
    %4265 = vmatpush2.msra.mxu0 0.0
    %4266 = vmatprep.subr.mxu0 0.0
    %4267 = vmatpush2.msra.mxu0 0.0
    %4268 = vmatprep.subr.mxu0 0.0
    %4269 = vmatpush2.msra.mxu0 0.0
    %4270 = vmatprep.mubr.f32.mxu0 0.0
    %4271 = vmatmul.mubr.f32.gmra.mxu0 %v4204
    %v4272 = vpop.f32.mrf.mxu0
    %v4273 = vadd.f32 0.0, %v4272
    %v4274 = vpop.f32.mrf.mxu0
    %4275 = vdwg.mxu0
    %v4276 = vadd.f32 %v3555, %v4273
    %v4277 = vxor.u32 %v4276, 2147483648
    %v4278 = vmul.f32 %v4277, 1.442695
    %v4279 = vpow.pop %v4278
    %v4280 = vadd.f32 %v4279, 1.0
    %v4281 = vrcp.pop %v4280
    %v4282 = vmul.f32 1.0, %v4281
    %v4283 = vtanh.pop %v4276
    %v4284 = vmul.f32 %v4282, %v4194
    %4286 = vrot.lane.b32.xlu0 %v4283, 96
    %v4287 = vpop.permute.xlu0 %4286
    %v4289 = vmul.f32 %v4282, %v4287
    %4291 = vrot.lane.b32.xlu0 %v4289, 16
    %v4292 = vpop.permute.xlu0 %4291
    %v4294 = vadd.f32 %v4284, %v4292
    %v4295 = vtanh.pop %v4294
    %4297 = vrot.lane.b32.xlu0 %v4295, 32
    %v4298 = vpop.permute.xlu0 %4297
    %v4300 = vmul.f32 %v4282, %v4298
    %4302 = vrot.lane.b32.xlu0 %v4300, 80
    %v4303 = vpop.permute.xlu0 %4302
    %v4304 = vsel %vm3703, %v4303, 0
    %4306 = vmatprep.subr.mxu0 0.0
    %4307 = vmatpush1.msra.mxu0 0.0
    %4308 = vmatprep.subr.mxu0 0.0
    %4309 = vmatpush1.msra.mxu0 0.0
    %4310 = vmatprep.subr.mxu0 0.0
    %4311 = vmatpush1.msra.mxu0 0.0
    %4312 = vmatprep.subr.mxu0 0.0
    %4313 = vmatpush1.msra.mxu0 0.0
    %4314 = vmatprep.subr.mxu0 0.0
    %4315 = vmatpush1.msra.mxu0 0.0
    %4316 = vmatprep.subr.mxu0 0.0
    %4317 = vmatpush1.msra.mxu0 0.0
    %4318 = vmatprep.subr.mxu0 0.0
    %4319 = vmatpush1.msra.mxu0 0.0
    %4320 = vmatprep.subr.mxu0 0.0
    %4321 = vmatpush1.msra.mxu0 0.0
    %4322 = vmatprep.subr.mxu0 0.0
    %4323 = vmatpush1.msra.mxu0 0.0
    %4324 = vmatprep.subr.mxu0 0.0
    %4325 = vmatpush1.msra.mxu0 0.0
    %4326 = vmatprep.subr.mxu0 0.0
    %4327 = vmatpush1.msra.mxu0 0.0
    %4328 = vmatprep.subr.mxu0 0.0
    %4329 = vmatpush1.msra.mxu0 0.0
    %4330 = vmatprep.subr.mxu0 0.0
    %4331 = vmatpush1.msra.mxu0 0.0
    %4332 = vmatprep.subr.mxu0 0.0
    %4333 = vmatpush1.msra.mxu0 0.0
    %4334 = vmatprep.subr.mxu0 0.0
    %4335 = vmatpush1.msra.mxu0 %v3130
    %4336 = vmatprep.subr.mxu0 0.0
    %4337 = vmatpush1.msra.mxu0 %v3129
    %4338 = vmatprep.subr.mxu0 0.0
    %4339 = vmatpush2.msra.mxu0 0.0
    %4340 = vmatprep.subr.mxu0 0.0
    %4341 = vmatpush2.msra.mxu0 0.0
    %4342 = vmatprep.subr.mxu0 0.0
    %4343 = vmatpush2.msra.mxu0 0.0
    %4344 = vmatprep.subr.mxu0 0.0
    %4345 = vmatpush2.msra.mxu0 0.0
    %4346 = vmatprep.subr.mxu0 0.0
    %4347 = vmatpush2.msra.mxu0 0.0
    %4348 = vmatprep.subr.mxu0 0.0
    %4349 = vmatpush2.msra.mxu0 0.0
    %4350 = vmatprep.subr.mxu0 0.0
    %4351 = vmatpush2.msra.mxu0 0.0
    %4352 = vmatprep.subr.mxu0 0.0
    %4353 = vmatpush2.msra.mxu0 0.0
    %4354 = vmatprep.subr.mxu0 0.0
    %4355 = vmatpush2.msra.mxu0 0.0
    %4356 = vmatprep.subr.mxu0 0.0
    %4357 = vmatpush2.msra.mxu0 0.0
    %4358 = vmatprep.subr.mxu0 0.0
    %4359 = vmatpush2.msra.mxu0 0.0
    %4360 = vmatprep.subr.mxu0 0.0
    %4361 = vmatpush2.msra.mxu0 0.0
    %4362 = vmatprep.subr.mxu0 0.0
    %4363 = vmatpush2.msra.mxu0 0.0
    %4364 = vmatprep.subr.mxu0 0.0
    %4365 = vmatpush2.msra.mxu0 0.0
    %4366 = vmatprep.subr.mxu0 0.0
    %4367 = vmatpush2.msra.mxu0 0.0
    %4368 = vmatprep.subr.mxu0 0.0
    %4369 = vmatpush2.msra.mxu0 0.0
    %4370 = vmatprep.mubr.f32.mxu0 0.0
    %4371 = vmatmul.mubr.f32.gmra.mxu0 %v4304
    %v4372 = vpop.f32.mrf.mxu0
    %v4373 = vadd.f32 0.0, %v4372
    %v4374 = vpop.f32.mrf.mxu0
    %4375 = vdwg.mxu0
    %v4376 = vadd.f32 %v3625, %v4373
    %v4377 = vxor.u32 %v4376, 2147483648
    %v4378 = vmul.f32 %v4377, 1.442695
    %v4379 = vpow.pop %v4378
    %v4380 = vadd.f32 %v4379, 1.0
    %v4381 = vrcp.pop %v4380
    %v4382 = vmul.f32 1.0, %v4381
    %v4383 = vtanh.pop %v4376
    %v4384 = vmul.f32 %v4382, %v4294
    %4386 = vrot.lane.b32.xlu0 %v4383, 96
    %v4387 = vpop.permute.xlu0 %4386
    %v4389 = vmul.f32 %v4382, %v4387
    %4391 = vrot.lane.b32.xlu0 %v4389, 16
    %v4392 = vpop.permute.xlu0 %4391
    %v4394 = vadd.f32 %v4384, %v4392
    %v4395 = vtanh.pop %v4394
    %4397 = vrot.lane.b32.xlu0 %v4395, 32
    %v4398 = vpop.permute.xlu0 %4397
    %v4400 = vmul.f32 %v4382, %v4398
    %4402 = vrot.lane.b32.xlu0 %v4400, 80
    %v4403 = vpop.permute.xlu0 %4402
    %v4404 = vsel %vm3703, %v4403, 0
    %4406 = vmatprep.subr.mxu0 0.0
    %4407 = vmatpush1.msra.mxu0 0.0
    %4408 = vmatprep.subr.mxu0 0.0
    %4409 = vmatpush1.msra.mxu0 0.0
    %4410 = vmatprep.subr.mxu0 0.0
    %4411 = vmatpush1.msra.mxu0 0.0
    %4412 = vmatprep.subr.mxu0 0.0
    %4413 = vmatpush1.msra.mxu0 0.0
    %4414 = vmatprep.subr.mxu0 0.0
    %4415 = vmatpush1.msra.mxu0 0.0
    %4416 = vmatprep.subr.mxu0 0.0
    %4417 = vmatpush1.msra.mxu0 0.0
    %4418 = vmatprep.subr.mxu0 0.0
    %4419 = vmatpush1.msra.mxu0 0.0
    %4420 = vmatprep.subr.mxu0 0.0
    %4421 = vmatpush1.msra.mxu0 0.0
    %4422 = vmatprep.subr.mxu0 0.0
    %4423 = vmatpush1.msra.mxu0 0.0
    %4424 = vmatprep.subr.mxu0 0.0
    %4425 = vmatpush1.msra.mxu0 0.0
    %4426 = vmatprep.subr.mxu0 0.0
    %4427 = vmatpush1.msra.mxu0 0.0
    %4428 = vmatprep.subr.mxu0 0.0
    %4429 = vmatpush1.msra.mxu0 0.0
    %4430 = vmatprep.subr.mxu0 0.0
    %4431 = vmatpush1.msra.mxu0 0.0
    %4432 = vmatprep.subr.mxu0 0.0
    %4433 = vmatpush1.msra.mxu0 0.0
    %4434 = vmatprep.subr.mxu0 0.0
    %4435 = vmatpush1.msra.mxu0 %v3130
    %4436 = vmatprep.subr.mxu0 0.0
    %4437 = vmatpush1.msra.mxu0 %v3129
    %4438 = vmatprep.subr.mxu0 0.0
    %4439 = vmatpush2.msra.mxu0 0.0
    %4440 = vmatprep.subr.mxu0 0.0
    %4441 = vmatpush2.msra.mxu0 0.0
    %4442 = vmatprep.subr.mxu0 0.0
    %4443 = vmatpush2.msra.mxu0 0.0
    %4444 = vmatprep.subr.mxu0 0.0
    %4445 = vmatpush2.msra.mxu0 0.0
    %4446 = vmatprep.subr.mxu0 0.0
    %4447 = vmatpush2.msra.mxu0 0.0
    %4448 = vmatprep.subr.mxu0 0.0
    %4449 = vmatpush2.msra.mxu0 0.0
    %4450 = vmatprep.subr.mxu0 0.0
    %4451 = vmatpush2.msra.mxu0 0.0
    %4452 = vmatprep.subr.mxu0 0.0
    %4453 = vmatpush2.msra.mxu0 0.0
    %4454 = vmatprep.subr.mxu0 0.0
    %4455 = vmatpush2.msra.mxu0 0.0
    %4456 = vmatprep.subr.mxu0 0.0
    %4457 = vmatpush2.msra.mxu0 0.0
    %4458 = vmatprep.subr.mxu0 0.0
    %4459 = vmatpush2.msra.mxu0 0.0
    %4460 = vmatprep.subr.mxu0 0.0
    %4461 = vmatpush2.msra.mxu0 0.0
    %4462 = vmatprep.subr.mxu0 0.0
    %4463 = vmatpush2.msra.mxu0 0.0
    %4464 = vmatprep.subr.mxu0 0.0
    %4465 = vmatpush2.msra.mxu0 0.0
    %4466 = vmatprep.subr.mxu0 0.0
    %4467 = vmatpush2.msra.mxu0 0.0
    %4468 = vmatprep.subr.mxu0 0.0
    %4469 = vmatpush2.msra.mxu0 0.0
    %4470 = vmatprep.mubr.f32.mxu0 0.0
    %4471 = vmatmul.mubr.f32.gmra.mxu0 %v4404
    %v4472 = vpop.f32.mrf.mxu0
    %v4473 = vadd.f32 0.0, %v4472
    %v4474 = vpop.f32.mrf.mxu0
    %4475 = vdwg.mxu0
    %v4476 = vadd.f32 %v3700, %v4473
    %v4477 = vxor.u32 %v4476, 2147483648
    %v4478 = vmul.f32 %v4477, 1.442695
    %v4479 = vpow.pop %v4478
    %v4480 = vadd.f32 %v4479, 1.0
    %v4481 = vrcp.pop %v4480
    %v4482 = vmul.f32 1.0, %v4481
    %v4483 = vtanh.pop %v4476
    %v4484 = vmul.f32 %v4482, %v4394
    %4486 = vrot.lane.b32.xlu0 %v4483, 96
    %v4487 = vpop.permute.xlu0 %4486
    %v4489 = vmul.f32 %v4482, %v4487
    %4491 = vrot.lane.b32.xlu0 %v4489, 16
    %v4492 = vpop.permute.xlu0 %4491
    %v4494 = vadd.f32 %v4484, %v4492
    %v4495 = vtanh.pop %v4494
    %4497 = vrot.lane.b32.xlu0 %v4495, 32
    %v4498 = vpop.permute.xlu0 %4497
    %v4500 = vmul.f32 %v4482, %v4498
    %v4501 = vld [vmem:[#allocation4] sm:$0xff]
    %v4502 = vld [vmem:[%s12] sm:$0xff]
    %v4503 = vld [vmem:[%s12 + $0x8] sm:$0x1]
    %v4504 = vld [vmem:[%s13] sm:$0x1]
    %v4506 = vlaneseq
    %v4507 = vshrl.u32 %v4506, 7
    %v4508 = vsub.s32 0, %v4507
    %v4509 = vrot.slane %v4504, %v4508
    %vm4511 = vcmask 72704
    %v4513 = vsel %vm4511, %v4501, 0
    %vm4515 = vcmask 1040384
    %v4517 = vsel %vm4515, %v4503, 0
    %4519 = vmatprep.subr.mxu0 0.0
    %4520 = vmatpush1.msra.mxu0 0.0
    %4521 = vmatprep.subr.mxu0 0.0
    %4522 = vmatpush1.msra.mxu0 0.0
    %4523 = vmatprep.subr.mxu0 0.0
    %4524 = vmatpush1.msra.mxu0 0.0
    %4525 = vmatprep.subr.mxu0 0.0
    %4526 = vmatpush1.msra.mxu0 0.0
    %4527 = vmatprep.subr.mxu0 0.0
    %4528 = vmatpush1.msra.mxu0 0.0
    %4529 = vmatprep.subr.mxu0 0.0
    %4530 = vmatpush1.msra.mxu0 0.0
    %4531 = vmatprep.subr.mxu0 0.0
    %4532 = vmatpush1.msra.mxu0 0.0
    %4533 = vmatprep.subr.mxu0 0.0
    %4534 = vmatpush1.msra.mxu0 0.0
    %4535 = vmatprep.subr.mxu0 0.0
    %4536 = vmatpush1.msra.mxu0 0.0
    %4537 = vmatprep.subr.mxu0 0.0
    %4538 = vmatpush1.msra.mxu0 0.0
    %4539 = vmatprep.subr.mxu0 0.0
    %4540 = vmatpush1.msra.mxu0 0.0
    %4541 = vmatprep.subr.mxu0 0.0
    %4542 = vmatpush1.msra.mxu0 0.0
    %4543 = vmatprep.subr.mxu0 0.0
    %4544 = vmatpush1.msra.mxu0 0.0
    %4545 = vmatprep.subr.mxu0 0.0
    %4546 = vmatpush1.msra.mxu0 0.0
    %4547 = vmatprep.subr.mxu0 0.0
    %4548 = vmatpush1.msra.mxu0 %v4517
    %4549 = vmatprep.subr.mxu0 0.0
    %4550 = vmatpush1.msra.mxu0 %v4502
    %4551 = vmatprep.subr.mxu0 0.0
    %4552 = vmatpush2.msra.mxu0 0.0
    %4553 = vmatprep.subr.mxu0 0.0
    %4554 = vmatpush2.msra.mxu0 0.0
    %4555 = vmatprep.subr.mxu0 0.0
    %4556 = vmatpush2.msra.mxu0 0.0
    %4557 = vmatprep.subr.mxu0 0.0
    %4558 = vmatpush2.msra.mxu0 0.0
    %4559 = vmatprep.subr.mxu0 0.0
    %4560 = vmatpush2.msra.mxu0 0.0
    %4561 = vmatprep.subr.mxu0 0.0
    %4562 = vmatpush2.msra.mxu0 0.0
    %4563 = vmatprep.subr.mxu0 0.0
    %4564 = vmatpush2.msra.mxu0 0.0
    %4565 = vmatprep.subr.mxu0 0.0
    %4566 = vmatpush2.msra.mxu0 0.0
    %4567 = vmatprep.subr.mxu0 0.0
    %4568 = vmatpush2.msra.mxu0 0.0
    %4569 = vmatprep.subr.mxu0 0.0
    %4570 = vmatpush2.msra.mxu0 0.0
    %4571 = vmatprep.subr.mxu0 0.0
    %4572 = vmatpush2.msra.mxu0 0.0
    %4573 = vmatprep.subr.mxu0 0.0
    %4574 = vmatpush2.msra.mxu0 0.0
    %4575 = vmatprep.subr.mxu0 0.0
    %4576 = vmatpush2.msra.mxu0 0.0
    %4577 = vmatprep.subr.mxu0 0.0
    %4578 = vmatpush2.msra.mxu0 0.0
    %4579 = vmatprep.subr.mxu0 0.0
    %4580 = vmatpush2.msra.mxu0 0.0
    %4581 = vmatprep.subr.mxu0 0.0
    %4582 = vmatpush2.msra.mxu0 0.0
    %4583 = vmatprep.mubr.f32.mxu0 0.0
    %4584 = vmatmul.mubr.f32.gmra.mxu0 %v4513
    %v4585 = vpop.f32.mrf.mxu0
    %v4586 = vadd.f32 %v4509, %v4585
    %v4587 = vpop.f32.mrf.mxu0
    %4588 = vdwg.mxu0
    %v4589 = vld [vmem:[%s11] sm:$0xff]
    %v4590 = vld [vmem:[%s11 + $0x8] sm:$0xff]
    %4591 = vmatprep.subr.mxu0 0.0
    %4592 = vmatpush1.msra.mxu0 0.0
    %4593 = vmatprep.subr.mxu0 0.0
    %4594 = vmatpush1.msra.mxu0 0.0
    %4595 = vmatprep.subr.mxu0 0.0
    %4596 = vmatpush1.msra.mxu0 0.0
    %4597 = vmatprep.subr.mxu0 0.0
    %4598 = vmatpush1.msra.mxu0 0.0
    %4599 = vmatprep.subr.mxu0 0.0
    %4600 = vmatpush1.msra.mxu0 0.0
    %4601 = vmatprep.subr.mxu0 0.0
    %4602 = vmatpush1.msra.mxu0 0.0
    %4603 = vmatprep.subr.mxu0 0.0
    %4604 = vmatpush1.msra.mxu0 0.0
    %4605 = vmatprep.subr.mxu0 0.0
    %4606 = vmatpush1.msra.mxu0 0.0
    %4607 = vmatprep.subr.mxu0 0.0
    %4608 = vmatpush1.msra.mxu0 0.0
    %4609 = vmatprep.subr.mxu0 0.0
    %4610 = vmatpush1.msra.mxu0 0.0
    %4611 = vmatprep.subr.mxu0 0.0
    %4612 = vmatpush1.msra.mxu0 0.0
    %4613 = vmatprep.subr.mxu0 0.0
    %4614 = vmatpush1.msra.mxu0 0.0
    %4615 = vmatprep.subr.mxu0 0.0
    %4616 = vmatpush1.msra.mxu0 0.0
    %4617 = vmatprep.subr.mxu0 0.0
    %4618 = vmatpush1.msra.mxu0 0.0
    %4619 = vmatprep.subr.mxu0 0.0
    %4620 = vmatpush1.msra.mxu0 %v4590
    %4621 = vmatprep.subr.mxu0 0.0
    %4622 = vmatpush1.msra.mxu0 %v4589
    %4623 = vmatprep.subr.mxu0 0.0
    %4624 = vmatpush2.msra.mxu0 0.0
    %4625 = vmatprep.subr.mxu0 0.0
    %4626 = vmatpush2.msra.mxu0 0.0
    %4627 = vmatprep.subr.mxu0 0.0
    %4628 = vmatpush2.msra.mxu0 0.0
    %4629 = vmatprep.subr.mxu0 0.0
    %4630 = vmatpush2.msra.mxu0 0.0
    %4631 = vmatprep.subr.mxu0 0.0
    %4632 = vmatpush2.msra.mxu0 0.0
    %4633 = vmatprep.subr.mxu0 0.0
    %4634 = vmatpush2.msra.mxu0 0.0
    %4635 = vmatprep.subr.mxu0 0.0
    %4636 = vmatpush2.msra.mxu0 0.0
    %4637 = vmatprep.subr.mxu0 0.0
    %4638 = vmatpush2.msra.mxu0 0.0
    %4639 = vmatprep.subr.mxu0 0.0
    %4640 = vmatpush2.msra.mxu0 0.0
    %4641 = vmatprep.subr.mxu0 0.0
    %4642 = vmatpush2.msra.mxu0 0.0
    %4643 = vmatprep.subr.mxu0 0.0
    %4644 = vmatpush2.msra.mxu0 0.0
    %4645 = vmatprep.subr.mxu0 0.0
    %4646 = vmatpush2.msra.mxu0 0.0
    %4647 = vmatprep.subr.mxu0 0.0
    %4648 = vmatpush2.msra.mxu0 0.0
    %4649 = vmatprep.subr.mxu0 0.0
    %4650 = vmatpush2.msra.mxu0 0.0
    %4651 = vmatprep.subr.mxu0 0.0
    %4652 = vmatpush2.msra.mxu0 0.0
    %4653 = vmatprep.subr.mxu0 0.0
    %4654 = vmatpush2.msra.mxu0 0.0
    %4655 = vmatprep.mubr.f32.mxu0 0.0
    %4656 = vmatmul.mubr.f32.gmra.mxu0 %v3804
    %v4657 = vpop.f32.mrf.mxu0
    %v4658 = vadd.f32 0.0, %v4657
    %v4659 = vpop.f32.mrf.mxu0
    %4660 = vdwg.mxu0
    %v4661 = vadd.f32 %v4586, %v4658
    %v4662 = vld [vmem:[%s11 + $0x10] sm:$0xff]
    %v4663 = vld [vmem:[%s11 + $0x18] sm:$0xff]
    %4664 = vmatprep.subr.mxu0 0.0
    %4665 = vmatpush1.msra.mxu0 0.0
    %4666 = vmatprep.subr.mxu0 0.0
    %4667 = vmatpush1.msra.mxu0 0.0
    %4668 = vmatprep.subr.mxu0 0.0
    %4669 = vmatpush1.msra.mxu0 0.0
    %4670 = vmatprep.subr.mxu0 0.0
    %4671 = vmatpush1.msra.mxu0 0.0
    %4672 = vmatprep.subr.mxu0 0.0
    %4673 = vmatpush1.msra.mxu0 0.0
    %4674 = vmatprep.subr.mxu0 0.0
    %4675 = vmatpush1.msra.mxu0 0.0
    %4676 = vmatprep.subr.mxu0 0.0
    %4677 = vmatpush1.msra.mxu0 0.0
    %4678 = vmatprep.subr.mxu0 0.0
    %4679 = vmatpush1.msra.mxu0 0.0
    %4680 = vmatprep.subr.mxu0 0.0
    %4681 = vmatpush1.msra.mxu0 0.0
    %4682 = vmatprep.subr.mxu0 0.0
    %4683 = vmatpush1.msra.mxu0 0.0
    %4684 = vmatprep.subr.mxu0 0.0
    %4685 = vmatpush1.msra.mxu0 0.0
    %4686 = vmatprep.subr.mxu0 0.0
    %4687 = vmatpush1.msra.mxu0 0.0
    %4688 = vmatprep.subr.mxu0 0.0
    %4689 = vmatpush1.msra.mxu0 0.0
    %4690 = vmatprep.subr.mxu0 0.0
    %4691 = vmatpush1.msra.mxu0 0.0
    %4692 = vmatprep.subr.mxu0 0.0
    %4693 = vmatpush1.msra.mxu0 %v4663
    %4694 = vmatprep.subr.mxu0 0.0
    %4695 = vmatpush1.msra.mxu0 %v4662
    %4696 = vmatprep.subr.mxu0 0.0
    %4697 = vmatpush2.msra.mxu0 0.0
    %4698 = vmatprep.subr.mxu0 0.0
    %4699 = vmatpush2.msra.mxu0 0.0
    %4700 = vmatprep.subr.mxu0 0.0
    %4701 = vmatpush2.msra.mxu0 0.0
    %4702 = vmatprep.subr.mxu0 0.0
    %4703 = vmatpush2.msra.mxu0 0.0
    %4704 = vmatprep.subr.mxu0 0.0
    %4705 = vmatpush2.msra.mxu0 0.0
    %4706 = vmatprep.subr.mxu0 0.0
    %4707 = vmatpush2.msra.mxu0 0.0
    %4708 = vmatprep.subr.mxu0 0.0
    %4709 = vmatpush2.msra.mxu0 0.0
    %4710 = vmatprep.subr.mxu0 0.0
    %4711 = vmatpush2.msra.mxu0 0.0
    %4712 = vmatprep.subr.mxu0 0.0
    %4713 = vmatpush2.msra.mxu0 0.0
    %4714 = vmatprep.subr.mxu0 0.0
    %4715 = vmatpush2.msra.mxu0 0.0
    %4716 = vmatprep.subr.mxu0 0.0
    %4717 = vmatpush2.msra.mxu0 0.0
    %4718 = vmatprep.subr.mxu0 0.0
    %4719 = vmatpush2.msra.mxu0 0.0
    %4720 = vmatprep.subr.mxu0 0.0
    %4721 = vmatpush2.msra.mxu0 0.0
    %4722 = vmatprep.subr.mxu0 0.0
    %4723 = vmatpush2.msra.mxu0 0.0
    %4724 = vmatprep.subr.mxu0 0.0
    %4725 = vmatpush2.msra.mxu0 0.0
    %4726 = vmatprep.subr.mxu0 0.0
    %4727 = vmatpush2.msra.mxu0 0.0
    %4728 = vmatprep.mubr.f32.mxu0 0.0
    %4729 = vmatmul.mubr.f32.gmra.mxu0 %v3904
    %v4730 = vpop.f32.mrf.mxu0
    %v4731 = vadd.f32 0.0, %v4730
    %v4732 = vpop.f32.mrf.mxu0
    %4733 = vdwg.mxu0
    %v4734 = vadd.f32 %v4661, %v4731
    %v4735 = vld [vmem:[%s11 + $0x20] sm:$0xff]
    %v4736 = vld [vmem:[%s11 + $0x28] sm:$0xff]
    %4737 = vmatprep.subr.mxu0 0.0
    %4738 = vmatpush1.msra.mxu0 0.0
    %4739 = vmatprep.subr.mxu0 0.0
    %4740 = vmatpush1.msra.mxu0 0.0
    %4741 = vmatprep.subr.mxu0 0.0
    %4742 = vmatpush1.msra.mxu0 0.0
    %4743 = vmatprep.subr.mxu0 0.0
    %4744 = vmatpush1.msra.mxu0 0.0
    %4745 = vmatprep.subr.mxu0 0.0
    %4746 = vmatpush1.msra.mxu0 0.0
    %4747 = vmatprep.subr.mxu0 0.0
    %4748 = vmatpush1.msra.mxu0 0.0
    %4749 = vmatprep.subr.mxu0 0.0
    %4750 = vmatpush1.msra.mxu0 0.0
    %4751 = vmatprep.subr.mxu0 0.0
    %4752 = vmatpush1.msra.mxu0 0.0
    %4753 = vmatprep.subr.mxu0 0.0
    %4754 = vmatpush1.msra.mxu0 0.0
    %4755 = vmatprep.subr.mxu0 0.0
    %4756 = vmatpush1.msra.mxu0 0.0
    %4757 = vmatprep.subr.mxu0 0.0
    %4758 = vmatpush1.msra.mxu0 0.0
    %4759 = vmatprep.subr.mxu0 0.0
    %4760 = vmatpush1.msra.mxu0 0.0
    %4761 = vmatprep.subr.mxu0 0.0
    %4762 = vmatpush1.msra.mxu0 0.0
    %4763 = vmatprep.subr.mxu0 0.0
    %4764 = vmatpush1.msra.mxu0 0.0
    %4765 = vmatprep.subr.mxu0 0.0
    %4766 = vmatpush1.msra.mxu0 %v4736
    %4767 = vmatprep.subr.mxu0 0.0
    %4768 = vmatpush1.msra.mxu0 %v4735
    %4769 = vmatprep.subr.mxu0 0.0
    %4770 = vmatpush2.msra.mxu0 0.0
    %4771 = vmatprep.subr.mxu0 0.0
    %4772 = vmatpush2.msra.mxu0 0.0
    %4773 = vmatprep.subr.mxu0 0.0
    %4774 = vmatpush2.msra.mxu0 0.0
    %4775 = vmatprep.subr.mxu0 0.0
    %4776 = vmatpush2.msra.mxu0 0.0
    %4777 = vmatprep.subr.mxu0 0.0
    %4778 = vmatpush2.msra.mxu0 0.0
    %4779 = vmatprep.subr.mxu0 0.0
    %4780 = vmatpush2.msra.mxu0 0.0
    %4781 = vmatprep.subr.mxu0 0.0
    %4782 = vmatpush2.msra.mxu0 0.0
    %4783 = vmatprep.subr.mxu0 0.0
    %4784 = vmatpush2.msra.mxu0 0.0
    %4785 = vmatprep.subr.mxu0 0.0
    %4786 = vmatpush2.msra.mxu0 0.0
    %4787 = vmatprep.subr.mxu0 0.0
    %4788 = vmatpush2.msra.mxu0 0.0
    %4789 = vmatprep.subr.mxu0 0.0
    %4790 = vmatpush2.msra.mxu0 0.0
    %4791 = vmatprep.subr.mxu0 0.0
    %4792 = vmatpush2.msra.mxu0 0.0
    %4793 = vmatprep.subr.mxu0 0.0
    %4794 = vmatpush2.msra.mxu0 0.0
    %4795 = vmatprep.subr.mxu0 0.0
    %4796 = vmatpush2.msra.mxu0 0.0
    %4797 = vmatprep.subr.mxu0 0.0
    %4798 = vmatpush2.msra.mxu0 0.0
    %4799 = vmatprep.subr.mxu0 0.0
    %4800 = vmatpush2.msra.mxu0 0.0
    %4801 = vmatprep.mubr.f32.mxu0 0.0
    %4802 = vmatmul.mubr.f32.gmra.mxu0 %v4004
    %v4803 = vpop.f32.mrf.mxu0
    %v4804 = vadd.f32 0.0, %v4803
    %v4805 = vpop.f32.mrf.mxu0
    %4806 = vdwg.mxu0
    %v4807 = vadd.f32 %v4734, %v4804
    %v4808 = vld [vmem:[%s11 + $0x30] sm:$0xff]
    %v4809 = vld [vmem:[%s11 + $0x38] sm:$0xff]
    %4810 = vmatprep.subr.mxu0 0.0
    %4811 = vmatpush1.msra.mxu0 0.0
    %4812 = vmatprep.subr.mxu0 0.0
    %4813 = vmatpush1.msra.mxu0 0.0
    %4814 = vmatprep.subr.mxu0 0.0
    %4815 = vmatpush1.msra.mxu0 0.0
    %4816 = vmatprep.subr.mxu0 0.0
    %4817 = vmatpush1.msra.mxu0 0.0
    %4818 = vmatprep.subr.mxu0 0.0
    %4819 = vmatpush1.msra.mxu0 0.0
    %4820 = vmatprep.subr.mxu0 0.0
    %4821 = vmatpush1.msra.mxu0 0.0
    %4822 = vmatprep.subr.mxu0 0.0
    %4823 = vmatpush1.msra.mxu0 0.0
    %4824 = vmatprep.subr.mxu0 0.0
    %4825 = vmatpush1.msra.mxu0 0.0
    %4826 = vmatprep.subr.mxu0 0.0
    %4827 = vmatpush1.msra.mxu0 0.0
    %4828 = vmatprep.subr.mxu0 0.0
    %4829 = vmatpush1.msra.mxu0 0.0
    %4830 = vmatprep.subr.mxu0 0.0
    %4831 = vmatpush1.msra.mxu0 0.0
    %4832 = vmatprep.subr.mxu0 0.0
    %4833 = vmatpush1.msra.mxu0 0.0
    %4834 = vmatprep.subr.mxu0 0.0
    %4835 = vmatpush1.msra.mxu0 0.0
    %4836 = vmatprep.subr.mxu0 0.0
    %4837 = vmatpush1.msra.mxu0 0.0
    %4838 = vmatprep.subr.mxu0 0.0
    %4839 = vmatpush1.msra.mxu0 %v4809
    %4840 = vmatprep.subr.mxu0 0.0
    %4841 = vmatpush1.msra.mxu0 %v4808
    %4842 = vmatprep.subr.mxu0 0.0
    %4843 = vmatpush2.msra.mxu0 0.0
    %4844 = vmatprep.subr.mxu0 0.0
    %4845 = vmatpush2.msra.mxu0 0.0
    %4846 = vmatprep.subr.mxu0 0.0
    %4847 = vmatpush2.msra.mxu0 0.0
    %4848 = vmatprep.subr.mxu0 0.0
    %4849 = vmatpush2.msra.mxu0 0.0
    %4850 = vmatprep.subr.mxu0 0.0
    %4851 = vmatpush2.msra.mxu0 0.0
    %4852 = vmatprep.subr.mxu0 0.0
    %4853 = vmatpush2.msra.mxu0 0.0
    %4854 = vmatprep.subr.mxu0 0.0
    %4855 = vmatpush2.msra.mxu0 0.0
    %4856 = vmatprep.subr.mxu0 0.0
    %4857 = vmatpush2.msra.mxu0 0.0
    %4858 = vmatprep.subr.mxu0 0.0
    %4859 = vmatpush2.msra.mxu0 0.0
    %4860 = vmatprep.subr.mxu0 0.0
    %4861 = vmatpush2.msra.mxu0 0.0
    %4862 = vmatprep.subr.mxu0 0.0
    %4863 = vmatpush2.msra.mxu0 0.0
    %4864 = vmatprep.subr.mxu0 0.0
    %4865 = vmatpush2.msra.mxu0 0.0
    %4866 = vmatprep.subr.mxu0 0.0
    %4867 = vmatpush2.msra.mxu0 0.0
    %4868 = vmatprep.subr.mxu0 0.0
    %4869 = vmatpush2.msra.mxu0 0.0
    %4870 = vmatprep.subr.mxu0 0.0
    %4871 = vmatpush2.msra.mxu0 0.0
    %4872 = vmatprep.subr.mxu0 0.0
    %4873 = vmatpush2.msra.mxu0 0.0
    %4874 = vmatprep.mubr.f32.mxu0 0.0
    %4875 = vmatmul.mubr.f32.gmra.mxu0 %v4104
    %v4876 = vpop.f32.mrf.mxu0
    %v4877 = vadd.f32 0.0, %v4876
    %v4878 = vpop.f32.mrf.mxu0
    %4879 = vdwg.mxu0
    %v4880 = vadd.f32 %v4807, %v4877
    %v4881 = vld [vmem:[%s11 + $0x40] sm:$0xff]
    %v4882 = vld [vmem:[%s11 + $0x48] sm:$0xff]
    %4883 = vmatprep.subr.mxu0 0.0
    %4884 = vmatpush1.msra.mxu0 0.0
    %4885 = vmatprep.subr.mxu0 0.0
    %4886 = vmatpush1.msra.mxu0 0.0
    %4887 = vmatprep.subr.mxu0 0.0
    %4888 = vmatpush1.msra.mxu0 0.0
    %4889 = vmatprep.subr.mxu0 0.0
    %4890 = vmatpush1.msra.mxu0 0.0
    %4891 = vmatprep.subr.mxu0 0.0
    %4892 = vmatpush1.msra.mxu0 0.0
    %4893 = vmatprep.subr.mxu0 0.0
    %4894 = vmatpush1.msra.mxu0 0.0
    %4895 = vmatprep.subr.mxu0 0.0
    %4896 = vmatpush1.msra.mxu0 0.0
    %4897 = vmatprep.subr.mxu0 0.0
    %4898 = vmatpush1.msra.mxu0 0.0
    %4899 = vmatprep.subr.mxu0 0.0
    %4900 = vmatpush1.msra.mxu0 0.0
    %4901 = vmatprep.subr.mxu0 0.0
    %4902 = vmatpush1.msra.mxu0 0.0
    %4903 = vmatprep.subr.mxu0 0.0
    %4904 = vmatpush1.msra.mxu0 0.0
    %4905 = vmatprep.subr.mxu0 0.0
    %4906 = vmatpush1.msra.mxu0 0.0
    %4907 = vmatprep.subr.mxu0 0.0
    %4908 = vmatpush1.msra.mxu0 0.0
    %4909 = vmatprep.subr.mxu0 0.0
    %4910 = vmatpush1.msra.mxu0 0.0
    %4911 = vmatprep.subr.mxu0 0.0
    %4912 = vmatpush1.msra.mxu0 %v4882
    %4913 = vmatprep.subr.mxu0 0.0
    %4914 = vmatpush1.msra.mxu0 %v4881
    %4915 = vmatprep.subr.mxu0 0.0
    %4916 = vmatpush2.msra.mxu0 0.0
    %4917 = vmatprep.subr.mxu0 0.0
    %4918 = vmatpush2.msra.mxu0 0.0
    %4919 = vmatprep.subr.mxu0 0.0
    %4920 = vmatpush2.msra.mxu0 0.0
    %4921 = vmatprep.subr.mxu0 0.0
    %4922 = vmatpush2.msra.mxu0 0.0
    %4923 = vmatprep.subr.mxu0 0.0
    %4924 = vmatpush2.msra.mxu0 0.0
    %4925 = vmatprep.subr.mxu0 0.0
    %4926 = vmatpush2.msra.mxu0 0.0
    %4927 = vmatprep.subr.mxu0 0.0
    %4928 = vmatpush2.msra.mxu0 0.0
    %4929 = vmatprep.subr.mxu0 0.0
    %4930 = vmatpush2.msra.mxu0 0.0
    %4931 = vmatprep.subr.mxu0 0.0
    %4932 = vmatpush2.msra.mxu0 0.0
    %4933 = vmatprep.subr.mxu0 0.0
    %4934 = vmatpush2.msra.mxu0 0.0
    %4935 = vmatprep.subr.mxu0 0.0
    %4936 = vmatpush2.msra.mxu0 0.0
    %4937 = vmatprep.subr.mxu0 0.0
    %4938 = vmatpush2.msra.mxu0 0.0
    %4939 = vmatprep.subr.mxu0 0.0
    %4940 = vmatpush2.msra.mxu0 0.0
    %4941 = vmatprep.subr.mxu0 0.0
    %4942 = vmatpush2.msra.mxu0 0.0
    %4943 = vmatprep.subr.mxu0 0.0
    %4944 = vmatpush2.msra.mxu0 0.0
    %4945 = vmatprep.subr.mxu0 0.0
    %4946 = vmatpush2.msra.mxu0 0.0
    %4947 = vmatprep.mubr.f32.mxu0 0.0
    %4948 = vmatmul.mubr.f32.gmra.mxu0 %v4204
    %v4949 = vpop.f32.mrf.mxu0
    %v4950 = vadd.f32 0.0, %v4949
    %v4951 = vpop.f32.mrf.mxu0
    %4952 = vdwg.mxu0
    %v4953 = vadd.f32 %v4880, %v4950
    %v4954 = vld [vmem:[%s11 + $0x50] sm:$0xff]
    %v4955 = vld [vmem:[%s11 + $0x58] sm:$0xff]
    %4956 = vmatprep.subr.mxu0 0.0
    %4957 = vmatpush1.msra.mxu0 0.0
    %4958 = vmatprep.subr.mxu0 0.0
    %4959 = vmatpush1.msra.mxu0 0.0
    %4960 = vmatprep.subr.mxu0 0.0
    %4961 = vmatpush1.msra.mxu0 0.0
    %4962 = vmatprep.subr.mxu0 0.0
    %4963 = vmatpush1.msra.mxu0 0.0
    %4964 = vmatprep.subr.mxu0 0.0
    %4965 = vmatpush1.msra.mxu0 0.0
    %4966 = vmatprep.subr.mxu0 0.0
    %4967 = vmatpush1.msra.mxu0 0.0
    %4968 = vmatprep.subr.mxu0 0.0
    %4969 = vmatpush1.msra.mxu0 0.0
    %4970 = vmatprep.subr.mxu0 0.0
    %4971 = vmatpush1.msra.mxu0 0.0
    %4972 = vmatprep.subr.mxu0 0.0
    %4973 = vmatpush1.msra.mxu0 0.0
    %4974 = vmatprep.subr.mxu0 0.0
    %4975 = vmatpush1.msra.mxu0 0.0
    %4976 = vmatprep.subr.mxu0 0.0
    %4977 = vmatpush1.msra.mxu0 0.0
    %4978 = vmatprep.subr.mxu0 0.0
    %4979 = vmatpush1.msra.mxu0 0.0
    %4980 = vmatprep.subr.mxu0 0.0
    %4981 = vmatpush1.msra.mxu0 0.0
    %4982 = vmatprep.subr.mxu0 0.0
    %4983 = vmatpush1.msra.mxu0 0.0
    %4984 = vmatprep.subr.mxu0 0.0
    %4985 = vmatpush1.msra.mxu0 %v4955
    %4986 = vmatprep.subr.mxu0 0.0
    %4987 = vmatpush1.msra.mxu0 %v4954
    %4988 = vmatprep.subr.mxu0 0.0
    %4989 = vmatpush2.msra.mxu0 0.0
    %4990 = vmatprep.subr.mxu0 0.0
    %4991 = vmatpush2.msra.mxu0 0.0
    %4992 = vmatprep.subr.mxu0 0.0
    %4993 = vmatpush2.msra.mxu0 0.0
    %4994 = vmatprep.subr.mxu0 0.0
    %4995 = vmatpush2.msra.mxu0 0.0
    %4996 = vmatprep.subr.mxu0 0.0
    %4997 = vmatpush2.msra.mxu0 0.0
    %4998 = vmatprep.subr.mxu0 0.0
    %4999 = vmatpush2.msra.mxu0 0.0
    %5000 = vmatprep.subr.mxu0 0.0
    %5001 = vmatpush2.msra.mxu0 0.0
    %5002 = vmatprep.subr.mxu0 0.0
    %5003 = vmatpush2.msra.mxu0 0.0
    %5004 = vmatprep.subr.mxu0 0.0
    %5005 = vmatpush2.msra.mxu0 0.0
    %5006 = vmatprep.subr.mxu0 0.0
    %5007 = vmatpush2.msra.mxu0 0.0
    %5008 = vmatprep.subr.mxu0 0.0
    %5009 = vmatpush2.msra.mxu0 0.0
    %5010 = vmatprep.subr.mxu0 0.0
    %5011 = vmatpush2.msra.mxu0 0.0
    %5012 = vmatprep.subr.mxu0 0.0
    %5013 = vmatpush2.msra.mxu0 0.0
    %5014 = vmatprep.subr.mxu0 0.0
    %5015 = vmatpush2.msra.mxu0 0.0
    %5016 = vmatprep.subr.mxu0 0.0
    %5017 = vmatpush2.msra.mxu0 0.0
    %5018 = vmatprep.subr.mxu0 0.0
    %5019 = vmatpush2.msra.mxu0 0.0
    %5020 = vmatprep.mubr.f32.mxu0 0.0
    %5021 = vmatmul.mubr.f32.gmra.mxu0 %v4304
    %v5022 = vpop.f32.mrf.mxu0
    %v5023 = vadd.f32 0.0, %v5022
    %v5024 = vpop.f32.mrf.mxu0
    %5025 = vdwg.mxu0
    %v5026 = vadd.f32 %v4953, %v5023
    %v5027 = vld [vmem:[%s11 + $0x60] sm:$0xff]
    %v5028 = vld [vmem:[%s11 + $0x68] sm:$0xff]
    %5029 = vmatprep.subr.mxu0 0.0
    %5030 = vmatpush1.msra.mxu0 0.0
    %5031 = vmatprep.subr.mxu0 0.0
    %5032 = vmatpush1.msra.mxu0 0.0
    %5033 = vmatprep.subr.mxu0 0.0
    %5034 = vmatpush1.msra.mxu0 0.0
    %5035 = vmatprep.subr.mxu0 0.0
    %5036 = vmatpush1.msra.mxu0 0.0
    %5037 = vmatprep.subr.mxu0 0.0
    %5038 = vmatpush1.msra.mxu0 0.0
    %5039 = vmatprep.subr.mxu0 0.0
    %5040 = vmatpush1.msra.mxu0 0.0
    %5041 = vmatprep.subr.mxu0 0.0
    %5042 = vmatpush1.msra.mxu0 0.0
    %5043 = vmatprep.subr.mxu0 0.0
    %5044 = vmatpush1.msra.mxu0 0.0
    %5045 = vmatprep.subr.mxu0 0.0
    %5046 = vmatpush1.msra.mxu0 0.0
    %5047 = vmatprep.subr.mxu0 0.0
    %5048 = vmatpush1.msra.mxu0 0.0
    %5049 = vmatprep.subr.mxu0 0.0
    %5050 = vmatpush1.msra.mxu0 0.0
    %5051 = vmatprep.subr.mxu0 0.0
    %5052 = vmatpush1.msra.mxu0 0.0
    %5053 = vmatprep.subr.mxu0 0.0
    %5054 = vmatpush1.msra.mxu0 0.0
    %5055 = vmatprep.subr.mxu0 0.0
    %5056 = vmatpush1.msra.mxu0 0.0
    %5057 = vmatprep.subr.mxu0 0.0
    %5058 = vmatpush1.msra.mxu0 %v5028
    %5059 = vmatprep.subr.mxu0 0.0
    %5060 = vmatpush1.msra.mxu0 %v5027
    %5061 = vmatprep.subr.mxu0 0.0
    %5062 = vmatpush2.msra.mxu0 0.0
    %5063 = vmatprep.subr.mxu0 0.0
    %5064 = vmatpush2.msra.mxu0 0.0
    %5065 = vmatprep.subr.mxu0 0.0
    %5066 = vmatpush2.msra.mxu0 0.0
    %5067 = vmatprep.subr.mxu0 0.0
    %5068 = vmatpush2.msra.mxu0 0.0
    %5069 = vmatprep.subr.mxu0 0.0
    %5070 = vmatpush2.msra.mxu0 0.0
    %5071 = vmatprep.subr.mxu0 0.0
    %5072 = vmatpush2.msra.mxu0 0.0
    %5073 = vmatprep.subr.mxu0 0.0
    %5074 = vmatpush2.msra.mxu0 0.0
    %5075 = vmatprep.subr.mxu0 0.0
    %5076 = vmatpush2.msra.mxu0 0.0
    %5077 = vmatprep.subr.mxu0 0.0
    %5078 = vmatpush2.msra.mxu0 0.0
    %5079 = vmatprep.subr.mxu0 0.0
    %5080 = vmatpush2.msra.mxu0 0.0
    %5081 = vmatprep.subr.mxu0 0.0
    %5082 = vmatpush2.msra.mxu0 0.0
    %5083 = vmatprep.subr.mxu0 0.0
    %5084 = vmatpush2.msra.mxu0 0.0
    %5085 = vmatprep.subr.mxu0 0.0
    %5086 = vmatpush2.msra.mxu0 0.0
    %5087 = vmatprep.subr.mxu0 0.0
    %5088 = vmatpush2.msra.mxu0 0.0
    %5089 = vmatprep.subr.mxu0 0.0
    %5090 = vmatpush2.msra.mxu0 0.0
    %5091 = vmatprep.subr.mxu0 0.0
    %5092 = vmatpush2.msra.mxu0 0.0
    %5093 = vmatprep.mubr.f32.mxu0 0.0
    %5094 = vmatmul.mubr.f32.gmra.mxu0 %v4404
    %v5095 = vpop.f32.mrf.mxu0
    %v5096 = vadd.f32 0.0, %v5095
    %v5097 = vpop.f32.mrf.mxu0
    %5098 = vdwg.mxu0
    %v5099 = vadd.f32 %v5026, %v5096
    %v5100 = vld [vmem:[%s11 + $0x70] sm:$0xff]
    %v5101 = vld [vmem:[%s11 + $0x78] sm:$0xff]
    %5103 = vrot.lane.b32.xlu0 %v4500, 80
    %v5104 = vpop.permute.xlu0 %5103
    %v5105 = vsel %vm3703, %v5104, 0
    %5107 = vmatprep.subr.mxu0 0.0
    %5108 = vmatpush1.msra.mxu0 0.0
    %5109 = vmatprep.subr.mxu0 0.0
    %5110 = vmatpush1.msra.mxu0 0.0
    %5111 = vmatprep.subr.mxu0 0.0
    %5112 = vmatpush1.msra.mxu0 0.0
    %5113 = vmatprep.subr.mxu0 0.0
    %5114 = vmatpush1.msra.mxu0 0.0
    %5115 = vmatprep.subr.mxu0 0.0
    %5116 = vmatpush1.msra.mxu0 0.0
    %5117 = vmatprep.subr.mxu0 0.0
    %5118 = vmatpush1.msra.mxu0 0.0
    %5119 = vmatprep.subr.mxu0 0.0
    %5120 = vmatpush1.msra.mxu0 0.0
    %5121 = vmatprep.subr.mxu0 0.0
    %5122 = vmatpush1.msra.mxu0 0.0
    %5123 = vmatprep.subr.mxu0 0.0
    %5124 = vmatpush1.msra.mxu0 0.0
    %5125 = vmatprep.subr.mxu0 0.0
    %5126 = vmatpush1.msra.mxu0 0.0
    %5127 = vmatprep.subr.mxu0 0.0
    %5128 = vmatpush1.msra.mxu0 0.0
    %5129 = vmatprep.subr.mxu0 0.0
    %5130 = vmatpush1.msra.mxu0 0.0
    %5131 = vmatprep.subr.mxu0 0.0
    %5132 = vmatpush1.msra.mxu0 0.0
    %5133 = vmatprep.subr.mxu0 0.0
    %5134 = vmatpush1.msra.mxu0 0.0
    %5135 = vmatprep.subr.mxu0 0.0
    %5136 = vmatpush1.msra.mxu0 %v5101
    %5137 = vmatprep.subr.mxu0 0.0
    %5138 = vmatpush1.msra.mxu0 %v5100
    %5139 = vmatprep.subr.mxu0 0.0
    %5140 = vmatpush2.msra.mxu0 0.0
    %5141 = vmatprep.subr.mxu0 0.0
    %5142 = vmatpush2.msra.mxu0 0.0
    %5143 = vmatprep.subr.mxu0 0.0
    %5144 = vmatpush2.msra.mxu0 0.0
    %5145 = vmatprep.subr.mxu0 0.0
    %5146 = vmatpush2.msra.mxu0 0.0
    %5147 = vmatprep.subr.mxu0 0.0
    %5148 = vmatpush2.msra.mxu0 0.0
    %5149 = vmatprep.subr.mxu0 0.0
    %5150 = vmatpush2.msra.mxu0 0.0
    %5151 = vmatprep.subr.mxu0 0.0
    %5152 = vmatpush2.msra.mxu0 0.0
    %5153 = vmatprep.subr.mxu0 0.0
    %5154 = vmatpush2.msra.mxu0 0.0
    %5155 = vmatprep.subr.mxu0 0.0
    %5156 = vmatpush2.msra.mxu0 0.0
    %5157 = vmatprep.subr.mxu0 0.0
    %5158 = vmatpush2.msra.mxu0 0.0
    %5159 = vmatprep.subr.mxu0 0.0
    %5160 = vmatpush2.msra.mxu0 0.0
    %5161 = vmatprep.subr.mxu0 0.0
    %5162 = vmatpush2.msra.mxu0 0.0
    %5163 = vmatprep.subr.mxu0 0.0
    %5164 = vmatpush2.msra.mxu0 0.0
    %5165 = vmatprep.subr.mxu0 0.0
    %5166 = vmatpush2.msra.mxu0 0.0
    %5167 = vmatprep.subr.mxu0 0.0
    %5168 = vmatpush2.msra.mxu0 0.0
    %5169 = vmatprep.subr.mxu0 0.0
    %5170 = vmatpush2.msra.mxu0 0.0
    %5171 = vmatprep.mubr.f32.mxu0 0.0
    %5172 = vmatmul.mubr.f32.gmra.mxu0 %v5105
    %v5173 = vpop.f32.mrf.mxu0
    %v5174 = vadd.f32 0.0, %v5173
    %v5175 = vpop.f32.mrf.mxu0
    %5176 = vdwg.mxu0
    %v5177 = vadd.f32 %v5099, %v5174
    %s5178 = sld [smem:[#allocation2]]
    %vm5179 = vcmp.ge.f32.partialorder %v5177, 0.0
    %v5180 = vstv %s5178
    %v5181 = vmul.f32 %v5180, %v5177
    %v5182 = vsel %vm5179, %v5177, %v5181
    %v5183 = vld [vmem:[%s14] sm:$0xff]
    %v5184 = vld [vmem:[%s14 + $0x8] sm:$0xff]
    %v5185 = vld [vmem:[%s14 + $0x10] sm:$0xff]
    %v5186 = vld [vmem:[%s14 + $0x18] sm:$0xff]
    %v5187 = vld [vmem:[%s14 + $0x20] sm:$0xff]
    %v5188 = vld [vmem:[%s14 + $0x28] sm:$0xff]
    %v5189 = vld [vmem:[%s14 + $0x30] sm:$0xff]
    %v5190 = vld [vmem:[%s14 + $0x38] sm:$0xff]
    %v5191 = vld [vmem:[%s15] sm:$0x1]
    %v5193 = vlaneseq
    %v5194 = vshrl.u32 %v5193, 7
    %v5195 = vsub.s32 0, %v5194
    %v5196 = vrot.slane %v5191, %v5195
    %vm5198 = vcmask 523264
    %v5200 = vsel %vm5198, %v5182, 0
    %5202 = vmatprep.subr.mxu0 0.0
    %5203 = vmatpush1.msra.mxu0 0.0
    %5204 = vmatprep.subr.mxu0 0.0
    %5205 = vmatpush1.msra.mxu0 0.0
    %5206 = vmatprep.subr.mxu0 0.0
    %5207 = vmatpush1.msra.mxu0 0.0
    %5208 = vmatprep.subr.mxu0 0.0
    %5209 = vmatpush1.msra.mxu0 0.0
    %5210 = vmatprep.subr.mxu0 0.0
    %5211 = vmatpush1.msra.mxu0 0.0
    %5212 = vmatprep.subr.mxu0 0.0
    %5213 = vmatpush1.msra.mxu0 0.0
    %5214 = vmatprep.subr.mxu0 0.0
    %5215 = vmatpush1.msra.mxu0 0.0
    %5216 = vmatprep.subr.mxu0 0.0
    %5217 = vmatpush1.msra.mxu0 0.0
    %5218 = vmatprep.subr.mxu0 0.0
    %5219 = vmatpush1.msra.mxu0 %v5190
    %5220 = vmatprep.subr.mxu0 0.0
    %5221 = vmatpush1.msra.mxu0 %v5189
    %5222 = vmatprep.subr.mxu0 0.0
    %5223 = vmatpush1.msra.mxu0 %v5188
    %5224 = vmatprep.subr.mxu0 0.0
    %5225 = vmatpush1.msra.mxu0 %v5187
    %5226 = vmatprep.subr.mxu0 0.0
    %5227 = vmatpush1.msra.mxu0 %v5186
    %5228 = vmatprep.subr.mxu0 0.0
    %5229 = vmatpush1.msra.mxu0 %v5185
    %5230 = vmatprep.subr.mxu0 0.0
    %5231 = vmatpush1.msra.mxu0 %v5184
    %5232 = vmatprep.subr.mxu0 0.0
    %5233 = vmatpush1.msra.mxu0 %v5183
    %5234 = vmatprep.subr.mxu0 0.0
    %5235 = vmatpush2.msra.mxu0 0.0
    %5236 = vmatprep.subr.mxu0 0.0
    %5237 = vmatpush2.msra.mxu0 0.0
    %5238 = vmatprep.subr.mxu0 0.0
    %5239 = vmatpush2.msra.mxu0 0.0
    %5240 = vmatprep.subr.mxu0 0.0
    %5241 = vmatpush2.msra.mxu0 0.0
    %5242 = vmatprep.subr.mxu0 0.0
    %5243 = vmatpush2.msra.mxu0 0.0
    %5244 = vmatprep.subr.mxu0 0.0
    %5245 = vmatpush2.msra.mxu0 0.0
    %5246 = vmatprep.subr.mxu0 0.0
    %5247 = vmatpush2.msra.mxu0 0.0
    %5248 = vmatprep.subr.mxu0 0.0
    %5249 = vmatpush2.msra.mxu0 0.0
    %5250 = vmatprep.subr.mxu0 0.0
    %5251 = vmatpush2.msra.mxu0 0.0
    %5252 = vmatprep.subr.mxu0 0.0
    %5253 = vmatpush2.msra.mxu0 0.0
    %5254 = vmatprep.subr.mxu0 0.0
    %5255 = vmatpush2.msra.mxu0 0.0
    %5256 = vmatprep.subr.mxu0 0.0
    %5257 = vmatpush2.msra.mxu0 0.0
    %5258 = vmatprep.subr.mxu0 0.0
    %5259 = vmatpush2.msra.mxu0 0.0
    %5260 = vmatprep.subr.mxu0 0.0
    %5261 = vmatpush2.msra.mxu0 0.0
    %5262 = vmatprep.subr.mxu0 0.0
    %5263 = vmatpush2.msra.mxu0 0.0
    %5264 = vmatprep.subr.mxu0 0.0
    %5265 = vmatpush2.msra.mxu0 0.0
    %5266 = vmatprep.mubr.f32.mxu0 0.0
    %5267 = vmatmul.mubr.f32.gmra.mxu0 %v5200
    %v5268 = vpop.f32.mrf.mxu0
    %v5269 = vadd.f32 %v5196, %v5268
    %v5270 = vpop.f32.mrf.mxu0
    %5271 = vdwg.mxu0
    %s5272 = sld [smem:[#allocation3]]
    %vm5273 = vcmp.ge.f32.partialorder %v5269, 0.0
    %v5274 = vstv %s5272
    %v5275 = vmul.f32 %v5274, %v5269
    %v5276 = vsel %vm5273, %v5269, %v5275
    %5277 = vst.msk [vmem:[#allocation12] sm:$0xff] %vm951, %v5276
    // Predicated region
    $region90: #{tpu_custom_call.1} parent=1 // pred_check
      _
    $region91: #{tpu_custom_call.1} parent=1 // pred_check_branch
      %5279 = sbr.rel (0) target = $region93
    $region92: #{tpu_custom_call.1} parent=1 // pred_region
      %s5281 = ssub.s32 128, 128
      %5282 = vsyncadd [#allocation6], %s5281
      %s5284 = sshll.u32 [#allocation12], 4
      %s5285 = int_to_ptr.vmem [resolvable:$true] %s5284
      %5287 = dma.vmem_to_hbm [thread:$0]  %s5285, 128, %s18, [#allocation6]
    $region93: #{tpu_custom_call.1} parent=1 // pred_fallthru
      _
    // Predicated region
    $region94: #{tpu_custom_call.1} parent=1 // pred_check
      _
    $region95: #{tpu_custom_call.1} parent=1 // pred_check_branch
      %5289 = sbr.rel (0) target = $region97
    $region96: #{tpu_custom_call.1} parent=1 // pred_region
      %5290 = dma.done [#allocation6], 128
    $region97: #{tpu_custom_call.1} parent=1 // pred_fallthru
      _
    %5291 = vsyncpa [#allocation5], 1
    %5292 = vsyncpa [#allocation8], 1
    %5293 = vsyncpa [#allocation11], 1
    %5294 = vsyncpa [#allocation6], 1

</llo_original>
